<compile_context>
chip_gen: v6e
topology: v6e:2x2x1
jax: 0.10.0
libtpu: 0.0.40
codegen_flags: <defaults>
</compile_context>

<pallas_src>
import jax
import jax.numpy as jnp
import numpy as np
from jax.experimental import pallas as pl
from jax.experimental.pallas import tpu as pltpu


# ----------------------------------------------------------------------------
# Helpers
# ----------------------------------------------------------------------------
def _round_up(x, m):
    return ((x + m - 1) // m) * m


_MAX_TB = 32  # per-step batch block; ~10 MiB VMEM incl. weights -> safe on v7x.
              # (Can be raised to 64-128 on v5e/v6e, which have 128 MiB VMEM.)


def _pick_batch_block(batch):
    """Pick (TB, padded_batch). TB is a multiple of 8 (or == batch for tiny batches)
    and gives >=4 grid steps at large batch so megacore / dual-TC stay busy."""
    if batch <= 8:
        return batch, batch
    tb = min(_MAX_TB, _round_up(max(1, batch // 4), 8))
    return tb, _round_up(batch, tb)


# ----------------------------------------------------------------------------
# The fused Pallas kernel (whole network, one batch block per grid step)
# ----------------------------------------------------------------------------
def _glenet5_kernel(x_ref, w1be_ref, w1bo_ref, b1t_ref,
                    w2be_ref, w2bo_ref, b2t_ref,
                    wfc1_ref, bfc1_ref, wfc2_ref, bfc2_ref,
                    out_ref, y1_ref):
    TB = x_ref.shape[0]
    f32 = jnp.float32
    bf16 = jnp.bfloat16

    def leaky(v):  # leaky_relu(v, 0.1) == max(v, 0.1*v)
        return jnp.maximum(v, 0.1 * v)

    # ---- conv1 (5x5, pad=2) as 5 banded matmuls over padded image rows ------
    # acc_*[b*32 + i, m*32 + c] = conv1(x)[b, i, j, c] with j = 2m (even) / 2m+1 (odd).
    # Rows 28..31 of each sample are tile-alignment garbage and never read.
    acc_e = None
    acc_o = None
    for ki in range(5):
        rows = x_ref[:, ki:ki + 32, :].reshape(TB * 32, 32)       # (TB*32, 32) bf16
        de = jnp.dot(rows, w1be_ref[ki], preferred_element_type=f32)
        do = jnp.dot(rows, w1bo_ref[ki], preferred_element_type=f32)
        acc_e = de if acc_e is None else acc_e + de
        acc_o = do if acc_o is None else acc_o + do
    # 2x2 max-pool along W == elementwise max of the two column-parity planes.
    mw = jnp.maximum(acc_e, acc_o).reshape(TB, 32, 448)
    # 2x2 max-pool along H + bias + leaky; y1[b, oh, ow*32+c] written to VMEM scratch.
    for oh in range(14):
        r = jnp.maximum(mw[:, 2 * oh, :], mw[:, 2 * oh + 1, :]) + b1t_ref[...]
        y1_ref[:, oh, :] = leaky(r).astype(bf16)
    # rows 14..19 only feed unused (alignment-garbage) conv2 rows; keep them finite.
    y1_ref[:, 14:20, :] = jnp.zeros((TB, 6, 448), bf16)

    # ---- conv2 (5x5, no pad) as 5 banded matmuls over y1 rows ---------------
    # acc2_*[b*16 + i, m*32 + co] = conv2(y1)[b, i, j, co] with j = 2m / 2m+1.
    acc2_e = None
    acc2_o = None
    for ki in range(5):
        rows = y1_ref[:, ki:ki + 16, :].reshape(TB * 16, 448)     # (TB*16, 448) bf16
        de = jnp.dot(rows, w2be_ref[ki], preferred_element_type=f32)
        do = jnp.dot(rows, w2bo_ref[ki], preferred_element_type=f32)
        acc2_e = de if acc2_e is None else acc2_e + de
        acc2_o = do if acc2_o is None else acc2_o + do
    mw2 = jnp.maximum(acc2_e, acc2_o).reshape(TB, 16, 160)

    # ---- 2x2 pool + bias + leaky, then fc1 accumulated per pooled row -------
    h = None
    for q in range(5):
        r = jnp.maximum(mw2[:, 2 * q, :], mw2[:, 2 * q + 1, :]) + b2t_ref[...]
        r = leaky(r).astype(bf16)                                  # (TB, 160)
        d = jnp.dot(r, wfc1_ref[q], preferred_element_type=f32)    # (TB, 84)
        h = d if h is None else h + d
    h = leaky(h + bfc1_ref[...]).astype(bf16)

    # ---- fc2 (weights padded to 128 lanes -> dense store) -------------------
    out_ref[...] = jnp.dot(h, wfc2_ref[...], preferred_element_type=f32) + bfc2_ref[...]


# ----------------------------------------------------------------------------
# Forward pass wrapper (single pallas_call; only layout plumbing stays in XLA)
# ----------------------------------------------------------------------------
def glenet5_forward(x, params):
    B = x.shape[0]
    assert x.shape[1:] == (1, 28, 28), x.shape
    TB, Bp = _pick_batch_block(B)

    # NCHW -> (B, 28, 28); zero-pad to the 36x32 frame the kernel consumes
    # (2 rows/cols of conv padding + 4 extra zero rows so every 5x5 row window is a
    #  tile-aligned 32-row slice); cast once to bf16 for the MXU.
    xp = jnp.pad(x.reshape(B, 28, 28),
                 ((0, Bp - B), (2, 6), (2, 2))).astype(jnp.bfloat16)   # (Bp, 36, 32)

    def full(a):
        return pl.BlockSpec(a.shape, lambda i, _nd=a.ndim: (0,) * _nd)

    wkeys = ("w1be", "w1bo", "b1t", "w2be", "w2bo", "b2t",
             "wfc1", "bfc1", "wfc2", "bfc2")
    wbytes = sum(int(np.prod(params[k].shape)) * params[k].dtype.itemsize for k in wkeys)
    cost = pl.CostEstimate(
        flops=int(Bp * (2 * 5 * 32 * 32 * 896 + 2 * 5 * 16 * 448 * 320
                        + 2 * 5 * 160 * 84 + 2 * 84 * 128)),
        transcendentals=0,
        bytes_accessed=int(Bp * (36 * 32 * 2 + 128 * 4) + wbytes),
    )

    out = pl.pallas_call(
        _glenet5_kernel,
        out_shape=jax.ShapeDtypeStruct((Bp, 128), jnp.float32),
        grid=(Bp // TB,),
        in_specs=[pl.BlockSpec((TB, 36, 32), lambda i: (i, 0, 0))]
                 + [full(params[k]) for k in wkeys],
        out_specs=pl.BlockSpec((TB, 128), lambda i: (i, 0)),
        scratch_shapes=[pltpu.VMEM((TB, 20, 448), jnp.bfloat16)],   # pooled conv1 act.
        compiler_params=pltpu.CompilerParams(
            dimension_semantics=("parallel",),
            vmem_limit_bytes=32 * 1024 * 1024),
        cost_estimate=cost,
    )(xp, *[params[k] for k in wkeys])

    return out[:B, :10]


# ----------------------------------------------------------------------------
# Parameters: kaiming-normal (a=0.1), bias 0.01; pre-transformed ONCE at init
# into kernel-ready banded / permuted / bf16 layouts (nothing in the hot path).
# ----------------------------------------------------------------------------
def _kaiming_normal(key, shape, fan_in, a=0.1):
    gain = (2.0 / (1.0 + a * a)) ** 0.5
    std = gain / (fan_in ** 0.5)
    return std * jax.random.normal(key, shape, dtype=jnp.float32)


def init_params(seed=0):
    keys = jax.random.split(jax.random.PRNGKey(seed), 4)
    conv1_w = _kaiming_normal(keys[0], (32, 1, 5, 5), fan_in=1 * 5 * 5)
    conv2_w = _kaiming_normal(keys[1], (32, 32, 5, 5), fan_in=32 * 5 * 5)
    fc1_w = _kaiming_normal(keys[2], (84, 32 * 5 * 5), fan_in=32 * 5 * 5)
    fc2_w = _kaiming_normal(keys[3], (10, 84), fan_in=84)
    bias = 0.01

    # conv1 band matrices: B1e/o[ki][w, m*32+c] = W1[c,0,ki, w - j] for j = 2m / 2m+1.
    w1 = np.asarray(conv1_w)[:, 0]                       # (co, ki, kj)
    w1be = np.zeros((5, 32, 14 * 32), np.float32)
    w1bo = np.zeros((5, 32, 14 * 32), np.float32)
    for ki in range(5):
        for m in range(14):
            for kj in range(5):
                w1be[ki, 2 * m + kj,     m * 32:(m + 1) * 32] = w1[:, ki, kj]
                w1bo[ki, 2 * m + 1 + kj, m * 32:(m + 1) * 32] = w1[:, ki, kj]

    # conv2 band matrices: B2e/o[ki][w*32+ci, m*32+co] = W2[co,ci,ki, w - j], j = 2m / 2m+1.
    w2 = np.asarray(conv2_w)                             # (co, ci, ki, kj)
    w2be = np.zeros((5, 14 * 32, 5 * 32), np.float32)
    w2bo = np.zeros((5, 14 * 32, 5 * 32), np.float32)
    for ki in range(5):
        for m in range(5):
            for kj in range(5):
                blk = w2[:, :, ki, kj].T                 # (ci, co)
                ce, co_ = 2 * m + kj, 2 * m + 1 + kj
                w2be[ki, ce * 32:(ce + 1) * 32,  m * 32:(m + 1) * 32] = blk
                w2bo[ki, co_ * 32:(co_ + 1) * 32, m * 32:(m + 1) * 32] = blk

    # fc1 split into 5 per-pooled-row chunks; handles the NCHW (c, h, w) flatten so
    # the kernel needs no activation transpose:  wfc1[q][m*32+co, o] = W[o, co*25+q*5+m].
    wf1 = np.asarray(fc1_w)                              # (84, 800)
    wfc1 = np.zeros((5, 160, 84), np.float32)
    for q in range(5):
        for m in range(5):
            for co in range(32):
                wfc1[q, m * 32 + co, :] = wf1[:, co * 25 + q * 5 + m]

    # fc2 padded to 128 output lanes (dense store; sliced back to 10 outside).
    wfc2 = np.zeros((84, 128), np.float32)
    wfc2[:, :10] = np.asarray(fc2_w).T
    bfc2 = np.zeros((1, 128), np.float32)
    bfc2[:, :10] = bias

    bf16 = jnp.bfloat16
    params = {
        "w1be": jnp.asarray(w1be, bf16), "w1bo": jnp.asarray(w1bo, bf16),
        "b1t": jnp.full((1, 448), bias, jnp.float32),
        "w2be": jnp.asarray(w2be, bf16), "w2bo": jnp.asarray(w2bo, bf16),
        "b2t": jnp.full((1, 160), bias, jnp.float32),
        "wfc1": jnp.asarray(wfc1, bf16),
        "bfc1": jnp.full((1, 84), bias, jnp.float32),
        "wfc2": jnp.asarray(wfc2, bf16),
        "bfc2": jnp.asarray(bfc2),
    }
    raw = {"conv1_w": conv1_w, "conv2_w": conv2_w, "fc1_w": fc1_w, "fc2_w": fc2_w,
           "bias": bias}
    return params, raw


# ----------------------------------------------------------------------------
# Pure-JAX reference (mirrors the kernel's bf16 operand rounding) for validation
# ----------------------------------------------------------------------------
def reference_forward(x, raw):
    hi = jax.lax.Precision.HIGHEST
    q = lambda a: a.astype(jnp.bfloat16).astype(jnp.float32)
    b = raw["bias"]

    y = jax.lax.conv_general_dilated(q(x), q(raw["conv1_w"]), (1, 1), ((2, 2), (2, 2)),
                                     dimension_numbers=("NCHW", "OIHW", "NCHW"),
                                     precision=hi) + b
    y = jnp.where(y > 0, y, 0.1 * y)
    y = jax.lax.reduce_window(y, -jnp.inf, jax.lax.max, (1, 1, 2, 2), (1, 1, 2, 2), "VALID")
    y = jax.lax.conv_general_dilated(q(y), q(raw["conv2_w"]), (1, 1), ((0, 0), (0, 0)),
                                     dimension_numbers=("NCHW", "OIHW", "NCHW"),
                                     precision=hi) + b
    y = jnp.where(y > 0, y, 0.1 * y)
    y = jax.lax.reduce_window(y, -jnp.inf, jax.lax.max, (1, 1, 2, 2), (1, 1, 2, 2), "VALID")
    flat = y.reshape(y.shape[0], 32 * 5 * 5)
    h = jnp.dot(q(flat), q(raw["fc1_w"]).T, precision=hi) + b
    h = jnp.where(h > 0, h, 0.1 * h)
    return jnp.dot(q(h), q(raw["fc2_w"]).T, precision=hi) + b


if __name__ == "__main__":
    key = jax.random.PRNGKey(0)
    x = jax.random.normal(key, (2, 1, 28, 28), dtype=jnp.float32)

    params, raw = init_params(seed=0)

    fwd = jax.jit(glenet5_forward)
    out = jax.block_until_ready(fwd(x, params))

    assert out.shape == (2, 10), out.shape
    assert out.dtype == jnp.float32

    ref = reference_forward(x, raw)
    err = float(jnp.max(jnp.abs(out - ref)))
    assert err < 5e-2, f"max abs error vs reference: {err}"

    print("KERNEL_OK")
</pallas_src>

<mosaic_0001>
module attributes {stable_mosaic.version = 11 : i64} {
  func.func @_glenet5_kernel(%arg0: i32, %arg1: memref<2x36x32xbf16, #tpu.memory_space<vmem>>, %arg2: memref<5x32x448xbf16, #tpu.memory_space<vmem>>, %arg3: memref<5x32x448xbf16, #tpu.memory_space<vmem>>, %arg4: memref<1x448xf32, #tpu.memory_space<vmem>>, %arg5: memref<5x448x160xbf16, #tpu.memory_space<vmem>>, %arg6: memref<5x448x160xbf16, #tpu.memory_space<vmem>>, %arg7: memref<1x160xf32, #tpu.memory_space<vmem>>, %arg8: memref<5x160x84xbf16, #tpu.memory_space<vmem>>, %arg9: memref<1x84xf32, #tpu.memory_space<vmem>>, %arg10: memref<84x128xbf16, #tpu.memory_space<vmem>>, %arg11: memref<1x128xf32, #tpu.memory_space<vmem>>, %arg12: memref<2x128xf32, #tpu.memory_space<vmem>>, %arg13: memref<2x20x448xbf16, #tpu.memory_space<vmem>>) attributes {dimension_semantics = [#tpu.dimension_semantics<parallel>], iteration_bounds = array<i64: 1>, scalar_prefetch = 0 : i64, scratch_operands = 1 : i64, tpu.core_type = #tpu.core_type<tc>, window_params = [{transform_indices = @transform_0, window_bounds = array<i64: 2, 36, 32>}, {pipeline_mode = #tpu.pipeline_mode<synchronous>, transform_indices = @transform_1, window_bounds = array<i64: 5, 32, 448>}, {pipeline_mode = #tpu.pipeline_mode<synchronous>, transform_indices = @transform_2, window_bounds = array<i64: 5, 32, 448>}, {pipeline_mode = #tpu.pipeline_mode<synchronous>, transform_indices = @transform_3, window_bounds = array<i64: 1, 448>}, {pipeline_mode = #tpu.pipeline_mode<synchronous>, transform_indices = @transform_4, window_bounds = array<i64: 5, 448, 160>}, {pipeline_mode = #tpu.pipeline_mode<synchronous>, transform_indices = @transform_5, window_bounds = array<i64: 5, 448, 160>}, {pipeline_mode = #tpu.pipeline_mode<synchronous>, transform_indices = @transform_6, window_bounds = array<i64: 1, 160>}, {pipeline_mode = #tpu.pipeline_mode<synchronous>, transform_indices = @transform_7, window_bounds = array<i64: 5, 160, 84>}, {pipeline_mode = #tpu.pipeline_mode<synchronous>, transform_indices = @transform_8, window_bounds = array<i64: 1, 84>}, {pipeline_mode = #tpu.pipeline_mode<synchronous>, transform_indices = @transform_9, window_bounds = array<i64: 84, 128>}, {pipeline_mode = #tpu.pipeline_mode<synchronous>, transform_indices = @transform_10, window_bounds = array<i64: 1, 128>}, {transform_indices = @transform_11, window_bounds = array<i64: 2, 128>}]} {
    %c0 = arith.constant 0 : index
    %c0_0 = arith.constant 0 : index
    %c0_1 = arith.constant 0 : index
    %0 = vector.load %arg1[%c0, %c0_0, %c0_1] : memref<2x36x32xbf16, #tpu.memory_space<vmem>>, vector<2x32x32xbf16>
    %1 = vector.shape_cast %0 : vector<2x32x32xbf16> to vector<64x32xbf16>
    %c0_2 = arith.constant 0 : index
    %c0_3 = arith.constant 0 : index
    %c0_4 = arith.constant 0 : index
    %2 = vector.load %arg2[%c0_2, %c0_3, %c0_4] : memref<5x32x448xbf16, #tpu.memory_space<vmem>>, vector<1x32x448xbf16>
    %3 = vector.shape_cast %2 : vector<1x32x448xbf16> to vector<32x448xbf16>
    %cst = arith.constant dense<0.000000e+00> : vector<64x448xf32>
    %4 = tpu.matmul %1, %3, %cst {dimension_numbers = #tpu.dot_dimension_numbers<[1], [0], [0], [1], [0, 0, 1, 1], [], []>} : vector<64x32xbf16>, vector<32x448xbf16>, vector<64x448xf32> -> vector<64x448xf32>
    %c0_5 = arith.constant 0 : index
    %c0_6 = arith.constant 0 : index
    %c0_7 = arith.constant 0 : index
    %5 = vector.load %arg3[%c0_5, %c0_6, %c0_7] : memref<5x32x448xbf16, #tpu.memory_space<vmem>>, vector<1x32x448xbf16>
    %6 = vector.shape_cast %5 : vector<1x32x448xbf16> to vector<32x448xbf16>
    %cst_8 = arith.constant dense<0.000000e+00> : vector<64x448xf32>
    %7 = tpu.matmul %1, %6, %cst_8 {dimension_numbers = #tpu.dot_dimension_numbers<[1], [0], [0], [1], [0, 0, 1, 1], [], []>} : vector<64x32xbf16>, vector<32x448xbf16>, vector<64x448xf32> -> vector<64x448xf32>
    %c0_9 = arith.constant 0 : index
    %c1 = arith.constant 1 : index
    %c0_10 = arith.constant 0 : index
    %8 = vector.load %arg1[%c0_9, %c1, %c0_10] : memref<2x36x32xbf16, #tpu.memory_space<vmem>>, vector<2x32x32xbf16>
    %9 = vector.shape_cast %8 : vector<2x32x32xbf16> to vector<64x32xbf16>
    %c1_11 = arith.constant 1 : index
    %c0_12 = arith.constant 0 : index
    %c0_13 = arith.constant 0 : index
    %10 = vector.load %arg2[%c1_11, %c0_12, %c0_13] : memref<5x32x448xbf16, #tpu.memory_space<vmem>>, vector<1x32x448xbf16>
    %11 = vector.shape_cast %10 : vector<1x32x448xbf16> to vector<32x448xbf16>
    %cst_14 = arith.constant dense<0.000000e+00> : vector<64x448xf32>
    %12 = tpu.matmul %9, %11, %cst_14 {dimension_numbers = #tpu.dot_dimension_numbers<[1], [0], [0], [1], [0, 0, 1, 1], [], []>} : vector<64x32xbf16>, vector<32x448xbf16>, vector<64x448xf32> -> vector<64x448xf32>
    %c1_15 = arith.constant 1 : index
    %c0_16 = arith.constant 0 : index
    %c0_17 = arith.constant 0 : index
    %13 = vector.load %arg3[%c1_15, %c0_16, %c0_17] : memref<5x32x448xbf16, #tpu.memory_space<vmem>>, vector<1x32x448xbf16>
    %14 = vector.shape_cast %13 : vector<1x32x448xbf16> to vector<32x448xbf16>
    %cst_18 = arith.constant dense<0.000000e+00> : vector<64x448xf32>
    %15 = tpu.matmul %9, %14, %cst_18 {dimension_numbers = #tpu.dot_dimension_numbers<[1], [0], [0], [1], [0, 0, 1, 1], [], []>} : vector<64x32xbf16>, vector<32x448xbf16>, vector<64x448xf32> -> vector<64x448xf32>
    %16 = arith.addf %4, %12 : vector<64x448xf32>
    %17 = arith.addf %7, %15 : vector<64x448xf32>
    %c0_19 = arith.constant 0 : index
    %c2 = arith.constant 2 : index
    %c0_20 = arith.constant 0 : index
    %18 = vector.load %arg1[%c0_19, %c2, %c0_20] : memref<2x36x32xbf16, #tpu.memory_space<vmem>>, vector<2x32x32xbf16>
    %19 = vector.shape_cast %18 : vector<2x32x32xbf16> to vector<64x32xbf16>
    %c2_21 = arith.constant 2 : index
    %c0_22 = arith.constant 0 : index
    %c0_23 = arith.constant 0 : index
    %20 = vector.load %arg2[%c2_21, %c0_22, %c0_23] : memref<5x32x448xbf16, #tpu.memory_space<vmem>>, vector<1x32x448xbf16>
    %21 = vector.shape_cast %20 : vector<1x32x448xbf16> to vector<32x448xbf16>
    %cst_24 = arith.constant dense<0.000000e+00> : vector<64x448xf32>
    %22 = tpu.matmul %19, %21, %cst_24 {dimension_numbers = #tpu.dot_dimension_numbers<[1], [0], [0], [1], [0, 0, 1, 1], [], []>} : vector<64x32xbf16>, vector<32x448xbf16>, vector<64x448xf32> -> vector<64x448xf32>
    %c2_25 = arith.constant 2 : index
    %c0_26 = arith.constant 0 : index
    %c0_27 = arith.constant 0 : index
    %23 = vector.load %arg3[%c2_25, %c0_26, %c0_27] : memref<5x32x448xbf16, #tpu.memory_space<vmem>>, vector<1x32x448xbf16>
    %24 = vector.shape_cast %23 : vector<1x32x448xbf16> to vector<32x448xbf16>
    %cst_28 = arith.constant dense<0.000000e+00> : vector<64x448xf32>
    %25 = tpu.matmul %19, %24, %cst_28 {dimension_numbers = #tpu.dot_dimension_numbers<[1], [0], [0], [1], [0, 0, 1, 1], [], []>} : vector<64x32xbf16>, vector<32x448xbf16>, vector<64x448xf32> -> vector<64x448xf32>
    %26 = arith.addf %16, %22 : vector<64x448xf32>
    %27 = arith.addf %17, %25 : vector<64x448xf32>
    %c0_29 = arith.constant 0 : index
    %c3 = arith.constant 3 : index
    %c0_30 = arith.constant 0 : index
    %28 = vector.load %arg1[%c0_29, %c3, %c0_30] : memref<2x36x32xbf16, #tpu.memory_space<vmem>>, vector<2x32x32xbf16>
    %29 = vector.shape_cast %28 : vector<2x32x32xbf16> to vector<64x32xbf16>
    %c3_31 = arith.constant 3 : index
    %c0_32 = arith.constant 0 : index
    %c0_33 = arith.constant 0 : index
    %30 = vector.load %arg2[%c3_31, %c0_32, %c0_33] : memref<5x32x448xbf16, #tpu.memory_space<vmem>>, vector<1x32x448xbf16>
    %31 = vector.shape_cast %30 : vector<1x32x448xbf16> to vector<32x448xbf16>
    %cst_34 = arith.constant dense<0.000000e+00> : vector<64x448xf32>
    %32 = tpu.matmul %29, %31, %cst_34 {dimension_numbers = #tpu.dot_dimension_numbers<[1], [0], [0], [1], [0, 0, 1, 1], [], []>} : vector<64x32xbf16>, vector<32x448xbf16>, vector<64x448xf32> -> vector<64x448xf32>
    %c3_35 = arith.constant 3 : index
    %c0_36 = arith.constant 0 : index
    %c0_37 = arith.constant 0 : index
    %33 = vector.load %arg3[%c3_35, %c0_36, %c0_37] : memref<5x32x448xbf16, #tpu.memory_space<vmem>>, vector<1x32x448xbf16>
    %34 = vector.shape_cast %33 : vector<1x32x448xbf16> to vector<32x448xbf16>
    %cst_38 = arith.constant dense<0.000000e+00> : vector<64x448xf32>
    %35 = tpu.matmul %29, %34, %cst_38 {dimension_numbers = #tpu.dot_dimension_numbers<[1], [0], [0], [1], [0, 0, 1, 1], [], []>} : vector<64x32xbf16>, vector<32x448xbf16>, vector<64x448xf32> -> vector<64x448xf32>
    %36 = arith.addf %26, %32 : vector<64x448xf32>
    %37 = arith.addf %27, %35 : vector<64x448xf32>
    %c0_39 = arith.constant 0 : index
    %c4 = arith.constant 4 : index
    %c0_40 = arith.constant 0 : index
    %38 = vector.load %arg1[%c0_39, %c4, %c0_40] : memref<2x36x32xbf16, #tpu.memory_space<vmem>>, vector<2x32x32xbf16>
    %39 = vector.shape_cast %38 : vector<2x32x32xbf16> to vector<64x32xbf16>
    %c4_41 = arith.constant 4 : index
    %c0_42 = arith.constant 0 : index
    %c0_43 = arith.constant 0 : index
    %40 = vector.load %arg2[%c4_41, %c0_42, %c0_43] : memref<5x32x448xbf16, #tpu.memory_space<vmem>>, vector<1x32x448xbf16>
    %41 = vector.shape_cast %40 : vector<1x32x448xbf16> to vector<32x448xbf16>
    %cst_44 = arith.constant dense<0.000000e+00> : vector<64x448xf32>
    %42 = tpu.matmul %39, %41, %cst_44 {dimension_numbers = #tpu.dot_dimension_numbers<[1], [0], [0], [1], [0, 0, 1, 1], [], []>} : vector<64x32xbf16>, vector<32x448xbf16>, vector<64x448xf32> -> vector<64x448xf32>
    %c4_45 = arith.constant 4 : index
    %c0_46 = arith.constant 0 : index
    %c0_47 = arith.constant 0 : index
    %43 = vector.load %arg3[%c4_45, %c0_46, %c0_47] : memref<5x32x448xbf16, #tpu.memory_space<vmem>>, vector<1x32x448xbf16>
    %44 = vector.shape_cast %43 : vector<1x32x448xbf16> to vector<32x448xbf16>
    %cst_48 = arith.constant dense<0.000000e+00> : vector<64x448xf32>
    %45 = tpu.matmul %39, %44, %cst_48 {dimension_numbers = #tpu.dot_dimension_numbers<[1], [0], [0], [1], [0, 0, 1, 1], [], []>} : vector<64x32xbf16>, vector<32x448xbf16>, vector<64x448xf32> -> vector<64x448xf32>
    %46 = arith.addf %36, %42 : vector<64x448xf32>
    %47 = arith.addf %37, %45 : vector<64x448xf32>
    %48 = arith.maximumf %46, %47 : vector<64x448xf32>
    %49 = vector.shape_cast %48 : vector<64x448xf32> to vector<2x32x448xf32>
    %50 = vector.extract_strided_slice %49 {offsets = [0, 0, 0], sizes = [2, 1, 448], strides = [1, 1, 1]} : vector<2x32x448xf32> to vector<2x1x448xf32>
    %51 = vector.shape_cast %50 : vector<2x1x448xf32> to vector<2x448xf32>
    %52 = vector.extract_strided_slice %49 {offsets = [0, 1, 0], sizes = [2, 1, 448], strides = [1, 1, 1]} : vector<2x32x448xf32> to vector<2x1x448xf32>
    %53 = vector.shape_cast %52 : vector<2x1x448xf32> to vector<2x448xf32>
    %54 = arith.maximumf %51, %53 : vector<2x448xf32>
    %c0_49 = arith.constant 0 : index
    %c0_50 = arith.constant 0 : index
    %55 = vector.load %arg4[%c0_49, %c0_50] : memref<1x448xf32, #tpu.memory_space<vmem>>, vector<1x448xf32>
    %56 = vector.broadcast %55 : vector<1x448xf32> to vector<2x448xf32>
    %57 = arith.addf %54, %56 : vector<2x448xf32>
    %cst_51 = arith.constant 1.000000e-01 : f32
    %58 = vector.broadcast %cst_51 : f32 to vector<2x448xf32>
    %59 = arith.mulf %58, %57 : vector<2x448xf32>
    %60 = arith.maximumf %57, %59 : vector<2x448xf32>
    %61 = arith.truncf %60 : vector<2x448xf32> to vector<2x448xbf16>
    %c0_52 = arith.constant 0 : index
    %c0_53 = arith.constant 0 : index
    %c0_54 = arith.constant 0 : index
    %62 = vector.load %arg13[%c0_52, %c0_53, %c0_54] : memref<2x20x448xbf16, #tpu.memory_space<vmem>>, vector<2x1x448xbf16>
    %63 = vector.shape_cast %62 : vector<2x1x448xbf16> to vector<2x448xbf16>
    %64 = vector.shape_cast %61 : vector<2x448xbf16> to vector<2x1x448xbf16>
    tpu.vector_store %arg13[%c0_52, %c0_53, %c0_54], %64 {strides = array<i32>} : memref<2x20x448xbf16, #tpu.memory_space<vmem>>, vector<2x1x448xbf16>,
    %65 = vector.extract_strided_slice %49 {offsets = [0, 2, 0], sizes = [2, 1, 448], strides = [1, 1, 1]} : vector<2x32x448xf32> to vector<2x1x448xf32>
    %66 = vector.shape_cast %65 : vector<2x1x448xf32> to vector<2x448xf32>
    %67 = vector.extract_strided_slice %49 {offsets = [0, 3, 0], sizes = [2, 1, 448], strides = [1, 1, 1]} : vector<2x32x448xf32> to vector<2x1x448xf32>
    %68 = vector.shape_cast %67 : vector<2x1x448xf32> to vector<2x448xf32>
    %69 = arith.maximumf %66, %68 : vector<2x448xf32>
    %c0_55 = arith.constant 0 : index
    %c0_56 = arith.constant 0 : index
    %70 = vector.load %arg4[%c0_55, %c0_56] : memref<1x448xf32, #tpu.memory_space<vmem>>, vector<1x448xf32>
    %71 = vector.broadcast %70 : vector<1x448xf32> to vector<2x448xf32>
    %72 = arith.addf %69, %71 : vector<2x448xf32>
    %cst_57 = arith.constant 1.000000e-01 : f32
    %73 = vector.broadcast %cst_57 : f32 to vector<2x448xf32>
    %74 = arith.mulf %73, %72 : vector<2x448xf32>
    %75 = arith.maximumf %72, %74 : vector<2x448xf32>
    %76 = arith.truncf %75 : vector<2x448xf32> to vector<2x448xbf16>
    %c0_58 = arith.constant 0 : index
    %c1_59 = arith.constant 1 : index
    %c0_60 = arith.constant 0 : index
    %77 = vector.load %arg13[%c0_58, %c1_59, %c0_60] : memref<2x20x448xbf16, #tpu.memory_space<vmem>>, vector<2x1x448xbf16>
    %78 = vector.shape_cast %77 : vector<2x1x448xbf16> to vector<2x448xbf16>
    %79 = vector.shape_cast %76 : vector<2x448xbf16> to vector<2x1x448xbf16>
    tpu.vector_store %arg13[%c0_58, %c1_59, %c0_60], %79 {strides = array<i32>} : memref<2x20x448xbf16, #tpu.memory_space<vmem>>, vector<2x1x448xbf16>,
    %80 = vector.extract_strided_slice %49 {offsets = [0, 4, 0], sizes = [2, 1, 448], strides = [1, 1, 1]} : vector<2x32x448xf32> to vector<2x1x448xf32>
    %81 = vector.shape_cast %80 : vector<2x1x448xf32> to vector<2x448xf32>
    %82 = vector.extract_strided_slice %49 {offsets = [0, 5, 0], sizes = [2, 1, 448], strides = [1, 1, 1]} : vector<2x32x448xf32> to vector<2x1x448xf32>
    %83 = vector.shape_cast %82 : vector<2x1x448xf32> to vector<2x448xf32>
    %84 = arith.maximumf %81, %83 : vector<2x448xf32>
    %c0_61 = arith.constant 0 : index
    %c0_62 = arith.constant 0 : index
    %85 = vector.load %arg4[%c0_61, %c0_62] : memref<1x448xf32, #tpu.memory_space<vmem>>, vector<1x448xf32>
    %86 = vector.broadcast %85 : vector<1x448xf32> to vector<2x448xf32>
    %87 = arith.addf %84, %86 : vector<2x448xf32>
    %cst_63 = arith.constant 1.000000e-01 : f32
    %88 = vector.broadcast %cst_63 : f32 to vector<2x448xf32>
    %89 = arith.mulf %88, %87 : vector<2x448xf32>
    %90 = arith.maximumf %87, %89 : vector<2x448xf32>
    %91 = arith.truncf %90 : vector<2x448xf32> to vector<2x448xbf16>
    %c0_64 = arith.constant 0 : index
    %c2_65 = arith.constant 2 : index
    %c0_66 = arith.constant 0 : index
    %92 = vector.load %arg13[%c0_64, %c2_65, %c0_66] : memref<2x20x448xbf16, #tpu.memory_space<vmem>>, vector<2x1x448xbf16>
    %93 = vector.shape_cast %92 : vector<2x1x448xbf16> to vector<2x448xbf16>
    %94 = vector.shape_cast %91 : vector<2x448xbf16> to vector<2x1x448xbf16>
    tpu.vector_store %arg13[%c0_64, %c2_65, %c0_66], %94 {strides = array<i32>} : memref<2x20x448xbf16, #tpu.memory_space<vmem>>, vector<2x1x448xbf16>,
    %95 = vector.extract_strided_slice %49 {offsets = [0, 6, 0], sizes = [2, 1, 448], strides = [1, 1, 1]} : vector<2x32x448xf32> to vector<2x1x448xf32>
    %96 = vector.shape_cast %95 : vector<2x1x448xf32> to vector<2x448xf32>
    %97 = vector.extract_strided_slice %49 {offsets = [0, 7, 0], sizes = [2, 1, 448], strides = [1, 1, 1]} : vector<2x32x448xf32> to vector<2x1x448xf32>
    %98 = vector.shape_cast %97 : vector<2x1x448xf32> to vector<2x448xf32>
    %99 = arith.maximumf %96, %98 : vector<2x448xf32>
    %c0_67 = arith.constant 0 : index
    %c0_68 = arith.constant 0 : index
    %100 = vector.load %arg4[%c0_67, %c0_68] : memref<1x448xf32, #tpu.memory_space<vmem>>, vector<1x448xf32>
    %101 = vector.broadcast %100 : vector<1x448xf32> to vector<2x448xf32>
    %102 = arith.addf %99, %101 : vector<2x448xf32>
    %cst_69 = arith.constant 1.000000e-01 : f32
    %103 = vector.broadcast %cst_69 : f32 to vector<2x448xf32>
    %104 = arith.mulf %103, %102 : vector<2x448xf32>
    %105 = arith.maximumf %102, %104 : vector<2x448xf32>
    %106 = arith.truncf %105 : vector<2x448xf32> to vector<2x448xbf16>
    %c0_70 = arith.constant 0 : index
    %c3_71 = arith.constant 3 : index
    %c0_72 = arith.constant 0 : index
    %107 = vector.load %arg13[%c0_70, %c3_71, %c0_72] : memref<2x20x448xbf16, #tpu.memory_space<vmem>>, vector<2x1x448xbf16>
    %108 = vector.shape_cast %107 : vector<2x1x448xbf16> to vector<2x448xbf16>
    %109 = vector.shape_cast %106 : vector<2x448xbf16> to vector<2x1x448xbf16>
    tpu.vector_store %arg13[%c0_70, %c3_71, %c0_72], %109 {strides = array<i32>} : memref<2x20x448xbf16, #tpu.memory_space<vmem>>, vector<2x1x448xbf16>,
    %110 = vector.extract_strided_slice %49 {offsets = [0, 8, 0], sizes = [2, 1, 448], strides = [1, 1, 1]} : vector<2x32x448xf32> to vector<2x1x448xf32>
    %111 = vector.shape_cast %110 : vector<2x1x448xf32> to vector<2x448xf32>
    %112 = vector.extract_strided_slice %49 {offsets = [0, 9, 0], sizes = [2, 1, 448], strides = [1, 1, 1]} : vector<2x32x448xf32> to vector<2x1x448xf32>
    %113 = vector.shape_cast %112 : vector<2x1x448xf32> to vector<2x448xf32>
    %114 = arith.maximumf %111, %113 : vector<2x448xf32>
    %c0_73 = arith.constant 0 : index
    %c0_74 = arith.constant 0 : index
    %115 = vector.load %arg4[%c0_73, %c0_74] : memref<1x448xf32, #tpu.memory_space<vmem>>, vector<1x448xf32>
    %116 = vector.broadcast %115 : vector<1x448xf32> to vector<2x448xf32>
    %117 = arith.addf %114, %116 : vector<2x448xf32>
    %cst_75 = arith.constant 1.000000e-01 : f32
    %118 = vector.broadcast %cst_75 : f32 to vector<2x448xf32>
    %119 = arith.mulf %118, %117 : vector<2x448xf32>
    %120 = arith.maximumf %117, %119 : vector<2x448xf32>
    %121 = arith.truncf %120 : vector<2x448xf32> to vector<2x448xbf16>
    %c0_76 = arith.constant 0 : index
    %c4_77 = arith.constant 4 : index
    %c0_78 = arith.constant 0 : index
    %122 = vector.load %arg13[%c0_76, %c4_77, %c0_78] : memref<2x20x448xbf16, #tpu.memory_space<vmem>>, vector<2x1x448xbf16>
    %123 = vector.shape_cast %122 : vector<2x1x448xbf16> to vector<2x448xbf16>
    %124 = vector.shape_cast %121 : vector<2x448xbf16> to vector<2x1x448xbf16>
    tpu.vector_store %arg13[%c0_76, %c4_77, %c0_78], %124 {strides = array<i32>} : memref<2x20x448xbf16, #tpu.memory_space<vmem>>, vector<2x1x448xbf16>,
    %125 = vector.extract_strided_slice %49 {offsets = [0, 10, 0], sizes = [2, 1, 448], strides = [1, 1, 1]} : vector<2x32x448xf32> to vector<2x1x448xf32>
    %126 = vector.shape_cast %125 : vector<2x1x448xf32> to vector<2x448xf32>
    %127 = vector.extract_strided_slice %49 {offsets = [0, 11, 0], sizes = [2, 1, 448], strides = [1, 1, 1]} : vector<2x32x448xf32> to vector<2x1x448xf32>
    %128 = vector.shape_cast %127 : vector<2x1x448xf32> to vector<2x448xf32>
    %129 = arith.maximumf %126, %128 : vector<2x448xf32>
    %c0_79 = arith.constant 0 : index
    %c0_80 = arith.constant 0 : index
    %130 = vector.load %arg4[%c0_79, %c0_80] : memref<1x448xf32, #tpu.memory_space<vmem>>, vector<1x448xf32>
    %131 = vector.broadcast %130 : vector<1x448xf32> to vector<2x448xf32>
    %132 = arith.addf %129, %131 : vector<2x448xf32>
    %cst_81 = arith.constant 1.000000e-01 : f32
    %133 = vector.broadcast %cst_81 : f32 to vector<2x448xf32>
    %134 = arith.mulf %133, %132 : vector<2x448xf32>
    %135 = arith.maximumf %132, %134 : vector<2x448xf32>
    %136 = arith.truncf %135 : vector<2x448xf32> to vector<2x448xbf16>
    %c0_82 = arith.constant 0 : index
    %c5 = arith.constant 5 : index
    %c0_83 = arith.constant 0 : index
    %137 = vector.load %arg13[%c0_82, %c5, %c0_83] : memref<2x20x448xbf16, #tpu.memory_space<vmem>>, vector<2x1x448xbf16>
    %138 = vector.shape_cast %137 : vector<2x1x448xbf16> to vector<2x448xbf16>
    %139 = vector.shape_cast %136 : vector<2x448xbf16> to vector<2x1x448xbf16>
    tpu.vector_store %arg13[%c0_82, %c5, %c0_83], %139 {strides = array<i32>} : memref<2x20x448xbf16, #tpu.memory_space<vmem>>, vector<2x1x448xbf16>,
    %140 = vector.extract_strided_slice %49 {offsets = [0, 12, 0], sizes = [2, 1, 448], strides = [1, 1, 1]} : vector<2x32x448xf32> to vector<2x1x448xf32>
    %141 = vector.shape_cast %140 : vector<2x1x448xf32> to vector<2x448xf32>
    %142 = vector.extract_strided_slice %49 {offsets = [0, 13, 0], sizes = [2, 1, 448], strides = [1, 1, 1]} : vector<2x32x448xf32> to vector<2x1x448xf32>
    %143 = vector.shape_cast %142 : vector<2x1x448xf32> to vector<2x448xf32>
    %144 = arith.maximumf %141, %143 : vector<2x448xf32>
    %c0_84 = arith.constant 0 : index
    %c0_85 = arith.constant 0 : index
    %145 = vector.load %arg4[%c0_84, %c0_85] : memref<1x448xf32, #tpu.memory_space<vmem>>, vector<1x448xf32>
    %146 = vector.broadcast %145 : vector<1x448xf32> to vector<2x448xf32>
    %147 = arith.addf %144, %146 : vector<2x448xf32>
    %cst_86 = arith.constant 1.000000e-01 : f32
    %148 = vector.broadcast %cst_86 : f32 to vector<2x448xf32>
    %149 = arith.mulf %148, %147 : vector<2x448xf32>
    %150 = arith.maximumf %147, %149 : vector<2x448xf32>
    %151 = arith.truncf %150 : vector<2x448xf32> to vector<2x448xbf16>
    %c0_87 = arith.constant 0 : index
    %c6 = arith.constant 6 : index
    %c0_88 = arith.constant 0 : index
    %152 = vector.load %arg13[%c0_87, %c6, %c0_88] : memref<2x20x448xbf16, #tpu.memory_space<vmem>>, vector<2x1x448xbf16>
    %153 = vector.shape_cast %152 : vector<2x1x448xbf16> to vector<2x448xbf16>
    %154 = vector.shape_cast %151 : vector<2x448xbf16> to vector<2x1x448xbf16>
    tpu.vector_store %arg13[%c0_87, %c6, %c0_88], %154 {strides = array<i32>} : memref<2x20x448xbf16, #tpu.memory_space<vmem>>, vector<2x1x448xbf16>,
    %155 = vector.extract_strided_slice %49 {offsets = [0, 14, 0], sizes = [2, 1, 448], strides = [1, 1, 1]} : vector<2x32x448xf32> to vector<2x1x448xf32>
    %156 = vector.shape_cast %155 : vector<2x1x448xf32> to vector<2x448xf32>
    %157 = vector.extract_strided_slice %49 {offsets = [0, 15, 0], sizes = [2, 1, 448], strides = [1, 1, 1]} : vector<2x32x448xf32> to vector<2x1x448xf32>
    %158 = vector.shape_cast %157 : vector<2x1x448xf32> to vector<2x448xf32>
    %159 = arith.maximumf %156, %158 : vector<2x448xf32>
    %c0_89 = arith.constant 0 : index
    %c0_90 = arith.constant 0 : index
    %160 = vector.load %arg4[%c0_89, %c0_90] : memref<1x448xf32, #tpu.memory_space<vmem>>, vector<1x448xf32>
    %161 = vector.broadcast %160 : vector<1x448xf32> to vector<2x448xf32>
    %162 = arith.addf %159, %161 : vector<2x448xf32>
    %cst_91 = arith.constant 1.000000e-01 : f32
    %163 = vector.broadcast %cst_91 : f32 to vector<2x448xf32>
    %164 = arith.mulf %163, %162 : vector<2x448xf32>
    %165 = arith.maximumf %162, %164 : vector<2x448xf32>
    %166 = arith.truncf %165 : vector<2x448xf32> to vector<2x448xbf16>
    %c0_92 = arith.constant 0 : index
    %c7 = arith.constant 7 : index
    %c0_93 = arith.constant 0 : index
    %167 = vector.load %arg13[%c0_92, %c7, %c0_93] : memref<2x20x448xbf16, #tpu.memory_space<vmem>>, vector<2x1x448xbf16>
    %168 = vector.shape_cast %167 : vector<2x1x448xbf16> to vector<2x448xbf16>
    %169 = vector.shape_cast %166 : vector<2x448xbf16> to vector<2x1x448xbf16>
    tpu.vector_store %arg13[%c0_92, %c7, %c0_93], %169 {strides = array<i32>} : memref<2x20x448xbf16, #tpu.memory_space<vmem>>, vector<2x1x448xbf16>,
    %170 = vector.extract_strided_slice %49 {offsets = [0, 16, 0], sizes = [2, 1, 448], strides = [1, 1, 1]} : vector<2x32x448xf32> to vector<2x1x448xf32>
    %171 = vector.shape_cast %170 : vector<2x1x448xf32> to vector<2x448xf32>
    %172 = vector.extract_strided_slice %49 {offsets = [0, 17, 0], sizes = [2, 1, 448], strides = [1, 1, 1]} : vector<2x32x448xf32> to vector<2x1x448xf32>
    %173 = vector.shape_cast %172 : vector<2x1x448xf32> to vector<2x448xf32>
    %174 = arith.maximumf %171, %173 : vector<2x448xf32>
    %c0_94 = arith.constant 0 : index
    %c0_95 = arith.constant 0 : index
    %175 = vector.load %arg4[%c0_94, %c0_95] : memref<1x448xf32, #tpu.memory_space<vmem>>, vector<1x448xf32>
    %176 = vector.broadcast %175 : vector<1x448xf32> to vector<2x448xf32>
    %177 = arith.addf %174, %176 : vector<2x448xf32>
    %cst_96 = arith.constant 1.000000e-01 : f32
    %178 = vector.broadcast %cst_96 : f32 to vector<2x448xf32>
    %179 = arith.mulf %178, %177 : vector<2x448xf32>
    %180 = arith.maximumf %177, %179 : vector<2x448xf32>
    %181 = arith.truncf %180 : vector<2x448xf32> to vector<2x448xbf16>
    %c0_97 = arith.constant 0 : index
    %c8 = arith.constant 8 : index
    %c0_98 = arith.constant 0 : index
    %182 = vector.load %arg13[%c0_97, %c8, %c0_98] : memref<2x20x448xbf16, #tpu.memory_space<vmem>>, vector<2x1x448xbf16>
    %183 = vector.shape_cast %182 : vector<2x1x448xbf16> to vector<2x448xbf16>
    %184 = vector.shape_cast %181 : vector<2x448xbf16> to vector<2x1x448xbf16>
    tpu.vector_store %arg13[%c0_97, %c8, %c0_98], %184 {strides = array<i32>} : memref<2x20x448xbf16, #tpu.memory_space<vmem>>, vector<2x1x448xbf16>,
    %185 = vector.extract_strided_slice %49 {offsets = [0, 18, 0], sizes = [2, 1, 448], strides = [1, 1, 1]} : vector<2x32x448xf32> to vector<2x1x448xf32>
    %186 = vector.shape_cast %185 : vector<2x1x448xf32> to vector<2x448xf32>
    %187 = vector.extract_strided_slice %49 {offsets = [0, 19, 0], sizes = [2, 1, 448], strides = [1, 1, 1]} : vector<2x32x448xf32> to vector<2x1x448xf32>
    %188 = vector.shape_cast %187 : vector<2x1x448xf32> to vector<2x448xf32>
    %189 = arith.maximumf %186, %188 : vector<2x448xf32>
    %c0_99 = arith.constant 0 : index
    %c0_100 = arith.constant 0 : index
    %190 = vector.load %arg4[%c0_99, %c0_100] : memref<1x448xf32, #tpu.memory_space<vmem>>, vector<1x448xf32>
    %191 = vector.broadcast %190 : vector<1x448xf32> to vector<2x448xf32>
    %192 = arith.addf %189, %191 : vector<2x448xf32>
    %cst_101 = arith.constant 1.000000e-01 : f32
    %193 = vector.broadcast %cst_101 : f32 to vector<2x448xf32>
    %194 = arith.mulf %193, %192 : vector<2x448xf32>
    %195 = arith.maximumf %192, %194 : vector<2x448xf32>
    %196 = arith.truncf %195 : vector<2x448xf32> to vector<2x448xbf16>
    %c0_102 = arith.constant 0 : index
    %c9 = arith.constant 9 : index
    %c0_103 = arith.constant 0 : index
    %197 = vector.load %arg13[%c0_102, %c9, %c0_103] : memref<2x20x448xbf16, #tpu.memory_space<vmem>>, vector<2x1x448xbf16>
    %198 = vector.shape_cast %197 : vector<2x1x448xbf16> to vector<2x448xbf16>
    %199 = vector.shape_cast %196 : vector<2x448xbf16> to vector<2x1x448xbf16>
    tpu.vector_store %arg13[%c0_102, %c9, %c0_103], %199 {strides = array<i32>} : memref<2x20x448xbf16, #tpu.memory_space<vmem>>, vector<2x1x448xbf16>,
    %200 = vector.extract_strided_slice %49 {offsets = [0, 20, 0], sizes = [2, 1, 448], strides = [1, 1, 1]} : vector<2x32x448xf32> to vector<2x1x448xf32>
    %201 = vector.shape_cast %200 : vector<2x1x448xf32> to vector<2x448xf32>
    %202 = vector.extract_strided_slice %49 {offsets = [0, 21, 0], sizes = [2, 1, 448], strides = [1, 1, 1]} : vector<2x32x448xf32> to vector<2x1x448xf32>
    %203 = vector.shape_cast %202 : vector<2x1x448xf32> to vector<2x448xf32>
    %204 = arith.maximumf %201, %203 : vector<2x448xf32>
    %c0_104 = arith.constant 0 : index
    %c0_105 = arith.constant 0 : index
    %205 = vector.load %arg4[%c0_104, %c0_105] : memref<1x448xf32, #tpu.memory_space<vmem>>, vector<1x448xf32>
    %206 = vector.broadcast %205 : vector<1x448xf32> to vector<2x448xf32>
    %207 = arith.addf %204, %206 : vector<2x448xf32>
    %cst_106 = arith.constant 1.000000e-01 : f32
    %208 = vector.broadcast %cst_106 : f32 to vector<2x448xf32>
    %209 = arith.mulf %208, %207 : vector<2x448xf32>
    %210 = arith.maximumf %207, %209 : vector<2x448xf32>
    %211 = arith.truncf %210 : vector<2x448xf32> to vector<2x448xbf16>
    %c0_107 = arith.constant 0 : index
    %c10 = arith.constant 10 : index
    %c0_108 = arith.constant 0 : index
    %212 = vector.load %arg13[%c0_107, %c10, %c0_108] : memref<2x20x448xbf16, #tpu.memory_space<vmem>>, vector<2x1x448xbf16>
    %213 = vector.shape_cast %212 : vector<2x1x448xbf16> to vector<2x448xbf16>
    %214 = vector.shape_cast %211 : vector<2x448xbf16> to vector<2x1x448xbf16>
    tpu.vector_store %arg13[%c0_107, %c10, %c0_108], %214 {strides = array<i32>} : memref<2x20x448xbf16, #tpu.memory_space<vmem>>, vector<2x1x448xbf16>,
    %215 = vector.extract_strided_slice %49 {offsets = [0, 22, 0], sizes = [2, 1, 448], strides = [1, 1, 1]} : vector<2x32x448xf32> to vector<2x1x448xf32>
    %216 = vector.shape_cast %215 : vector<2x1x448xf32> to vector<2x448xf32>
    %217 = vector.extract_strided_slice %49 {offsets = [0, 23, 0], sizes = [2, 1, 448], strides = [1, 1, 1]} : vector<2x32x448xf32> to vector<2x1x448xf32>
    %218 = vector.shape_cast %217 : vector<2x1x448xf32> to vector<2x448xf32>
    %219 = arith.maximumf %216, %218 : vector<2x448xf32>
    %c0_109 = arith.constant 0 : index
    %c0_110 = arith.constant 0 : index
    %220 = vector.load %arg4[%c0_109, %c0_110] : memref<1x448xf32, #tpu.memory_space<vmem>>, vector<1x448xf32>
    %221 = vector.broadcast %220 : vector<1x448xf32> to vector<2x448xf32>
    %222 = arith.addf %219, %221 : vector<2x448xf32>
    %cst_111 = arith.constant 1.000000e-01 : f32
    %223 = vector.broadcast %cst_111 : f32 to vector<2x448xf32>
    %224 = arith.mulf %223, %222 : vector<2x448xf32>
    %225 = arith.maximumf %222, %224 : vector<2x448xf32>
    %226 = arith.truncf %225 : vector<2x448xf32> to vector<2x448xbf16>
    %c0_112 = arith.constant 0 : index
    %c11 = arith.constant 11 : index
    %c0_113 = arith.constant 0 : index
    %227 = vector.load %arg13[%c0_112, %c11, %c0_113] : memref<2x20x448xbf16, #tpu.memory_space<vmem>>, vector<2x1x448xbf16>
    %228 = vector.shape_cast %227 : vector<2x1x448xbf16> to vector<2x448xbf16>
    %229 = vector.shape_cast %226 : vector<2x448xbf16> to vector<2x1x448xbf16>
    tpu.vector_store %arg13[%c0_112, %c11, %c0_113], %229 {strides = array<i32>} : memref<2x20x448xbf16, #tpu.memory_space<vmem>>, vector<2x1x448xbf16>,
    %230 = vector.extract_strided_slice %49 {offsets = [0, 24, 0], sizes = [2, 1, 448], strides = [1, 1, 1]} : vector<2x32x448xf32> to vector<2x1x448xf32>
    %231 = vector.shape_cast %230 : vector<2x1x448xf32> to vector<2x448xf32>
    %232 = vector.extract_strided_slice %49 {offsets = [0, 25, 0], sizes = [2, 1, 448], strides = [1, 1, 1]} : vector<2x32x448xf32> to vector<2x1x448xf32>
    %233 = vector.shape_cast %232 : vector<2x1x448xf32> to vector<2x448xf32>
    %234 = arith.maximumf %231, %233 : vector<2x448xf32>
    %c0_114 = arith.constant 0 : index
    %c0_115 = arith.constant 0 : index
    %235 = vector.load %arg4[%c0_114, %c0_115] : memref<1x448xf32, #tpu.memory_space<vmem>>, vector<1x448xf32>
    %236 = vector.broadcast %235 : vector<1x448xf32> to vector<2x448xf32>
    %237 = arith.addf %234, %236 : vector<2x448xf32>
    %cst_116 = arith.constant 1.000000e-01 : f32
    %238 = vector.broadcast %cst_116 : f32 to vector<2x448xf32>
    %239 = arith.mulf %238, %237 : vector<2x448xf32>
    %240 = arith.maximumf %237, %239 : vector<2x448xf32>
    %241 = arith.truncf %240 : vector<2x448xf32> to vector<2x448xbf16>
    %c0_117 = arith.constant 0 : index
    %c12 = arith.constant 12 : index
    %c0_118 = arith.constant 0 : index
    %242 = vector.load %arg13[%c0_117, %c12, %c0_118] : memref<2x20x448xbf16, #tpu.memory_space<vmem>>, vector<2x1x448xbf16>
    %243 = vector.shape_cast %242 : vector<2x1x448xbf16> to vector<2x448xbf16>
    %244 = vector.shape_cast %241 : vector<2x448xbf16> to vector<2x1x448xbf16>
    tpu.vector_store %arg13[%c0_117, %c12, %c0_118], %244 {strides = array<i32>} : memref<2x20x448xbf16, #tpu.memory_space<vmem>>, vector<2x1x448xbf16>,
    %245 = vector.extract_strided_slice %49 {offsets = [0, 26, 0], sizes = [2, 1, 448], strides = [1, 1, 1]} : vector<2x32x448xf32> to vector<2x1x448xf32>
    %246 = vector.shape_cast %245 : vector<2x1x448xf32> to vector<2x448xf32>
    %247 = vector.extract_strided_slice %49 {offsets = [0, 27, 0], sizes = [2, 1, 448], strides = [1, 1, 1]} : vector<2x32x448xf32> to vector<2x1x448xf32>
    %248 = vector.shape_cast %247 : vector<2x1x448xf32> to vector<2x448xf32>
    %249 = arith.maximumf %246, %248 : vector<2x448xf32>
    %c0_119 = arith.constant 0 : index
    %c0_120 = arith.constant 0 : index
    %250 = vector.load %arg4[%c0_119, %c0_120] : memref<1x448xf32, #tpu.memory_space<vmem>>, vector<1x448xf32>
    %251 = vector.broadcast %250 : vector<1x448xf32> to vector<2x448xf32>
    %252 = arith.addf %249, %251 : vector<2x448xf32>
    %cst_121 = arith.constant 1.000000e-01 : f32
    %253 = vector.broadcast %cst_121 : f32 to vector<2x448xf32>
    %254 = arith.mulf %253, %252 : vector<2x448xf32>
    %255 = arith.maximumf %252, %254 : vector<2x448xf32>
    %256 = arith.truncf %255 : vector<2x448xf32> to vector<2x448xbf16>
    %c0_122 = arith.constant 0 : index
    %c13 = arith.constant 13 : index
    %c0_123 = arith.constant 0 : index
    %257 = vector.load %arg13[%c0_122, %c13, %c0_123] : memref<2x20x448xbf16, #tpu.memory_space<vmem>>, vector<2x1x448xbf16>
    %258 = vector.shape_cast %257 : vector<2x1x448xbf16> to vector<2x448xbf16>
    %259 = vector.shape_cast %256 : vector<2x448xbf16> to vector<2x1x448xbf16>
    tpu.vector_store %arg13[%c0_122, %c13, %c0_123], %259 {strides = array<i32>} : memref<2x20x448xbf16, #tpu.memory_space<vmem>>, vector<2x1x448xbf16>,
    %cst_124 = arith.constant 0.000000e+00 : bf16
    %260 = vector.broadcast %cst_124 : bf16 to vector<2x6x448xbf16>
    %c0_125 = arith.constant 0 : index
    %c14 = arith.constant 14 : index
    %c0_126 = arith.constant 0 : index
    %261 = vector.load %arg13[%c0_125, %c14, %c0_126] : memref<2x20x448xbf16, #tpu.memory_space<vmem>>, vector<2x6x448xbf16>
    tpu.vector_store %arg13[%c0_125, %c14, %c0_126], %260 {strides = array<i32>} : memref<2x20x448xbf16, #tpu.memory_space<vmem>>, vector<2x6x448xbf16>,
    %c0_127 = arith.constant 0 : index
    %c0_128 = arith.constant 0 : index
    %c0_129 = arith.constant 0 : index
    %262 = vector.load %arg13[%c0_127, %c0_128, %c0_129] : memref<2x20x448xbf16, #tpu.memory_space<vmem>>, vector<2x16x448xbf16>
    %263 = vector.shape_cast %262 : vector<2x16x448xbf16> to vector<32x448xbf16>
    %c0_130 = arith.constant 0 : index
    %c0_131 = arith.constant 0 : index
    %c0_132 = arith.constant 0 : index
    %264 = vector.load %arg5[%c0_130, %c0_131, %c0_132] : memref<5x448x160xbf16, #tpu.memory_space<vmem>>, vector<1x448x160xbf16>
    %265 = vector.shape_cast %264 : vector<1x448x160xbf16> to vector<448x160xbf16>
    %cst_133 = arith.constant dense<0.000000e+00> : vector<32x160xf32>
    %266 = tpu.matmul %263, %265, %cst_133 {dimension_numbers = #tpu.dot_dimension_numbers<[1], [0], [0], [1], [0, 0, 1, 1], [], []>} : vector<32x448xbf16>, vector<448x160xbf16>, vector<32x160xf32> -> vector<32x160xf32>
    %c0_134 = arith.constant 0 : index
    %c0_135 = arith.constant 0 : index
    %c0_136 = arith.constant 0 : index
    %267 = vector.load %arg6[%c0_134, %c0_135, %c0_136] : memref<5x448x160xbf16, #tpu.memory_space<vmem>>, vector<1x448x160xbf16>
    %268 = vector.shape_cast %267 : vector<1x448x160xbf16> to vector<448x160xbf16>
    %cst_137 = arith.constant dense<0.000000e+00> : vector<32x160xf32>
    %269 = tpu.matmul %263, %268, %cst_137 {dimension_numbers = #tpu.dot_dimension_numbers<[1], [0], [0], [1], [0, 0, 1, 1], [], []>} : vector<32x448xbf16>, vector<448x160xbf16>, vector<32x160xf32> -> vector<32x160xf32>
    %c0_138 = arith.constant 0 : index
    %c1_139 = arith.constant 1 : index
    %c0_140 = arith.constant 0 : index
    %270 = vector.load %arg13[%c0_138, %c1_139, %c0_140] : memref<2x20x448xbf16, #tpu.memory_space<vmem>>, vector<2x16x448xbf16>
    %271 = vector.shape_cast %270 : vector<2x16x448xbf16> to vector<32x448xbf16>
    %c1_141 = arith.constant 1 : index
    %c0_142 = arith.constant 0 : index
    %c0_143 = arith.constant 0 : index
    %272 = vector.load %arg5[%c1_141, %c0_142, %c0_143] : memref<5x448x160xbf16, #tpu.memory_space<vmem>>, vector<1x448x160xbf16>
    %273 = vector.shape_cast %272 : vector<1x448x160xbf16> to vector<448x160xbf16>
    %cst_144 = arith.constant dense<0.000000e+00> : vector<32x160xf32>
    %274 = tpu.matmul %271, %273, %cst_144 {dimension_numbers = #tpu.dot_dimension_numbers<[1], [0], [0], [1], [0, 0, 1, 1], [], []>} : vector<32x448xbf16>, vector<448x160xbf16>, vector<32x160xf32> -> vector<32x160xf32>
    %c1_145 = arith.constant 1 : index
    %c0_146 = arith.constant 0 : index
    %c0_147 = arith.constant 0 : index
    %275 = vector.load %arg6[%c1_145, %c0_146, %c0_147] : memref<5x448x160xbf16, #tpu.memory_space<vmem>>, vector<1x448x160xbf16>
    %276 = vector.shape_cast %275 : vector<1x448x160xbf16> to vector<448x160xbf16>
    %cst_148 = arith.constant dense<0.000000e+00> : vector<32x160xf32>
    %277 = tpu.matmul %271, %276, %cst_148 {dimension_numbers = #tpu.dot_dimension_numbers<[1], [0], [0], [1], [0, 0, 1, 1], [], []>} : vector<32x448xbf16>, vector<448x160xbf16>, vector<32x160xf32> -> vector<32x160xf32>
    %278 = arith.addf %266, %274 : vector<32x160xf32>
    %279 = arith.addf %269, %277 : vector<32x160xf32>
    %c0_149 = arith.constant 0 : index
    %c2_150 = arith.constant 2 : index
    %c0_151 = arith.constant 0 : index
    %280 = vector.load %arg13[%c0_149, %c2_150, %c0_151] : memref<2x20x448xbf16, #tpu.memory_space<vmem>>, vector<2x16x448xbf16>
    %281 = vector.shape_cast %280 : vector<2x16x448xbf16> to vector<32x448xbf16>
    %c2_152 = arith.constant 2 : index
    %c0_153 = arith.constant 0 : index
    %c0_154 = arith.constant 0 : index
    %282 = vector.load %arg5[%c2_152, %c0_153, %c0_154] : memref<5x448x160xbf16, #tpu.memory_space<vmem>>, vector<1x448x160xbf16>
    %283 = vector.shape_cast %282 : vector<1x448x160xbf16> to vector<448x160xbf16>
    %cst_155 = arith.constant dense<0.000000e+00> : vector<32x160xf32>
    %284 = tpu.matmul %281, %283, %cst_155 {dimension_numbers = #tpu.dot_dimension_numbers<[1], [0], [0], [1], [0, 0, 1, 1], [], []>} : vector<32x448xbf16>, vector<448x160xbf16>, vector<32x160xf32> -> vector<32x160xf32>
    %c2_156 = arith.constant 2 : index
    %c0_157 = arith.constant 0 : index
    %c0_158 = arith.constant 0 : index
    %285 = vector.load %arg6[%c2_156, %c0_157, %c0_158] : memref<5x448x160xbf16, #tpu.memory_space<vmem>>, vector<1x448x160xbf16>
    %286 = vector.shape_cast %285 : vector<1x448x160xbf16> to vector<448x160xbf16>
    %cst_159 = arith.constant dense<0.000000e+00> : vector<32x160xf32>
    %287 = tpu.matmul %281, %286, %cst_159 {dimension_numbers = #tpu.dot_dimension_numbers<[1], [0], [0], [1], [0, 0, 1, 1], [], []>} : vector<32x448xbf16>, vector<448x160xbf16>, vector<32x160xf32> -> vector<32x160xf32>
    %288 = arith.addf %278, %284 : vector<32x160xf32>
    %289 = arith.addf %279, %287 : vector<32x160xf32>
    %c0_160 = arith.constant 0 : index
    %c3_161 = arith.constant 3 : index
    %c0_162 = arith.constant 0 : index
    %290 = vector.load %arg13[%c0_160, %c3_161, %c0_162] : memref<2x20x448xbf16, #tpu.memory_space<vmem>>, vector<2x16x448xbf16>
    %291 = vector.shape_cast %290 : vector<2x16x448xbf16> to vector<32x448xbf16>
    %c3_163 = arith.constant 3 : index
    %c0_164 = arith.constant 0 : index
    %c0_165 = arith.constant 0 : index
    %292 = vector.load %arg5[%c3_163, %c0_164, %c0_165] : memref<5x448x160xbf16, #tpu.memory_space<vmem>>, vector<1x448x160xbf16>
    %293 = vector.shape_cast %292 : vector<1x448x160xbf16> to vector<448x160xbf16>
    %cst_166 = arith.constant dense<0.000000e+00> : vector<32x160xf32>
    %294 = tpu.matmul %291, %293, %cst_166 {dimension_numbers = #tpu.dot_dimension_numbers<[1], [0], [0], [1], [0, 0, 1, 1], [], []>} : vector<32x448xbf16>, vector<448x160xbf16>, vector<32x160xf32> -> vector<32x160xf32>
    %c3_167 = arith.constant 3 : index
    %c0_168 = arith.constant 0 : index
    %c0_169 = arith.constant 0 : index
    %295 = vector.load %arg6[%c3_167, %c0_168, %c0_169] : memref<5x448x160xbf16, #tpu.memory_space<vmem>>, vector<1x448x160xbf16>
    %296 = vector.shape_cast %295 : vector<1x448x160xbf16> to vector<448x160xbf16>
    %cst_170 = arith.constant dense<0.000000e+00> : vector<32x160xf32>
    %297 = tpu.matmul %291, %296, %cst_170 {dimension_numbers = #tpu.dot_dimension_numbers<[1], [0], [0], [1], [0, 0, 1, 1], [], []>} : vector<32x448xbf16>, vector<448x160xbf16>, vector<32x160xf32> -> vector<32x160xf32>
    %298 = arith.addf %288, %294 : vector<32x160xf32>
    %299 = arith.addf %289, %297 : vector<32x160xf32>
    %c0_171 = arith.constant 0 : index
    %c4_172 = arith.constant 4 : index
    %c0_173 = arith.constant 0 : index
    %300 = vector.load %arg13[%c0_171, %c4_172, %c0_173] : memref<2x20x448xbf16, #tpu.memory_space<vmem>>, vector<2x16x448xbf16>
    %301 = vector.shape_cast %300 : vector<2x16x448xbf16> to vector<32x448xbf16>
    %c4_174 = arith.constant 4 : index
    %c0_175 = arith.constant 0 : index
    %c0_176 = arith.constant 0 : index
    %302 = vector.load %arg5[%c4_174, %c0_175, %c0_176] : memref<5x448x160xbf16, #tpu.memory_space<vmem>>, vector<1x448x160xbf16>
    %303 = vector.shape_cast %302 : vector<1x448x160xbf16> to vector<448x160xbf16>
    %cst_177 = arith.constant dense<0.000000e+00> : vector<32x160xf32>
    %304 = tpu.matmul %301, %303, %cst_177 {dimension_numbers = #tpu.dot_dimension_numbers<[1], [0], [0], [1], [0, 0, 1, 1], [], []>} : vector<32x448xbf16>, vector<448x160xbf16>, vector<32x160xf32> -> vector<32x160xf32>
    %c4_178 = arith.constant 4 : index
    %c0_179 = arith.constant 0 : index
    %c0_180 = arith.constant 0 : index
    %305 = vector.load %arg6[%c4_178, %c0_179, %c0_180] : memref<5x448x160xbf16, #tpu.memory_space<vmem>>, vector<1x448x160xbf16>
    %306 = vector.shape_cast %305 : vector<1x448x160xbf16> to vector<448x160xbf16>
    %cst_181 = arith.constant dense<0.000000e+00> : vector<32x160xf32>
    %307 = tpu.matmul %301, %306, %cst_181 {dimension_numbers = #tpu.dot_dimension_numbers<[1], [0], [0], [1], [0, 0, 1, 1], [], []>} : vector<32x448xbf16>, vector<448x160xbf16>, vector<32x160xf32> -> vector<32x160xf32>
    %308 = arith.addf %298, %304 : vector<32x160xf32>
    %309 = arith.addf %299, %307 : vector<32x160xf32>
    %310 = arith.maximumf %308, %309 : vector<32x160xf32>
    %311 = vector.shape_cast %310 : vector<32x160xf32> to vector<2x16x160xf32>
    %312 = vector.extract_strided_slice %311 {offsets = [0, 0, 0], sizes = [2, 1, 160], strides = [1, 1, 1]} : vector<2x16x160xf32> to vector<2x1x160xf32>
    %313 = vector.shape_cast %312 : vector<2x1x160xf32> to vector<2x160xf32>
    %314 = vector.extract_strided_slice %311 {offsets = [0, 1, 0], sizes = [2, 1, 160], strides = [1, 1, 1]} : vector<2x16x160xf32> to vector<2x1x160xf32>
    %315 = vector.shape_cast %314 : vector<2x1x160xf32> to vector<2x160xf32>
    %316 = arith.maximumf %313, %315 : vector<2x160xf32>
    %c0_182 = arith.constant 0 : index
    %c0_183 = arith.constant 0 : index
    %317 = vector.load %arg7[%c0_182, %c0_183] : memref<1x160xf32, #tpu.memory_space<vmem>>, vector<1x160xf32>
    %318 = vector.broadcast %317 : vector<1x160xf32> to vector<2x160xf32>
    %319 = arith.addf %316, %318 : vector<2x160xf32>
    %cst_184 = arith.constant 1.000000e-01 : f32
    %320 = vector.broadcast %cst_184 : f32 to vector<2x160xf32>
    %321 = arith.mulf %320, %319 : vector<2x160xf32>
    %322 = arith.maximumf %319, %321 : vector<2x160xf32>
    %323 = arith.truncf %322 : vector<2x160xf32> to vector<2x160xbf16>
    %c0_185 = arith.constant 0 : index
    %c0_186 = arith.constant 0 : index
    %c0_187 = arith.constant 0 : index
    %324 = vector.load %arg8[%c0_185, %c0_186, %c0_187] : memref<5x160x84xbf16, #tpu.memory_space<vmem>>, vector<1x160x84xbf16>
    %325 = vector.shape_cast %324 : vector<1x160x84xbf16> to vector<160x84xbf16>
    %cst_188 = arith.constant dense<0.000000e+00> : vector<2x84xf32>
    %326 = tpu.matmul %323, %325, %cst_188 {dimension_numbers = #tpu.dot_dimension_numbers<[1], [0], [0], [1], [0, 0, 1, 1], [], []>} : vector<2x160xbf16>, vector<160x84xbf16>, vector<2x84xf32> -> vector<2x84xf32>
    %327 = vector.extract_strided_slice %311 {offsets = [0, 2, 0], sizes = [2, 1, 160], strides = [1, 1, 1]} : vector<2x16x160xf32> to vector<2x1x160xf32>
    %328 = vector.shape_cast %327 : vector<2x1x160xf32> to vector<2x160xf32>
    %329 = vector.extract_strided_slice %311 {offsets = [0, 3, 0], sizes = [2, 1, 160], strides = [1, 1, 1]} : vector<2x16x160xf32> to vector<2x1x160xf32>
    %330 = vector.shape_cast %329 : vector<2x1x160xf32> to vector<2x160xf32>
    %331 = arith.maximumf %328, %330 : vector<2x160xf32>
    %c0_189 = arith.constant 0 : index
    %c0_190 = arith.constant 0 : index
    %332 = vector.load %arg7[%c0_189, %c0_190] : memref<1x160xf32, #tpu.memory_space<vmem>>, vector<1x160xf32>
    %333 = vector.broadcast %332 : vector<1x160xf32> to vector<2x160xf32>
    %334 = arith.addf %331, %333 : vector<2x160xf32>
    %cst_191 = arith.constant 1.000000e-01 : f32
    %335 = vector.broadcast %cst_191 : f32 to vector<2x160xf32>
    %336 = arith.mulf %335, %334 : vector<2x160xf32>
    %337 = arith.maximumf %334, %336 : vector<2x160xf32>
    %338 = arith.truncf %337 : vector<2x160xf32> to vector<2x160xbf16>
    %c1_192 = arith.constant 1 : index
    %c0_193 = arith.constant 0 : index
    %c0_194 = arith.constant 0 : index
    %339 = vector.load %arg8[%c1_192, %c0_193, %c0_194] : memref<5x160x84xbf16, #tpu.memory_space<vmem>>, vector<1x160x84xbf16>
    %340 = vector.shape_cast %339 : vector<1x160x84xbf16> to vector<160x84xbf16>
    %cst_195 = arith.constant dense<0.000000e+00> : vector<2x84xf32>
    %341 = tpu.matmul %338, %340, %cst_195 {dimension_numbers = #tpu.dot_dimension_numbers<[1], [0], [0], [1], [0, 0, 1, 1], [], []>} : vector<2x160xbf16>, vector<160x84xbf16>, vector<2x84xf32> -> vector<2x84xf32>
    %342 = arith.addf %326, %341 : vector<2x84xf32>
    %343 = vector.extract_strided_slice %311 {offsets = [0, 4, 0], sizes = [2, 1, 160], strides = [1, 1, 1]} : vector<2x16x160xf32> to vector<2x1x160xf32>
    %344 = vector.shape_cast %343 : vector<2x1x160xf32> to vector<2x160xf32>
    %345 = vector.extract_strided_slice %311 {offsets = [0, 5, 0], sizes = [2, 1, 160], strides = [1, 1, 1]} : vector<2x16x160xf32> to vector<2x1x160xf32>
    %346 = vector.shape_cast %345 : vector<2x1x160xf32> to vector<2x160xf32>
    %347 = arith.maximumf %344, %346 : vector<2x160xf32>
    %c0_196 = arith.constant 0 : index
    %c0_197 = arith.constant 0 : index
    %348 = vector.load %arg7[%c0_196, %c0_197] : memref<1x160xf32, #tpu.memory_space<vmem>>, vector<1x160xf32>
    %349 = vector.broadcast %348 : vector<1x160xf32> to vector<2x160xf32>
    %350 = arith.addf %347, %349 : vector<2x160xf32>
    %cst_198 = arith.constant 1.000000e-01 : f32
    %351 = vector.broadcast %cst_198 : f32 to vector<2x160xf32>
    %352 = arith.mulf %351, %350 : vector<2x160xf32>
    %353 = arith.maximumf %350, %352 : vector<2x160xf32>
    %354 = arith.truncf %353 : vector<2x160xf32> to vector<2x160xbf16>
    %c2_199 = arith.constant 2 : index
    %c0_200 = arith.constant 0 : index
    %c0_201 = arith.constant 0 : index
    %355 = vector.load %arg8[%c2_199, %c0_200, %c0_201] : memref<5x160x84xbf16, #tpu.memory_space<vmem>>, vector<1x160x84xbf16>
    %356 = vector.shape_cast %355 : vector<1x160x84xbf16> to vector<160x84xbf16>
    %cst_202 = arith.constant dense<0.000000e+00> : vector<2x84xf32>
    %357 = tpu.matmul %354, %356, %cst_202 {dimension_numbers = #tpu.dot_dimension_numbers<[1], [0], [0], [1], [0, 0, 1, 1], [], []>} : vector<2x160xbf16>, vector<160x84xbf16>, vector<2x84xf32> -> vector<2x84xf32>
    %358 = arith.addf %342, %357 : vector<2x84xf32>
    %359 = vector.extract_strided_slice %311 {offsets = [0, 6, 0], sizes = [2, 1, 160], strides = [1, 1, 1]} : vector<2x16x160xf32> to vector<2x1x160xf32>
    %360 = vector.shape_cast %359 : vector<2x1x160xf32> to vector<2x160xf32>
    %361 = vector.extract_strided_slice %311 {offsets = [0, 7, 0], sizes = [2, 1, 160], strides = [1, 1, 1]} : vector<2x16x160xf32> to vector<2x1x160xf32>
    %362 = vector.shape_cast %361 : vector<2x1x160xf32> to vector<2x160xf32>
    %363 = arith.maximumf %360, %362 : vector<2x160xf32>
    %c0_203 = arith.constant 0 : index
    %c0_204 = arith.constant 0 : index
    %364 = vector.load %arg7[%c0_203, %c0_204] : memref<1x160xf32, #tpu.memory_space<vmem>>, vector<1x160xf32>
    %365 = vector.broadcast %364 : vector<1x160xf32> to vector<2x160xf32>
    %366 = arith.addf %363, %365 : vector<2x160xf32>
    %cst_205 = arith.constant 1.000000e-01 : f32
    %367 = vector.broadcast %cst_205 : f32 to vector<2x160xf32>
    %368 = arith.mulf %367, %366 : vector<2x160xf32>
    %369 = arith.maximumf %366, %368 : vector<2x160xf32>
    %370 = arith.truncf %369 : vector<2x160xf32> to vector<2x160xbf16>
    %c3_206 = arith.constant 3 : index
    %c0_207 = arith.constant 0 : index
    %c0_208 = arith.constant 0 : index
    %371 = vector.load %arg8[%c3_206, %c0_207, %c0_208] : memref<5x160x84xbf16, #tpu.memory_space<vmem>>, vector<1x160x84xbf16>
    %372 = vector.shape_cast %371 : vector<1x160x84xbf16> to vector<160x84xbf16>
    %cst_209 = arith.constant dense<0.000000e+00> : vector<2x84xf32>
    %373 = tpu.matmul %370, %372, %cst_209 {dimension_numbers = #tpu.dot_dimension_numbers<[1], [0], [0], [1], [0, 0, 1, 1], [], []>} : vector<2x160xbf16>, vector<160x84xbf16>, vector<2x84xf32> -> vector<2x84xf32>
    %374 = arith.addf %358, %373 : vector<2x84xf32>
    %375 = vector.extract_strided_slice %311 {offsets = [0, 8, 0], sizes = [2, 1, 160], strides = [1, 1, 1]} : vector<2x16x160xf32> to vector<2x1x160xf32>
    %376 = vector.shape_cast %375 : vector<2x1x160xf32> to vector<2x160xf32>
    %377 = vector.extract_strided_slice %311 {offsets = [0, 9, 0], sizes = [2, 1, 160], strides = [1, 1, 1]} : vector<2x16x160xf32> to vector<2x1x160xf32>
    %378 = vector.shape_cast %377 : vector<2x1x160xf32> to vector<2x160xf32>
    %379 = arith.maximumf %376, %378 : vector<2x160xf32>
    %c0_210 = arith.constant 0 : index
    %c0_211 = arith.constant 0 : index
    %380 = vector.load %arg7[%c0_210, %c0_211] : memref<1x160xf32, #tpu.memory_space<vmem>>, vector<1x160xf32>
    %381 = vector.broadcast %380 : vector<1x160xf32> to vector<2x160xf32>
    %382 = arith.addf %379, %381 : vector<2x160xf32>
    %cst_212 = arith.constant 1.000000e-01 : f32
    %383 = vector.broadcast %cst_212 : f32 to vector<2x160xf32>
    %384 = arith.mulf %383, %382 : vector<2x160xf32>
    %385 = arith.maximumf %382, %384 : vector<2x160xf32>
    %386 = arith.truncf %385 : vector<2x160xf32> to vector<2x160xbf16>
    %c4_213 = arith.constant 4 : index
    %c0_214 = arith.constant 0 : index
    %c0_215 = arith.constant 0 : index
    %387 = vector.load %arg8[%c4_213, %c0_214, %c0_215] : memref<5x160x84xbf16, #tpu.memory_space<vmem>>, vector<1x160x84xbf16>
    %388 = vector.shape_cast %387 : vector<1x160x84xbf16> to vector<160x84xbf16>
    %cst_216 = arith.constant dense<0.000000e+00> : vector<2x84xf32>
    %389 = tpu.matmul %386, %388, %cst_216 {dimension_numbers = #tpu.dot_dimension_numbers<[1], [0], [0], [1], [0, 0, 1, 1], [], []>} : vector<2x160xbf16>, vector<160x84xbf16>, vector<2x84xf32> -> vector<2x84xf32>
    %390 = arith.addf %374, %389 : vector<2x84xf32>
    %c0_217 = arith.constant 0 : index
    %c0_218 = arith.constant 0 : index
    %391 = vector.load %arg9[%c0_217, %c0_218] : memref<1x84xf32, #tpu.memory_space<vmem>>, vector<1x84xf32>
    %392 = vector.broadcast %391 : vector<1x84xf32> to vector<2x84xf32>
    %393 = arith.addf %390, %392 : vector<2x84xf32>
    %cst_219 = arith.constant 1.000000e-01 : f32
    %394 = vector.broadcast %cst_219 : f32 to vector<2x84xf32>
    %395 = arith.mulf %394, %393 : vector<2x84xf32>
    %396 = arith.maximumf %393, %395 : vector<2x84xf32>
    %397 = arith.truncf %396 : vector<2x84xf32> to vector<2x84xbf16>
    %c0_220 = arith.constant 0 : index
    %c0_221 = arith.constant 0 : index
    %398 = vector.load %arg10[%c0_220, %c0_221] : memref<84x128xbf16, #tpu.memory_space<vmem>>, vector<84x128xbf16>
    %cst_222 = arith.constant dense<0.000000e+00> : vector<2x128xf32>
    %399 = tpu.matmul %397, %398, %cst_222 {dimension_numbers = #tpu.dot_dimension_numbers<[1], [0], [0], [1], [0, 0, 1, 1], [], []>} : vector<2x84xbf16>, vector<84x128xbf16>, vector<2x128xf32> -> vector<2x128xf32>
    %c0_223 = arith.constant 0 : index
    %c0_224 = arith.constant 0 : index
    %400 = vector.load %arg11[%c0_223, %c0_224] : memref<1x128xf32, #tpu.memory_space<vmem>>, vector<1x128xf32>
    %401 = vector.broadcast %400 : vector<1x128xf32> to vector<2x128xf32>
    %402 = arith.addf %399, %401 : vector<2x128xf32>
    %c0_225 = arith.constant 0 : index
    %c0_226 = arith.constant 0 : index
    %403 = vector.load %arg12[%c0_225, %c0_226] : memref<2x128xf32, #tpu.memory_space<vmem>>, vector<2x128xf32>
    tpu.vector_store %arg12[%c0_225, %c0_226], %402 {strides = array<i32>} : memref<2x128xf32, #tpu.memory_space<vmem>>, vector<2x128xf32>,
    return
  }
  func.func @transform_0(%arg0: i32) -> (i32, i32, i32) {
    %c0_i32 = arith.constant 0 : i32
    %c0_i32_0 = arith.constant 0 : i32
    %c0_i32_1 = arith.constant 0 : i32
    return %arg0, %c0_i32, %c0_i32_0 : i32, i32, i32
  }
  func.func @transform_1(%arg0: i32) -> (i32, i32, i32) {
    %c0_i32 = arith.constant 0 : i32
    %c0_i32_0 = arith.constant 0 : i32
    %c0_i32_1 = arith.constant 0 : i32
    %c0_i32_2 = arith.constant 0 : i32
    return %c0_i32, %c0_i32_0, %c0_i32_1 : i32, i32, i32
  }
  func.func @transform_2(%arg0: i32) -> (i32, i32, i32) {
    %c0_i32 = arith.constant 0 : i32
    %c0_i32_0 = arith.constant 0 : i32
    %c0_i32_1 = arith.constant 0 : i32
    %c0_i32_2 = arith.constant 0 : i32
    return %c0_i32, %c0_i32_0, %c0_i32_1 : i32, i32, i32
  }
  func.func @transform_3(%arg0: i32) -> (i32, i32) {
    %c0_i32 = arith.constant 0 : i32
    %c0_i32_0 = arith.constant 0 : i32
    %c0_i32_1 = arith.constant 0 : i32
    return %c0_i32, %c0_i32_0 : i32, i32
  }
  func.func @transform_4(%arg0: i32) -> (i32, i32, i32) {
    %c0_i32 = arith.constant 0 : i32
    %c0_i32_0 = arith.constant 0 : i32
    %c0_i32_1 = arith.constant 0 : i32
    %c0_i32_2 = arith.constant 0 : i32
    return %c0_i32, %c0_i32_0, %c0_i32_1 : i32, i32, i32
  }
  func.func @transform_5(%arg0: i32) -> (i32, i32, i32) {
    %c0_i32 = arith.constant 0 : i32
    %c0_i32_0 = arith.constant 0 : i32
    %c0_i32_1 = arith.constant 0 : i32
    %c0_i32_2 = arith.constant 0 : i32
    return %c0_i32, %c0_i32_0, %c0_i32_1 : i32, i32, i32
  }
  func.func @transform_6(%arg0: i32) -> (i32, i32) {
    %c0_i32 = arith.constant 0 : i32
    %c0_i32_0 = arith.constant 0 : i32
    %c0_i32_1 = arith.constant 0 : i32
    return %c0_i32, %c0_i32_0 : i32, i32
  }
  func.func @transform_7(%arg0: i32) -> (i32, i32, i32) {
    %c0_i32 = arith.constant 0 : i32
    %c0_i32_0 = arith.constant 0 : i32
    %c0_i32_1 = arith.constant 0 : i32
    %c0_i32_2 = arith.constant 0 : i32
    return %c0_i32, %c0_i32_0, %c0_i32_1 : i32, i32, i32
  }
  func.func @transform_8(%arg0: i32) -> (i32, i32) {
    %c0_i32 = arith.constant 0 : i32
    %c0_i32_0 = arith.constant 0 : i32
    %c0_i32_1 = arith.constant 0 : i32
    return %c0_i32, %c0_i32_0 : i32, i32
  }
  func.func @transform_9(%arg0: i32) -> (i32, i32) {
    %c0_i32 = arith.constant 0 : i32
    %c0_i32_0 = arith.constant 0 : i32
    %c0_i32_1 = arith.constant 0 : i32
    return %c0_i32, %c0_i32_0 : i32, i32
  }
  func.func @transform_10(%arg0: i32) -> (i32, i32) {
    %c0_i32 = arith.constant 0 : i32
    %c0_i32_0 = arith.constant 0 : i32
    %c0_i32_1 = arith.constant 0 : i32
    return %c0_i32, %c0_i32_0 : i32, i32
  }
  func.func @transform_11(%arg0: i32) -> (i32, i32) {
    %c0_i32 = arith.constant 0 : i32
    %c0_i32_0 = arith.constant 0 : i32
    return %arg0, %c0_i32 : i32, i32
  }
}

</mosaic_0001>

<llo_original>
// kernel: glenet5_forward.1
$region0: #{glenet5_forward.1}
  #allocation0 [shape = 'u32[]', space=smem, size = 0x4, offset = 0x4, fixed_abs, tag = 'smem constant byte address 0x4 - core index']
  #allocation1 [shape = 'u32[144,128]{1,0:T(1,128)}', space=vmem, size = 0x12000, scoped, tag = 'internal scratch']
  #allocation2 [shape = 'bf16[2,20,448]{2,1,0:T(8,128)(2,1)}', space=vmem, size = 0xc000, scoped, tag = 'scratch operand']
  %s0 = inlined_call_operand.vmem [shape: bf16[2,36,32], index: 0, kind: input, shape index: {}]
  %s1 = inlined_call_operand.vmem [shape: bf16[5,32,448], index: 1, kind: input, shape index: {}]
  %s2 = inlined_call_operand.vmem [shape: bf16[5,32,448], index: 2, kind: input, shape index: {}]
  %s3 = inlined_call_operand.vmem [shape: f32[1,448], index: 3, kind: input, shape index: {}]
  %s4 = inlined_call_operand.vmem [shape: bf16[5,448,160], index: 4, kind: input, shape index: {}]
  %s5 = inlined_call_operand.vmem [shape: bf16[5,448,160], index: 5, kind: input, shape index: {}]
  %s6 = inlined_call_operand.vmem [shape: f32[1,160], index: 6, kind: input, shape index: {}]
  %s7 = inlined_call_operand.vmem [shape: bf16[5,160,84], index: 7, kind: input, shape index: {}]
  %s8 = inlined_call_operand.vmem [shape: f32[1,84], index: 8, kind: input, shape index: {}]
  %s9 = inlined_call_operand.vmem [shape: bf16[84,128], index: 9, kind: input, shape index: {}]
  %s10 = inlined_call_operand.vmem [shape: f32[1,128], index: 10, kind: input, shape index: {}]
  %s11 = inlined_call_operand.hbm [shape: f32[2,128], index: 11, kind: output, shape index: {}]
  %s12 = sld [smem:[#allocation0]]
  $region54: #{glenet5_forward.1} parent=0
    _
  %s14 = ssub.s32 1, %s12
  %s15 = scalar_select 0, %s14, %s12
  $region1: #{glenet5_forward.1} parent=0
    #allocation3 [shape = 'u8[1024]{0}', space=vmem, size = 0x400, scoped, tag = 'output window, operand 0, single buffered']
    #allocation4 [shape = 's32[1]{0}', space=sflag, size = 0x4, scoped, tag = 'scoped memory for glenet5_forward.1']
    %16 = vsyncpa [#allocation4], 0
    // Predicated region
    $region2: #{glenet5_forward.1} parent=1 // pred_check
      _
    $region3: #{glenet5_forward.1} parent=1 // pred_check_branch
      %18 = sbr.rel (0) target = $region5
    $region4: #{glenet5_forward.1} parent=1 // pred_region
      _
    $region5: #{glenet5_forward.1} parent=1 // pred_fallthru
      _
    // Predicated region
    $region6: #{glenet5_forward.1} parent=1 // pred_check
      _
    $region7: #{glenet5_forward.1} parent=1 // pred_check_branch
      %20 = sbr.rel (0) target = $region9
    $region8: #{glenet5_forward.1} parent=1 // pred_region
      _
    $region9: #{glenet5_forward.1} parent=1 // pred_fallthru
      _
    // Predicated region
    $region10: #{glenet5_forward.1} parent=1 // pred_check
      _
    $region11: #{glenet5_forward.1} parent=1 // pred_check_branch
      %22 = sbr.rel (0) target = $region13
    $region12: #{glenet5_forward.1} parent=1 // pred_region
      _
    $region13: #{glenet5_forward.1} parent=1 // pred_fallthru
      _
    // Predicated region
    $region14: #{glenet5_forward.1} parent=1 // pred_check
      _
    $region15: #{glenet5_forward.1} parent=1 // pred_check_branch
      %24 = sbr.rel (0) target = $region17
    $region16: #{glenet5_forward.1} parent=1 // pred_region
      _
    $region17: #{glenet5_forward.1} parent=1 // pred_fallthru
      _
    // Predicated region
    $region18: #{glenet5_forward.1} parent=1 // pred_check
      _
    $region19: #{glenet5_forward.1} parent=1 // pred_check_branch
      %26 = sbr.rel (0) target = $region21
    $region20: #{glenet5_forward.1} parent=1 // pred_region
      _
    $region21: #{glenet5_forward.1} parent=1 // pred_fallthru
      _
    // Predicated region
    $region22: #{glenet5_forward.1} parent=1 // pred_check
      _
    $region23: #{glenet5_forward.1} parent=1 // pred_check_branch
      %28 = sbr.rel (0) target = $region25
    $region24: #{glenet5_forward.1} parent=1 // pred_region
      _
    $region25: #{glenet5_forward.1} parent=1 // pred_fallthru
      _
    // Predicated region
    $region26: #{glenet5_forward.1} parent=1 // pred_check
      _
    $region27: #{glenet5_forward.1} parent=1 // pred_check_branch
      %30 = sbr.rel (0) target = $region29
    $region28: #{glenet5_forward.1} parent=1 // pred_region
      _
    $region29: #{glenet5_forward.1} parent=1 // pred_fallthru
      _
    // Predicated region
    $region30: #{glenet5_forward.1} parent=1 // pred_check
      _
    $region31: #{glenet5_forward.1} parent=1 // pred_check_branch
      %32 = sbr.rel (0) target = $region33
    $region32: #{glenet5_forward.1} parent=1 // pred_region
      _
    $region33: #{glenet5_forward.1} parent=1 // pred_fallthru
      _
    // Predicated region
    $region34: #{glenet5_forward.1} parent=1 // pred_check
      _
    $region35: #{glenet5_forward.1} parent=1 // pred_check_branch
      %34 = sbr.rel (0) target = $region37
    $region36: #{glenet5_forward.1} parent=1 // pred_region
      _
    $region37: #{glenet5_forward.1} parent=1 // pred_fallthru
      _
    // Predicated region
    $region38: #{glenet5_forward.1} parent=1 // pred_check
      _
    $region39: #{glenet5_forward.1} parent=1 // pred_check_branch
      %36 = sbr.rel (0) target = $region41
    $region40: #{glenet5_forward.1} parent=1 // pred_region
      _
    $region41: #{glenet5_forward.1} parent=1 // pred_fallthru
      _
    // Predicated region
    $region42: #{glenet5_forward.1} parent=1 // pred_check
      _
    $region43: #{glenet5_forward.1} parent=1 // pred_check_branch
      %38 = sbr.rel (0) target = $region45
    $region44: #{glenet5_forward.1} parent=1 // pred_region
      _
    $region45: #{glenet5_forward.1} parent=1 // pred_fallthru
      _
    %v40 = vld [vmem:[%s0] sm:$0xf]
    %v41 = vld [vmem:[%s0 + $0x4] sm:$0xf]
    %v42 = vld [vmem:[%s0 + $0x8] sm:$0xf]
    %v43 = vld [vmem:[%s0 + $0xc] sm:$0xf]
    %v44 = vld [vmem:[%s0 + $0x14] sm:$0xf]
    %v45 = vld [vmem:[%s0 + $0x18] sm:$0xf]
    %v46 = vld [vmem:[%s0 + $0x1c] sm:$0xf]
    %v47 = vld [vmem:[%s0 + $0x20] sm:$0xf]
    %v48 = vld [vmem:[%s1] sm:$0xff]
    %v49 = vld [vmem:[%s1 + $0x8] sm:$0xff]
    %v50 = vld [vmem:[%s1 + $0x10] sm:$0xff]
    %v51 = vld [vmem:[%s1 + $0x18] sm:$0xff]
    %v52 = vld [vmem:[%s1 + $0x20] sm:$0xff]
    %v53 = vld [vmem:[%s1 + $0x28] sm:$0xff]
    %v54 = vld [vmem:[%s1 + $0x30] sm:$0xff]
    %v55 = vld [vmem:[%s1 + $0x38] sm:$0xff]
    %v56 = vld [vmem:[%s2] sm:$0xff]
    %v57 = vld [vmem:[%s2 + $0x8] sm:$0xff]
    %v58 = vld [vmem:[%s2 + $0x10] sm:$0xff]
    %v59 = vld [vmem:[%s2 + $0x18] sm:$0xff]
    %v60 = vld [vmem:[%s2 + $0x20] sm:$0xff]
    %v61 = vld [vmem:[%s2 + $0x28] sm:$0xff]
    %v62 = vld [vmem:[%s2 + $0x30] sm:$0xff]
    %v63 = vld [vmem:[%s2 + $0x38] sm:$0xff]
    %v64 = vld [vmem:[%s0 + $0x10] sm:$0x1]
    %v65 = vld [vmem:[%s0 + $0x24] sm:$0x1]
    %vm66 = vsmask.f32 3328
    %vm67 = vsmask.f32 7440
    %vm68 = vmor %vm66, %vm67
    %v70 = vshrl.u32 %v40, 16
    %v72 = vrot.slane %v70, 4
    %v73 = vshll.u32 %v40, 16
    %v75 = vrot.slane %v73, 5
    %v76 = vor.u32 %v72, %v75
    %v77 = vrot.slane %v76, 4
    %v79 = vshll.u32 %v41, 16
    %v81 = vrot.slane %v79, 5
    %v82 = vsel %vm68, %v77, %v81
    %v83 = vshrl.u32 %v41, 16
    %v85 = vrot.slane %v83, 4
    %v86 = vor.u32 %v85, %v81
    %v87 = vrot.slane %v86, 4
    %v89 = vshll.u32 %v42, 16
    %v91 = vrot.slane %v89, 5
    %v92 = vsel %vm68, %v87, %v91
    %v93 = vshrl.u32 %v42, 16
    %v95 = vrot.slane %v93, 4
    %v96 = vor.u32 %v95, %v91
    %v97 = vrot.slane %v96, 4
    %v99 = vshll.u32 %v43, 16
    %v101 = vrot.slane %v99, 5
    %v102 = vsel %vm68, %v97, %v101
    %v103 = vshrl.u32 %v43, 16
    %v105 = vrot.slane %v103, 4
    %v106 = vor.u32 %v105, %v101
    %v107 = vrot.slane %v106, 4
    %v109 = vshll.u32 %v64, 16
    %v111 = vrot.slane %v109, 5
    %v112 = vsel %vm68, %v107, %v111
    %v114 = vshrl.u32 %v44, 16
    %v116 = vrot.slane %v114, 4
    %v117 = vshll.u32 %v44, 16
    %v119 = vrot.slane %v117, 5
    %v120 = vor.u32 %v116, %v119
    %v121 = vrot.slane %v120, 4
    %v123 = vshll.u32 %v45, 16
    %v125 = vrot.slane %v123, 5
    %v126 = vsel %vm68, %v121, %v125
    %v127 = vshrl.u32 %v45, 16
    %v129 = vrot.slane %v127, 4
    %v130 = vor.u32 %v129, %v125
    %v131 = vrot.slane %v130, 4
    %v133 = vshll.u32 %v46, 16
    %v135 = vrot.slane %v133, 5
    %v136 = vsel %vm68, %v131, %v135
    %v137 = vshrl.u32 %v46, 16
    %v139 = vrot.slane %v137, 4
    %v140 = vor.u32 %v139, %v135
    %v141 = vrot.slane %v140, 4
    %v143 = vshll.u32 %v47, 16
    %v145 = vrot.slane %v143, 5
    %v146 = vsel %vm68, %v141, %v145
    %v147 = vshrl.u32 %v47, 16
    %v149 = vrot.slane %v147, 4
    %v150 = vor.u32 %v149, %v145
    %v151 = vrot.slane %v150, 4
    %v153 = vshll.u32 %v65, 16
    %v155 = vrot.slane %v153, 5
    %v156 = vsel %vm68, %v151, %v155
    %s157 = scalar_lea.vmem %s1, 64
    %v158 = vld [vmem:[%s157] sm:$0xff]
    %v159 = vld [vmem:[%s157 + $0x8] sm:$0xff]
    %v160 = vld [vmem:[%s157 + $0x10] sm:$0xff]
    %v161 = vld [vmem:[%s157 + $0x18] sm:$0xff]
    %v162 = vld [vmem:[%s157 + $0x20] sm:$0xff]
    %v163 = vld [vmem:[%s157 + $0x28] sm:$0xff]
    %v164 = vld [vmem:[%s157 + $0x30] sm:$0xff]
    %v165 = vld [vmem:[%s157 + $0x38] sm:$0xff]
    %v166 = vunpack.c.l.b16 %v82
    %v167 = vunpack.c.l.b16 %v92
    %v168 = vunpack.c.l.b16 %v102
    %v169 = vunpack.c.l.b16 %v112
    %v170 = vunpack.c.l.b16 %v126
    %v171 = vunpack.c.l.b16 %v136
    %v172 = vunpack.c.l.b16 %v146
    %v173 = vunpack.c.l.b16 %v156
    %v174 = vpack.c.b16 %v167, %v166
    %v175 = vpack.c.b16 %v169, %v168
    %v176 = vpack.c.b16 %v171, %v170
    %v177 = vpack.c.b16 %v173, %v172
    %v186 = vunpack.c.l.b16 %v158
    %v187 = vunpack.c.h.b16 %v158
    %v188 = vunpack.c.l.b16 %v159
    %v189 = vunpack.c.h.b16 %v159
    %v190 = vunpack.c.l.b16 %v160
    %v191 = vunpack.c.h.b16 %v160
    %v192 = vunpack.c.l.b16 %v161
    %v193 = vunpack.c.h.b16 %v161
    %v194 = vunpack.c.l.b16 %v162
    %v195 = vunpack.c.h.b16 %v162
    %v196 = vunpack.c.l.b16 %v163
    %v197 = vunpack.c.h.b16 %v163
    %v198 = vunpack.c.l.b16 %v164
    %v199 = vunpack.c.h.b16 %v164
    %v200 = vunpack.c.l.b16 %v165
    %v201 = vunpack.c.h.b16 %v165
    %v202 = vpack.c.b16 %v190, %v186
    %v203 = vpack.c.b16 %v191, %v187
    %v204 = vpack.c.b16 %v192, %v188
    %v205 = vpack.c.b16 %v193, %v189
    %v206 = vpack.c.b16 %v198, %v194
    %v207 = vpack.c.b16 %v199, %v195
    %v208 = vpack.c.b16 %v200, %v196
    %v209 = vpack.c.b16 %v201, %v197
    %vm218 = vcmask 261120
    %v220 = vsel %vm218, %v174, 0
    %v223 = vsel %vm218, %v175, 0
    %v226 = vsel %vm218, %v176, 0
    %v229 = vsel %vm218, %v177, 0
    %231 = vmatprep.subr.bf16.mxu0 0
    %232 = vmatpush1.bf16.msra.mxu0 0
    %233 = vmatprep.subr.bf16.mxu0 0
    %234 = vmatpush1.bf16.msra.mxu0 0
    %235 = vmatprep.subr.bf16.mxu0 0
    %236 = vmatpush1.bf16.msra.mxu0 0
    %237 = vmatprep.subr.bf16.mxu0 0
    %238 = vmatpush1.bf16.msra.mxu0 0
    %239 = vmatprep.subr.bf16.mxu0 0
    %240 = vmatpush1.bf16.msra.mxu0 0
    %241 = vmatprep.subr.bf16.mxu0 0
    %242 = vmatpush1.bf16.msra.mxu0 0
    %243 = vmatprep.subr.bf16.mxu0 %v207
    %244 = vmatpush1.bf16.msra.mxu0 %v206
    %245 = vmatprep.subr.bf16.mxu0 %v203
    %246 = vmatpush1.bf16.msra.mxu0 %v202
    %247 = vmatprep.subr.bf16.mxu0 0
    %248 = vmatpush2.bf16.msra.mxu0 0
    %249 = vmatprep.subr.bf16.mxu0 0
    %250 = vmatpush2.bf16.msra.mxu0 0
    %251 = vmatprep.subr.bf16.mxu0 0
    %252 = vmatpush2.bf16.msra.mxu0 0
    %253 = vmatprep.subr.bf16.mxu0 0
    %254 = vmatpush2.bf16.msra.mxu0 0
    %255 = vmatprep.subr.bf16.mxu0 0
    %256 = vmatpush2.bf16.msra.mxu0 0
    %257 = vmatprep.subr.bf16.mxu0 0
    %258 = vmatpush2.bf16.msra.mxu0 0
    %259 = vmatprep.subr.bf16.mxu0 0
    %260 = vmatpush2.bf16.msra.mxu0 0
    %261 = vmatprep.subr.bf16.mxu0 0
    %262 = vmatpush2.bf16.msra.mxu0 0
    %263 = vmatprep.mubr.bf16.mxu0 0
    %264 = vmatmul.mubr.bf16.gmra.mxu0 %v220
    %v265 = vpop.f32.mrf.mxu0
    %v266 = vadd.f32 0.0, %v265
    %v267 = vpop.f32.mrf.mxu0
    %v268 = vadd.f32 0.0, %v267
    %v269 = vpop.f32.mrf.mxu0
    %v270 = vadd.f32 0.0, %v269
    %v271 = vpop.f32.mrf.mxu0
    %v272 = vadd.f32 0.0, %v271
    %273 = vmatprep.mubr.bf16.mxu0 0
    %274 = vmatmul.mubr.bf16.gmra.mxu0 %v223
    %v275 = vpop.f32.mrf.mxu0
    %v276 = vadd.f32 0.0, %v275
    %v277 = vpop.f32.mrf.mxu0
    %v278 = vadd.f32 0.0, %v277
    %v279 = vpop.f32.mrf.mxu0
    %v280 = vadd.f32 0.0, %v279
    %v281 = vpop.f32.mrf.mxu0
    %v282 = vadd.f32 0.0, %v281
    %283 = vmatprep.mubr.bf16.mxu0 0
    %284 = vmatmul.mubr.bf16.gmra.mxu0 %v226
    %v285 = vpop.f32.mrf.mxu0
    %v286 = vadd.f32 0.0, %v285
    %v287 = vpop.f32.mrf.mxu0
    %v288 = vadd.f32 0.0, %v287
    %v289 = vpop.f32.mrf.mxu0
    %v290 = vadd.f32 0.0, %v289
    %v291 = vpop.f32.mrf.mxu0
    %v292 = vadd.f32 0.0, %v291
    %293 = vmatprep.mubr.bf16.mxu0 0
    %294 = vmatmul.mubr.bf16.gmra.mxu0 %v229
    %v295 = vpop.f32.mrf.mxu0
    %v296 = vadd.f32 0.0, %v295
    %v297 = vpop.f32.mrf.mxu0
    %v298 = vadd.f32 0.0, %v297
    %v299 = vpop.f32.mrf.mxu0
    %v300 = vadd.f32 0.0, %v299
    %v301 = vpop.f32.mrf.mxu0
    %v302 = vadd.f32 0.0, %v301
    %303 = vdwg.mxu0
    %304 = vmatprep.subr.bf16.mxu0 0
    %305 = vmatpush1.bf16.msra.mxu0 0
    %306 = vmatprep.subr.bf16.mxu0 0
    %307 = vmatpush1.bf16.msra.mxu0 0
    %308 = vmatprep.subr.bf16.mxu0 0
    %309 = vmatpush1.bf16.msra.mxu0 0
    %310 = vmatprep.subr.bf16.mxu0 0
    %311 = vmatpush1.bf16.msra.mxu0 0
    %312 = vmatprep.subr.bf16.mxu0 0
    %313 = vmatpush1.bf16.msra.mxu0 0
    %314 = vmatprep.subr.bf16.mxu0 0
    %315 = vmatpush1.bf16.msra.mxu0 0
    %316 = vmatprep.subr.bf16.mxu0 %v209
    %317 = vmatpush1.bf16.msra.mxu0 %v208
    %318 = vmatprep.subr.bf16.mxu0 %v205
    %319 = vmatpush1.bf16.msra.mxu0 %v204
    %320 = vmatprep.subr.bf16.mxu0 0
    %321 = vmatpush2.bf16.msra.mxu0 0
    %322 = vmatprep.subr.bf16.mxu0 0
    %323 = vmatpush2.bf16.msra.mxu0 0
    %324 = vmatprep.subr.bf16.mxu0 0
    %325 = vmatpush2.bf16.msra.mxu0 0
    %326 = vmatprep.subr.bf16.mxu0 0
    %327 = vmatpush2.bf16.msra.mxu0 0
    %328 = vmatprep.subr.bf16.mxu0 0
    %329 = vmatpush2.bf16.msra.mxu0 0
    %330 = vmatprep.subr.bf16.mxu0 0
    %331 = vmatpush2.bf16.msra.mxu0 0
    %332 = vmatprep.subr.bf16.mxu0 0
    %333 = vmatpush2.bf16.msra.mxu0 0
    %334 = vmatprep.subr.bf16.mxu0 0
    %335 = vmatpush2.bf16.msra.mxu0 0
    %336 = vmatprep.mubr.bf16.mxu0 0
    %337 = vmatmul.mubr.bf16.gmra.mxu0 %v220
    %v338 = vpop.f32.mrf.mxu0
    %v339 = vadd.f32 0.0, %v338
    %v340 = vpop.f32.mrf.mxu0
    %v341 = vadd.f32 0.0, %v340
    %v342 = vpop.f32.mrf.mxu0
    %v343 = vadd.f32 0.0, %v342
    %v344 = vpop.f32.mrf.mxu0
    %v345 = vadd.f32 0.0, %v344
    %346 = vmatprep.mubr.bf16.mxu0 0
    %347 = vmatmul.mubr.bf16.gmra.mxu0 %v223
    %v348 = vpop.f32.mrf.mxu0
    %v349 = vadd.f32 0.0, %v348
    %v350 = vpop.f32.mrf.mxu0
    %v351 = vadd.f32 0.0, %v350
    %v352 = vpop.f32.mrf.mxu0
    %v353 = vadd.f32 0.0, %v352
    %v354 = vpop.f32.mrf.mxu0
    %v355 = vadd.f32 0.0, %v354
    %356 = vmatprep.mubr.bf16.mxu0 0
    %357 = vmatmul.mubr.bf16.gmra.mxu0 %v226
    %v358 = vpop.f32.mrf.mxu0
    %v359 = vadd.f32 0.0, %v358
    %v360 = vpop.f32.mrf.mxu0
    %v361 = vadd.f32 0.0, %v360
    %v362 = vpop.f32.mrf.mxu0
    %v363 = vadd.f32 0.0, %v362
    %v364 = vpop.f32.mrf.mxu0
    %v365 = vadd.f32 0.0, %v364
    %366 = vmatprep.mubr.bf16.mxu0 0
    %367 = vmatmul.mubr.bf16.gmra.mxu0 %v229
    %v368 = vpop.f32.mrf.mxu0
    %v369 = vadd.f32 0.0, %v368
    %v370 = vpop.f32.mrf.mxu0
    %v371 = vadd.f32 0.0, %v370
    %v372 = vpop.f32.mrf.mxu0
    %v373 = vadd.f32 0.0, %v372
    %v374 = vpop.f32.mrf.mxu0
    %v375 = vadd.f32 0.0, %v374
    %376 = vdwg.mxu0
    %s377 = scalar_lea.vmem %s2, 64
    %v378 = vld [vmem:[%s377] sm:$0xff]
    %v379 = vld [vmem:[%s377 + $0x8] sm:$0xff]
    %v380 = vld [vmem:[%s377 + $0x10] sm:$0xff]
    %v381 = vld [vmem:[%s377 + $0x18] sm:$0xff]
    %v382 = vld [vmem:[%s377 + $0x20] sm:$0xff]
    %v383 = vld [vmem:[%s377 + $0x28] sm:$0xff]
    %v384 = vld [vmem:[%s377 + $0x30] sm:$0xff]
    %v385 = vld [vmem:[%s377 + $0x38] sm:$0xff]
    %v394 = vunpack.c.l.b16 %v378
    %v395 = vunpack.c.h.b16 %v378
    %v396 = vunpack.c.l.b16 %v379
    %v397 = vunpack.c.h.b16 %v379
    %v398 = vunpack.c.l.b16 %v380
    %v399 = vunpack.c.h.b16 %v380
    %v400 = vunpack.c.l.b16 %v381
    %v401 = vunpack.c.h.b16 %v381
    %v402 = vunpack.c.l.b16 %v382
    %v403 = vunpack.c.h.b16 %v382
    %v404 = vunpack.c.l.b16 %v383
    %v405 = vunpack.c.h.b16 %v383
    %v406 = vunpack.c.l.b16 %v384
    %v407 = vunpack.c.h.b16 %v384
    %v408 = vunpack.c.l.b16 %v385
    %v409 = vunpack.c.h.b16 %v385
    %v410 = vpack.c.b16 %v398, %v394
    %v411 = vpack.c.b16 %v399, %v395
    %v412 = vpack.c.b16 %v400, %v396
    %v413 = vpack.c.b16 %v401, %v397
    %v414 = vpack.c.b16 %v406, %v402
    %v415 = vpack.c.b16 %v407, %v403
    %v416 = vpack.c.b16 %v408, %v404
    %v417 = vpack.c.b16 %v409, %v405
    %426 = vmatprep.subr.bf16.mxu0 0
    %427 = vmatpush1.bf16.msra.mxu0 0
    %428 = vmatprep.subr.bf16.mxu0 0
    %429 = vmatpush1.bf16.msra.mxu0 0
    %430 = vmatprep.subr.bf16.mxu0 0
    %431 = vmatpush1.bf16.msra.mxu0 0
    %432 = vmatprep.subr.bf16.mxu0 0
    %433 = vmatpush1.bf16.msra.mxu0 0
    %434 = vmatprep.subr.bf16.mxu0 0
    %435 = vmatpush1.bf16.msra.mxu0 0
    %436 = vmatprep.subr.bf16.mxu0 0
    %437 = vmatpush1.bf16.msra.mxu0 0
    %438 = vmatprep.subr.bf16.mxu0 %v415
    %439 = vmatpush1.bf16.msra.mxu0 %v414
    %440 = vmatprep.subr.bf16.mxu0 %v411
    %441 = vmatpush1.bf16.msra.mxu0 %v410
    %442 = vmatprep.subr.bf16.mxu0 0
    %443 = vmatpush2.bf16.msra.mxu0 0
    %444 = vmatprep.subr.bf16.mxu0 0
    %445 = vmatpush2.bf16.msra.mxu0 0
    %446 = vmatprep.subr.bf16.mxu0 0
    %447 = vmatpush2.bf16.msra.mxu0 0
    %448 = vmatprep.subr.bf16.mxu0 0
    %449 = vmatpush2.bf16.msra.mxu0 0
    %450 = vmatprep.subr.bf16.mxu0 0
    %451 = vmatpush2.bf16.msra.mxu0 0
    %452 = vmatprep.subr.bf16.mxu0 0
    %453 = vmatpush2.bf16.msra.mxu0 0
    %454 = vmatprep.subr.bf16.mxu0 0
    %455 = vmatpush2.bf16.msra.mxu0 0
    %456 = vmatprep.subr.bf16.mxu0 0
    %457 = vmatpush2.bf16.msra.mxu0 0
    %458 = vmatprep.mubr.bf16.mxu0 0
    %459 = vmatmul.mubr.bf16.gmra.mxu0 %v220
    %v460 = vpop.f32.mrf.mxu0
    %v461 = vadd.f32 0.0, %v460
    %v462 = vpop.f32.mrf.mxu0
    %v463 = vadd.f32 0.0, %v462
    %v464 = vpop.f32.mrf.mxu0
    %v465 = vadd.f32 0.0, %v464
    %v466 = vpop.f32.mrf.mxu0
    %v467 = vadd.f32 0.0, %v466
    %468 = vmatprep.mubr.bf16.mxu0 0
    %469 = vmatmul.mubr.bf16.gmra.mxu0 %v223
    %v470 = vpop.f32.mrf.mxu0
    %v471 = vadd.f32 0.0, %v470
    %v472 = vpop.f32.mrf.mxu0
    %v473 = vadd.f32 0.0, %v472
    %v474 = vpop.f32.mrf.mxu0
    %v475 = vadd.f32 0.0, %v474
    %v476 = vpop.f32.mrf.mxu0
    %v477 = vadd.f32 0.0, %v476
    %478 = vmatprep.mubr.bf16.mxu0 0
    %479 = vmatmul.mubr.bf16.gmra.mxu0 %v226
    %v480 = vpop.f32.mrf.mxu0
    %v481 = vadd.f32 0.0, %v480
    %v482 = vpop.f32.mrf.mxu0
    %v483 = vadd.f32 0.0, %v482
    %v484 = vpop.f32.mrf.mxu0
    %v485 = vadd.f32 0.0, %v484
    %v486 = vpop.f32.mrf.mxu0
    %v487 = vadd.f32 0.0, %v486
    %488 = vmatprep.mubr.bf16.mxu0 0
    %489 = vmatmul.mubr.bf16.gmra.mxu0 %v229
    %v490 = vpop.f32.mrf.mxu0
    %v491 = vadd.f32 0.0, %v490
    %v492 = vpop.f32.mrf.mxu0
    %v493 = vadd.f32 0.0, %v492
    %v494 = vpop.f32.mrf.mxu0
    %v495 = vadd.f32 0.0, %v494
    %v496 = vpop.f32.mrf.mxu0
    %v497 = vadd.f32 0.0, %v496
    %498 = vdwg.mxu0
    %499 = vmatprep.subr.bf16.mxu0 0
    %500 = vmatpush1.bf16.msra.mxu0 0
    %501 = vmatprep.subr.bf16.mxu0 0
    %502 = vmatpush1.bf16.msra.mxu0 0
    %503 = vmatprep.subr.bf16.mxu0 0
    %504 = vmatpush1.bf16.msra.mxu0 0
    %505 = vmatprep.subr.bf16.mxu0 0
    %506 = vmatpush1.bf16.msra.mxu0 0
    %507 = vmatprep.subr.bf16.mxu0 0
    %508 = vmatpush1.bf16.msra.mxu0 0
    %509 = vmatprep.subr.bf16.mxu0 0
    %510 = vmatpush1.bf16.msra.mxu0 0
    %511 = vmatprep.subr.bf16.mxu0 %v417
    %512 = vmatpush1.bf16.msra.mxu0 %v416
    %513 = vmatprep.subr.bf16.mxu0 %v413
    %514 = vmatpush1.bf16.msra.mxu0 %v412
    %515 = vmatprep.subr.bf16.mxu0 0
    %516 = vmatpush2.bf16.msra.mxu0 0
    %517 = vmatprep.subr.bf16.mxu0 0
    %518 = vmatpush2.bf16.msra.mxu0 0
    %519 = vmatprep.subr.bf16.mxu0 0
    %520 = vmatpush2.bf16.msra.mxu0 0
    %521 = vmatprep.subr.bf16.mxu0 0
    %522 = vmatpush2.bf16.msra.mxu0 0
    %523 = vmatprep.subr.bf16.mxu0 0
    %524 = vmatpush2.bf16.msra.mxu0 0
    %525 = vmatprep.subr.bf16.mxu0 0
    %526 = vmatpush2.bf16.msra.mxu0 0
    %527 = vmatprep.subr.bf16.mxu0 0
    %528 = vmatpush2.bf16.msra.mxu0 0
    %529 = vmatprep.subr.bf16.mxu0 0
    %530 = vmatpush2.bf16.msra.mxu0 0
    %531 = vmatprep.mubr.bf16.mxu0 0
    %532 = vmatmul.mubr.bf16.gmra.mxu0 %v220
    %v533 = vpop.f32.mrf.mxu0
    %v534 = vadd.f32 0.0, %v533
    %v535 = vpop.f32.mrf.mxu0
    %v536 = vadd.f32 0.0, %v535
    %v537 = vpop.f32.mrf.mxu0
    %v538 = vadd.f32 0.0, %v537
    %v539 = vpop.f32.mrf.mxu0
    %v540 = vadd.f32 0.0, %v539
    %541 = vmatprep.mubr.bf16.mxu0 0
    %542 = vmatmul.mubr.bf16.gmra.mxu0 %v223
    %v543 = vpop.f32.mrf.mxu0
    %v544 = vadd.f32 0.0, %v543
    %v545 = vpop.f32.mrf.mxu0
    %v546 = vadd.f32 0.0, %v545
    %v547 = vpop.f32.mrf.mxu0
    %v548 = vadd.f32 0.0, %v547
    %v549 = vpop.f32.mrf.mxu0
    %v550 = vadd.f32 0.0, %v549
    %551 = vmatprep.mubr.bf16.mxu0 0
    %552 = vmatmul.mubr.bf16.gmra.mxu0 %v226
    %v553 = vpop.f32.mrf.mxu0
    %v554 = vadd.f32 0.0, %v553
    %v555 = vpop.f32.mrf.mxu0
    %v556 = vadd.f32 0.0, %v555
    %v557 = vpop.f32.mrf.mxu0
    %v558 = vadd.f32 0.0, %v557
    %v559 = vpop.f32.mrf.mxu0
    %v560 = vadd.f32 0.0, %v559
    %561 = vmatprep.mubr.bf16.mxu0 0
    %562 = vmatmul.mubr.bf16.gmra.mxu0 %v229
    %v563 = vpop.f32.mrf.mxu0
    %v564 = vadd.f32 0.0, %v563
    %v565 = vpop.f32.mrf.mxu0
    %v566 = vadd.f32 0.0, %v565
    %v567 = vpop.f32.mrf.mxu0
    %v568 = vadd.f32 0.0, %v567
    %v569 = vpop.f32.mrf.mxu0
    %v570 = vadd.f32 0.0, %v569
    %571 = vdwg.mxu0
    %v580 = vunpack.c.l.b16 %v40
    %v581 = vunpack.c.l.b16 %v41
    %v582 = vunpack.c.l.b16 %v42
    %v583 = vunpack.c.l.b16 %v43
    %v584 = vunpack.c.l.b16 %v44
    %v585 = vunpack.c.l.b16 %v45
    %v586 = vunpack.c.l.b16 %v46
    %v587 = vunpack.c.l.b16 %v47
    %v588 = vpack.c.b16 %v581, %v580
    %v589 = vpack.c.b16 %v583, %v582
    %v590 = vpack.c.b16 %v585, %v584
    %v591 = vpack.c.b16 %v587, %v586
    %v600 = vunpack.c.l.b16 %v48
    %v601 = vunpack.c.h.b16 %v48
    %v602 = vunpack.c.l.b16 %v49
    %v603 = vunpack.c.h.b16 %v49
    %v604 = vunpack.c.l.b16 %v50
    %v605 = vunpack.c.h.b16 %v50
    %v606 = vunpack.c.l.b16 %v51
    %v607 = vunpack.c.h.b16 %v51
    %v608 = vunpack.c.l.b16 %v52
    %v609 = vunpack.c.h.b16 %v52
    %v610 = vunpack.c.l.b16 %v53
    %v611 = vunpack.c.h.b16 %v53
    %v612 = vunpack.c.l.b16 %v54
    %v613 = vunpack.c.h.b16 %v54
    %v614 = vunpack.c.l.b16 %v55
    %v615 = vunpack.c.h.b16 %v55
    %v616 = vpack.c.b16 %v604, %v600
    %v617 = vpack.c.b16 %v605, %v601
    %v618 = vpack.c.b16 %v606, %v602
    %v619 = vpack.c.b16 %v607, %v603
    %v620 = vpack.c.b16 %v612, %v608
    %v621 = vpack.c.b16 %v613, %v609
    %v622 = vpack.c.b16 %v614, %v610
    %v623 = vpack.c.b16 %v615, %v611
    %v633 = vsel %vm218, %v588, 0
    %v636 = vsel %vm218, %v589, 0
    %v639 = vsel %vm218, %v590, 0
    %v642 = vsel %vm218, %v591, 0
    %644 = vmatprep.subr.bf16.mxu0 0
    %645 = vmatpush1.bf16.msra.mxu0 0
    %646 = vmatprep.subr.bf16.mxu0 0
    %647 = vmatpush1.bf16.msra.mxu0 0
    %648 = vmatprep.subr.bf16.mxu0 0
    %649 = vmatpush1.bf16.msra.mxu0 0
    %650 = vmatprep.subr.bf16.mxu0 0
    %651 = vmatpush1.bf16.msra.mxu0 0
    %652 = vmatprep.subr.bf16.mxu0 0
    %653 = vmatpush1.bf16.msra.mxu0 0
    %654 = vmatprep.subr.bf16.mxu0 0
    %655 = vmatpush1.bf16.msra.mxu0 0
    %656 = vmatprep.subr.bf16.mxu0 %v621
    %657 = vmatpush1.bf16.msra.mxu0 %v620
    %658 = vmatprep.subr.bf16.mxu0 %v617
    %659 = vmatpush1.bf16.msra.mxu0 %v616
    %660 = vmatprep.subr.bf16.mxu0 0
    %661 = vmatpush2.bf16.msra.mxu0 0
    %662 = vmatprep.subr.bf16.mxu0 0
    %663 = vmatpush2.bf16.msra.mxu0 0
    %664 = vmatprep.subr.bf16.mxu0 0
    %665 = vmatpush2.bf16.msra.mxu0 0
    %666 = vmatprep.subr.bf16.mxu0 0
    %667 = vmatpush2.bf16.msra.mxu0 0
    %668 = vmatprep.subr.bf16.mxu0 0
    %669 = vmatpush2.bf16.msra.mxu0 0
    %670 = vmatprep.subr.bf16.mxu0 0
    %671 = vmatpush2.bf16.msra.mxu0 0
    %672 = vmatprep.subr.bf16.mxu0 0
    %673 = vmatpush2.bf16.msra.mxu0 0
    %674 = vmatprep.subr.bf16.mxu0 0
    %675 = vmatpush2.bf16.msra.mxu0 0
    %676 = vmatprep.mubr.bf16.mxu0 0
    %677 = vmatmul.mubr.bf16.gmra.mxu0 %v633
    %v678 = vpop.f32.mrf.mxu0
    %v679 = vadd.f32 %v266, %v678
    %v680 = vpop.f32.mrf.mxu0
    %v681 = vadd.f32 %v268, %v680
    %v682 = vpop.f32.mrf.mxu0
    %v683 = vadd.f32 %v270, %v682
    %v684 = vpop.f32.mrf.mxu0
    %v685 = vadd.f32 %v272, %v684
    %686 = vmatprep.mubr.bf16.mxu0 0
    %687 = vmatmul.mubr.bf16.gmra.mxu0 %v636
    %v688 = vpop.f32.mrf.mxu0
    %v689 = vadd.f32 %v276, %v688
    %v690 = vpop.f32.mrf.mxu0
    %v691 = vadd.f32 %v278, %v690
    %v692 = vpop.f32.mrf.mxu0
    %v693 = vadd.f32 %v280, %v692
    %v694 = vpop.f32.mrf.mxu0
    %v695 = vadd.f32 %v282, %v694
    %696 = vmatprep.mubr.bf16.mxu0 0
    %697 = vmatmul.mubr.bf16.gmra.mxu0 %v639
    %v698 = vpop.f32.mrf.mxu0
    %v699 = vadd.f32 %v286, %v698
    %v700 = vpop.f32.mrf.mxu0
    %v701 = vadd.f32 %v288, %v700
    %v702 = vpop.f32.mrf.mxu0
    %v703 = vadd.f32 %v290, %v702
    %v704 = vpop.f32.mrf.mxu0
    %v705 = vadd.f32 %v292, %v704
    %706 = vmatprep.mubr.bf16.mxu0 0
    %707 = vmatmul.mubr.bf16.gmra.mxu0 %v642
    %v708 = vpop.f32.mrf.mxu0
    %v709 = vadd.f32 %v296, %v708
    %v710 = vpop.f32.mrf.mxu0
    %v711 = vadd.f32 %v298, %v710
    %v712 = vpop.f32.mrf.mxu0
    %v713 = vadd.f32 %v300, %v712
    %v714 = vpop.f32.mrf.mxu0
    %v715 = vadd.f32 %v302, %v714
    %716 = vdwg.mxu0
    %717 = vmatprep.subr.bf16.mxu0 0
    %718 = vmatpush1.bf16.msra.mxu0 0
    %719 = vmatprep.subr.bf16.mxu0 0
    %720 = vmatpush1.bf16.msra.mxu0 0
    %721 = vmatprep.subr.bf16.mxu0 0
    %722 = vmatpush1.bf16.msra.mxu0 0
    %723 = vmatprep.subr.bf16.mxu0 0
    %724 = vmatpush1.bf16.msra.mxu0 0
    %725 = vmatprep.subr.bf16.mxu0 0
    %726 = vmatpush1.bf16.msra.mxu0 0
    %727 = vmatprep.subr.bf16.mxu0 0
    %728 = vmatpush1.bf16.msra.mxu0 0
    %729 = vmatprep.subr.bf16.mxu0 %v623
    %730 = vmatpush1.bf16.msra.mxu0 %v622
    %731 = vmatprep.subr.bf16.mxu0 %v619
    %732 = vmatpush1.bf16.msra.mxu0 %v618
    %733 = vmatprep.subr.bf16.mxu0 0
    %734 = vmatpush2.bf16.msra.mxu0 0
    %735 = vmatprep.subr.bf16.mxu0 0
    %736 = vmatpush2.bf16.msra.mxu0 0
    %737 = vmatprep.subr.bf16.mxu0 0
    %738 = vmatpush2.bf16.msra.mxu0 0
    %739 = vmatprep.subr.bf16.mxu0 0
    %740 = vmatpush2.bf16.msra.mxu0 0
    %741 = vmatprep.subr.bf16.mxu0 0
    %742 = vmatpush2.bf16.msra.mxu0 0
    %743 = vmatprep.subr.bf16.mxu0 0
    %744 = vmatpush2.bf16.msra.mxu0 0
    %745 = vmatprep.subr.bf16.mxu0 0
    %746 = vmatpush2.bf16.msra.mxu0 0
    %747 = vmatprep.subr.bf16.mxu0 0
    %748 = vmatpush2.bf16.msra.mxu0 0
    %749 = vmatprep.mubr.bf16.mxu0 0
    %750 = vmatmul.mubr.bf16.gmra.mxu0 %v633
    %v751 = vpop.f32.mrf.mxu0
    %v752 = vadd.f32 %v339, %v751
    %v753 = vpop.f32.mrf.mxu0
    %v754 = vadd.f32 %v341, %v753
    %v755 = vpop.f32.mrf.mxu0
    %v756 = vadd.f32 %v343, %v755
    %v757 = vpop.f32.mrf.mxu0
    %v758 = vadd.f32 %v345, %v757
    %759 = vmatprep.mubr.bf16.mxu0 0
    %760 = vmatmul.mubr.bf16.gmra.mxu0 %v636
    %v761 = vpop.f32.mrf.mxu0
    %v762 = vadd.f32 %v349, %v761
    %v763 = vpop.f32.mrf.mxu0
    %v764 = vadd.f32 %v351, %v763
    %v765 = vpop.f32.mrf.mxu0
    %v766 = vadd.f32 %v353, %v765
    %v767 = vpop.f32.mrf.mxu0
    %v768 = vadd.f32 %v355, %v767
    %769 = vmatprep.mubr.bf16.mxu0 0
    %770 = vmatmul.mubr.bf16.gmra.mxu0 %v639
    %v771 = vpop.f32.mrf.mxu0
    %v772 = vadd.f32 %v359, %v771
    %v773 = vpop.f32.mrf.mxu0
    %v774 = vadd.f32 %v361, %v773
    %v775 = vpop.f32.mrf.mxu0
    %v776 = vadd.f32 %v363, %v775
    %v777 = vpop.f32.mrf.mxu0
    %v778 = vadd.f32 %v365, %v777
    %779 = vmatprep.mubr.bf16.mxu0 0
    %780 = vmatmul.mubr.bf16.gmra.mxu0 %v642
    %v781 = vpop.f32.mrf.mxu0
    %v782 = vadd.f32 %v369, %v781
    %v783 = vpop.f32.mrf.mxu0
    %v784 = vadd.f32 %v371, %v783
    %v785 = vpop.f32.mrf.mxu0
    %v786 = vadd.f32 %v373, %v785
    %v787 = vpop.f32.mrf.mxu0
    %v788 = vadd.f32 %v375, %v787
    %789 = vdwg.mxu0
    %v798 = vunpack.c.l.b16 %v56
    %v799 = vunpack.c.h.b16 %v56
    %v800 = vunpack.c.l.b16 %v57
    %v801 = vunpack.c.h.b16 %v57
    %v802 = vunpack.c.l.b16 %v58
    %v803 = vunpack.c.h.b16 %v58
    %v804 = vunpack.c.l.b16 %v59
    %v805 = vunpack.c.h.b16 %v59
    %v806 = vunpack.c.l.b16 %v60
    %v807 = vunpack.c.h.b16 %v60
    %v808 = vunpack.c.l.b16 %v61
    %v809 = vunpack.c.h.b16 %v61
    %v810 = vunpack.c.l.b16 %v62
    %v811 = vunpack.c.h.b16 %v62
    %v812 = vunpack.c.l.b16 %v63
    %v813 = vunpack.c.h.b16 %v63
    %v814 = vpack.c.b16 %v802, %v798
    %v815 = vpack.c.b16 %v803, %v799
    %v816 = vpack.c.b16 %v804, %v800
    %v817 = vpack.c.b16 %v805, %v801
    %v818 = vpack.c.b16 %v810, %v806
    %v819 = vpack.c.b16 %v811, %v807
    %v820 = vpack.c.b16 %v812, %v808
    %v821 = vpack.c.b16 %v813, %v809
    %830 = vmatprep.subr.bf16.mxu0 0
    %831 = vmatpush1.bf16.msra.mxu0 0
    %832 = vmatprep.subr.bf16.mxu0 0
    %833 = vmatpush1.bf16.msra.mxu0 0
    %834 = vmatprep.subr.bf16.mxu0 0
    %835 = vmatpush1.bf16.msra.mxu0 0
    %836 = vmatprep.subr.bf16.mxu0 0
    %837 = vmatpush1.bf16.msra.mxu0 0
    %838 = vmatprep.subr.bf16.mxu0 0
    %839 = vmatpush1.bf16.msra.mxu0 0
    %840 = vmatprep.subr.bf16.mxu0 0
    %841 = vmatpush1.bf16.msra.mxu0 0
    %842 = vmatprep.subr.bf16.mxu0 %v819
    %843 = vmatpush1.bf16.msra.mxu0 %v818
    %844 = vmatprep.subr.bf16.mxu0 %v815
    %845 = vmatpush1.bf16.msra.mxu0 %v814
    %846 = vmatprep.subr.bf16.mxu0 0
    %847 = vmatpush2.bf16.msra.mxu0 0
    %848 = vmatprep.subr.bf16.mxu0 0
    %849 = vmatpush2.bf16.msra.mxu0 0
    %850 = vmatprep.subr.bf16.mxu0 0
    %851 = vmatpush2.bf16.msra.mxu0 0
    %852 = vmatprep.subr.bf16.mxu0 0
    %853 = vmatpush2.bf16.msra.mxu0 0
    %854 = vmatprep.subr.bf16.mxu0 0
    %855 = vmatpush2.bf16.msra.mxu0 0
    %856 = vmatprep.subr.bf16.mxu0 0
    %857 = vmatpush2.bf16.msra.mxu0 0
    %858 = vmatprep.subr.bf16.mxu0 0
    %859 = vmatpush2.bf16.msra.mxu0 0
    %860 = vmatprep.subr.bf16.mxu0 0
    %861 = vmatpush2.bf16.msra.mxu0 0
    %862 = vmatprep.mubr.bf16.mxu0 0
    %863 = vmatmul.mubr.bf16.gmra.mxu0 %v633
    %v864 = vpop.f32.mrf.mxu0
    %v865 = vadd.f32 %v461, %v864
    %v866 = vpop.f32.mrf.mxu0
    %v867 = vadd.f32 %v463, %v866
    %v868 = vpop.f32.mrf.mxu0
    %v869 = vadd.f32 %v465, %v868
    %v870 = vpop.f32.mrf.mxu0
    %v871 = vadd.f32 %v467, %v870
    %872 = vmatprep.mubr.bf16.mxu0 0
    %873 = vmatmul.mubr.bf16.gmra.mxu0 %v636
    %v874 = vpop.f32.mrf.mxu0
    %v875 = vadd.f32 %v471, %v874
    %v876 = vpop.f32.mrf.mxu0
    %v877 = vadd.f32 %v473, %v876
    %v878 = vpop.f32.mrf.mxu0
    %v879 = vadd.f32 %v475, %v878
    %v880 = vpop.f32.mrf.mxu0
    %v881 = vadd.f32 %v477, %v880
    %882 = vmatprep.mubr.bf16.mxu0 0
    %883 = vmatmul.mubr.bf16.gmra.mxu0 %v639
    %v884 = vpop.f32.mrf.mxu0
    %v885 = vadd.f32 %v481, %v884
    %v886 = vpop.f32.mrf.mxu0
    %v887 = vadd.f32 %v483, %v886
    %v888 = vpop.f32.mrf.mxu0
    %v889 = vadd.f32 %v485, %v888
    %v890 = vpop.f32.mrf.mxu0
    %v891 = vadd.f32 %v487, %v890
    %892 = vmatprep.mubr.bf16.mxu0 0
    %893 = vmatmul.mubr.bf16.gmra.mxu0 %v642
    %v894 = vpop.f32.mrf.mxu0
    %v895 = vadd.f32 %v491, %v894
    %v896 = vpop.f32.mrf.mxu0
    %v897 = vadd.f32 %v493, %v896
    %v898 = vpop.f32.mrf.mxu0
    %v899 = vadd.f32 %v495, %v898
    %v900 = vpop.f32.mrf.mxu0
    %v901 = vadd.f32 %v497, %v900
    %902 = vdwg.mxu0
    %903 = vmatprep.subr.bf16.mxu0 0
    %904 = vmatpush1.bf16.msra.mxu0 0
    %905 = vmatprep.subr.bf16.mxu0 0
    %906 = vmatpush1.bf16.msra.mxu0 0
    %907 = vmatprep.subr.bf16.mxu0 0
    %908 = vmatpush1.bf16.msra.mxu0 0
    %909 = vmatprep.subr.bf16.mxu0 0
    %910 = vmatpush1.bf16.msra.mxu0 0
    %911 = vmatprep.subr.bf16.mxu0 0
    %912 = vmatpush1.bf16.msra.mxu0 0
    %913 = vmatprep.subr.bf16.mxu0 0
    %914 = vmatpush1.bf16.msra.mxu0 0
    %915 = vmatprep.subr.bf16.mxu0 %v821
    %916 = vmatpush1.bf16.msra.mxu0 %v820
    %917 = vmatprep.subr.bf16.mxu0 %v817
    %918 = vmatpush1.bf16.msra.mxu0 %v816
    %919 = vmatprep.subr.bf16.mxu0 0
    %920 = vmatpush2.bf16.msra.mxu0 0
    %921 = vmatprep.subr.bf16.mxu0 0
    %922 = vmatpush2.bf16.msra.mxu0 0
    %923 = vmatprep.subr.bf16.mxu0 0
    %924 = vmatpush2.bf16.msra.mxu0 0
    %925 = vmatprep.subr.bf16.mxu0 0
    %926 = vmatpush2.bf16.msra.mxu0 0
    %927 = vmatprep.subr.bf16.mxu0 0
    %928 = vmatpush2.bf16.msra.mxu0 0
    %929 = vmatprep.subr.bf16.mxu0 0
    %930 = vmatpush2.bf16.msra.mxu0 0
    %931 = vmatprep.subr.bf16.mxu0 0
    %932 = vmatpush2.bf16.msra.mxu0 0
    %933 = vmatprep.subr.bf16.mxu0 0
    %934 = vmatpush2.bf16.msra.mxu0 0
    %935 = vmatprep.mubr.bf16.mxu0 0
    %936 = vmatmul.mubr.bf16.gmra.mxu0 %v633
    %v937 = vpop.f32.mrf.mxu0
    %v938 = vadd.f32 %v534, %v937
    %v939 = vpop.f32.mrf.mxu0
    %v940 = vadd.f32 %v536, %v939
    %v941 = vpop.f32.mrf.mxu0
    %v942 = vadd.f32 %v538, %v941
    %v943 = vpop.f32.mrf.mxu0
    %v944 = vadd.f32 %v540, %v943
    %945 = vmatprep.mubr.bf16.mxu0 0
    %946 = vmatmul.mubr.bf16.gmra.mxu0 %v636
    %v947 = vpop.f32.mrf.mxu0
    %v948 = vadd.f32 %v544, %v947
    %v949 = vpop.f32.mrf.mxu0
    %v950 = vadd.f32 %v546, %v949
    %v951 = vpop.f32.mrf.mxu0
    %v952 = vadd.f32 %v548, %v951
    %v953 = vpop.f32.mrf.mxu0
    %v954 = vadd.f32 %v550, %v953
    %955 = vmatprep.mubr.bf16.mxu0 0
    %956 = vmatmul.mubr.bf16.gmra.mxu0 %v639
    %v957 = vpop.f32.mrf.mxu0
    %v958 = vadd.f32 %v554, %v957
    %v959 = vpop.f32.mrf.mxu0
    %v960 = vadd.f32 %v556, %v959
    %v961 = vpop.f32.mrf.mxu0
    %v962 = vadd.f32 %v558, %v961
    %v963 = vpop.f32.mrf.mxu0
    %v964 = vadd.f32 %v560, %v963
    %965 = vmatprep.mubr.bf16.mxu0 0
    %966 = vmatmul.mubr.bf16.gmra.mxu0 %v642
    %v967 = vpop.f32.mrf.mxu0
    %v968 = vadd.f32 %v564, %v967
    %v969 = vpop.f32.mrf.mxu0
    %v970 = vadd.f32 %v566, %v969
    %v971 = vpop.f32.mrf.mxu0
    %v972 = vadd.f32 %v568, %v971
    %v973 = vpop.f32.mrf.mxu0
    %v974 = vadd.f32 %v570, %v973
    %975 = vdwg.mxu0
    %v976 = vld [vmem:[%s0] sm:$0xe]
    %v977 = vld [vmem:[%s0 + $0x14] sm:$0xe]
    %vm982 = vcmask 1042432
    %vm983 = vcmask 1046532
    %vm984 = vmor %vm982, %vm983
    %v985 = vrot.slane %v976, 5
    %v986 = vrot.slane %v985, 4
    %v987 = vrot.slane %v41, 5
    %v988 = vsel %vm984, %v986, %v987
    %v989 = vrot.slane %v987, 4
    %v990 = vrot.slane %v42, 5
    %v991 = vsel %vm984, %v989, %v990
    %v992 = vrot.slane %v990, 4
    %v993 = vrot.slane %v43, 5
    %v994 = vsel %vm984, %v992, %v993
    %v995 = vrot.slane %v993, 4
    %v996 = vrot.slane %v64, 5
    %v997 = vsel %vm984, %v995, %v996
    %v998 = vrot.slane %v977, 5
    %v999 = vrot.slane %v998, 4
    %v1000 = vrot.slane %v45, 5
    %v1001 = vsel %vm984, %v999, %v1000
    %v1002 = vrot.slane %v1000, 4
    %v1003 = vrot.slane %v46, 5
    %v1004 = vsel %vm984, %v1002, %v1003
    %v1005 = vrot.slane %v1003, 4
    %v1006 = vrot.slane %v47, 5
    %v1007 = vsel %vm984, %v1005, %v1006
    %v1008 = vrot.slane %v1006, 4
    %v1009 = vrot.slane %v65, 5
    %v1010 = vsel %vm984, %v1008, %v1009
    %s1011 = scalar_lea.vmem %s1, 128
    %v1012 = vld [vmem:[%s1011] sm:$0xff]
    %v1013 = vld [vmem:[%s1011 + $0x8] sm:$0xff]
    %v1014 = vld [vmem:[%s1011 + $0x10] sm:$0xff]
    %v1015 = vld [vmem:[%s1011 + $0x18] sm:$0xff]
    %v1016 = vld [vmem:[%s1011 + $0x20] sm:$0xff]
    %v1017 = vld [vmem:[%s1011 + $0x28] sm:$0xff]
    %v1018 = vld [vmem:[%s1011 + $0x30] sm:$0xff]
    %v1019 = vld [vmem:[%s1011 + $0x38] sm:$0xff]
    %v1020 = vunpack.c.l.b16 %v988
    %v1021 = vunpack.c.l.b16 %v991
    %v1022 = vunpack.c.l.b16 %v994
    %v1023 = vunpack.c.l.b16 %v997
    %v1024 = vunpack.c.l.b16 %v1001
    %v1025 = vunpack.c.l.b16 %v1004
    %v1026 = vunpack.c.l.b16 %v1007
    %v1027 = vunpack.c.l.b16 %v1010
    %v1028 = vpack.c.b16 %v1021, %v1020
    %v1029 = vpack.c.b16 %v1023, %v1022
    %v1030 = vpack.c.b16 %v1025, %v1024
    %v1031 = vpack.c.b16 %v1027, %v1026
    %v1040 = vunpack.c.l.b16 %v1012
    %v1041 = vunpack.c.h.b16 %v1012
    %v1042 = vunpack.c.l.b16 %v1013
    %v1043 = vunpack.c.h.b16 %v1013
    %v1044 = vunpack.c.l.b16 %v1014
    %v1045 = vunpack.c.h.b16 %v1014
    %v1046 = vunpack.c.l.b16 %v1015
    %v1047 = vunpack.c.h.b16 %v1015
    %v1048 = vunpack.c.l.b16 %v1016
    %v1049 = vunpack.c.h.b16 %v1016
    %v1050 = vunpack.c.l.b16 %v1017
    %v1051 = vunpack.c.h.b16 %v1017
    %v1052 = vunpack.c.l.b16 %v1018
    %v1053 = vunpack.c.h.b16 %v1018
    %v1054 = vunpack.c.l.b16 %v1019
    %v1055 = vunpack.c.h.b16 %v1019
    %v1056 = vpack.c.b16 %v1044, %v1040
    %v1057 = vpack.c.b16 %v1045, %v1041
    %v1058 = vpack.c.b16 %v1046, %v1042
    %v1059 = vpack.c.b16 %v1047, %v1043
    %v1060 = vpack.c.b16 %v1052, %v1048
    %v1061 = vpack.c.b16 %v1053, %v1049
    %v1062 = vpack.c.b16 %v1054, %v1050
    %v1063 = vpack.c.b16 %v1055, %v1051
    %v1073 = vsel %vm218, %v1028, 0
    %v1076 = vsel %vm218, %v1029, 0
    %v1079 = vsel %vm218, %v1030, 0
    %v1082 = vsel %vm218, %v1031, 0
    %1084 = vmatprep.subr.bf16.mxu0 0
    %1085 = vmatpush1.bf16.msra.mxu0 0
    %1086 = vmatprep.subr.bf16.mxu0 0
    %1087 = vmatpush1.bf16.msra.mxu0 0
    %1088 = vmatprep.subr.bf16.mxu0 0
    %1089 = vmatpush1.bf16.msra.mxu0 0
    %1090 = vmatprep.subr.bf16.mxu0 0
    %1091 = vmatpush1.bf16.msra.mxu0 0
    %1092 = vmatprep.subr.bf16.mxu0 0
    %1093 = vmatpush1.bf16.msra.mxu0 0
    %1094 = vmatprep.subr.bf16.mxu0 0
    %1095 = vmatpush1.bf16.msra.mxu0 0
    %1096 = vmatprep.subr.bf16.mxu0 %v1061
    %1097 = vmatpush1.bf16.msra.mxu0 %v1060
    %1098 = vmatprep.subr.bf16.mxu0 %v1057
    %1099 = vmatpush1.bf16.msra.mxu0 %v1056
    %1100 = vmatprep.subr.bf16.mxu0 0
    %1101 = vmatpush2.bf16.msra.mxu0 0
    %1102 = vmatprep.subr.bf16.mxu0 0
    %1103 = vmatpush2.bf16.msra.mxu0 0
    %1104 = vmatprep.subr.bf16.mxu0 0
    %1105 = vmatpush2.bf16.msra.mxu0 0
    %1106 = vmatprep.subr.bf16.mxu0 0
    %1107 = vmatpush2.bf16.msra.mxu0 0
    %1108 = vmatprep.subr.bf16.mxu0 0
    %1109 = vmatpush2.bf16.msra.mxu0 0
    %1110 = vmatprep.subr.bf16.mxu0 0
    %1111 = vmatpush2.bf16.msra.mxu0 0
    %1112 = vmatprep.subr.bf16.mxu0 0
    %1113 = vmatpush2.bf16.msra.mxu0 0
    %1114 = vmatprep.subr.bf16.mxu0 0
    %1115 = vmatpush2.bf16.msra.mxu0 0
    %1116 = vmatprep.mubr.bf16.mxu0 0
    %1117 = vmatmul.mubr.bf16.gmra.mxu0 %v1073
    %v1118 = vpop.f32.mrf.mxu0
    %v1119 = vadd.f32 0.0, %v1118
    %v1120 = vpop.f32.mrf.mxu0
    %v1121 = vadd.f32 0.0, %v1120
    %v1122 = vpop.f32.mrf.mxu0
    %v1123 = vadd.f32 0.0, %v1122
    %v1124 = vpop.f32.mrf.mxu0
    %v1125 = vadd.f32 0.0, %v1124
    %1126 = vmatprep.mubr.bf16.mxu0 0
    %1127 = vmatmul.mubr.bf16.gmra.mxu0 %v1076
    %v1128 = vpop.f32.mrf.mxu0
    %v1129 = vadd.f32 0.0, %v1128
    %v1130 = vpop.f32.mrf.mxu0
    %v1131 = vadd.f32 0.0, %v1130
    %v1132 = vpop.f32.mrf.mxu0
    %v1133 = vadd.f32 0.0, %v1132
    %v1134 = vpop.f32.mrf.mxu0
    %v1135 = vadd.f32 0.0, %v1134
    %1136 = vmatprep.mubr.bf16.mxu0 0
    %1137 = vmatmul.mubr.bf16.gmra.mxu0 %v1079
    %v1138 = vpop.f32.mrf.mxu0
    %v1139 = vadd.f32 0.0, %v1138
    %v1140 = vpop.f32.mrf.mxu0
    %v1141 = vadd.f32 0.0, %v1140
    %v1142 = vpop.f32.mrf.mxu0
    %v1143 = vadd.f32 0.0, %v1142
    %v1144 = vpop.f32.mrf.mxu0
    %v1145 = vadd.f32 0.0, %v1144
    %1146 = vmatprep.mubr.bf16.mxu0 0
    %1147 = vmatmul.mubr.bf16.gmra.mxu0 %v1082
    %v1148 = vpop.f32.mrf.mxu0
    %v1149 = vadd.f32 0.0, %v1148
    %v1150 = vpop.f32.mrf.mxu0
    %v1151 = vadd.f32 0.0, %v1150
    %v1152 = vpop.f32.mrf.mxu0
    %v1153 = vadd.f32 0.0, %v1152
    %v1154 = vpop.f32.mrf.mxu0
    %v1155 = vadd.f32 0.0, %v1154
    %1156 = vdwg.mxu0
    %1157 = vmatprep.subr.bf16.mxu0 0
    %1158 = vmatpush1.bf16.msra.mxu0 0
    %1159 = vmatprep.subr.bf16.mxu0 0
    %1160 = vmatpush1.bf16.msra.mxu0 0
    %1161 = vmatprep.subr.bf16.mxu0 0
    %1162 = vmatpush1.bf16.msra.mxu0 0
    %1163 = vmatprep.subr.bf16.mxu0 0
    %1164 = vmatpush1.bf16.msra.mxu0 0
    %1165 = vmatprep.subr.bf16.mxu0 0
    %1166 = vmatpush1.bf16.msra.mxu0 0
    %1167 = vmatprep.subr.bf16.mxu0 0
    %1168 = vmatpush1.bf16.msra.mxu0 0
    %1169 = vmatprep.subr.bf16.mxu0 %v1063
    %1170 = vmatpush1.bf16.msra.mxu0 %v1062
    %1171 = vmatprep.subr.bf16.mxu0 %v1059
    %1172 = vmatpush1.bf16.msra.mxu0 %v1058
    %1173 = vmatprep.subr.bf16.mxu0 0
    %1174 = vmatpush2.bf16.msra.mxu0 0
    %1175 = vmatprep.subr.bf16.mxu0 0
    %1176 = vmatpush2.bf16.msra.mxu0 0
    %1177 = vmatprep.subr.bf16.mxu0 0
    %1178 = vmatpush2.bf16.msra.mxu0 0
    %1179 = vmatprep.subr.bf16.mxu0 0
    %1180 = vmatpush2.bf16.msra.mxu0 0
    %1181 = vmatprep.subr.bf16.mxu0 0
    %1182 = vmatpush2.bf16.msra.mxu0 0
    %1183 = vmatprep.subr.bf16.mxu0 0
    %1184 = vmatpush2.bf16.msra.mxu0 0
    %1185 = vmatprep.subr.bf16.mxu0 0
    %1186 = vmatpush2.bf16.msra.mxu0 0
    %1187 = vmatprep.subr.bf16.mxu0 0
    %1188 = vmatpush2.bf16.msra.mxu0 0
    %1189 = vmatprep.mubr.bf16.mxu0 0
    %1190 = vmatmul.mubr.bf16.gmra.mxu0 %v1073
    %v1191 = vpop.f32.mrf.mxu0
    %v1192 = vadd.f32 0.0, %v1191
    %v1193 = vpop.f32.mrf.mxu0
    %v1194 = vadd.f32 0.0, %v1193
    %v1195 = vpop.f32.mrf.mxu0
    %v1196 = vadd.f32 0.0, %v1195
    %v1197 = vpop.f32.mrf.mxu0
    %v1198 = vadd.f32 0.0, %v1197
    %1199 = vmatprep.mubr.bf16.mxu0 0
    %1200 = vmatmul.mubr.bf16.gmra.mxu0 %v1076
    %v1201 = vpop.f32.mrf.mxu0
    %v1202 = vadd.f32 0.0, %v1201
    %v1203 = vpop.f32.mrf.mxu0
    %v1204 = vadd.f32 0.0, %v1203
    %v1205 = vpop.f32.mrf.mxu0
    %v1206 = vadd.f32 0.0, %v1205
    %v1207 = vpop.f32.mrf.mxu0
    %v1208 = vadd.f32 0.0, %v1207
    %1209 = vmatprep.mubr.bf16.mxu0 0
    %1210 = vmatmul.mubr.bf16.gmra.mxu0 %v1079
    %v1211 = vpop.f32.mrf.mxu0
    %v1212 = vadd.f32 0.0, %v1211
    %v1213 = vpop.f32.mrf.mxu0
    %v1214 = vadd.f32 0.0, %v1213
    %v1215 = vpop.f32.mrf.mxu0
    %v1216 = vadd.f32 0.0, %v1215
    %v1217 = vpop.f32.mrf.mxu0
    %v1218 = vadd.f32 0.0, %v1217
    %1219 = vmatprep.mubr.bf16.mxu0 0
    %1220 = vmatmul.mubr.bf16.gmra.mxu0 %v1082
    %v1221 = vpop.f32.mrf.mxu0
    %v1222 = vadd.f32 0.0, %v1221
    %v1223 = vpop.f32.mrf.mxu0
    %v1224 = vadd.f32 0.0, %v1223
    %v1225 = vpop.f32.mrf.mxu0
    %v1226 = vadd.f32 0.0, %v1225
    %v1227 = vpop.f32.mrf.mxu0
    %v1228 = vadd.f32 0.0, %v1227
    %1229 = vdwg.mxu0
    %s1230 = scalar_lea.vmem %s2, 128
    %v1231 = vld [vmem:[%s1230] sm:$0xff]
    %v1232 = vld [vmem:[%s1230 + $0x8] sm:$0xff]
    %v1233 = vld [vmem:[%s1230 + $0x10] sm:$0xff]
    %v1234 = vld [vmem:[%s1230 + $0x18] sm:$0xff]
    %v1235 = vld [vmem:[%s1230 + $0x20] sm:$0xff]
    %v1236 = vld [vmem:[%s1230 + $0x28] sm:$0xff]
    %v1237 = vld [vmem:[%s1230 + $0x30] sm:$0xff]
    %v1238 = vld [vmem:[%s1230 + $0x38] sm:$0xff]
    %v1247 = vunpack.c.l.b16 %v1231
    %v1248 = vunpack.c.h.b16 %v1231
    %v1249 = vunpack.c.l.b16 %v1232
    %v1250 = vunpack.c.h.b16 %v1232
    %v1251 = vunpack.c.l.b16 %v1233
    %v1252 = vunpack.c.h.b16 %v1233
    %v1253 = vunpack.c.l.b16 %v1234
    %v1254 = vunpack.c.h.b16 %v1234
    %v1255 = vunpack.c.l.b16 %v1235
    %v1256 = vunpack.c.h.b16 %v1235
    %v1257 = vunpack.c.l.b16 %v1236
    %v1258 = vunpack.c.h.b16 %v1236
    %v1259 = vunpack.c.l.b16 %v1237
    %v1260 = vunpack.c.h.b16 %v1237
    %v1261 = vunpack.c.l.b16 %v1238
    %v1262 = vunpack.c.h.b16 %v1238
    %v1263 = vpack.c.b16 %v1251, %v1247
    %v1264 = vpack.c.b16 %v1252, %v1248
    %v1265 = vpack.c.b16 %v1253, %v1249
    %v1266 = vpack.c.b16 %v1254, %v1250
    %v1267 = vpack.c.b16 %v1259, %v1255
    %v1268 = vpack.c.b16 %v1260, %v1256
    %v1269 = vpack.c.b16 %v1261, %v1257
    %v1270 = vpack.c.b16 %v1262, %v1258
    %1279 = vmatprep.subr.bf16.mxu0 0
    %1280 = vmatpush1.bf16.msra.mxu0 0
    %1281 = vmatprep.subr.bf16.mxu0 0
    %1282 = vmatpush1.bf16.msra.mxu0 0
    %1283 = vmatprep.subr.bf16.mxu0 0
    %1284 = vmatpush1.bf16.msra.mxu0 0
    %1285 = vmatprep.subr.bf16.mxu0 0
    %1286 = vmatpush1.bf16.msra.mxu0 0
    %1287 = vmatprep.subr.bf16.mxu0 0
    %1288 = vmatpush1.bf16.msra.mxu0 0
    %1289 = vmatprep.subr.bf16.mxu0 0
    %1290 = vmatpush1.bf16.msra.mxu0 0
    %1291 = vmatprep.subr.bf16.mxu0 %v1268
    %1292 = vmatpush1.bf16.msra.mxu0 %v1267
    %1293 = vmatprep.subr.bf16.mxu0 %v1264
    %1294 = vmatpush1.bf16.msra.mxu0 %v1263
    %1295 = vmatprep.subr.bf16.mxu0 0
    %1296 = vmatpush2.bf16.msra.mxu0 0
    %1297 = vmatprep.subr.bf16.mxu0 0
    %1298 = vmatpush2.bf16.msra.mxu0 0
    %1299 = vmatprep.subr.bf16.mxu0 0
    %1300 = vmatpush2.bf16.msra.mxu0 0
    %1301 = vmatprep.subr.bf16.mxu0 0
    %1302 = vmatpush2.bf16.msra.mxu0 0
    %1303 = vmatprep.subr.bf16.mxu0 0
    %1304 = vmatpush2.bf16.msra.mxu0 0
    %1305 = vmatprep.subr.bf16.mxu0 0
    %1306 = vmatpush2.bf16.msra.mxu0 0
    %1307 = vmatprep.subr.bf16.mxu0 0
    %1308 = vmatpush2.bf16.msra.mxu0 0
    %1309 = vmatprep.subr.bf16.mxu0 0
    %1310 = vmatpush2.bf16.msra.mxu0 0
    %1311 = vmatprep.mubr.bf16.mxu0 0
    %1312 = vmatmul.mubr.bf16.gmra.mxu0 %v1073
    %v1313 = vpop.f32.mrf.mxu0
    %v1314 = vadd.f32 0.0, %v1313
    %v1315 = vpop.f32.mrf.mxu0
    %v1316 = vadd.f32 0.0, %v1315
    %v1317 = vpop.f32.mrf.mxu0
    %v1318 = vadd.f32 0.0, %v1317
    %v1319 = vpop.f32.mrf.mxu0
    %v1320 = vadd.f32 0.0, %v1319
    %1321 = vmatprep.mubr.bf16.mxu0 0
    %1322 = vmatmul.mubr.bf16.gmra.mxu0 %v1076
    %v1323 = vpop.f32.mrf.mxu0
    %v1324 = vadd.f32 0.0, %v1323
    %v1325 = vpop.f32.mrf.mxu0
    %v1326 = vadd.f32 0.0, %v1325
    %v1327 = vpop.f32.mrf.mxu0
    %v1328 = vadd.f32 0.0, %v1327
    %v1329 = vpop.f32.mrf.mxu0
    %v1330 = vadd.f32 0.0, %v1329
    %1331 = vmatprep.mubr.bf16.mxu0 0
    %1332 = vmatmul.mubr.bf16.gmra.mxu0 %v1079
    %v1333 = vpop.f32.mrf.mxu0
    %v1334 = vadd.f32 0.0, %v1333
    %v1335 = vpop.f32.mrf.mxu0
    %v1336 = vadd.f32 0.0, %v1335
    %v1337 = vpop.f32.mrf.mxu0
    %v1338 = vadd.f32 0.0, %v1337
    %v1339 = vpop.f32.mrf.mxu0
    %v1340 = vadd.f32 0.0, %v1339
    %1341 = vmatprep.mubr.bf16.mxu0 0
    %1342 = vmatmul.mubr.bf16.gmra.mxu0 %v1082
    %v1343 = vpop.f32.mrf.mxu0
    %v1344 = vadd.f32 0.0, %v1343
    %v1345 = vpop.f32.mrf.mxu0
    %v1346 = vadd.f32 0.0, %v1345
    %v1347 = vpop.f32.mrf.mxu0
    %v1348 = vadd.f32 0.0, %v1347
    %v1349 = vpop.f32.mrf.mxu0
    %v1350 = vadd.f32 0.0, %v1349
    %1351 = vdwg.mxu0
    %1352 = vmatprep.subr.bf16.mxu0 0
    %1353 = vmatpush1.bf16.msra.mxu0 0
    %1354 = vmatprep.subr.bf16.mxu0 0
    %1355 = vmatpush1.bf16.msra.mxu0 0
    %1356 = vmatprep.subr.bf16.mxu0 0
    %1357 = vmatpush1.bf16.msra.mxu0 0
    %1358 = vmatprep.subr.bf16.mxu0 0
    %1359 = vmatpush1.bf16.msra.mxu0 0
    %1360 = vmatprep.subr.bf16.mxu0 0
    %1361 = vmatpush1.bf16.msra.mxu0 0
    %1362 = vmatprep.subr.bf16.mxu0 0
    %1363 = vmatpush1.bf16.msra.mxu0 0
    %1364 = vmatprep.subr.bf16.mxu0 %v1270
    %1365 = vmatpush1.bf16.msra.mxu0 %v1269
    %1366 = vmatprep.subr.bf16.mxu0 %v1266
    %1367 = vmatpush1.bf16.msra.mxu0 %v1265
    %1368 = vmatprep.subr.bf16.mxu0 0
    %1369 = vmatpush2.bf16.msra.mxu0 0
    %1370 = vmatprep.subr.bf16.mxu0 0
    %1371 = vmatpush2.bf16.msra.mxu0 0
    %1372 = vmatprep.subr.bf16.mxu0 0
    %1373 = vmatpush2.bf16.msra.mxu0 0
    %1374 = vmatprep.subr.bf16.mxu0 0
    %1375 = vmatpush2.bf16.msra.mxu0 0
    %1376 = vmatprep.subr.bf16.mxu0 0
    %1377 = vmatpush2.bf16.msra.mxu0 0
    %1378 = vmatprep.subr.bf16.mxu0 0
    %1379 = vmatpush2.bf16.msra.mxu0 0
    %1380 = vmatprep.subr.bf16.mxu0 0
    %1381 = vmatpush2.bf16.msra.mxu0 0
    %1382 = vmatprep.subr.bf16.mxu0 0
    %1383 = vmatpush2.bf16.msra.mxu0 0
    %1384 = vmatprep.mubr.bf16.mxu0 0
    %1385 = vmatmul.mubr.bf16.gmra.mxu0 %v1073
    %v1386 = vpop.f32.mrf.mxu0
    %v1387 = vadd.f32 0.0, %v1386
    %v1388 = vpop.f32.mrf.mxu0
    %v1389 = vadd.f32 0.0, %v1388
    %v1390 = vpop.f32.mrf.mxu0
    %v1391 = vadd.f32 0.0, %v1390
    %v1392 = vpop.f32.mrf.mxu0
    %v1393 = vadd.f32 0.0, %v1392
    %1394 = vmatprep.mubr.bf16.mxu0 0
    %1395 = vmatmul.mubr.bf16.gmra.mxu0 %v1076
    %v1396 = vpop.f32.mrf.mxu0
    %v1397 = vadd.f32 0.0, %v1396
    %v1398 = vpop.f32.mrf.mxu0
    %v1399 = vadd.f32 0.0, %v1398
    %v1400 = vpop.f32.mrf.mxu0
    %v1401 = vadd.f32 0.0, %v1400
    %v1402 = vpop.f32.mrf.mxu0
    %v1403 = vadd.f32 0.0, %v1402
    %1404 = vmatprep.mubr.bf16.mxu0 0
    %1405 = vmatmul.mubr.bf16.gmra.mxu0 %v1079
    %v1406 = vpop.f32.mrf.mxu0
    %v1407 = vadd.f32 0.0, %v1406
    %v1408 = vpop.f32.mrf.mxu0
    %v1409 = vadd.f32 0.0, %v1408
    %v1410 = vpop.f32.mrf.mxu0
    %v1411 = vadd.f32 0.0, %v1410
    %v1412 = vpop.f32.mrf.mxu0
    %v1413 = vadd.f32 0.0, %v1412
    %1414 = vmatprep.mubr.bf16.mxu0 0
    %1415 = vmatmul.mubr.bf16.gmra.mxu0 %v1082
    %v1416 = vpop.f32.mrf.mxu0
    %v1417 = vadd.f32 0.0, %v1416
    %v1418 = vpop.f32.mrf.mxu0
    %v1419 = vadd.f32 0.0, %v1418
    %v1420 = vpop.f32.mrf.mxu0
    %v1421 = vadd.f32 0.0, %v1420
    %v1422 = vpop.f32.mrf.mxu0
    %v1423 = vadd.f32 0.0, %v1422
    %1424 = vdwg.mxu0
    %v1425 = vadd.f32 %v679, %v1119
    %v1426 = vadd.f32 %v681, %v1121
    %v1427 = vadd.f32 %v752, %v1192
    %v1428 = vadd.f32 %v754, %v1194
    %v1429 = vadd.f32 %v683, %v1123
    %v1430 = vadd.f32 %v685, %v1125
    %v1431 = vadd.f32 %v756, %v1196
    %v1432 = vadd.f32 %v758, %v1198
    %v1433 = vadd.f32 %v689, %v1129
    %v1434 = vadd.f32 %v691, %v1131
    %v1435 = vadd.f32 %v762, %v1202
    %v1436 = vadd.f32 %v764, %v1204
    %v1437 = vadd.f32 %v693, %v1133
    %v1438 = vadd.f32 %v695, %v1135
    %v1439 = vadd.f32 %v766, %v1206
    %v1440 = vadd.f32 %v768, %v1208
    %v1441 = vadd.f32 %v699, %v1139
    %v1442 = vadd.f32 %v701, %v1141
    %v1443 = vadd.f32 %v772, %v1212
    %v1444 = vadd.f32 %v774, %v1214
    %v1445 = vadd.f32 %v703, %v1143
    %v1446 = vadd.f32 %v705, %v1145
    %v1447 = vadd.f32 %v776, %v1216
    %v1448 = vadd.f32 %v778, %v1218
    %v1449 = vadd.f32 %v709, %v1149
    %v1450 = vadd.f32 %v711, %v1151
    %v1451 = vadd.f32 %v782, %v1222
    %v1452 = vadd.f32 %v784, %v1224
    %v1453 = vadd.f32 %v713, %v1153
    %v1454 = vadd.f32 %v715, %v1155
    %v1455 = vadd.f32 %v786, %v1226
    %v1456 = vadd.f32 %v788, %v1228
    %v1457 = vadd.f32 %v865, %v1314
    %v1458 = vadd.f32 %v867, %v1316
    %v1459 = vadd.f32 %v938, %v1387
    %v1460 = vadd.f32 %v940, %v1389
    %v1461 = vadd.f32 %v869, %v1318
    %v1462 = vadd.f32 %v871, %v1320
    %v1463 = vadd.f32 %v942, %v1391
    %v1464 = vadd.f32 %v944, %v1393
    %v1465 = vadd.f32 %v875, %v1324
    %v1466 = vadd.f32 %v877, %v1326
    %v1467 = vadd.f32 %v948, %v1397
    %v1468 = vadd.f32 %v950, %v1399
    %v1469 = vadd.f32 %v879, %v1328
    %v1470 = vadd.f32 %v881, %v1330
    %v1471 = vadd.f32 %v952, %v1401
    %v1472 = vadd.f32 %v954, %v1403
    %v1473 = vadd.f32 %v885, %v1334
    %v1474 = vadd.f32 %v887, %v1336
    %v1475 = vadd.f32 %v958, %v1407
    %v1476 = vadd.f32 %v960, %v1409
    %v1477 = vadd.f32 %v889, %v1338
    %v1478 = vadd.f32 %v891, %v1340
    %v1479 = vadd.f32 %v962, %v1411
    %v1480 = vadd.f32 %v964, %v1413
    %v1481 = vadd.f32 %v895, %v1344
    %v1482 = vadd.f32 %v897, %v1346
    %v1483 = vadd.f32 %v968, %v1417
    %v1484 = vadd.f32 %v970, %v1419
    %v1485 = vadd.f32 %v899, %v1348
    %v1486 = vadd.f32 %v901, %v1350
    %v1487 = vadd.f32 %v972, %v1421
    %v1488 = vadd.f32 %v974, %v1423
    %v1489 = vld [vmem:[%s0 + $0x10] sm:$0x3]
    %v1490 = vld [vmem:[%s0 + $0x24] sm:$0x3]
    %vm1491 = vsmask.f32 2304
    %vm1492 = vsmask.f32 6416
    %vm1493 = vmor %vm1491, %vm1492
    %v1495 = vshrl.u32 %v976, 16
    %v1497 = vrot.slane %v1495, 5
    %v1498 = vshll.u32 %v976, 16
    %v1500 = vrot.slane %v1498, 6
    %v1501 = vor.u32 %v1497, %v1500
    %v1502 = vrot.slane %v1501, 4
    %v1503 = vrot.slane %v83, 5
    %v1504 = vrot.slane %v79, 6
    %v1505 = vor.u32 %v1503, %v1504
    %v1506 = vsel %vm1493, %v1502, %v1505
    %v1507 = vrot.slane %v1505, 4
    %v1508 = vrot.slane %v93, 5
    %v1509 = vrot.slane %v89, 6
    %v1510 = vor.u32 %v1508, %v1509
    %v1511 = vsel %vm1493, %v1507, %v1510
    %v1512 = vrot.slane %v1510, 4
    %v1513 = vrot.slane %v103, 5
    %v1514 = vrot.slane %v99, 6
    %v1515 = vor.u32 %v1513, %v1514
    %v1516 = vsel %vm1493, %v1512, %v1515
    %v1517 = vrot.slane %v1515, 4
    %v1519 = vshrl.u32 %v1489, 16
    %v1521 = vrot.slane %v1519, 5
    %v1522 = vshll.u32 %v1489, 16
    %v1524 = vrot.slane %v1522, 6
    %v1525 = vor.u32 %v1521, %v1524
    %v1526 = vsel %vm1493, %v1517, %v1525
    %v1528 = vshrl.u32 %v977, 16
    %v1530 = vrot.slane %v1528, 5
    %v1531 = vshll.u32 %v977, 16
    %v1533 = vrot.slane %v1531, 6
    %v1534 = vor.u32 %v1530, %v1533
    %v1535 = vrot.slane %v1534, 4
    %v1536 = vrot.slane %v127, 5
    %v1537 = vrot.slane %v123, 6
    %v1538 = vor.u32 %v1536, %v1537
    %v1539 = vsel %vm1493, %v1535, %v1538
    %v1540 = vrot.slane %v1538, 4
    %v1541 = vrot.slane %v137, 5
    %v1542 = vrot.slane %v133, 6
    %v1543 = vor.u32 %v1541, %v1542
    %v1544 = vsel %vm1493, %v1540, %v1543
    %v1545 = vrot.slane %v1543, 4
    %v1546 = vrot.slane %v147, 5
    %v1547 = vrot.slane %v143, 6
    %v1548 = vor.u32 %v1546, %v1547
    %v1549 = vsel %vm1493, %v1545, %v1548
    %v1550 = vrot.slane %v1548, 4
    %v1552 = vshrl.u32 %v1490, 16
    %v1554 = vrot.slane %v1552, 5
    %v1555 = vshll.u32 %v1490, 16
    %v1557 = vrot.slane %v1555, 6
    %v1558 = vor.u32 %v1554, %v1557
    %v1559 = vsel %vm1493, %v1550, %v1558
    %s1560 = scalar_lea.vmem %s1, 192
    %v1561 = vld [vmem:[%s1560] sm:$0xff]
    %v1562 = vld [vmem:[%s1560 + $0x8] sm:$0xff]
    %v1563 = vld [vmem:[%s1560 + $0x10] sm:$0xff]
    %v1564 = vld [vmem:[%s1560 + $0x18] sm:$0xff]
    %v1565 = vld [vmem:[%s1560 + $0x20] sm:$0xff]
    %v1566 = vld [vmem:[%s1560 + $0x28] sm:$0xff]
    %v1567 = vld [vmem:[%s1560 + $0x30] sm:$0xff]
    %v1568 = vld [vmem:[%s1560 + $0x38] sm:$0xff]
    %v1569 = vunpack.c.l.b16 %v1506
    %v1570 = vunpack.c.l.b16 %v1511
    %v1571 = vunpack.c.l.b16 %v1516
    %v1572 = vunpack.c.l.b16 %v1526
    %v1573 = vunpack.c.l.b16 %v1539
    %v1574 = vunpack.c.l.b16 %v1544
    %v1575 = vunpack.c.l.b16 %v1549
    %v1576 = vunpack.c.l.b16 %v1559
    %v1577 = vpack.c.b16 %v1570, %v1569
    %v1578 = vpack.c.b16 %v1572, %v1571
    %v1579 = vpack.c.b16 %v1574, %v1573
    %v1580 = vpack.c.b16 %v1576, %v1575
    %v1589 = vunpack.c.l.b16 %v1561
    %v1590 = vunpack.c.h.b16 %v1561
    %v1591 = vunpack.c.l.b16 %v1562
    %v1592 = vunpack.c.h.b16 %v1562
    %v1593 = vunpack.c.l.b16 %v1563
    %v1594 = vunpack.c.h.b16 %v1563
    %v1595 = vunpack.c.l.b16 %v1564
    %v1596 = vunpack.c.h.b16 %v1564
    %v1597 = vunpack.c.l.b16 %v1565
    %v1598 = vunpack.c.h.b16 %v1565
    %v1599 = vunpack.c.l.b16 %v1566
    %v1600 = vunpack.c.h.b16 %v1566
    %v1601 = vunpack.c.l.b16 %v1567
    %v1602 = vunpack.c.h.b16 %v1567
    %v1603 = vunpack.c.l.b16 %v1568
    %v1604 = vunpack.c.h.b16 %v1568
    %v1605 = vpack.c.b16 %v1593, %v1589
    %v1606 = vpack.c.b16 %v1594, %v1590
    %v1607 = vpack.c.b16 %v1595, %v1591
    %v1608 = vpack.c.b16 %v1596, %v1592
    %v1609 = vpack.c.b16 %v1601, %v1597
    %v1610 = vpack.c.b16 %v1602, %v1598
    %v1611 = vpack.c.b16 %v1603, %v1599
    %v1612 = vpack.c.b16 %v1604, %v1600
    %v1622 = vsel %vm218, %v1577, 0
    %v1625 = vsel %vm218, %v1578, 0
    %v1628 = vsel %vm218, %v1579, 0
    %v1631 = vsel %vm218, %v1580, 0
    %1633 = vmatprep.subr.bf16.mxu0 0
    %1634 = vmatpush1.bf16.msra.mxu0 0
    %1635 = vmatprep.subr.bf16.mxu0 0
    %1636 = vmatpush1.bf16.msra.mxu0 0
    %1637 = vmatprep.subr.bf16.mxu0 0
    %1638 = vmatpush1.bf16.msra.mxu0 0
    %1639 = vmatprep.subr.bf16.mxu0 0
    %1640 = vmatpush1.bf16.msra.mxu0 0
    %1641 = vmatprep.subr.bf16.mxu0 0
    %1642 = vmatpush1.bf16.msra.mxu0 0
    %1643 = vmatprep.subr.bf16.mxu0 0
    %1644 = vmatpush1.bf16.msra.mxu0 0
    %1645 = vmatprep.subr.bf16.mxu0 %v1610
    %1646 = vmatpush1.bf16.msra.mxu0 %v1609
    %1647 = vmatprep.subr.bf16.mxu0 %v1606
    %1648 = vmatpush1.bf16.msra.mxu0 %v1605
    %1649 = vmatprep.subr.bf16.mxu0 0
    %1650 = vmatpush2.bf16.msra.mxu0 0
    %1651 = vmatprep.subr.bf16.mxu0 0
    %1652 = vmatpush2.bf16.msra.mxu0 0
    %1653 = vmatprep.subr.bf16.mxu0 0
    %1654 = vmatpush2.bf16.msra.mxu0 0
    %1655 = vmatprep.subr.bf16.mxu0 0
    %1656 = vmatpush2.bf16.msra.mxu0 0
    %1657 = vmatprep.subr.bf16.mxu0 0
    %1658 = vmatpush2.bf16.msra.mxu0 0
    %1659 = vmatprep.subr.bf16.mxu0 0
    %1660 = vmatpush2.bf16.msra.mxu0 0
    %1661 = vmatprep.subr.bf16.mxu0 0
    %1662 = vmatpush2.bf16.msra.mxu0 0
    %1663 = vmatprep.subr.bf16.mxu0 0
    %1664 = vmatpush2.bf16.msra.mxu0 0
    %1665 = vmatprep.mubr.bf16.mxu0 0
    %1666 = vmatmul.mubr.bf16.gmra.mxu0 %v1622
    %v1667 = vpop.f32.mrf.mxu0
    %v1668 = vadd.f32 0.0, %v1667
    %v1669 = vpop.f32.mrf.mxu0
    %v1670 = vadd.f32 0.0, %v1669
    %v1671 = vpop.f32.mrf.mxu0
    %v1672 = vadd.f32 0.0, %v1671
    %v1673 = vpop.f32.mrf.mxu0
    %v1674 = vadd.f32 0.0, %v1673
    %1675 = vmatprep.mubr.bf16.mxu0 0
    %1676 = vmatmul.mubr.bf16.gmra.mxu0 %v1625
    %v1677 = vpop.f32.mrf.mxu0
    %v1678 = vadd.f32 0.0, %v1677
    %v1679 = vpop.f32.mrf.mxu0
    %v1680 = vadd.f32 0.0, %v1679
    %v1681 = vpop.f32.mrf.mxu0
    %v1682 = vadd.f32 0.0, %v1681
    %v1683 = vpop.f32.mrf.mxu0
    %v1684 = vadd.f32 0.0, %v1683
    %1685 = vmatprep.mubr.bf16.mxu0 0
    %1686 = vmatmul.mubr.bf16.gmra.mxu0 %v1628
    %v1687 = vpop.f32.mrf.mxu0
    %v1688 = vadd.f32 0.0, %v1687
    %v1689 = vpop.f32.mrf.mxu0
    %v1690 = vadd.f32 0.0, %v1689
    %v1691 = vpop.f32.mrf.mxu0
    %v1692 = vadd.f32 0.0, %v1691
    %v1693 = vpop.f32.mrf.mxu0
    %v1694 = vadd.f32 0.0, %v1693
    %1695 = vmatprep.mubr.bf16.mxu0 0
    %1696 = vmatmul.mubr.bf16.gmra.mxu0 %v1631
    %v1697 = vpop.f32.mrf.mxu0
    %v1698 = vadd.f32 0.0, %v1697
    %v1699 = vpop.f32.mrf.mxu0
    %v1700 = vadd.f32 0.0, %v1699
    %v1701 = vpop.f32.mrf.mxu0
    %v1702 = vadd.f32 0.0, %v1701
    %v1703 = vpop.f32.mrf.mxu0
    %v1704 = vadd.f32 0.0, %v1703
    %1705 = vdwg.mxu0
    %1706 = vmatprep.subr.bf16.mxu0 0
    %1707 = vmatpush1.bf16.msra.mxu0 0
    %1708 = vmatprep.subr.bf16.mxu0 0
    %1709 = vmatpush1.bf16.msra.mxu0 0
    %1710 = vmatprep.subr.bf16.mxu0 0
    %1711 = vmatpush1.bf16.msra.mxu0 0
    %1712 = vmatprep.subr.bf16.mxu0 0
    %1713 = vmatpush1.bf16.msra.mxu0 0
    %1714 = vmatprep.subr.bf16.mxu0 0
    %1715 = vmatpush1.bf16.msra.mxu0 0
    %1716 = vmatprep.subr.bf16.mxu0 0
    %1717 = vmatpush1.bf16.msra.mxu0 0
    %1718 = vmatprep.subr.bf16.mxu0 %v1612
    %1719 = vmatpush1.bf16.msra.mxu0 %v1611
    %1720 = vmatprep.subr.bf16.mxu0 %v1608
    %1721 = vmatpush1.bf16.msra.mxu0 %v1607
    %1722 = vmatprep.subr.bf16.mxu0 0
    %1723 = vmatpush2.bf16.msra.mxu0 0
    %1724 = vmatprep.subr.bf16.mxu0 0
    %1725 = vmatpush2.bf16.msra.mxu0 0
    %1726 = vmatprep.subr.bf16.mxu0 0
    %1727 = vmatpush2.bf16.msra.mxu0 0
    %1728 = vmatprep.subr.bf16.mxu0 0
    %1729 = vmatpush2.bf16.msra.mxu0 0
    %1730 = vmatprep.subr.bf16.mxu0 0
    %1731 = vmatpush2.bf16.msra.mxu0 0
    %1732 = vmatprep.subr.bf16.mxu0 0
    %1733 = vmatpush2.bf16.msra.mxu0 0
    %1734 = vmatprep.subr.bf16.mxu0 0
    %1735 = vmatpush2.bf16.msra.mxu0 0
    %1736 = vmatprep.subr.bf16.mxu0 0
    %1737 = vmatpush2.bf16.msra.mxu0 0
    %1738 = vmatprep.mubr.bf16.mxu0 0
    %1739 = vmatmul.mubr.bf16.gmra.mxu0 %v1622
    %v1740 = vpop.f32.mrf.mxu0
    %v1741 = vadd.f32 0.0, %v1740
    %v1742 = vpop.f32.mrf.mxu0
    %v1743 = vadd.f32 0.0, %v1742
    %v1744 = vpop.f32.mrf.mxu0
    %v1745 = vadd.f32 0.0, %v1744
    %v1746 = vpop.f32.mrf.mxu0
    %v1747 = vadd.f32 0.0, %v1746
    %1748 = vmatprep.mubr.bf16.mxu0 0
    %1749 = vmatmul.mubr.bf16.gmra.mxu0 %v1625
    %v1750 = vpop.f32.mrf.mxu0
    %v1751 = vadd.f32 0.0, %v1750
    %v1752 = vpop.f32.mrf.mxu0
    %v1753 = vadd.f32 0.0, %v1752
    %v1754 = vpop.f32.mrf.mxu0
    %v1755 = vadd.f32 0.0, %v1754
    %v1756 = vpop.f32.mrf.mxu0
    %v1757 = vadd.f32 0.0, %v1756
    %1758 = vmatprep.mubr.bf16.mxu0 0
    %1759 = vmatmul.mubr.bf16.gmra.mxu0 %v1628
    %v1760 = vpop.f32.mrf.mxu0
    %v1761 = vadd.f32 0.0, %v1760
    %v1762 = vpop.f32.mrf.mxu0
    %v1763 = vadd.f32 0.0, %v1762
    %v1764 = vpop.f32.mrf.mxu0
    %v1765 = vadd.f32 0.0, %v1764
    %v1766 = vpop.f32.mrf.mxu0
    %v1767 = vadd.f32 0.0, %v1766
    %1768 = vmatprep.mubr.bf16.mxu0 0
    %1769 = vmatmul.mubr.bf16.gmra.mxu0 %v1631
    %v1770 = vpop.f32.mrf.mxu0
    %v1771 = vadd.f32 0.0, %v1770
    %v1772 = vpop.f32.mrf.mxu0
    %v1773 = vadd.f32 0.0, %v1772
    %v1774 = vpop.f32.mrf.mxu0
    %v1775 = vadd.f32 0.0, %v1774
    %v1776 = vpop.f32.mrf.mxu0
    %v1777 = vadd.f32 0.0, %v1776
    %1778 = vdwg.mxu0
    %s1779 = scalar_lea.vmem %s2, 192
    %v1780 = vld [vmem:[%s1779] sm:$0xff]
    %v1781 = vld [vmem:[%s1779 + $0x8] sm:$0xff]
    %v1782 = vld [vmem:[%s1779 + $0x10] sm:$0xff]
    %v1783 = vld [vmem:[%s1779 + $0x18] sm:$0xff]
    %v1784 = vld [vmem:[%s1779 + $0x20] sm:$0xff]
    %v1785 = vld [vmem:[%s1779 + $0x28] sm:$0xff]
    %v1786 = vld [vmem:[%s1779 + $0x30] sm:$0xff]
    %v1787 = vld [vmem:[%s1779 + $0x38] sm:$0xff]
    %v1796 = vunpack.c.l.b16 %v1780
    %v1797 = vunpack.c.h.b16 %v1780
    %v1798 = vunpack.c.l.b16 %v1781
    %v1799 = vunpack.c.h.b16 %v1781
    %v1800 = vunpack.c.l.b16 %v1782
    %v1801 = vunpack.c.h.b16 %v1782
    %v1802 = vunpack.c.l.b16 %v1783
    %v1803 = vunpack.c.h.b16 %v1783
    %v1804 = vunpack.c.l.b16 %v1784
    %v1805 = vunpack.c.h.b16 %v1784
    %v1806 = vunpack.c.l.b16 %v1785
    %v1807 = vunpack.c.h.b16 %v1785
    %v1808 = vunpack.c.l.b16 %v1786
    %v1809 = vunpack.c.h.b16 %v1786
    %v1810 = vunpack.c.l.b16 %v1787
    %v1811 = vunpack.c.h.b16 %v1787
    %v1812 = vpack.c.b16 %v1800, %v1796
    %v1813 = vpack.c.b16 %v1801, %v1797
    %v1814 = vpack.c.b16 %v1802, %v1798
    %v1815 = vpack.c.b16 %v1803, %v1799
    %v1816 = vpack.c.b16 %v1808, %v1804
    %v1817 = vpack.c.b16 %v1809, %v1805
    %v1818 = vpack.c.b16 %v1810, %v1806
    %v1819 = vpack.c.b16 %v1811, %v1807
    %1828 = vmatprep.subr.bf16.mxu0 0
    %1829 = vmatpush1.bf16.msra.mxu0 0
    %1830 = vmatprep.subr.bf16.mxu0 0
    %1831 = vmatpush1.bf16.msra.mxu0 0
    %1832 = vmatprep.subr.bf16.mxu0 0
    %1833 = vmatpush1.bf16.msra.mxu0 0
    %1834 = vmatprep.subr.bf16.mxu0 0
    %1835 = vmatpush1.bf16.msra.mxu0 0
    %1836 = vmatprep.subr.bf16.mxu0 0
    %1837 = vmatpush1.bf16.msra.mxu0 0
    %1838 = vmatprep.subr.bf16.mxu0 0
    %1839 = vmatpush1.bf16.msra.mxu0 0
    %1840 = vmatprep.subr.bf16.mxu0 %v1817
    %1841 = vmatpush1.bf16.msra.mxu0 %v1816
    %1842 = vmatprep.subr.bf16.mxu0 %v1813
    %1843 = vmatpush1.bf16.msra.mxu0 %v1812
    %1844 = vmatprep.subr.bf16.mxu0 0
    %1845 = vmatpush2.bf16.msra.mxu0 0
    %1846 = vmatprep.subr.bf16.mxu0 0
    %1847 = vmatpush2.bf16.msra.mxu0 0
    %1848 = vmatprep.subr.bf16.mxu0 0
    %1849 = vmatpush2.bf16.msra.mxu0 0
    %1850 = vmatprep.subr.bf16.mxu0 0
    %1851 = vmatpush2.bf16.msra.mxu0 0
    %1852 = vmatprep.subr.bf16.mxu0 0
    %1853 = vmatpush2.bf16.msra.mxu0 0
    %1854 = vmatprep.subr.bf16.mxu0 0
    %1855 = vmatpush2.bf16.msra.mxu0 0
    %1856 = vmatprep.subr.bf16.mxu0 0
    %1857 = vmatpush2.bf16.msra.mxu0 0
    %1858 = vmatprep.subr.bf16.mxu0 0
    %1859 = vmatpush2.bf16.msra.mxu0 0
    %1860 = vmatprep.mubr.bf16.mxu0 0
    %1861 = vmatmul.mubr.bf16.gmra.mxu0 %v1622
    %v1862 = vpop.f32.mrf.mxu0
    %v1863 = vadd.f32 0.0, %v1862
    %v1864 = vpop.f32.mrf.mxu0
    %v1865 = vadd.f32 0.0, %v1864
    %v1866 = vpop.f32.mrf.mxu0
    %v1867 = vadd.f32 0.0, %v1866
    %v1868 = vpop.f32.mrf.mxu0
    %v1869 = vadd.f32 0.0, %v1868
    %1870 = vmatprep.mubr.bf16.mxu0 0
    %1871 = vmatmul.mubr.bf16.gmra.mxu0 %v1625
    %v1872 = vpop.f32.mrf.mxu0
    %v1873 = vadd.f32 0.0, %v1872
    %v1874 = vpop.f32.mrf.mxu0
    %v1875 = vadd.f32 0.0, %v1874
    %v1876 = vpop.f32.mrf.mxu0
    %v1877 = vadd.f32 0.0, %v1876
    %v1878 = vpop.f32.mrf.mxu0
    %v1879 = vadd.f32 0.0, %v1878
    %1880 = vmatprep.mubr.bf16.mxu0 0
    %1881 = vmatmul.mubr.bf16.gmra.mxu0 %v1628
    %v1882 = vpop.f32.mrf.mxu0
    %v1883 = vadd.f32 0.0, %v1882
    %v1884 = vpop.f32.mrf.mxu0
    %v1885 = vadd.f32 0.0, %v1884
    %v1886 = vpop.f32.mrf.mxu0
    %v1887 = vadd.f32 0.0, %v1886
    %v1888 = vpop.f32.mrf.mxu0
    %v1889 = vadd.f32 0.0, %v1888
    %1890 = vmatprep.mubr.bf16.mxu0 0
    %1891 = vmatmul.mubr.bf16.gmra.mxu0 %v1631
    %v1892 = vpop.f32.mrf.mxu0
    %v1893 = vadd.f32 0.0, %v1892
    %v1894 = vpop.f32.mrf.mxu0
    %v1895 = vadd.f32 0.0, %v1894
    %v1896 = vpop.f32.mrf.mxu0
    %v1897 = vadd.f32 0.0, %v1896
    %v1898 = vpop.f32.mrf.mxu0
    %v1899 = vadd.f32 0.0, %v1898
    %1900 = vdwg.mxu0
    %1901 = vmatprep.subr.bf16.mxu0 0
    %1902 = vmatpush1.bf16.msra.mxu0 0
    %1903 = vmatprep.subr.bf16.mxu0 0
    %1904 = vmatpush1.bf16.msra.mxu0 0
    %1905 = vmatprep.subr.bf16.mxu0 0
    %1906 = vmatpush1.bf16.msra.mxu0 0
    %1907 = vmatprep.subr.bf16.mxu0 0
    %1908 = vmatpush1.bf16.msra.mxu0 0
    %1909 = vmatprep.subr.bf16.mxu0 0
    %1910 = vmatpush1.bf16.msra.mxu0 0
    %1911 = vmatprep.subr.bf16.mxu0 0
    %1912 = vmatpush1.bf16.msra.mxu0 0
    %1913 = vmatprep.subr.bf16.mxu0 %v1819
    %1914 = vmatpush1.bf16.msra.mxu0 %v1818
    %1915 = vmatprep.subr.bf16.mxu0 %v1815
    %1916 = vmatpush1.bf16.msra.mxu0 %v1814
    %1917 = vmatprep.subr.bf16.mxu0 0
    %1918 = vmatpush2.bf16.msra.mxu0 0
    %1919 = vmatprep.subr.bf16.mxu0 0
    %1920 = vmatpush2.bf16.msra.mxu0 0
    %1921 = vmatprep.subr.bf16.mxu0 0
    %1922 = vmatpush2.bf16.msra.mxu0 0
    %1923 = vmatprep.subr.bf16.mxu0 0
    %1924 = vmatpush2.bf16.msra.mxu0 0
    %1925 = vmatprep.subr.bf16.mxu0 0
    %1926 = vmatpush2.bf16.msra.mxu0 0
    %1927 = vmatprep.subr.bf16.mxu0 0
    %1928 = vmatpush2.bf16.msra.mxu0 0
    %1929 = vmatprep.subr.bf16.mxu0 0
    %1930 = vmatpush2.bf16.msra.mxu0 0
    %1931 = vmatprep.subr.bf16.mxu0 0
    %1932 = vmatpush2.bf16.msra.mxu0 0
    %1933 = vmatprep.mubr.bf16.mxu0 0
    %1934 = vmatmul.mubr.bf16.gmra.mxu0 %v1622
    %v1935 = vpop.f32.mrf.mxu0
    %v1936 = vadd.f32 0.0, %v1935
    %v1937 = vpop.f32.mrf.mxu0
    %v1938 = vadd.f32 0.0, %v1937
    %v1939 = vpop.f32.mrf.mxu0
    %v1940 = vadd.f32 0.0, %v1939
    %v1941 = vpop.f32.mrf.mxu0
    %v1942 = vadd.f32 0.0, %v1941
    %1943 = vmatprep.mubr.bf16.mxu0 0
    %1944 = vmatmul.mubr.bf16.gmra.mxu0 %v1625
    %v1945 = vpop.f32.mrf.mxu0
    %v1946 = vadd.f32 0.0, %v1945
    %v1947 = vpop.f32.mrf.mxu0
    %v1948 = vadd.f32 0.0, %v1947
    %v1949 = vpop.f32.mrf.mxu0
    %v1950 = vadd.f32 0.0, %v1949
    %v1951 = vpop.f32.mrf.mxu0
    %v1952 = vadd.f32 0.0, %v1951
    %1953 = vmatprep.mubr.bf16.mxu0 0
    %1954 = vmatmul.mubr.bf16.gmra.mxu0 %v1628
    %v1955 = vpop.f32.mrf.mxu0
    %v1956 = vadd.f32 0.0, %v1955
    %v1957 = vpop.f32.mrf.mxu0
    %v1958 = vadd.f32 0.0, %v1957
    %v1959 = vpop.f32.mrf.mxu0
    %v1960 = vadd.f32 0.0, %v1959
    %v1961 = vpop.f32.mrf.mxu0
    %v1962 = vadd.f32 0.0, %v1961
    %1963 = vmatprep.mubr.bf16.mxu0 0
    %1964 = vmatmul.mubr.bf16.gmra.mxu0 %v1631
    %v1965 = vpop.f32.mrf.mxu0
    %v1966 = vadd.f32 0.0, %v1965
    %v1967 = vpop.f32.mrf.mxu0
    %v1968 = vadd.f32 0.0, %v1967
    %v1969 = vpop.f32.mrf.mxu0
    %v1970 = vadd.f32 0.0, %v1969
    %v1971 = vpop.f32.mrf.mxu0
    %v1972 = vadd.f32 0.0, %v1971
    %1973 = vdwg.mxu0
    %v1974 = vadd.f32 %v1425, %v1668
    %v1975 = vadd.f32 %v1426, %v1670
    %v1976 = vadd.f32 %v1427, %v1741
    %v1977 = vadd.f32 %v1428, %v1743
    %v1978 = vadd.f32 %v1429, %v1672
    %v1979 = vadd.f32 %v1430, %v1674
    %v1980 = vadd.f32 %v1431, %v1745
    %v1981 = vadd.f32 %v1432, %v1747
    %v1982 = vadd.f32 %v1433, %v1678
    %v1983 = vadd.f32 %v1434, %v1680
    %v1984 = vadd.f32 %v1435, %v1751
    %v1985 = vadd.f32 %v1436, %v1753
    %v1986 = vadd.f32 %v1437, %v1682
    %v1987 = vadd.f32 %v1438, %v1684
    %v1988 = vadd.f32 %v1439, %v1755
    %v1989 = vadd.f32 %v1440, %v1757
    %v1990 = vadd.f32 %v1441, %v1688
    %v1991 = vadd.f32 %v1442, %v1690
    %v1992 = vadd.f32 %v1443, %v1761
    %v1993 = vadd.f32 %v1444, %v1763
    %v1994 = vadd.f32 %v1445, %v1692
    %v1995 = vadd.f32 %v1446, %v1694
    %v1996 = vadd.f32 %v1447, %v1765
    %v1997 = vadd.f32 %v1448, %v1767
    %v1998 = vadd.f32 %v1449, %v1698
    %v1999 = vadd.f32 %v1450, %v1700
    %v2000 = vadd.f32 %v1451, %v1771
    %v2001 = vadd.f32 %v1452, %v1773
    %v2002 = vadd.f32 %v1453, %v1702
    %v2003 = vadd.f32 %v1454, %v1704
    %v2004 = vadd.f32 %v1455, %v1775
    %v2005 = vadd.f32 %v1456, %v1777
    %v2006 = vadd.f32 %v1457, %v1863
    %v2007 = vadd.f32 %v1458, %v1865
    %v2008 = vadd.f32 %v1459, %v1936
    %v2009 = vadd.f32 %v1460, %v1938
    %v2010 = vadd.f32 %v1461, %v1867
    %v2011 = vadd.f32 %v1462, %v1869
    %v2012 = vadd.f32 %v1463, %v1940
    %v2013 = vadd.f32 %v1464, %v1942
    %v2014 = vadd.f32 %v1465, %v1873
    %v2015 = vadd.f32 %v1466, %v1875
    %v2016 = vadd.f32 %v1467, %v1946
    %v2017 = vadd.f32 %v1468, %v1948
    %v2018 = vadd.f32 %v1469, %v1877
    %v2019 = vadd.f32 %v1470, %v1879
    %v2020 = vadd.f32 %v1471, %v1950
    %v2021 = vadd.f32 %v1472, %v1952
    %v2022 = vadd.f32 %v1473, %v1883
    %v2023 = vadd.f32 %v1474, %v1885
    %v2024 = vadd.f32 %v1475, %v1956
    %v2025 = vadd.f32 %v1476, %v1958
    %v2026 = vadd.f32 %v1477, %v1887
    %v2027 = vadd.f32 %v1478, %v1889
    %v2028 = vadd.f32 %v1479, %v1960
    %v2029 = vadd.f32 %v1480, %v1962
    %v2030 = vadd.f32 %v1481, %v1893
    %v2031 = vadd.f32 %v1482, %v1895
    %v2032 = vadd.f32 %v1483, %v1966
    %v2033 = vadd.f32 %v1484, %v1968
    %v2034 = vadd.f32 %v1485, %v1897
    %v2035 = vadd.f32 %v1486, %v1899
    %v2036 = vadd.f32 %v1487, %v1970
    %v2037 = vadd.f32 %v1488, %v1972
    %v2038 = vld [vmem:[%s0] sm:$0xc]
    %v2039 = vld [vmem:[%s0 + $0x14] sm:$0xc]
    %vm2044 = vcmask 1041408
    %vm2045 = vcmask 1045508
    %vm2046 = vmor %vm2044, %vm2045
    %v2047 = vrot.slane %v2038, 6
    %v2048 = vrot.slane %v2047, 4
    %v2049 = vrot.slane %v41, 6
    %v2050 = vsel %vm2046, %v2048, %v2049
    %v2051 = vrot.slane %v2049, 4
    %v2052 = vrot.slane %v42, 6
    %v2053 = vsel %vm2046, %v2051, %v2052
    %v2054 = vrot.slane %v2052, 4
    %v2055 = vrot.slane %v43, 6
    %v2056 = vsel %vm2046, %v2054, %v2055
    %v2057 = vrot.slane %v2055, 4
    %v2058 = vrot.slane %v1489, 6
    %v2059 = vsel %vm2046, %v2057, %v2058
    %v2060 = vrot.slane %v2039, 6
    %v2061 = vrot.slane %v2060, 4
    %v2062 = vrot.slane %v45, 6
    %v2063 = vsel %vm2046, %v2061, %v2062
    %v2064 = vrot.slane %v2062, 4
    %v2065 = vrot.slane %v46, 6
    %v2066 = vsel %vm2046, %v2064, %v2065
    %v2067 = vrot.slane %v2065, 4
    %v2068 = vrot.slane %v47, 6
    %v2069 = vsel %vm2046, %v2067, %v2068
    %v2070 = vrot.slane %v2068, 4
    %v2071 = vrot.slane %v1490, 6
    %v2072 = vsel %vm2046, %v2070, %v2071
    %s2073 = scalar_lea.vmem %s1, 256
    %v2074 = vld [vmem:[%s2073] sm:$0xff]
    %v2075 = vld [vmem:[%s2073 + $0x8] sm:$0xff]
    %v2076 = vld [vmem:[%s2073 + $0x10] sm:$0xff]
    %v2077 = vld [vmem:[%s2073 + $0x18] sm:$0xff]
    %v2078 = vld [vmem:[%s2073 + $0x20] sm:$0xff]
    %v2079 = vld [vmem:[%s2073 + $0x28] sm:$0xff]
    %v2080 = vld [vmem:[%s2073 + $0x30] sm:$0xff]
    %v2081 = vld [vmem:[%s2073 + $0x38] sm:$0xff]
    %v2082 = vunpack.c.l.b16 %v2050
    %v2083 = vunpack.c.l.b16 %v2053
    %v2084 = vunpack.c.l.b16 %v2056
    %v2085 = vunpack.c.l.b16 %v2059
    %v2086 = vunpack.c.l.b16 %v2063
    %v2087 = vunpack.c.l.b16 %v2066
    %v2088 = vunpack.c.l.b16 %v2069
    %v2089 = vunpack.c.l.b16 %v2072
    %v2090 = vpack.c.b16 %v2083, %v2082
    %v2091 = vpack.c.b16 %v2085, %v2084
    %v2092 = vpack.c.b16 %v2087, %v2086
    %v2093 = vpack.c.b16 %v2089, %v2088
    %v2102 = vunpack.c.l.b16 %v2074
    %v2103 = vunpack.c.h.b16 %v2074
    %v2104 = vunpack.c.l.b16 %v2075
    %v2105 = vunpack.c.h.b16 %v2075
    %v2106 = vunpack.c.l.b16 %v2076
    %v2107 = vunpack.c.h.b16 %v2076
    %v2108 = vunpack.c.l.b16 %v2077
    %v2109 = vunpack.c.h.b16 %v2077
    %v2110 = vunpack.c.l.b16 %v2078
    %v2111 = vunpack.c.h.b16 %v2078
    %v2112 = vunpack.c.l.b16 %v2079
    %v2113 = vunpack.c.h.b16 %v2079
    %v2114 = vunpack.c.l.b16 %v2080
    %v2115 = vunpack.c.h.b16 %v2080
    %v2116 = vunpack.c.l.b16 %v2081
    %v2117 = vunpack.c.h.b16 %v2081
    %v2118 = vpack.c.b16 %v2106, %v2102
    %v2119 = vpack.c.b16 %v2107, %v2103
    %v2120 = vpack.c.b16 %v2108, %v2104
    %v2121 = vpack.c.b16 %v2109, %v2105
    %v2122 = vpack.c.b16 %v2114, %v2110
    %v2123 = vpack.c.b16 %v2115, %v2111
    %v2124 = vpack.c.b16 %v2116, %v2112
    %v2125 = vpack.c.b16 %v2117, %v2113
    %v2135 = vsel %vm218, %v2090, 0
    %v2138 = vsel %vm218, %v2091, 0
    %v2141 = vsel %vm218, %v2092, 0
    %v2144 = vsel %vm218, %v2093, 0
    %2146 = vmatprep.subr.bf16.mxu0 0
    %2147 = vmatpush1.bf16.msra.mxu0 0
    %2148 = vmatprep.subr.bf16.mxu0 0
    %2149 = vmatpush1.bf16.msra.mxu0 0
    %2150 = vmatprep.subr.bf16.mxu0 0
    %2151 = vmatpush1.bf16.msra.mxu0 0
    %2152 = vmatprep.subr.bf16.mxu0 0
    %2153 = vmatpush1.bf16.msra.mxu0 0
    %2154 = vmatprep.subr.bf16.mxu0 0
    %2155 = vmatpush1.bf16.msra.mxu0 0
    %2156 = vmatprep.subr.bf16.mxu0 0
    %2157 = vmatpush1.bf16.msra.mxu0 0
    %2158 = vmatprep.subr.bf16.mxu0 %v2123
    %2159 = vmatpush1.bf16.msra.mxu0 %v2122
    %2160 = vmatprep.subr.bf16.mxu0 %v2119
    %2161 = vmatpush1.bf16.msra.mxu0 %v2118
    %2162 = vmatprep.subr.bf16.mxu0 0
    %2163 = vmatpush2.bf16.msra.mxu0 0
    %2164 = vmatprep.subr.bf16.mxu0 0
    %2165 = vmatpush2.bf16.msra.mxu0 0
    %2166 = vmatprep.subr.bf16.mxu0 0
    %2167 = vmatpush2.bf16.msra.mxu0 0
    %2168 = vmatprep.subr.bf16.mxu0 0
    %2169 = vmatpush2.bf16.msra.mxu0 0
    %2170 = vmatprep.subr.bf16.mxu0 0
    %2171 = vmatpush2.bf16.msra.mxu0 0
    %2172 = vmatprep.subr.bf16.mxu0 0
    %2173 = vmatpush2.bf16.msra.mxu0 0
    %2174 = vmatprep.subr.bf16.mxu0 0
    %2175 = vmatpush2.bf16.msra.mxu0 0
    %2176 = vmatprep.subr.bf16.mxu0 0
    %2177 = vmatpush2.bf16.msra.mxu0 0
    %2178 = vmatprep.mubr.bf16.mxu0 0
    %2179 = vmatmul.mubr.bf16.gmra.mxu0 %v2135
    %v2180 = vpop.f32.mrf.mxu0
    %v2181 = vadd.f32 0.0, %v2180
    %v2182 = vpop.f32.mrf.mxu0
    %v2183 = vadd.f32 0.0, %v2182
    %v2184 = vpop.f32.mrf.mxu0
    %v2185 = vadd.f32 0.0, %v2184
    %v2186 = vpop.f32.mrf.mxu0
    %v2187 = vadd.f32 0.0, %v2186
    %2188 = vmatprep.mubr.bf16.mxu0 0
    %2189 = vmatmul.mubr.bf16.gmra.mxu0 %v2138
    %v2190 = vpop.f32.mrf.mxu0
    %v2191 = vadd.f32 0.0, %v2190
    %v2192 = vpop.f32.mrf.mxu0
    %v2193 = vadd.f32 0.0, %v2192
    %v2194 = vpop.f32.mrf.mxu0
    %v2195 = vadd.f32 0.0, %v2194
    %v2196 = vpop.f32.mrf.mxu0
    %v2197 = vadd.f32 0.0, %v2196
    %2198 = vmatprep.mubr.bf16.mxu0 0
    %2199 = vmatmul.mubr.bf16.gmra.mxu0 %v2141
    %v2200 = vpop.f32.mrf.mxu0
    %v2201 = vadd.f32 0.0, %v2200
    %v2202 = vpop.f32.mrf.mxu0
    %v2203 = vadd.f32 0.0, %v2202
    %v2204 = vpop.f32.mrf.mxu0
    %v2205 = vadd.f32 0.0, %v2204
    %v2206 = vpop.f32.mrf.mxu0
    %v2207 = vadd.f32 0.0, %v2206
    %2208 = vmatprep.mubr.bf16.mxu0 0
    %2209 = vmatmul.mubr.bf16.gmra.mxu0 %v2144
    %v2210 = vpop.f32.mrf.mxu0
    %v2211 = vadd.f32 0.0, %v2210
    %v2212 = vpop.f32.mrf.mxu0
    %v2213 = vadd.f32 0.0, %v2212
    %v2214 = vpop.f32.mrf.mxu0
    %v2215 = vadd.f32 0.0, %v2214
    %v2216 = vpop.f32.mrf.mxu0
    %v2217 = vadd.f32 0.0, %v2216
    %2218 = vdwg.mxu0
    %2219 = vmatprep.subr.bf16.mxu0 0
    %2220 = vmatpush1.bf16.msra.mxu0 0
    %2221 = vmatprep.subr.bf16.mxu0 0
    %2222 = vmatpush1.bf16.msra.mxu0 0
    %2223 = vmatprep.subr.bf16.mxu0 0
    %2224 = vmatpush1.bf16.msra.mxu0 0
    %2225 = vmatprep.subr.bf16.mxu0 0
    %2226 = vmatpush1.bf16.msra.mxu0 0
    %2227 = vmatprep.subr.bf16.mxu0 0
    %2228 = vmatpush1.bf16.msra.mxu0 0
    %2229 = vmatprep.subr.bf16.mxu0 0
    %2230 = vmatpush1.bf16.msra.mxu0 0
    %2231 = vmatprep.subr.bf16.mxu0 %v2125
    %2232 = vmatpush1.bf16.msra.mxu0 %v2124
    %2233 = vmatprep.subr.bf16.mxu0 %v2121
    %2234 = vmatpush1.bf16.msra.mxu0 %v2120
    %2235 = vmatprep.subr.bf16.mxu0 0
    %2236 = vmatpush2.bf16.msra.mxu0 0
    %2237 = vmatprep.subr.bf16.mxu0 0
    %2238 = vmatpush2.bf16.msra.mxu0 0
    %2239 = vmatprep.subr.bf16.mxu0 0
    %2240 = vmatpush2.bf16.msra.mxu0 0
    %2241 = vmatprep.subr.bf16.mxu0 0
    %2242 = vmatpush2.bf16.msra.mxu0 0
    %2243 = vmatprep.subr.bf16.mxu0 0
    %2244 = vmatpush2.bf16.msra.mxu0 0
    %2245 = vmatprep.subr.bf16.mxu0 0
    %2246 = vmatpush2.bf16.msra.mxu0 0
    %2247 = vmatprep.subr.bf16.mxu0 0
    %2248 = vmatpush2.bf16.msra.mxu0 0
    %2249 = vmatprep.subr.bf16.mxu0 0
    %2250 = vmatpush2.bf16.msra.mxu0 0
    %2251 = vmatprep.mubr.bf16.mxu0 0
    %2252 = vmatmul.mubr.bf16.gmra.mxu0 %v2135
    %v2253 = vpop.f32.mrf.mxu0
    %v2254 = vadd.f32 0.0, %v2253
    %v2255 = vpop.f32.mrf.mxu0
    %v2256 = vadd.f32 0.0, %v2255
    %v2257 = vpop.f32.mrf.mxu0
    %v2258 = vadd.f32 0.0, %v2257
    %v2259 = vpop.f32.mrf.mxu0
    %v2260 = vadd.f32 0.0, %v2259
    %2261 = vmatprep.mubr.bf16.mxu0 0
    %2262 = vmatmul.mubr.bf16.gmra.mxu0 %v2138
    %v2263 = vpop.f32.mrf.mxu0
    %v2264 = vadd.f32 0.0, %v2263
    %v2265 = vpop.f32.mrf.mxu0
    %v2266 = vadd.f32 0.0, %v2265
    %v2267 = vpop.f32.mrf.mxu0
    %v2268 = vadd.f32 0.0, %v2267
    %v2269 = vpop.f32.mrf.mxu0
    %v2270 = vadd.f32 0.0, %v2269
    %2271 = vmatprep.mubr.bf16.mxu0 0
    %2272 = vmatmul.mubr.bf16.gmra.mxu0 %v2141
    %v2273 = vpop.f32.mrf.mxu0
    %v2274 = vadd.f32 0.0, %v2273
    %v2275 = vpop.f32.mrf.mxu0
    %v2276 = vadd.f32 0.0, %v2275
    %v2277 = vpop.f32.mrf.mxu0
    %v2278 = vadd.f32 0.0, %v2277
    %v2279 = vpop.f32.mrf.mxu0
    %v2280 = vadd.f32 0.0, %v2279
    %2281 = vmatprep.mubr.bf16.mxu0 0
    %2282 = vmatmul.mubr.bf16.gmra.mxu0 %v2144
    %v2283 = vpop.f32.mrf.mxu0
    %v2284 = vadd.f32 0.0, %v2283
    %v2285 = vpop.f32.mrf.mxu0
    %v2286 = vadd.f32 0.0, %v2285
    %v2287 = vpop.f32.mrf.mxu0
    %v2288 = vadd.f32 0.0, %v2287
    %v2289 = vpop.f32.mrf.mxu0
    %v2290 = vadd.f32 0.0, %v2289
    %2291 = vdwg.mxu0
    %s2292 = scalar_lea.vmem %s2, 256
    %v2293 = vld [vmem:[%s2292] sm:$0xff]
    %v2294 = vld [vmem:[%s2292 + $0x8] sm:$0xff]
    %v2295 = vld [vmem:[%s2292 + $0x10] sm:$0xff]
    %v2296 = vld [vmem:[%s2292 + $0x18] sm:$0xff]
    %v2297 = vld [vmem:[%s2292 + $0x20] sm:$0xff]
    %v2298 = vld [vmem:[%s2292 + $0x28] sm:$0xff]
    %v2299 = vld [vmem:[%s2292 + $0x30] sm:$0xff]
    %v2300 = vld [vmem:[%s2292 + $0x38] sm:$0xff]
    %v2309 = vunpack.c.l.b16 %v2293
    %v2310 = vunpack.c.h.b16 %v2293
    %v2311 = vunpack.c.l.b16 %v2294
    %v2312 = vunpack.c.h.b16 %v2294
    %v2313 = vunpack.c.l.b16 %v2295
    %v2314 = vunpack.c.h.b16 %v2295
    %v2315 = vunpack.c.l.b16 %v2296
    %v2316 = vunpack.c.h.b16 %v2296
    %v2317 = vunpack.c.l.b16 %v2297
    %v2318 = vunpack.c.h.b16 %v2297
    %v2319 = vunpack.c.l.b16 %v2298
    %v2320 = vunpack.c.h.b16 %v2298
    %v2321 = vunpack.c.l.b16 %v2299
    %v2322 = vunpack.c.h.b16 %v2299
    %v2323 = vunpack.c.l.b16 %v2300
    %v2324 = vunpack.c.h.b16 %v2300
    %v2325 = vpack.c.b16 %v2313, %v2309
    %v2326 = vpack.c.b16 %v2314, %v2310
    %v2327 = vpack.c.b16 %v2315, %v2311
    %v2328 = vpack.c.b16 %v2316, %v2312
    %v2329 = vpack.c.b16 %v2321, %v2317
    %v2330 = vpack.c.b16 %v2322, %v2318
    %v2331 = vpack.c.b16 %v2323, %v2319
    %v2332 = vpack.c.b16 %v2324, %v2320
    %2341 = vmatprep.subr.bf16.mxu0 0
    %2342 = vmatpush1.bf16.msra.mxu0 0
    %2343 = vmatprep.subr.bf16.mxu0 0
    %2344 = vmatpush1.bf16.msra.mxu0 0
    %2345 = vmatprep.subr.bf16.mxu0 0
    %2346 = vmatpush1.bf16.msra.mxu0 0
    %2347 = vmatprep.subr.bf16.mxu0 0
    %2348 = vmatpush1.bf16.msra.mxu0 0
    %2349 = vmatprep.subr.bf16.mxu0 0
    %2350 = vmatpush1.bf16.msra.mxu0 0
    %2351 = vmatprep.subr.bf16.mxu0 0
    %2352 = vmatpush1.bf16.msra.mxu0 0
    %2353 = vmatprep.subr.bf16.mxu0 %v2330
    %2354 = vmatpush1.bf16.msra.mxu0 %v2329
    %2355 = vmatprep.subr.bf16.mxu0 %v2326
    %2356 = vmatpush1.bf16.msra.mxu0 %v2325
    %2357 = vmatprep.subr.bf16.mxu0 0
    %2358 = vmatpush2.bf16.msra.mxu0 0
    %2359 = vmatprep.subr.bf16.mxu0 0
    %2360 = vmatpush2.bf16.msra.mxu0 0
    %2361 = vmatprep.subr.bf16.mxu0 0
    %2362 = vmatpush2.bf16.msra.mxu0 0
    %2363 = vmatprep.subr.bf16.mxu0 0
    %2364 = vmatpush2.bf16.msra.mxu0 0
    %2365 = vmatprep.subr.bf16.mxu0 0
    %2366 = vmatpush2.bf16.msra.mxu0 0
    %2367 = vmatprep.subr.bf16.mxu0 0
    %2368 = vmatpush2.bf16.msra.mxu0 0
    %2369 = vmatprep.subr.bf16.mxu0 0
    %2370 = vmatpush2.bf16.msra.mxu0 0
    %2371 = vmatprep.subr.bf16.mxu0 0
    %2372 = vmatpush2.bf16.msra.mxu0 0
    %2373 = vmatprep.mubr.bf16.mxu0 0
    %2374 = vmatmul.mubr.bf16.gmra.mxu0 %v2135
    %v2375 = vpop.f32.mrf.mxu0
    %v2376 = vadd.f32 0.0, %v2375
    %v2377 = vpop.f32.mrf.mxu0
    %v2378 = vadd.f32 0.0, %v2377
    %v2379 = vpop.f32.mrf.mxu0
    %v2380 = vadd.f32 0.0, %v2379
    %v2381 = vpop.f32.mrf.mxu0
    %v2382 = vadd.f32 0.0, %v2381
    %2383 = vmatprep.mubr.bf16.mxu0 0
    %2384 = vmatmul.mubr.bf16.gmra.mxu0 %v2138
    %v2385 = vpop.f32.mrf.mxu0
    %v2386 = vadd.f32 0.0, %v2385
    %v2387 = vpop.f32.mrf.mxu0
    %v2388 = vadd.f32 0.0, %v2387
    %v2389 = vpop.f32.mrf.mxu0
    %v2390 = vadd.f32 0.0, %v2389
    %v2391 = vpop.f32.mrf.mxu0
    %v2392 = vadd.f32 0.0, %v2391
    %2393 = vmatprep.mubr.bf16.mxu0 0
    %2394 = vmatmul.mubr.bf16.gmra.mxu0 %v2141
    %v2395 = vpop.f32.mrf.mxu0
    %v2396 = vadd.f32 0.0, %v2395
    %v2397 = vpop.f32.mrf.mxu0
    %v2398 = vadd.f32 0.0, %v2397
    %v2399 = vpop.f32.mrf.mxu0
    %v2400 = vadd.f32 0.0, %v2399
    %v2401 = vpop.f32.mrf.mxu0
    %v2402 = vadd.f32 0.0, %v2401
    %2403 = vmatprep.mubr.bf16.mxu0 0
    %2404 = vmatmul.mubr.bf16.gmra.mxu0 %v2144
    %v2405 = vpop.f32.mrf.mxu0
    %v2406 = vadd.f32 0.0, %v2405
    %v2407 = vpop.f32.mrf.mxu0
    %v2408 = vadd.f32 0.0, %v2407
    %v2409 = vpop.f32.mrf.mxu0
    %v2410 = vadd.f32 0.0, %v2409
    %v2411 = vpop.f32.mrf.mxu0
    %v2412 = vadd.f32 0.0, %v2411
    %2413 = vdwg.mxu0
    %2414 = vmatprep.subr.bf16.mxu0 0
    %2415 = vmatpush1.bf16.msra.mxu0 0
    %2416 = vmatprep.subr.bf16.mxu0 0
    %2417 = vmatpush1.bf16.msra.mxu0 0
    %2418 = vmatprep.subr.bf16.mxu0 0
    %2419 = vmatpush1.bf16.msra.mxu0 0
    %2420 = vmatprep.subr.bf16.mxu0 0
    %2421 = vmatpush1.bf16.msra.mxu0 0
    %2422 = vmatprep.subr.bf16.mxu0 0
    %2423 = vmatpush1.bf16.msra.mxu0 0
    %2424 = vmatprep.subr.bf16.mxu0 0
    %2425 = vmatpush1.bf16.msra.mxu0 0
    %2426 = vmatprep.subr.bf16.mxu0 %v2332
    %2427 = vmatpush1.bf16.msra.mxu0 %v2331
    %2428 = vmatprep.subr.bf16.mxu0 %v2328
    %2429 = vmatpush1.bf16.msra.mxu0 %v2327
    %2430 = vmatprep.subr.bf16.mxu0 0
    %2431 = vmatpush2.bf16.msra.mxu0 0
    %2432 = vmatprep.subr.bf16.mxu0 0
    %2433 = vmatpush2.bf16.msra.mxu0 0
    %2434 = vmatprep.subr.bf16.mxu0 0
    %2435 = vmatpush2.bf16.msra.mxu0 0
    %2436 = vmatprep.subr.bf16.mxu0 0
    %2437 = vmatpush2.bf16.msra.mxu0 0
    %2438 = vmatprep.subr.bf16.mxu0 0
    %2439 = vmatpush2.bf16.msra.mxu0 0
    %2440 = vmatprep.subr.bf16.mxu0 0
    %2441 = vmatpush2.bf16.msra.mxu0 0
    %2442 = vmatprep.subr.bf16.mxu0 0
    %2443 = vmatpush2.bf16.msra.mxu0 0
    %2444 = vmatprep.subr.bf16.mxu0 0
    %2445 = vmatpush2.bf16.msra.mxu0 0
    %2446 = vmatprep.mubr.bf16.mxu0 0
    %2447 = vmatmul.mubr.bf16.gmra.mxu0 %v2135
    %v2448 = vpop.f32.mrf.mxu0
    %v2449 = vadd.f32 0.0, %v2448
    %v2450 = vpop.f32.mrf.mxu0
    %v2451 = vadd.f32 0.0, %v2450
    %v2452 = vpop.f32.mrf.mxu0
    %v2453 = vadd.f32 0.0, %v2452
    %v2454 = vpop.f32.mrf.mxu0
    %v2455 = vadd.f32 0.0, %v2454
    %2456 = vmatprep.mubr.bf16.mxu0 0
    %2457 = vmatmul.mubr.bf16.gmra.mxu0 %v2138
    %v2458 = vpop.f32.mrf.mxu0
    %v2459 = vadd.f32 0.0, %v2458
    %v2460 = vpop.f32.mrf.mxu0
    %v2461 = vadd.f32 0.0, %v2460
    %v2462 = vpop.f32.mrf.mxu0
    %v2463 = vadd.f32 0.0, %v2462
    %v2464 = vpop.f32.mrf.mxu0
    %v2465 = vadd.f32 0.0, %v2464
    %2466 = vmatprep.mubr.bf16.mxu0 0
    %2467 = vmatmul.mubr.bf16.gmra.mxu0 %v2141
    %v2468 = vpop.f32.mrf.mxu0
    %v2469 = vadd.f32 0.0, %v2468
    %v2470 = vpop.f32.mrf.mxu0
    %v2471 = vadd.f32 0.0, %v2470
    %v2472 = vpop.f32.mrf.mxu0
    %v2473 = vadd.f32 0.0, %v2472
    %v2474 = vpop.f32.mrf.mxu0
    %v2475 = vadd.f32 0.0, %v2474
    %2476 = vmatprep.mubr.bf16.mxu0 0
    %2477 = vmatmul.mubr.bf16.gmra.mxu0 %v2144
    %v2478 = vpop.f32.mrf.mxu0
    %v2479 = vadd.f32 0.0, %v2478
    %v2480 = vpop.f32.mrf.mxu0
    %v2481 = vadd.f32 0.0, %v2480
    %v2482 = vpop.f32.mrf.mxu0
    %v2483 = vadd.f32 0.0, %v2482
    %v2484 = vpop.f32.mrf.mxu0
    %v2485 = vadd.f32 0.0, %v2484
    %2486 = vdwg.mxu0
    %v2487 = vadd.f32 %v1974, %v2181
    %v2488 = vadd.f32 %v1975, %v2183
    %v2489 = vadd.f32 %v1976, %v2254
    %v2490 = vadd.f32 %v1977, %v2256
    %v2491 = vadd.f32 %v1978, %v2185
    %v2492 = vadd.f32 %v1979, %v2187
    %v2493 = vadd.f32 %v1980, %v2258
    %v2494 = vadd.f32 %v1981, %v2260
    %v2495 = vadd.f32 %v1982, %v2191
    %v2496 = vadd.f32 %v1983, %v2193
    %v2497 = vadd.f32 %v1984, %v2264
    %v2498 = vadd.f32 %v1985, %v2266
    %v2499 = vadd.f32 %v1986, %v2195
    %v2500 = vadd.f32 %v1987, %v2197
    %v2501 = vadd.f32 %v1988, %v2268
    %v2502 = vadd.f32 %v1989, %v2270
    %v2503 = vadd.f32 %v1990, %v2201
    %v2504 = vadd.f32 %v1991, %v2203
    %v2505 = vadd.f32 %v1992, %v2274
    %v2506 = vadd.f32 %v1993, %v2276
    %v2507 = vadd.f32 %v1994, %v2205
    %v2508 = vadd.f32 %v1995, %v2207
    %v2509 = vadd.f32 %v1996, %v2278
    %v2510 = vadd.f32 %v1997, %v2280
    %v2511 = vadd.f32 %v1998, %v2211
    %v2512 = vadd.f32 %v1999, %v2213
    %v2513 = vadd.f32 %v2000, %v2284
    %v2514 = vadd.f32 %v2001, %v2286
    %v2515 = vadd.f32 %v2002, %v2215
    %v2516 = vadd.f32 %v2003, %v2217
    %v2517 = vadd.f32 %v2004, %v2288
    %v2518 = vadd.f32 %v2005, %v2290
    %v2519 = vadd.f32 %v2006, %v2376
    %v2520 = vadd.f32 %v2007, %v2378
    %v2521 = vadd.f32 %v2008, %v2449
    %v2522 = vadd.f32 %v2009, %v2451
    %v2523 = vadd.f32 %v2010, %v2380
    %v2524 = vadd.f32 %v2011, %v2382
    %v2525 = vadd.f32 %v2012, %v2453
    %v2526 = vadd.f32 %v2013, %v2455
    %v2527 = vadd.f32 %v2014, %v2386
    %v2528 = vadd.f32 %v2015, %v2388
    %v2529 = vadd.f32 %v2016, %v2459
    %v2530 = vadd.f32 %v2017, %v2461
    %v2531 = vadd.f32 %v2018, %v2390
    %v2532 = vadd.f32 %v2019, %v2392
    %v2533 = vadd.f32 %v2020, %v2463
    %v2534 = vadd.f32 %v2021, %v2465
    %v2535 = vadd.f32 %v2022, %v2396
    %v2536 = vadd.f32 %v2023, %v2398
    %v2537 = vadd.f32 %v2024, %v2469
    %v2538 = vadd.f32 %v2025, %v2471
    %v2539 = vadd.f32 %v2026, %v2400
    %v2540 = vadd.f32 %v2027, %v2402
    %v2541 = vadd.f32 %v2028, %v2473
    %v2542 = vadd.f32 %v2029, %v2475
    %v2543 = vadd.f32 %v2030, %v2406
    %v2544 = vadd.f32 %v2031, %v2408
    %v2545 = vadd.f32 %v2032, %v2479
    %v2546 = vadd.f32 %v2033, %v2481
    %v2547 = vadd.f32 %v2034, %v2410
    %v2548 = vadd.f32 %v2035, %v2412
    %v2549 = vadd.f32 %v2036, %v2483
    %v2550 = vadd.f32 %v2037, %v2485
    %v2551 = vmax.f32 %v2487, %v2519
    %v2552 = vmax.f32 %v2488, %v2520
    %v2553 = vmax.f32 %v2489, %v2521
    %v2554 = vmax.f32 %v2490, %v2522
    %v2555 = vmax.f32 %v2491, %v2523
    %v2556 = vmax.f32 %v2492, %v2524
    %v2557 = vmax.f32 %v2493, %v2525
    %v2558 = vmax.f32 %v2494, %v2526
    %v2559 = vmax.f32 %v2495, %v2527
    %v2560 = vmax.f32 %v2496, %v2528
    %v2561 = vmax.f32 %v2497, %v2529
    %v2562 = vmax.f32 %v2498, %v2530
    %v2563 = vmax.f32 %v2499, %v2531
    %v2564 = vmax.f32 %v2500, %v2532
    %v2565 = vmax.f32 %v2501, %v2533
    %v2566 = vmax.f32 %v2502, %v2534
    %v2567 = vmax.f32 %v2503, %v2535
    %v2568 = vmax.f32 %v2504, %v2536
    %v2569 = vmax.f32 %v2505, %v2537
    %v2570 = vmax.f32 %v2506, %v2538
    %v2571 = vmax.f32 %v2507, %v2539
    %v2572 = vmax.f32 %v2508, %v2540
    %v2573 = vmax.f32 %v2509, %v2541
    %v2574 = vmax.f32 %v2510, %v2542
    %v2575 = vmax.f32 %v2511, %v2543
    %v2576 = vmax.f32 %v2512, %v2544
    %v2577 = vmax.f32 %v2513, %v2545
    %v2578 = vmax.f32 %v2514, %v2546
    %v2579 = vmax.f32 %v2515, %v2547
    %v2580 = vmax.f32 %v2516, %v2548
    %v2581 = vmax.f32 %v2517, %v2549
    %v2582 = vmax.f32 %v2518, %v2550
    %v2591 = vrot.slane %v2551, 1
    %v2592 = vrot.slane %v2552, 1
    %v2593 = vrot.slane %v2553, 1
    %v2594 = vrot.slane %v2554, 1
    %v2595 = vrot.slane %v2567, 1
    %v2596 = vrot.slane %v2568, 1
    %v2597 = vrot.slane %v2569, 1
    %v2598 = vrot.slane %v2570, 1
    %v2607 = vmax.f32 %v2551, %v2591
    %v2608 = vmax.f32 %v2552, %v2592
    %v2609 = vmax.f32 %v2553, %v2593
    %v2610 = vmax.f32 %v2554, %v2594
    %v2611 = vmax.f32 %v2567, %v2595
    %v2612 = vmax.f32 %v2568, %v2596
    %v2613 = vmax.f32 %v2569, %v2597
    %v2614 = vmax.f32 %v2570, %v2598
    %v2615 = vld [vmem:[%s3] sm:$0xf]
    %v2617 = vlaneseq
    %v2618 = vshrl.u32 %v2617, 7
    %v2619 = vsub.s32 0, %v2618
    %v2620 = vrot.slane %v2615, %v2619
    %v2621 = vlaneseq
    %v2622 = vshrl.u32 %v2621, 7
    %v2623 = vsub.s32 1, %v2622
    %v2624 = vrot.slane %v2615, %v2623
    %v2625 = vlaneseq
    %v2626 = vshrl.u32 %v2625, 7
    %v2627 = vsub.s32 2, %v2626
    %v2628 = vrot.slane %v2615, %v2627
    %v2629 = vlaneseq
    %v2630 = vshrl.u32 %v2629, 7
    %v2631 = vsub.s32 3, %v2630
    %v2632 = vrot.slane %v2615, %v2631
    %v2637 = vadd.f32 %v2607, %v2620
    %v2638 = vadd.f32 %v2608, %v2624
    %v2639 = vadd.f32 %v2609, %v2628
    %v2640 = vadd.f32 %v2610, %v2632
    %v2641 = vadd.f32 %v2611, %v2620
    %v2642 = vadd.f32 %v2612, %v2624
    %v2643 = vadd.f32 %v2613, %v2628
    %v2644 = vadd.f32 %v2614, %v2632
    %v2645 = vmul.f32 %v2637, 0.1
    %v2646 = vmul.f32 %v2638, 0.1
    %v2647 = vmul.f32 %v2639, 0.1
    %v2648 = vmul.f32 %v2640, 0.1
    %v2649 = vmul.f32 %v2641, 0.1
    %v2650 = vmul.f32 %v2642, 0.1
    %v2651 = vmul.f32 %v2643, 0.1
    %v2652 = vmul.f32 %v2644, 0.1
    %v2653 = vmax.f32 %v2637, %v2645
    %v2654 = vmax.f32 %v2638, %v2646
    %v2655 = vmax.f32 %v2639, %v2647
    %v2656 = vmax.f32 %v2640, %v2648
    %v2657 = vmax.f32 %v2641, %v2649
    %v2658 = vmax.f32 %v2642, %v2650
    %v2659 = vmax.f32 %v2643, %v2651
    %v2660 = vmax.f32 %v2644, %v2652
    %v2661 = vpack.c.bf16 %v2653, %v2653
    %v2662 = vpack.c.bf16 %v2654, %v2654
    %v2663 = vpack.c.bf16 %v2655, %v2655
    %v2664 = vpack.c.bf16 %v2656, %v2656
    %v2665 = vpack.c.bf16 %v2657, %v2657
    %v2666 = vpack.c.bf16 %v2658, %v2658
    %v2667 = vpack.c.bf16 %v2659, %v2659
    %v2668 = vpack.c.bf16 %v2660, %v2660
    %v2677 = vunpack.c.l.b16 %v2661
    %v2678 = vunpack.c.l.b16 %v2662
    %v2679 = vunpack.c.l.b16 %v2663
    %v2680 = vunpack.c.l.b16 %v2664
    %v2681 = vunpack.c.l.b16 %v2665
    %v2682 = vunpack.c.l.b16 %v2666
    %v2683 = vunpack.c.l.b16 %v2667
    %v2684 = vunpack.c.l.b16 %v2668
    %v2685 = vpack.c.b16 %v2678, %v2677
    %v2686 = vpack.c.b16 %v2680, %v2679
    %v2687 = vpack.c.b16 %v2682, %v2681
    %v2688 = vpack.c.b16 %v2684, %v2683
    %vm2693 = vcmask 1040384
    %vm2694 = vsmask.f32 256
    %vm2695 = vmand %vm2693, %vm2694
    %vm2696 = vcmask 1044484
    %vm2697 = vsmask.f32 4352
    %vm2698 = vmand %vm2696, %vm2697
    %vm2699 = vmor %vm2698, %vm2695
    %v2700 = vld [vmem:[#allocation2] sm:$0x11]
    %v2701 = vsel %vm2699, %v2685, %v2700
    %2702 = vst [vmem:[#allocation2] sm:$0x11] %v2701
    %vm2703 = vcmask 520196
    %vm2704 = vmand %vm2703, %vm2697
    %vm2705 = vmor %vm2704, %vm2695
    %v2706 = vld [vmem:[#allocation2 + $0x8] sm:$0x11]
    %v2707 = vsel %vm2705, %v2686, %v2706
    %2708 = vst [vmem:[#allocation2 + $0x8] sm:$0x11] %v2707
    %v2709 = vld [vmem:[#allocation2 + $0x30] sm:$0x11]
    %v2710 = vsel %vm2699, %v2687, %v2709
    %2711 = vst [vmem:[#allocation2 + $0x30] sm:$0x11] %v2710
    %v2712 = vld [vmem:[#allocation2 + $0x38] sm:$0x11]
    %v2713 = vsel %vm2705, %v2688, %v2712
    %2714 = vst [vmem:[#allocation2 + $0x38] sm:$0x11] %v2713
    %v2715 = vld [vmem:[%s3] sm:$0xf]
    %v2717 = vlaneseq
    %v2718 = vshrl.u32 %v2717, 7
    %v2719 = vsub.s32 0, %v2718
    %v2720 = vrot.slane %v2715, %v2719
    %v2721 = vlaneseq
    %v2722 = vshrl.u32 %v2721, 7
    %v2723 = vsub.s32 1, %v2722
    %v2724 = vrot.slane %v2715, %v2723
    %v2725 = vlaneseq
    %v2726 = vshrl.u32 %v2725, 7
    %v2727 = vsub.s32 2, %v2726
    %v2728 = vrot.slane %v2715, %v2727
    %v2729 = vlaneseq
    %v2730 = vshrl.u32 %v2729, 7
    %v2731 = vsub.s32 3, %v2730
    %v2732 = vrot.slane %v2715, %v2731
    %v2737 = vadd.f32 %v2607, %v2720
    %v2738 = vadd.f32 %v2608, %v2724
    %v2739 = vadd.f32 %v2609, %v2728
    %v2740 = vadd.f32 %v2610, %v2732
    %v2741 = vadd.f32 %v2611, %v2720
    %v2742 = vadd.f32 %v2612, %v2724
    %v2743 = vadd.f32 %v2613, %v2728
    %v2744 = vadd.f32 %v2614, %v2732
    %v2745 = vmul.f32 %v2737, 0.1
    %v2746 = vmul.f32 %v2738, 0.1
    %v2747 = vmul.f32 %v2739, 0.1
    %v2748 = vmul.f32 %v2740, 0.1
    %v2749 = vmul.f32 %v2741, 0.1
    %v2750 = vmul.f32 %v2742, 0.1
    %v2751 = vmul.f32 %v2743, 0.1
    %v2752 = vmul.f32 %v2744, 0.1
    %v2753 = vmax.f32 %v2737, %v2745
    %v2754 = vmax.f32 %v2738, %v2746
    %v2755 = vmax.f32 %v2739, %v2747
    %v2756 = vmax.f32 %v2740, %v2748
    %v2757 = vmax.f32 %v2741, %v2749
    %v2758 = vmax.f32 %v2742, %v2750
    %v2759 = vmax.f32 %v2743, %v2751
    %v2760 = vmax.f32 %v2744, %v2752
    %v2761 = vpack.c.bf16 %v2753, %v2753
    %v2762 = vpack.c.bf16 %v2754, %v2754
    %v2763 = vpack.c.bf16 %v2755, %v2755
    %v2764 = vpack.c.bf16 %v2756, %v2756
    %v2765 = vpack.c.bf16 %v2757, %v2757
    %v2766 = vpack.c.bf16 %v2758, %v2758
    %v2767 = vpack.c.bf16 %v2759, %v2759
    %v2768 = vpack.c.bf16 %v2760, %v2760
    %v2777 = vunpack.c.l.b16 %v2761
    %v2778 = vunpack.c.l.b16 %v2762
    %v2779 = vunpack.c.l.b16 %v2763
    %v2780 = vunpack.c.l.b16 %v2764
    %v2781 = vunpack.c.l.b16 %v2765
    %v2782 = vunpack.c.l.b16 %v2766
    %v2783 = vunpack.c.l.b16 %v2767
    %v2784 = vunpack.c.l.b16 %v2768
    %v2785 = vpack.c.b16 %v2778, %v2777
    %v2786 = vpack.c.b16 %v2780, %v2779
    %v2787 = vpack.c.b16 %v2782, %v2781
    %v2788 = vpack.c.b16 %v2784, %v2783
    %v2790 = vshll.u32 %v2785, 16
    %v2792 = vrot.slane %v2790, 5
    %v2793 = vrot.slane %v2792, 4
    %v2795 = vshll.u32 %v2786, 16
    %v2797 = vrot.slane %v2795, 5
    %v2798 = vrot.slane %v2797, 4
    %v2800 = vshll.u32 %v2787, 16
    %v2802 = vrot.slane %v2800, 5
    %v2803 = vrot.slane %v2802, 4
    %v2805 = vshll.u32 %v2788, 16
    %v2807 = vrot.slane %v2805, 5
    %v2808 = vrot.slane %v2807, 4
    %vm2813 = vsmask.f32 7938
    %vm2814 = vmand %vm2693, %vm2813
    %vm2815 = vsmask.f32 7954
    %vm2816 = vmand %vm2696, %vm2815
    %vm2817 = vmor %vm2816, %vm2814
    %v2818 = vld [vmem:[#allocation2] sm:$0x11]
    %v2819 = vsel %vm2817, %v2793, %v2818
    %2820 = vst [vmem:[#allocation2] sm:$0x11] %v2819
    %vm2821 = vmand %vm2703, %vm2815
    %vm2822 = vmor %vm2821, %vm2814
    %v2823 = vld [vmem:[#allocation2 + $0x8] sm:$0x11]
    %v2824 = vsel %vm2822, %v2798, %v2823
    %2825 = vst [vmem:[#allocation2 + $0x8] sm:$0x11] %v2824
    %v2826 = vld [vmem:[#allocation2 + $0x30] sm:$0x11]
    %v2827 = vsel %vm2817, %v2803, %v2826
    %2828 = vst [vmem:[#allocation2 + $0x30] sm:$0x11] %v2827
    %v2829 = vld [vmem:[#allocation2 + $0x38] sm:$0x11]
    %v2830 = vsel %vm2822, %v2808, %v2829
    %2831 = vst [vmem:[#allocation2 + $0x38] sm:$0x11] %v2830
    %v2832 = vld [vmem:[%s3] sm:$0xf]
    %v2834 = vlaneseq
    %v2835 = vshrl.u32 %v2834, 7
    %v2836 = vsub.s32 0, %v2835
    %v2837 = vrot.slane %v2832, %v2836
    %v2838 = vlaneseq
    %v2839 = vshrl.u32 %v2838, 7
    %v2840 = vsub.s32 1, %v2839
    %v2841 = vrot.slane %v2832, %v2840
    %v2842 = vlaneseq
    %v2843 = vshrl.u32 %v2842, 7
    %v2844 = vsub.s32 2, %v2843
    %v2845 = vrot.slane %v2832, %v2844
    %v2846 = vlaneseq
    %v2847 = vshrl.u32 %v2846, 7
    %v2848 = vsub.s32 3, %v2847
    %v2849 = vrot.slane %v2832, %v2848
    %v2854 = vadd.f32 %v2607, %v2837
    %v2855 = vadd.f32 %v2608, %v2841
    %v2856 = vadd.f32 %v2609, %v2845
    %v2857 = vadd.f32 %v2610, %v2849
    %v2858 = vadd.f32 %v2611, %v2837
    %v2859 = vadd.f32 %v2612, %v2841
    %v2860 = vadd.f32 %v2613, %v2845
    %v2861 = vadd.f32 %v2614, %v2849
    %v2862 = vmul.f32 %v2854, 0.1
    %v2863 = vmul.f32 %v2855, 0.1
    %v2864 = vmul.f32 %v2856, 0.1
    %v2865 = vmul.f32 %v2857, 0.1
    %v2866 = vmul.f32 %v2858, 0.1
    %v2867 = vmul.f32 %v2859, 0.1
    %v2868 = vmul.f32 %v2860, 0.1
    %v2869 = vmul.f32 %v2861, 0.1
    %v2870 = vmax.f32 %v2854, %v2862
    %v2871 = vmax.f32 %v2855, %v2863
    %v2872 = vmax.f32 %v2856, %v2864
    %v2873 = vmax.f32 %v2857, %v2865
    %v2874 = vmax.f32 %v2858, %v2866
    %v2875 = vmax.f32 %v2859, %v2867
    %v2876 = vmax.f32 %v2860, %v2868
    %v2877 = vmax.f32 %v2861, %v2869
    %v2878 = vpack.c.bf16 %v2870, %v2870
    %v2879 = vpack.c.bf16 %v2871, %v2871
    %v2880 = vpack.c.bf16 %v2872, %v2872
    %v2881 = vpack.c.bf16 %v2873, %v2873
    %v2882 = vpack.c.bf16 %v2874, %v2874
    %v2883 = vpack.c.bf16 %v2875, %v2875
    %v2884 = vpack.c.bf16 %v2876, %v2876
    %v2885 = vpack.c.bf16 %v2877, %v2877
    %v2894 = vunpack.c.l.b16 %v2878
    %v2895 = vunpack.c.l.b16 %v2879
    %v2896 = vunpack.c.l.b16 %v2880
    %v2897 = vunpack.c.l.b16 %v2881
    %v2898 = vunpack.c.l.b16 %v2882
    %v2899 = vunpack.c.l.b16 %v2883
    %v2900 = vunpack.c.l.b16 %v2884
    %v2901 = vunpack.c.l.b16 %v2885
    %v2902 = vpack.c.b16 %v2895, %v2894
    %v2903 = vpack.c.b16 %v2897, %v2896
    %v2904 = vpack.c.b16 %v2899, %v2898
    %v2905 = vpack.c.b16 %v2901, %v2900
    %v2906 = vrot.slane %v2902, 5
    %v2907 = vrot.slane %v2906, 4
    %v2908 = vrot.slane %v2903, 5
    %v2909 = vrot.slane %v2908, 4
    %v2910 = vrot.slane %v2904, 5
    %v2911 = vrot.slane %v2910, 4
    %v2912 = vrot.slane %v2905, 5
    %v2913 = vrot.slane %v2912, 4
    %vm2918 = vcmask 1041409
    %vm2919 = vsmask.f32 1280
    %vm2920 = vmand %vm2918, %vm2919
    %vm2921 = vcmask 1045509
    %vm2922 = vsmask.f32 5376
    %vm2923 = vmand %vm2921, %vm2922
    %vm2924 = vmor %vm2923, %vm2920
    %v2925 = vld [vmem:[#allocation2] sm:$0x22]
    %v2926 = vsel %vm2924, %v2907, %v2925
    %2927 = vst [vmem:[#allocation2] sm:$0x22] %v2926
    %vm2928 = vcmask 521221
    %vm2929 = vmand %vm2928, %vm2922
    %vm2930 = vmor %vm2929, %vm2920
    %v2931 = vld [vmem:[#allocation2 + $0x8] sm:$0x22]
    %v2932 = vsel %vm2930, %v2909, %v2931
    %2933 = vst [vmem:[#allocation2 + $0x8] sm:$0x22] %v2932
    %v2934 = vld [vmem:[#allocation2 + $0x30] sm:$0x22]
    %v2935 = vsel %vm2924, %v2911, %v2934
    %2936 = vst [vmem:[#allocation2 + $0x30] sm:$0x22] %v2935
    %v2937 = vld [vmem:[#allocation2 + $0x38] sm:$0x22]
    %v2938 = vsel %vm2930, %v2913, %v2937
    %2939 = vst [vmem:[#allocation2 + $0x38] sm:$0x22] %v2938
    %v2940 = vld [vmem:[%s3] sm:$0xf]
    %v2942 = vlaneseq
    %v2943 = vshrl.u32 %v2942, 7
    %v2944 = vsub.s32 0, %v2943
    %v2945 = vrot.slane %v2940, %v2944
    %v2946 = vlaneseq
    %v2947 = vshrl.u32 %v2946, 7
    %v2948 = vsub.s32 1, %v2947
    %v2949 = vrot.slane %v2940, %v2948
    %v2950 = vlaneseq
    %v2951 = vshrl.u32 %v2950, 7
    %v2952 = vsub.s32 2, %v2951
    %v2953 = vrot.slane %v2940, %v2952
    %v2954 = vlaneseq
    %v2955 = vshrl.u32 %v2954, 7
    %v2956 = vsub.s32 3, %v2955
    %v2957 = vrot.slane %v2940, %v2956
    %v2962 = vadd.f32 %v2607, %v2945
    %v2963 = vadd.f32 %v2608, %v2949
    %v2964 = vadd.f32 %v2609, %v2953
    %v2965 = vadd.f32 %v2610, %v2957
    %v2966 = vadd.f32 %v2611, %v2945
    %v2967 = vadd.f32 %v2612, %v2949
    %v2968 = vadd.f32 %v2613, %v2953
    %v2969 = vadd.f32 %v2614, %v2957
    %v2970 = vmul.f32 %v2962, 0.1
    %v2971 = vmul.f32 %v2963, 0.1
    %v2972 = vmul.f32 %v2964, 0.1
    %v2973 = vmul.f32 %v2965, 0.1
    %v2974 = vmul.f32 %v2966, 0.1
    %v2975 = vmul.f32 %v2967, 0.1
    %v2976 = vmul.f32 %v2968, 0.1
    %v2977 = vmul.f32 %v2969, 0.1
    %v2978 = vmax.f32 %v2962, %v2970
    %v2979 = vmax.f32 %v2963, %v2971
    %v2980 = vmax.f32 %v2964, %v2972
    %v2981 = vmax.f32 %v2965, %v2973
    %v2982 = vmax.f32 %v2966, %v2974
    %v2983 = vmax.f32 %v2967, %v2975
    %v2984 = vmax.f32 %v2968, %v2976
    %v2985 = vmax.f32 %v2969, %v2977
    %v2986 = vpack.c.bf16 %v2978, %v2978
    %v2987 = vpack.c.bf16 %v2979, %v2979
    %v2988 = vpack.c.bf16 %v2980, %v2980
    %v2989 = vpack.c.bf16 %v2981, %v2981
    %v2990 = vpack.c.bf16 %v2982, %v2982
    %v2991 = vpack.c.bf16 %v2983, %v2983
    %v2992 = vpack.c.bf16 %v2984, %v2984
    %v2993 = vpack.c.bf16 %v2985, %v2985
    %v3002 = vunpack.c.l.b16 %v2986
    %v3003 = vunpack.c.l.b16 %v2987
    %v3004 = vunpack.c.l.b16 %v2988
    %v3005 = vunpack.c.l.b16 %v2989
    %v3006 = vunpack.c.l.b16 %v2990
    %v3007 = vunpack.c.l.b16 %v2991
    %v3008 = vunpack.c.l.b16 %v2992
    %v3009 = vunpack.c.l.b16 %v2993
    %v3010 = vpack.c.b16 %v3003, %v3002
    %v3011 = vpack.c.b16 %v3005, %v3004
    %v3012 = vpack.c.b16 %v3007, %v3006
    %v3013 = vpack.c.b16 %v3009, %v3008
    %v3015 = vshll.u32 %v3010, 16
    %v3017 = vrot.slane %v3015, 6
    %v3018 = vrot.slane %v3017, 4
    %v3020 = vshll.u32 %v3011, 16
    %v3022 = vrot.slane %v3020, 6
    %v3023 = vrot.slane %v3022, 4
    %v3025 = vshll.u32 %v3012, 16
    %v3027 = vrot.slane %v3025, 6
    %v3028 = vrot.slane %v3027, 4
    %v3030 = vshll.u32 %v3013, 16
    %v3032 = vrot.slane %v3030, 6
    %v3033 = vrot.slane %v3032, 4
    %vm3038 = vsmask.f32 7942
    %vm3039 = vmand %vm2918, %vm3038
    %vm3040 = vsmask.f32 7958
    %vm3041 = vmand %vm2921, %vm3040
    %vm3042 = vmor %vm3041, %vm3039
    %v3043 = vld [vmem:[#allocation2] sm:$0x22]
    %v3044 = vsel %vm3042, %v3018, %v3043
    %3045 = vst [vmem:[#allocation2] sm:$0x22] %v3044
    %vm3046 = vmand %vm2928, %vm3040
    %vm3047 = vmor %vm3046, %vm3039
    %v3048 = vld [vmem:[#allocation2 + $0x8] sm:$0x22]
    %v3049 = vsel %vm3047, %v3023, %v3048
    %3050 = vst [vmem:[#allocation2 + $0x8] sm:$0x22] %v3049
    %v3051 = vld [vmem:[#allocation2 + $0x30] sm:$0x22]
    %v3052 = vsel %vm3042, %v3028, %v3051
    %3053 = vst [vmem:[#allocation2 + $0x30] sm:$0x22] %v3052
    %v3054 = vld [vmem:[#allocation2 + $0x38] sm:$0x22]
    %v3055 = vsel %vm3047, %v3033, %v3054
    %3056 = vst [vmem:[#allocation2 + $0x38] sm:$0x22] %v3055
    %v3065 = vrot.slane %v2555, 1
    %v3066 = vrot.slane %v2556, 1
    %v3067 = vrot.slane %v2557, 1
    %v3068 = vrot.slane %v2558, 1
    %v3069 = vrot.slane %v2571, 1
    %v3070 = vrot.slane %v2572, 1
    %v3071 = vrot.slane %v2573, 1
    %v3072 = vrot.slane %v2574, 1
    %v3081 = vmax.f32 %v2555, %v3065
    %v3082 = vmax.f32 %v2556, %v3066
    %v3083 = vmax.f32 %v2557, %v3067
    %v3084 = vmax.f32 %v2558, %v3068
    %v3085 = vmax.f32 %v2571, %v3069
    %v3086 = vmax.f32 %v2572, %v3070
    %v3087 = vmax.f32 %v2573, %v3071
    %v3088 = vmax.f32 %v2574, %v3072
    %v3089 = vld [vmem:[%s3] sm:$0xf]
    %v3091 = vlaneseq
    %v3092 = vshrl.u32 %v3091, 7
    %v3093 = vsub.s32 0, %v3092
    %v3094 = vrot.slane %v3089, %v3093
    %v3095 = vlaneseq
    %v3096 = vshrl.u32 %v3095, 7
    %v3097 = vsub.s32 1, %v3096
    %v3098 = vrot.slane %v3089, %v3097
    %v3099 = vlaneseq
    %v3100 = vshrl.u32 %v3099, 7
    %v3101 = vsub.s32 2, %v3100
    %v3102 = vrot.slane %v3089, %v3101
    %v3103 = vlaneseq
    %v3104 = vshrl.u32 %v3103, 7
    %v3105 = vsub.s32 3, %v3104
    %v3106 = vrot.slane %v3089, %v3105
    %v3111 = vadd.f32 %v3081, %v3094
    %v3112 = vadd.f32 %v3082, %v3098
    %v3113 = vadd.f32 %v3083, %v3102
    %v3114 = vadd.f32 %v3084, %v3106
    %v3115 = vadd.f32 %v3085, %v3094
    %v3116 = vadd.f32 %v3086, %v3098
    %v3117 = vadd.f32 %v3087, %v3102
    %v3118 = vadd.f32 %v3088, %v3106
    %v3119 = vmul.f32 %v3111, 0.1
    %v3120 = vmul.f32 %v3112, 0.1
    %v3121 = vmul.f32 %v3113, 0.1
    %v3122 = vmul.f32 %v3114, 0.1
    %v3123 = vmul.f32 %v3115, 0.1
    %v3124 = vmul.f32 %v3116, 0.1
    %v3125 = vmul.f32 %v3117, 0.1
    %v3126 = vmul.f32 %v3118, 0.1
    %v3127 = vmax.f32 %v3111, %v3119
    %v3128 = vmax.f32 %v3112, %v3120
    %v3129 = vmax.f32 %v3113, %v3121
    %v3130 = vmax.f32 %v3114, %v3122
    %v3131 = vmax.f32 %v3115, %v3123
    %v3132 = vmax.f32 %v3116, %v3124
    %v3133 = vmax.f32 %v3117, %v3125
    %v3134 = vmax.f32 %v3118, %v3126
    %v3135 = vpack.c.bf16 %v3127, %v3127
    %v3136 = vpack.c.bf16 %v3128, %v3128
    %v3137 = vpack.c.bf16 %v3129, %v3129
    %v3138 = vpack.c.bf16 %v3130, %v3130
    %v3139 = vpack.c.bf16 %v3131, %v3131
    %v3140 = vpack.c.bf16 %v3132, %v3132
    %v3141 = vpack.c.bf16 %v3133, %v3133
    %v3142 = vpack.c.bf16 %v3134, %v3134
    %v3151 = vunpack.c.l.b16 %v3135
    %v3152 = vunpack.c.l.b16 %v3136
    %v3153 = vunpack.c.l.b16 %v3137
    %v3154 = vunpack.c.l.b16 %v3138
    %v3155 = vunpack.c.l.b16 %v3139
    %v3156 = vunpack.c.l.b16 %v3140
    %v3157 = vunpack.c.l.b16 %v3141
    %v3158 = vunpack.c.l.b16 %v3142
    %v3159 = vpack.c.b16 %v3152, %v3151
    %v3160 = vpack.c.b16 %v3154, %v3153
    %v3161 = vpack.c.b16 %v3156, %v3155
    %v3162 = vpack.c.b16 %v3158, %v3157
    %v3163 = vrot.slane %v3159, 6
    %v3164 = vrot.slane %v3160, 6
    %v3165 = vrot.slane %v3161, 6
    %v3166 = vrot.slane %v3162, 6
    %vm3171 = vcmask 1042434
    %vm3172 = vmand %vm3171, %vm1491
    %vm3173 = vcmask 1046534
    %vm3174 = vsmask.f32 6400
    %vm3175 = vmand %vm3173, %vm3174
    %vm3176 = vmor %vm3175, %vm3172
    %v3177 = vld [vmem:[#allocation2] sm:$0x44]
    %v3178 = vsel %vm3176, %v3163, %v3177
    %3179 = vst [vmem:[#allocation2] sm:$0x44] %v3178
    %vm3180 = vcmask 522246
    %vm3181 = vmand %vm3180, %vm3174
    %vm3182 = vmor %vm3181, %vm3172
    %v3183 = vld [vmem:[#allocation2 + $0x8] sm:$0x44]
    %v3184 = vsel %vm3182, %v3164, %v3183
    %3185 = vst [vmem:[#allocation2 + $0x8] sm:$0x44] %v3184
    %v3186 = vld [vmem:[#allocation2 + $0x30] sm:$0x44]
    %v3187 = vsel %vm3176, %v3165, %v3186
    %3188 = vst [vmem:[#allocation2 + $0x30] sm:$0x44] %v3187
    %v3189 = vld [vmem:[#allocation2 + $0x38] sm:$0x44]
    %v3190 = vsel %vm3182, %v3166, %v3189
    %3191 = vst [vmem:[#allocation2 + $0x38] sm:$0x44] %v3190
    %v3192 = vld [vmem:[%s3] sm:$0xf]
    %v3194 = vlaneseq
    %v3195 = vshrl.u32 %v3194, 7
    %v3196 = vsub.s32 0, %v3195
    %v3197 = vrot.slane %v3192, %v3196
    %v3198 = vlaneseq
    %v3199 = vshrl.u32 %v3198, 7
    %v3200 = vsub.s32 1, %v3199
    %v3201 = vrot.slane %v3192, %v3200
    %v3202 = vlaneseq
    %v3203 = vshrl.u32 %v3202, 7
    %v3204 = vsub.s32 2, %v3203
    %v3205 = vrot.slane %v3192, %v3204
    %v3206 = vlaneseq
    %v3207 = vshrl.u32 %v3206, 7
    %v3208 = vsub.s32 3, %v3207
    %v3209 = vrot.slane %v3192, %v3208
    %v3214 = vadd.f32 %v3081, %v3197
    %v3215 = vadd.f32 %v3082, %v3201
    %v3216 = vadd.f32 %v3083, %v3205
    %v3217 = vadd.f32 %v3084, %v3209
    %v3218 = vadd.f32 %v3085, %v3197
    %v3219 = vadd.f32 %v3086, %v3201
    %v3220 = vadd.f32 %v3087, %v3205
    %v3221 = vadd.f32 %v3088, %v3209
    %v3222 = vmul.f32 %v3214, 0.1
    %v3223 = vmul.f32 %v3215, 0.1
    %v3224 = vmul.f32 %v3216, 0.1
    %v3225 = vmul.f32 %v3217, 0.1
    %v3226 = vmul.f32 %v3218, 0.1
    %v3227 = vmul.f32 %v3219, 0.1
    %v3228 = vmul.f32 %v3220, 0.1
    %v3229 = vmul.f32 %v3221, 0.1
    %v3230 = vmax.f32 %v3214, %v3222
    %v3231 = vmax.f32 %v3215, %v3223
    %v3232 = vmax.f32 %v3216, %v3224
    %v3233 = vmax.f32 %v3217, %v3225
    %v3234 = vmax.f32 %v3218, %v3226
    %v3235 = vmax.f32 %v3219, %v3227
    %v3236 = vmax.f32 %v3220, %v3228
    %v3237 = vmax.f32 %v3221, %v3229
    %v3238 = vpack.c.bf16 %v3230, %v3230
    %v3239 = vpack.c.bf16 %v3231, %v3231
    %v3240 = vpack.c.bf16 %v3232, %v3232
    %v3241 = vpack.c.bf16 %v3233, %v3233
    %v3242 = vpack.c.bf16 %v3234, %v3234
    %v3243 = vpack.c.bf16 %v3235, %v3235
    %v3244 = vpack.c.bf16 %v3236, %v3236
    %v3245 = vpack.c.bf16 %v3237, %v3237
    %v3254 = vunpack.c.l.b16 %v3238
    %v3255 = vunpack.c.l.b16 %v3239
    %v3256 = vunpack.c.l.b16 %v3240
    %v3257 = vunpack.c.l.b16 %v3241
    %v3258 = vunpack.c.l.b16 %v3242
    %v3259 = vunpack.c.l.b16 %v3243
    %v3260 = vunpack.c.l.b16 %v3244
    %v3261 = vunpack.c.l.b16 %v3245
    %v3262 = vpack.c.b16 %v3255, %v3254
    %v3263 = vpack.c.b16 %v3257, %v3256
    %v3264 = vpack.c.b16 %v3259, %v3258
    %v3265 = vpack.c.b16 %v3261, %v3260
    %v3267 = vshll.u32 %v3262, 16
    %v3269 = vrot.slane %v3267, 7
    %v3271 = vshll.u32 %v3263, 16
    %v3273 = vrot.slane %v3271, 7
    %v3275 = vshll.u32 %v3264, 16
    %v3277 = vrot.slane %v3275, 7
    %v3279 = vshll.u32 %v3265, 16
    %v3281 = vrot.slane %v3279, 7
    %vm3286 = vsmask.f32 7946
    %vm3287 = vmand %vm3171, %vm3286
    %vm3288 = vsmask.f32 7962
    %vm3289 = vmand %vm3173, %vm3288
    %vm3290 = vmor %vm3289, %vm3287
    %v3291 = vld [vmem:[#allocation2] sm:$0x44]
    %v3292 = vsel %vm3290, %v3269, %v3291
    %3293 = vst [vmem:[#allocation2] sm:$0x44] %v3292
    %vm3294 = vmand %vm3180, %vm3288
    %vm3295 = vmor %vm3294, %vm3287
    %v3296 = vld [vmem:[#allocation2 + $0x8] sm:$0x44]
    %v3297 = vsel %vm3295, %v3273, %v3296
    %3298 = vst [vmem:[#allocation2 + $0x8] sm:$0x44] %v3297
    %v3299 = vld [vmem:[#allocation2 + $0x30] sm:$0x44]
    %v3300 = vsel %vm3290, %v3277, %v3299
    %3301 = vst [vmem:[#allocation2 + $0x30] sm:$0x44] %v3300
    %v3302 = vld [vmem:[#allocation2 + $0x38] sm:$0x44]
    %v3303 = vsel %vm3295, %v3281, %v3302
    %3304 = vst [vmem:[#allocation2 + $0x38] sm:$0x44] %v3303
    %v3305 = vld [vmem:[%s3] sm:$0xf]
    %v3307 = vlaneseq
    %v3308 = vshrl.u32 %v3307, 7
    %v3309 = vsub.s32 0, %v3308
    %v3310 = vrot.slane %v3305, %v3309
    %v3311 = vlaneseq
    %v3312 = vshrl.u32 %v3311, 7
    %v3313 = vsub.s32 1, %v3312
    %v3314 = vrot.slane %v3305, %v3313
    %v3315 = vlaneseq
    %v3316 = vshrl.u32 %v3315, 7
    %v3317 = vsub.s32 2, %v3316
    %v3318 = vrot.slane %v3305, %v3317
    %v3319 = vlaneseq
    %v3320 = vshrl.u32 %v3319, 7
    %v3321 = vsub.s32 3, %v3320
    %v3322 = vrot.slane %v3305, %v3321
    %v3327 = vadd.f32 %v3081, %v3310
    %v3328 = vadd.f32 %v3082, %v3314
    %v3329 = vadd.f32 %v3083, %v3318
    %v3330 = vadd.f32 %v3084, %v3322
    %v3331 = vadd.f32 %v3085, %v3310
    %v3332 = vadd.f32 %v3086, %v3314
    %v3333 = vadd.f32 %v3087, %v3318
    %v3334 = vadd.f32 %v3088, %v3322
    %v3335 = vmul.f32 %v3327, 0.1
    %v3336 = vmul.f32 %v3328, 0.1
    %v3337 = vmul.f32 %v3329, 0.1
    %v3338 = vmul.f32 %v3330, 0.1
    %v3339 = vmul.f32 %v3331, 0.1
    %v3340 = vmul.f32 %v3332, 0.1
    %v3341 = vmul.f32 %v3333, 0.1
    %v3342 = vmul.f32 %v3334, 0.1
    %v3343 = vmax.f32 %v3327, %v3335
    %v3344 = vmax.f32 %v3328, %v3336
    %v3345 = vmax.f32 %v3329, %v3337
    %v3346 = vmax.f32 %v3330, %v3338
    %v3347 = vmax.f32 %v3331, %v3339
    %v3348 = vmax.f32 %v3332, %v3340
    %v3349 = vmax.f32 %v3333, %v3341
    %v3350 = vmax.f32 %v3334, %v3342
    %v3351 = vpack.c.bf16 %v3343, %v3343
    %v3352 = vpack.c.bf16 %v3344, %v3344
    %v3353 = vpack.c.bf16 %v3345, %v3345
    %v3354 = vpack.c.bf16 %v3346, %v3346
    %v3355 = vpack.c.bf16 %v3347, %v3347
    %v3356 = vpack.c.bf16 %v3348, %v3348
    %v3357 = vpack.c.bf16 %v3349, %v3349
    %v3358 = vpack.c.bf16 %v3350, %v3350
    %v3367 = vunpack.c.l.b16 %v3351
    %v3368 = vunpack.c.l.b16 %v3352
    %v3369 = vunpack.c.l.b16 %v3353
    %v3370 = vunpack.c.l.b16 %v3354
    %v3371 = vunpack.c.l.b16 %v3355
    %v3372 = vunpack.c.l.b16 %v3356
    %v3373 = vunpack.c.l.b16 %v3357
    %v3374 = vunpack.c.l.b16 %v3358
    %v3375 = vpack.c.b16 %v3368, %v3367
    %v3376 = vpack.c.b16 %v3370, %v3369
    %v3377 = vpack.c.b16 %v3372, %v3371
    %v3378 = vpack.c.b16 %v3374, %v3373
    %v3379 = vrot.slane %v3375, 7
    %v3380 = vrot.slane %v3376, 7
    %v3381 = vrot.slane %v3377, 7
    %v3382 = vrot.slane %v3378, 7
    %vm3387 = vcmask 1043459
    %vm3388 = vmand %vm3387, %vm66
    %vm3389 = vcmask 1047559
    %vm3390 = vsmask.f32 7424
    %vm3391 = vmand %vm3389, %vm3390
    %vm3392 = vmor %vm3391, %vm3388
    %v3393 = vld [vmem:[#allocation2] sm:$0x88]
    %v3394 = vsel %vm3392, %v3379, %v3393
    %3395 = vst [vmem:[#allocation2] sm:$0x88] %v3394
    %vm3396 = vcmask 523271
    %vm3397 = vmand %vm3396, %vm3390
    %vm3398 = vmor %vm3397, %vm3388
    %v3399 = vld [vmem:[#allocation2 + $0x8] sm:$0x88]
    %v3400 = vsel %vm3398, %v3380, %v3399
    %3401 = vst [vmem:[#allocation2 + $0x8] sm:$0x88] %v3400
    %v3402 = vld [vmem:[#allocation2 + $0x30] sm:$0x88]
    %v3403 = vsel %vm3392, %v3381, %v3402
    %3404 = vst [vmem:[#allocation2 + $0x30] sm:$0x88] %v3403
    %v3405 = vld [vmem:[#allocation2 + $0x38] sm:$0x88]
    %v3406 = vsel %vm3398, %v3382, %v3405
    %3407 = vst [vmem:[#allocation2 + $0x38] sm:$0x88] %v3406
    %v3408 = vld [vmem:[%s3] sm:$0xf]
    %v3410 = vlaneseq
    %v3411 = vshrl.u32 %v3410, 7
    %v3412 = vsub.s32 0, %v3411
    %v3413 = vrot.slane %v3408, %v3412
    %v3414 = vlaneseq
    %v3415 = vshrl.u32 %v3414, 7
    %v3416 = vsub.s32 1, %v3415
    %v3417 = vrot.slane %v3408, %v3416
    %v3418 = vlaneseq
    %v3419 = vshrl.u32 %v3418, 7
    %v3420 = vsub.s32 2, %v3419
    %v3421 = vrot.slane %v3408, %v3420
    %v3422 = vlaneseq
    %v3423 = vshrl.u32 %v3422, 7
    %v3424 = vsub.s32 3, %v3423
    %v3425 = vrot.slane %v3408, %v3424
    %v3430 = vadd.f32 %v3081, %v3413
    %v3431 = vadd.f32 %v3082, %v3417
    %v3432 = vadd.f32 %v3083, %v3421
    %v3433 = vadd.f32 %v3084, %v3425
    %v3434 = vadd.f32 %v3085, %v3413
    %v3435 = vadd.f32 %v3086, %v3417
    %v3436 = vadd.f32 %v3087, %v3421
    %v3437 = vadd.f32 %v3088, %v3425
    %v3438 = vmul.f32 %v3430, 0.1
    %v3439 = vmul.f32 %v3431, 0.1
    %v3440 = vmul.f32 %v3432, 0.1
    %v3441 = vmul.f32 %v3433, 0.1
    %v3442 = vmul.f32 %v3434, 0.1
    %v3443 = vmul.f32 %v3435, 0.1
    %v3444 = vmul.f32 %v3436, 0.1
    %v3445 = vmul.f32 %v3437, 0.1
    %v3446 = vmax.f32 %v3430, %v3438
    %v3447 = vmax.f32 %v3431, %v3439
    %v3448 = vmax.f32 %v3432, %v3440
    %v3449 = vmax.f32 %v3433, %v3441
    %v3450 = vmax.f32 %v3434, %v3442
    %v3451 = vmax.f32 %v3435, %v3443
    %v3452 = vmax.f32 %v3436, %v3444
    %v3453 = vmax.f32 %v3437, %v3445
    %v3454 = vpack.c.bf16 %v3446, %v3446
    %v3455 = vpack.c.bf16 %v3447, %v3447
    %v3456 = vpack.c.bf16 %v3448, %v3448
    %v3457 = vpack.c.bf16 %v3449, %v3449
    %v3458 = vpack.c.bf16 %v3450, %v3450
    %v3459 = vpack.c.bf16 %v3451, %v3451
    %v3460 = vpack.c.bf16 %v3452, %v3452
    %v3461 = vpack.c.bf16 %v3453, %v3453
    %v3470 = vunpack.c.l.b16 %v3454
    %v3471 = vunpack.c.l.b16 %v3455
    %v3472 = vunpack.c.l.b16 %v3456
    %v3473 = vunpack.c.l.b16 %v3457
    %v3474 = vunpack.c.l.b16 %v3458
    %v3475 = vunpack.c.l.b16 %v3459
    %v3476 = vunpack.c.l.b16 %v3460
    %v3477 = vunpack.c.l.b16 %v3461
    %v3478 = vpack.c.b16 %v3471, %v3470
    %v3479 = vpack.c.b16 %v3473, %v3472
    %v3480 = vpack.c.b16 %v3475, %v3474
    %v3481 = vpack.c.b16 %v3477, %v3476
    %v3483 = vshll.u32 %v3478, 16
    %v3486 = vshll.u32 %v3479, 16
    %v3489 = vshll.u32 %v3480, 16
    %v3492 = vshll.u32 %v3481, 16
    %vm3498 = vsmask.f32 7950
    %vm3499 = vmand %vm3387, %vm3498
    %vm3500 = vsmask.f32 7966
    %vm3501 = vmand %vm3389, %vm3500
    %vm3502 = vmor %vm3501, %vm3499
    %v3503 = vld [vmem:[#allocation2] sm:$0x88]
    %v3504 = vsel %vm3502, %v3483, %v3503
    %3505 = vst [vmem:[#allocation2] sm:$0x88] %v3504
    %vm3506 = vmand %vm3396, %vm3500
    %vm3507 = vmor %vm3506, %vm3499
    %v3508 = vld [vmem:[#allocation2 + $0x8] sm:$0x88]
    %v3509 = vsel %vm3507, %v3486, %v3508
    %3510 = vst [vmem:[#allocation2 + $0x8] sm:$0x88] %v3509
    %v3511 = vld [vmem:[#allocation2 + $0x30] sm:$0x88]
    %v3512 = vsel %vm3502, %v3489, %v3511
    %3513 = vst [vmem:[#allocation2 + $0x30] sm:$0x88] %v3512
    %v3514 = vld [vmem:[#allocation2 + $0x38] sm:$0x88]
    %v3515 = vsel %vm3507, %v3492, %v3514
    %3516 = vst [vmem:[#allocation2 + $0x38] sm:$0x88] %v3515
    %v3525 = vrot.slane %v2559, 1
    %v3526 = vrot.slane %v2560, 1
    %v3527 = vrot.slane %v2561, 1
    %v3528 = vrot.slane %v2562, 1
    %v3529 = vrot.slane %v2575, 1
    %v3530 = vrot.slane %v2576, 1
    %v3531 = vrot.slane %v2577, 1
    %v3532 = vrot.slane %v2578, 1
    %v3541 = vmax.f32 %v2559, %v3525
    %v3542 = vmax.f32 %v2560, %v3526
    %v3543 = vmax.f32 %v2561, %v3527
    %v3544 = vmax.f32 %v2562, %v3528
    %v3545 = vmax.f32 %v2575, %v3529
    %v3546 = vmax.f32 %v2576, %v3530
    %v3547 = vmax.f32 %v2577, %v3531
    %v3548 = vmax.f32 %v2578, %v3532
    %v3549 = vld [vmem:[%s3] sm:$0xf]
    %v3551 = vlaneseq
    %v3552 = vshrl.u32 %v3551, 7
    %v3553 = vsub.s32 0, %v3552
    %v3554 = vrot.slane %v3549, %v3553
    %v3555 = vlaneseq
    %v3556 = vshrl.u32 %v3555, 7
    %v3557 = vsub.s32 1, %v3556
    %v3558 = vrot.slane %v3549, %v3557
    %v3559 = vlaneseq
    %v3560 = vshrl.u32 %v3559, 7
    %v3561 = vsub.s32 2, %v3560
    %v3562 = vrot.slane %v3549, %v3561
    %v3563 = vlaneseq
    %v3564 = vshrl.u32 %v3563, 7
    %v3565 = vsub.s32 3, %v3564
    %v3566 = vrot.slane %v3549, %v3565
    %v3571 = vadd.f32 %v3541, %v3554
    %v3572 = vadd.f32 %v3542, %v3558
    %v3573 = vadd.f32 %v3543, %v3562
    %v3574 = vadd.f32 %v3544, %v3566
    %v3575 = vadd.f32 %v3545, %v3554
    %v3576 = vadd.f32 %v3546, %v3558
    %v3577 = vadd.f32 %v3547, %v3562
    %v3578 = vadd.f32 %v3548, %v3566
    %v3579 = vmul.f32 %v3571, 0.1
    %v3580 = vmul.f32 %v3572, 0.1
    %v3581 = vmul.f32 %v3573, 0.1
    %v3582 = vmul.f32 %v3574, 0.1
    %v3583 = vmul.f32 %v3575, 0.1
    %v3584 = vmul.f32 %v3576, 0.1
    %v3585 = vmul.f32 %v3577, 0.1
    %v3586 = vmul.f32 %v3578, 0.1
    %v3587 = vmax.f32 %v3571, %v3579
    %v3588 = vmax.f32 %v3572, %v3580
    %v3589 = vmax.f32 %v3573, %v3581
    %v3590 = vmax.f32 %v3574, %v3582
    %v3591 = vmax.f32 %v3575, %v3583
    %v3592 = vmax.f32 %v3576, %v3584
    %v3593 = vmax.f32 %v3577, %v3585
    %v3594 = vmax.f32 %v3578, %v3586
    %v3595 = vpack.c.bf16 %v3587, %v3587
    %v3596 = vpack.c.bf16 %v3588, %v3588
    %v3597 = vpack.c.bf16 %v3589, %v3589
    %v3598 = vpack.c.bf16 %v3590, %v3590
    %v3599 = vpack.c.bf16 %v3591, %v3591
    %v3600 = vpack.c.bf16 %v3592, %v3592
    %v3601 = vpack.c.bf16 %v3593, %v3593
    %v3602 = vpack.c.bf16 %v3594, %v3594
    %v3611 = vunpack.c.l.b16 %v3595
    %v3612 = vunpack.c.l.b16 %v3596
    %v3613 = vunpack.c.l.b16 %v3597
    %v3614 = vunpack.c.l.b16 %v3598
    %v3615 = vunpack.c.l.b16 %v3599
    %v3616 = vunpack.c.l.b16 %v3600
    %v3617 = vunpack.c.l.b16 %v3601
    %v3618 = vunpack.c.l.b16 %v3602
    %v3619 = vpack.c.b16 %v3612, %v3611
    %v3620 = vpack.c.b16 %v3614, %v3613
    %v3621 = vpack.c.b16 %v3616, %v3615
    %v3622 = vpack.c.b16 %v3618, %v3617
    %v3627 = vld [vmem:[#allocation2 + $0x10] sm:$0x11]
    %v3628 = vsel %vm2699, %v3619, %v3627
    %3629 = vst [vmem:[#allocation2 + $0x10] sm:$0x11] %v3628
    %v3630 = vld [vmem:[#allocation2 + $0x18] sm:$0x11]
    %v3631 = vsel %vm2705, %v3620, %v3630
    %3632 = vst [vmem:[#allocation2 + $0x18] sm:$0x11] %v3631
    %v3633 = vld [vmem:[#allocation2 + $0x40] sm:$0x11]
    %v3634 = vsel %vm2699, %v3621, %v3633
    %3635 = vst [vmem:[#allocation2 + $0x40] sm:$0x11] %v3634
    %v3636 = vld [vmem:[#allocation2 + $0x48] sm:$0x11]
    %v3637 = vsel %vm2705, %v3622, %v3636
    %3638 = vst [vmem:[#allocation2 + $0x48] sm:$0x11] %v3637
    %v3639 = vld [vmem:[%s3] sm:$0xf]
    %v3641 = vlaneseq
    %v3642 = vshrl.u32 %v3641, 7
    %v3643 = vsub.s32 0, %v3642
    %v3644 = vrot.slane %v3639, %v3643
    %v3645 = vlaneseq
    %v3646 = vshrl.u32 %v3645, 7
    %v3647 = vsub.s32 1, %v3646
    %v3648 = vrot.slane %v3639, %v3647
    %v3649 = vlaneseq
    %v3650 = vshrl.u32 %v3649, 7
    %v3651 = vsub.s32 2, %v3650
    %v3652 = vrot.slane %v3639, %v3651
    %v3653 = vlaneseq
    %v3654 = vshrl.u32 %v3653, 7
    %v3655 = vsub.s32 3, %v3654
    %v3656 = vrot.slane %v3639, %v3655
    %v3661 = vadd.f32 %v3541, %v3644
    %v3662 = vadd.f32 %v3542, %v3648
    %v3663 = vadd.f32 %v3543, %v3652
    %v3664 = vadd.f32 %v3544, %v3656
    %v3665 = vadd.f32 %v3545, %v3644
    %v3666 = vadd.f32 %v3546, %v3648
    %v3667 = vadd.f32 %v3547, %v3652
    %v3668 = vadd.f32 %v3548, %v3656
    %v3669 = vmul.f32 %v3661, 0.1
    %v3670 = vmul.f32 %v3662, 0.1
    %v3671 = vmul.f32 %v3663, 0.1
    %v3672 = vmul.f32 %v3664, 0.1
    %v3673 = vmul.f32 %v3665, 0.1
    %v3674 = vmul.f32 %v3666, 0.1
    %v3675 = vmul.f32 %v3667, 0.1
    %v3676 = vmul.f32 %v3668, 0.1
    %v3677 = vmax.f32 %v3661, %v3669
    %v3678 = vmax.f32 %v3662, %v3670
    %v3679 = vmax.f32 %v3663, %v3671
    %v3680 = vmax.f32 %v3664, %v3672
    %v3681 = vmax.f32 %v3665, %v3673
    %v3682 = vmax.f32 %v3666, %v3674
    %v3683 = vmax.f32 %v3667, %v3675
    %v3684 = vmax.f32 %v3668, %v3676
    %v3685 = vpack.c.bf16 %v3677, %v3677
    %v3686 = vpack.c.bf16 %v3678, %v3678
    %v3687 = vpack.c.bf16 %v3679, %v3679
    %v3688 = vpack.c.bf16 %v3680, %v3680
    %v3689 = vpack.c.bf16 %v3681, %v3681
    %v3690 = vpack.c.bf16 %v3682, %v3682
    %v3691 = vpack.c.bf16 %v3683, %v3683
    %v3692 = vpack.c.bf16 %v3684, %v3684
    %v3701 = vunpack.c.l.b16 %v3685
    %v3702 = vunpack.c.l.b16 %v3686
    %v3703 = vunpack.c.l.b16 %v3687
    %v3704 = vunpack.c.l.b16 %v3688
    %v3705 = vunpack.c.l.b16 %v3689
    %v3706 = vunpack.c.l.b16 %v3690
    %v3707 = vunpack.c.l.b16 %v3691
    %v3708 = vunpack.c.l.b16 %v3692
    %v3709 = vpack.c.b16 %v3702, %v3701
    %v3710 = vpack.c.b16 %v3704, %v3703
    %v3711 = vpack.c.b16 %v3706, %v3705
    %v3712 = vpack.c.b16 %v3708, %v3707
    %v3714 = vshll.u32 %v3709, 16
    %v3716 = vrot.slane %v3714, 5
    %v3717 = vrot.slane %v3716, 4
    %v3719 = vshll.u32 %v3710, 16
    %v3721 = vrot.slane %v3719, 5
    %v3722 = vrot.slane %v3721, 4
    %v3724 = vshll.u32 %v3711, 16
    %v3726 = vrot.slane %v3724, 5
    %v3727 = vrot.slane %v3726, 4
    %v3729 = vshll.u32 %v3712, 16
    %v3731 = vrot.slane %v3729, 5
    %v3732 = vrot.slane %v3731, 4
    %v3737 = vld [vmem:[#allocation2 + $0x10] sm:$0x11]
    %v3738 = vsel %vm2817, %v3717, %v3737
    %3739 = vst [vmem:[#allocation2 + $0x10] sm:$0x11] %v3738
    %v3740 = vld [vmem:[#allocation2 + $0x18] sm:$0x11]
    %v3741 = vsel %vm2822, %v3722, %v3740
    %3742 = vst [vmem:[#allocation2 + $0x18] sm:$0x11] %v3741
    %v3743 = vld [vmem:[#allocation2 + $0x40] sm:$0x11]
    %v3744 = vsel %vm2817, %v3727, %v3743
    %3745 = vst [vmem:[#allocation2 + $0x40] sm:$0x11] %v3744
    %v3746 = vld [vmem:[#allocation2 + $0x48] sm:$0x11]
    %v3747 = vsel %vm2822, %v3732, %v3746
    %3748 = vst [vmem:[#allocation2 + $0x48] sm:$0x11] %v3747
    %v3749 = vld [vmem:[%s3] sm:$0xf]
    %v3751 = vlaneseq
    %v3752 = vshrl.u32 %v3751, 7
    %v3753 = vsub.s32 0, %v3752
    %v3754 = vrot.slane %v3749, %v3753
    %v3755 = vlaneseq
    %v3756 = vshrl.u32 %v3755, 7
    %v3757 = vsub.s32 1, %v3756
    %v3758 = vrot.slane %v3749, %v3757
    %v3759 = vlaneseq
    %v3760 = vshrl.u32 %v3759, 7
    %v3761 = vsub.s32 2, %v3760
    %v3762 = vrot.slane %v3749, %v3761
    %v3763 = vlaneseq
    %v3764 = vshrl.u32 %v3763, 7
    %v3765 = vsub.s32 3, %v3764
    %v3766 = vrot.slane %v3749, %v3765
    %v3771 = vadd.f32 %v3541, %v3754
    %v3772 = vadd.f32 %v3542, %v3758
    %v3773 = vadd.f32 %v3543, %v3762
    %v3774 = vadd.f32 %v3544, %v3766
    %v3775 = vadd.f32 %v3545, %v3754
    %v3776 = vadd.f32 %v3546, %v3758
    %v3777 = vadd.f32 %v3547, %v3762
    %v3778 = vadd.f32 %v3548, %v3766
    %v3779 = vmul.f32 %v3771, 0.1
    %v3780 = vmul.f32 %v3772, 0.1
    %v3781 = vmul.f32 %v3773, 0.1
    %v3782 = vmul.f32 %v3774, 0.1
    %v3783 = vmul.f32 %v3775, 0.1
    %v3784 = vmul.f32 %v3776, 0.1
    %v3785 = vmul.f32 %v3777, 0.1
    %v3786 = vmul.f32 %v3778, 0.1
    %v3787 = vmax.f32 %v3771, %v3779
    %v3788 = vmax.f32 %v3772, %v3780
    %v3789 = vmax.f32 %v3773, %v3781
    %v3790 = vmax.f32 %v3774, %v3782
    %v3791 = vmax.f32 %v3775, %v3783
    %v3792 = vmax.f32 %v3776, %v3784
    %v3793 = vmax.f32 %v3777, %v3785
    %v3794 = vmax.f32 %v3778, %v3786
    %v3795 = vpack.c.bf16 %v3787, %v3787
    %v3796 = vpack.c.bf16 %v3788, %v3788
    %v3797 = vpack.c.bf16 %v3789, %v3789
    %v3798 = vpack.c.bf16 %v3790, %v3790
    %v3799 = vpack.c.bf16 %v3791, %v3791
    %v3800 = vpack.c.bf16 %v3792, %v3792
    %v3801 = vpack.c.bf16 %v3793, %v3793
    %v3802 = vpack.c.bf16 %v3794, %v3794
    %v3811 = vunpack.c.l.b16 %v3795
    %v3812 = vunpack.c.l.b16 %v3796
    %v3813 = vunpack.c.l.b16 %v3797
    %v3814 = vunpack.c.l.b16 %v3798
    %v3815 = vunpack.c.l.b16 %v3799
    %v3816 = vunpack.c.l.b16 %v3800
    %v3817 = vunpack.c.l.b16 %v3801
    %v3818 = vunpack.c.l.b16 %v3802
    %v3819 = vpack.c.b16 %v3812, %v3811
    %v3820 = vpack.c.b16 %v3814, %v3813
    %v3821 = vpack.c.b16 %v3816, %v3815
    %v3822 = vpack.c.b16 %v3818, %v3817
    %v3823 = vrot.slane %v3819, 5
    %v3824 = vrot.slane %v3823, 4
    %v3825 = vrot.slane %v3820, 5
    %v3826 = vrot.slane %v3825, 4
    %v3827 = vrot.slane %v3821, 5
    %v3828 = vrot.slane %v3827, 4
    %v3829 = vrot.slane %v3822, 5
    %v3830 = vrot.slane %v3829, 4
    %v3835 = vld [vmem:[#allocation2 + $0x10] sm:$0x22]
    %v3836 = vsel %vm2924, %v3824, %v3835
    %3837 = vst [vmem:[#allocation2 + $0x10] sm:$0x22] %v3836
    %v3838 = vld [vmem:[#allocation2 + $0x18] sm:$0x22]
    %v3839 = vsel %vm2930, %v3826, %v3838
    %3840 = vst [vmem:[#allocation2 + $0x18] sm:$0x22] %v3839
    %v3841 = vld [vmem:[#allocation2 + $0x40] sm:$0x22]
    %v3842 = vsel %vm2924, %v3828, %v3841
    %3843 = vst [vmem:[#allocation2 + $0x40] sm:$0x22] %v3842
    %v3844 = vld [vmem:[#allocation2 + $0x48] sm:$0x22]
    %v3845 = vsel %vm2930, %v3830, %v3844
    %3846 = vst [vmem:[#allocation2 + $0x48] sm:$0x22] %v3845
    %v3847 = vld [vmem:[%s3] sm:$0xf]
    %v3849 = vlaneseq
    %v3850 = vshrl.u32 %v3849, 7
    %v3851 = vsub.s32 0, %v3850
    %v3852 = vrot.slane %v3847, %v3851
    %v3853 = vlaneseq
    %v3854 = vshrl.u32 %v3853, 7
    %v3855 = vsub.s32 1, %v3854
    %v3856 = vrot.slane %v3847, %v3855
    %v3857 = vlaneseq
    %v3858 = vshrl.u32 %v3857, 7
    %v3859 = vsub.s32 2, %v3858
    %v3860 = vrot.slane %v3847, %v3859
    %v3861 = vlaneseq
    %v3862 = vshrl.u32 %v3861, 7
    %v3863 = vsub.s32 3, %v3862
    %v3864 = vrot.slane %v3847, %v3863
    %v3869 = vadd.f32 %v3541, %v3852
    %v3870 = vadd.f32 %v3542, %v3856
    %v3871 = vadd.f32 %v3543, %v3860
    %v3872 = vadd.f32 %v3544, %v3864
    %v3873 = vadd.f32 %v3545, %v3852
    %v3874 = vadd.f32 %v3546, %v3856
    %v3875 = vadd.f32 %v3547, %v3860
    %v3876 = vadd.f32 %v3548, %v3864
    %v3877 = vmul.f32 %v3869, 0.1
    %v3878 = vmul.f32 %v3870, 0.1
    %v3879 = vmul.f32 %v3871, 0.1
    %v3880 = vmul.f32 %v3872, 0.1
    %v3881 = vmul.f32 %v3873, 0.1
    %v3882 = vmul.f32 %v3874, 0.1
    %v3883 = vmul.f32 %v3875, 0.1
    %v3884 = vmul.f32 %v3876, 0.1
    %v3885 = vmax.f32 %v3869, %v3877
    %v3886 = vmax.f32 %v3870, %v3878
    %v3887 = vmax.f32 %v3871, %v3879
    %v3888 = vmax.f32 %v3872, %v3880
    %v3889 = vmax.f32 %v3873, %v3881
    %v3890 = vmax.f32 %v3874, %v3882
    %v3891 = vmax.f32 %v3875, %v3883
    %v3892 = vmax.f32 %v3876, %v3884
    %v3893 = vpack.c.bf16 %v3885, %v3885
    %v3894 = vpack.c.bf16 %v3886, %v3886
    %v3895 = vpack.c.bf16 %v3887, %v3887
    %v3896 = vpack.c.bf16 %v3888, %v3888
    %v3897 = vpack.c.bf16 %v3889, %v3889
    %v3898 = vpack.c.bf16 %v3890, %v3890
    %v3899 = vpack.c.bf16 %v3891, %v3891
    %v3900 = vpack.c.bf16 %v3892, %v3892
    %v3909 = vunpack.c.l.b16 %v3893
    %v3910 = vunpack.c.l.b16 %v3894
    %v3911 = vunpack.c.l.b16 %v3895
    %v3912 = vunpack.c.l.b16 %v3896
    %v3913 = vunpack.c.l.b16 %v3897
    %v3914 = vunpack.c.l.b16 %v3898
    %v3915 = vunpack.c.l.b16 %v3899
    %v3916 = vunpack.c.l.b16 %v3900
    %v3917 = vpack.c.b16 %v3910, %v3909
    %v3918 = vpack.c.b16 %v3912, %v3911
    %v3919 = vpack.c.b16 %v3914, %v3913
    %v3920 = vpack.c.b16 %v3916, %v3915
    %v3922 = vshll.u32 %v3917, 16
    %v3924 = vrot.slane %v3922, 6
    %v3925 = vrot.slane %v3924, 4
    %v3927 = vshll.u32 %v3918, 16
    %v3929 = vrot.slane %v3927, 6
    %v3930 = vrot.slane %v3929, 4
    %v3932 = vshll.u32 %v3919, 16
    %v3934 = vrot.slane %v3932, 6
    %v3935 = vrot.slane %v3934, 4
    %v3937 = vshll.u32 %v3920, 16
    %v3939 = vrot.slane %v3937, 6
    %v3940 = vrot.slane %v3939, 4
    %v3945 = vld [vmem:[#allocation2 + $0x10] sm:$0x22]
    %v3946 = vsel %vm3042, %v3925, %v3945
    %3947 = vst [vmem:[#allocation2 + $0x10] sm:$0x22] %v3946
    %v3948 = vld [vmem:[#allocation2 + $0x18] sm:$0x22]
    %v3949 = vsel %vm3047, %v3930, %v3948
    %3950 = vst [vmem:[#allocation2 + $0x18] sm:$0x22] %v3949
    %v3951 = vld [vmem:[#allocation2 + $0x40] sm:$0x22]
    %v3952 = vsel %vm3042, %v3935, %v3951
    %3953 = vst [vmem:[#allocation2 + $0x40] sm:$0x22] %v3952
    %v3954 = vld [vmem:[#allocation2 + $0x48] sm:$0x22]
    %v3955 = vsel %vm3047, %v3940, %v3954
    %3956 = vst [vmem:[#allocation2 + $0x48] sm:$0x22] %v3955
    %v3965 = vrot.slane %v2563, 1
    %v3966 = vrot.slane %v2564, 1
    %v3967 = vrot.slane %v2565, 1
    %v3968 = vrot.slane %v2566, 1
    %v3969 = vrot.slane %v2579, 1
    %v3970 = vrot.slane %v2580, 1
    %v3971 = vrot.slane %v2581, 1
    %v3972 = vrot.slane %v2582, 1
    %v3981 = vmax.f32 %v2563, %v3965
    %v3982 = vmax.f32 %v2564, %v3966
    %v3983 = vmax.f32 %v2565, %v3967
    %v3984 = vmax.f32 %v2566, %v3968
    %v3985 = vmax.f32 %v2579, %v3969
    %v3986 = vmax.f32 %v2580, %v3970
    %v3987 = vmax.f32 %v2581, %v3971
    %v3988 = vmax.f32 %v2582, %v3972
    %v3989 = vld [vmem:[%s3] sm:$0xf]
    %v3991 = vlaneseq
    %v3992 = vshrl.u32 %v3991, 7
    %v3993 = vsub.s32 0, %v3992
    %v3994 = vrot.slane %v3989, %v3993
    %v3995 = vlaneseq
    %v3996 = vshrl.u32 %v3995, 7
    %v3997 = vsub.s32 1, %v3996
    %v3998 = vrot.slane %v3989, %v3997
    %v3999 = vlaneseq
    %v4000 = vshrl.u32 %v3999, 7
    %v4001 = vsub.s32 2, %v4000
    %v4002 = vrot.slane %v3989, %v4001
    %v4003 = vlaneseq
    %v4004 = vshrl.u32 %v4003, 7
    %v4005 = vsub.s32 3, %v4004
    %v4006 = vrot.slane %v3989, %v4005
    %v4011 = vadd.f32 %v3981, %v3994
    %v4012 = vadd.f32 %v3982, %v3998
    %v4013 = vadd.f32 %v3983, %v4002
    %v4014 = vadd.f32 %v3984, %v4006
    %v4015 = vadd.f32 %v3985, %v3994
    %v4016 = vadd.f32 %v3986, %v3998
    %v4017 = vadd.f32 %v3987, %v4002
    %v4018 = vadd.f32 %v3988, %v4006
    %v4019 = vmul.f32 %v4011, 0.1
    %v4020 = vmul.f32 %v4012, 0.1
    %v4021 = vmul.f32 %v4013, 0.1
    %v4022 = vmul.f32 %v4014, 0.1
    %v4023 = vmul.f32 %v4015, 0.1
    %v4024 = vmul.f32 %v4016, 0.1
    %v4025 = vmul.f32 %v4017, 0.1
    %v4026 = vmul.f32 %v4018, 0.1
    %v4027 = vmax.f32 %v4011, %v4019
    %v4028 = vmax.f32 %v4012, %v4020
    %v4029 = vmax.f32 %v4013, %v4021
    %v4030 = vmax.f32 %v4014, %v4022
    %v4031 = vmax.f32 %v4015, %v4023
    %v4032 = vmax.f32 %v4016, %v4024
    %v4033 = vmax.f32 %v4017, %v4025
    %v4034 = vmax.f32 %v4018, %v4026
    %v4035 = vpack.c.bf16 %v4027, %v4027
    %v4036 = vpack.c.bf16 %v4028, %v4028
    %v4037 = vpack.c.bf16 %v4029, %v4029
    %v4038 = vpack.c.bf16 %v4030, %v4030
    %v4039 = vpack.c.bf16 %v4031, %v4031
    %v4040 = vpack.c.bf16 %v4032, %v4032
    %v4041 = vpack.c.bf16 %v4033, %v4033
    %v4042 = vpack.c.bf16 %v4034, %v4034
    %v4051 = vunpack.c.l.b16 %v4035
    %v4052 = vunpack.c.l.b16 %v4036
    %v4053 = vunpack.c.l.b16 %v4037
    %v4054 = vunpack.c.l.b16 %v4038
    %v4055 = vunpack.c.l.b16 %v4039
    %v4056 = vunpack.c.l.b16 %v4040
    %v4057 = vunpack.c.l.b16 %v4041
    %v4058 = vunpack.c.l.b16 %v4042
    %v4059 = vpack.c.b16 %v4052, %v4051
    %v4060 = vpack.c.b16 %v4054, %v4053
    %v4061 = vpack.c.b16 %v4056, %v4055
    %v4062 = vpack.c.b16 %v4058, %v4057
    %v4063 = vrot.slane %v4059, 6
    %v4064 = vrot.slane %v4060, 6
    %v4065 = vrot.slane %v4061, 6
    %v4066 = vrot.slane %v4062, 6
    %v4071 = vld [vmem:[#allocation2 + $0x10] sm:$0x44]
    %v4072 = vsel %vm3176, %v4063, %v4071
    %4073 = vst [vmem:[#allocation2 + $0x10] sm:$0x44] %v4072
    %v4074 = vld [vmem:[#allocation2 + $0x18] sm:$0x44]
    %v4075 = vsel %vm3182, %v4064, %v4074
    %4076 = vst [vmem:[#allocation2 + $0x18] sm:$0x44] %v4075
    %v4077 = vld [vmem:[#allocation2 + $0x40] sm:$0x44]
    %v4078 = vsel %vm3176, %v4065, %v4077
    %4079 = vst [vmem:[#allocation2 + $0x40] sm:$0x44] %v4078
    %v4080 = vld [vmem:[#allocation2 + $0x48] sm:$0x44]
    %v4081 = vsel %vm3182, %v4066, %v4080
    %4082 = vst [vmem:[#allocation2 + $0x48] sm:$0x44] %v4081
    %v4083 = vld [vmem:[%s3] sm:$0xf]
    %v4085 = vlaneseq
    %v4086 = vshrl.u32 %v4085, 7
    %v4087 = vsub.s32 0, %v4086
    %v4088 = vrot.slane %v4083, %v4087
    %v4089 = vlaneseq
    %v4090 = vshrl.u32 %v4089, 7
    %v4091 = vsub.s32 1, %v4090
    %v4092 = vrot.slane %v4083, %v4091
    %v4093 = vlaneseq
    %v4094 = vshrl.u32 %v4093, 7
    %v4095 = vsub.s32 2, %v4094
    %v4096 = vrot.slane %v4083, %v4095
    %v4097 = vlaneseq
    %v4098 = vshrl.u32 %v4097, 7
    %v4099 = vsub.s32 3, %v4098
    %v4100 = vrot.slane %v4083, %v4099
    %v4105 = vadd.f32 %v3981, %v4088
    %v4106 = vadd.f32 %v3982, %v4092
    %v4107 = vadd.f32 %v3983, %v4096
    %v4108 = vadd.f32 %v3984, %v4100
    %v4109 = vadd.f32 %v3985, %v4088
    %v4110 = vadd.f32 %v3986, %v4092
    %v4111 = vadd.f32 %v3987, %v4096
    %v4112 = vadd.f32 %v3988, %v4100
    %v4113 = vmul.f32 %v4105, 0.1
    %v4114 = vmul.f32 %v4106, 0.1
    %v4115 = vmul.f32 %v4107, 0.1
    %v4116 = vmul.f32 %v4108, 0.1
    %v4117 = vmul.f32 %v4109, 0.1
    %v4118 = vmul.f32 %v4110, 0.1
    %v4119 = vmul.f32 %v4111, 0.1
    %v4120 = vmul.f32 %v4112, 0.1
    %v4121 = vmax.f32 %v4105, %v4113
    %v4122 = vmax.f32 %v4106, %v4114
    %v4123 = vmax.f32 %v4107, %v4115
    %v4124 = vmax.f32 %v4108, %v4116
    %v4125 = vmax.f32 %v4109, %v4117
    %v4126 = vmax.f32 %v4110, %v4118
    %v4127 = vmax.f32 %v4111, %v4119
    %v4128 = vmax.f32 %v4112, %v4120
    %v4129 = vpack.c.bf16 %v4121, %v4121
    %v4130 = vpack.c.bf16 %v4122, %v4122
    %v4131 = vpack.c.bf16 %v4123, %v4123
    %v4132 = vpack.c.bf16 %v4124, %v4124
    %v4133 = vpack.c.bf16 %v4125, %v4125
    %v4134 = vpack.c.bf16 %v4126, %v4126
    %v4135 = vpack.c.bf16 %v4127, %v4127
    %v4136 = vpack.c.bf16 %v4128, %v4128
    %v4145 = vunpack.c.l.b16 %v4129
    %v4146 = vunpack.c.l.b16 %v4130
    %v4147 = vunpack.c.l.b16 %v4131
    %v4148 = vunpack.c.l.b16 %v4132
    %v4149 = vunpack.c.l.b16 %v4133
    %v4150 = vunpack.c.l.b16 %v4134
    %v4151 = vunpack.c.l.b16 %v4135
    %v4152 = vunpack.c.l.b16 %v4136
    %v4153 = vpack.c.b16 %v4146, %v4145
    %v4154 = vpack.c.b16 %v4148, %v4147
    %v4155 = vpack.c.b16 %v4150, %v4149
    %v4156 = vpack.c.b16 %v4152, %v4151
    %v4158 = vshll.u32 %v4153, 16
    %v4160 = vrot.slane %v4158, 7
    %v4162 = vshll.u32 %v4154, 16
    %v4164 = vrot.slane %v4162, 7
    %v4166 = vshll.u32 %v4155, 16
    %v4168 = vrot.slane %v4166, 7
    %v4170 = vshll.u32 %v4156, 16
    %v4172 = vrot.slane %v4170, 7
    %v4177 = vld [vmem:[#allocation2 + $0x10] sm:$0x44]
    %v4178 = vsel %vm3290, %v4160, %v4177
    %4179 = vst [vmem:[#allocation2 + $0x10] sm:$0x44] %v4178
    %v4180 = vld [vmem:[#allocation2 + $0x18] sm:$0x44]
    %v4181 = vsel %vm3295, %v4164, %v4180
    %4182 = vst [vmem:[#allocation2 + $0x18] sm:$0x44] %v4181
    %v4183 = vld [vmem:[#allocation2 + $0x40] sm:$0x44]
    %v4184 = vsel %vm3290, %v4168, %v4183
    %4185 = vst [vmem:[#allocation2 + $0x40] sm:$0x44] %v4184
    %v4186 = vld [vmem:[#allocation2 + $0x48] sm:$0x44]
    %v4187 = vsel %vm3295, %v4172, %v4186
    %4188 = vst [vmem:[#allocation2 + $0x48] sm:$0x44] %v4187
    %4189 = vst [vmem:[#allocation2 + $0x10] sm:$0x88] 0
    %vm4190 = vcmask 1043459
    %vm4191 = vcmask 523271
    %vm4192 = vmor %vm4191, %vm4190
    %4193 = vst.msk [vmem:[#allocation2 + $0x18] sm:$0x88] %vm4192, 0
    %4194 = vst [vmem:[#allocation2 + $0x20] sm:$0x33] 0
    %vm4195 = vcmask 1041408
    %vm4196 = vcmask 521220
    %vm4197 = vmor %vm4196, %vm4195
    %4198 = vst.msk [vmem:[#allocation2 + $0x28] sm:$0x33] %vm4197, 0
    %4199 = vst [vmem:[#allocation2 + $0x40] sm:$0x88] 0
    %4200 = vst.msk [vmem:[#allocation2 + $0x48] sm:$0x88] %vm4192, 0
    %4201 = vst [vmem:[#allocation2 + $0x50] sm:$0x33] 0
    %4202 = vst.msk [vmem:[#allocation2 + $0x58] sm:$0x33] %vm4197, 0
    %v4203 = vld [vmem:[#allocation2] sm:$0xff]
    %v4204 = vld [vmem:[#allocation2 + $0x8] sm:$0xff]
    %v4205 = vld [vmem:[#allocation2 + $0x10] sm:$0xff]
    %v4206 = vld [vmem:[#allocation2 + $0x18] sm:$0xff]
    %v4207 = vld [vmem:[#allocation2 + $0x30] sm:$0xff]
    %v4208 = vld [vmem:[#allocation2 + $0x38] sm:$0xff]
    %v4209 = vld [vmem:[#allocation2 + $0x40] sm:$0xff]
    %v4210 = vld [vmem:[#allocation2 + $0x48] sm:$0xff]
    %v4211 = vld [vmem:[%s4] sm:$0xff]
    %v4212 = vld [vmem:[%s4 + $0x8] sm:$0xff]
    %v4213 = vld [vmem:[%s4 + $0x10] sm:$0xff]
    %v4214 = vld [vmem:[%s4 + $0x18] sm:$0xff]
    %v4215 = vld [vmem:[%s4 + $0x20] sm:$0xff]
    %v4216 = vld [vmem:[%s4 + $0x28] sm:$0xff]
    %v4217 = vld [vmem:[%s4 + $0x30] sm:$0xff]
    %v4218 = vld [vmem:[%s4 + $0x38] sm:$0xff]
    %v4219 = vld [vmem:[%s4 + $0x40] sm:$0xff]
    %v4220 = vld [vmem:[%s4 + $0x48] sm:$0xff]
    %v4221 = vld [vmem:[%s4 + $0x50] sm:$0xff]
    %v4222 = vld [vmem:[%s4 + $0x58] sm:$0xff]
    %v4223 = vld [vmem:[%s4 + $0x60] sm:$0xff]
    %v4224 = vld [vmem:[%s4 + $0x68] sm:$0xff]
    %v4225 = vld [vmem:[%s4 + $0x70] sm:$0xff]
    %v4226 = vld [vmem:[%s4 + $0x78] sm:$0xff]
    %v4227 = vld [vmem:[%s4 + $0x80] sm:$0xff]
    %v4228 = vld [vmem:[%s4 + $0x88] sm:$0xff]
    %v4229 = vld [vmem:[%s4 + $0x90] sm:$0xff]
    %v4230 = vld [vmem:[%s4 + $0x98] sm:$0xff]
    %v4231 = vld [vmem:[%s4 + $0xa0] sm:$0xff]
    %v4232 = vld [vmem:[%s4 + $0xa8] sm:$0xff]
    %v4233 = vld [vmem:[%s4 + $0xb0] sm:$0xff]
    %v4234 = vld [vmem:[%s4 + $0xb8] sm:$0xff]
    %v4235 = vld [vmem:[%s4 + $0xc0] sm:$0xff]
    %v4236 = vld [vmem:[%s4 + $0xc8] sm:$0xff]
    %v4237 = vld [vmem:[%s4 + $0xd0] sm:$0xff]
    %v4238 = vld [vmem:[%s4 + $0xd8] sm:$0xff]
    %v4239 = vld [vmem:[%s4 + $0xe0] sm:$0xff]
    %v4240 = vld [vmem:[%s4 + $0xe8] sm:$0xff]
    %v4241 = vld [vmem:[%s4 + $0xf0] sm:$0xff]
    %v4242 = vld [vmem:[%s4 + $0xf8] sm:$0xff]
    %v4243 = vld [vmem:[%s4 + $0x100] sm:$0xff]
    %v4244 = vld [vmem:[%s4 + $0x108] sm:$0xff]
    %v4245 = vld [vmem:[%s4 + $0x110] sm:$0xff]
    %v4246 = vld [vmem:[%s4 + $0x118] sm:$0xff]
    %v4247 = vld [vmem:[%s4 + $0x120] sm:$0xff]
    %v4248 = vld [vmem:[%s4 + $0x128] sm:$0xff]
    %v4249 = vld [vmem:[%s4 + $0x130] sm:$0xff]
    %v4250 = vld [vmem:[%s4 + $0x138] sm:$0xff]
    %v4251 = vld [vmem:[%s4 + $0x140] sm:$0xff]
    %v4252 = vld [vmem:[%s4 + $0x148] sm:$0xff]
    %v4253 = vld [vmem:[%s4 + $0x150] sm:$0xff]
    %v4254 = vld [vmem:[%s4 + $0x158] sm:$0xff]
    %v4255 = vld [vmem:[%s4 + $0x160] sm:$0xff]
    %v4256 = vld [vmem:[%s4 + $0x168] sm:$0xff]
    %v4257 = vld [vmem:[%s4 + $0x170] sm:$0xff]
    %v4258 = vld [vmem:[%s4 + $0x178] sm:$0xff]
    %v4259 = vld [vmem:[%s4 + $0x180] sm:$0xff]
    %v4260 = vld [vmem:[%s4 + $0x188] sm:$0xff]
    %v4261 = vld [vmem:[%s4 + $0x190] sm:$0xff]
    %v4262 = vld [vmem:[%s4 + $0x198] sm:$0xff]
    %v4263 = vld [vmem:[%s4 + $0x1a0] sm:$0xff]
    %v4264 = vld [vmem:[%s4 + $0x1a8] sm:$0xff]
    %v4265 = vld [vmem:[%s4 + $0x1b0] sm:$0xff]
    %v4266 = vld [vmem:[%s4 + $0x1b8] sm:$0xff]
    %v4267 = vld [vmem:[%s5] sm:$0xff]
    %v4268 = vld [vmem:[%s5 + $0x8] sm:$0xff]
    %v4269 = vld [vmem:[%s5 + $0x10] sm:$0xff]
    %v4270 = vld [vmem:[%s5 + $0x18] sm:$0xff]
    %v4271 = vld [vmem:[%s5 + $0x20] sm:$0xff]
    %v4272 = vld [vmem:[%s5 + $0x28] sm:$0xff]
    %v4273 = vld [vmem:[%s5 + $0x30] sm:$0xff]
    %v4274 = vld [vmem:[%s5 + $0x38] sm:$0xff]
    %v4275 = vld [vmem:[%s5 + $0x40] sm:$0xff]
    %v4276 = vld [vmem:[%s5 + $0x48] sm:$0xff]
    %v4277 = vld [vmem:[%s5 + $0x50] sm:$0xff]
    %v4278 = vld [vmem:[%s5 + $0x58] sm:$0xff]
    %v4279 = vld [vmem:[%s5 + $0x60] sm:$0xff]
    %v4280 = vld [vmem:[%s5 + $0x68] sm:$0xff]
    %v4281 = vld [vmem:[%s5 + $0x70] sm:$0xff]
    %v4282 = vld [vmem:[%s5 + $0x78] sm:$0xff]
    %v4283 = vld [vmem:[%s5 + $0x80] sm:$0xff]
    %v4284 = vld [vmem:[%s5 + $0x88] sm:$0xff]
    %v4285 = vld [vmem:[%s5 + $0x90] sm:$0xff]
    %v4286 = vld [vmem:[%s5 + $0x98] sm:$0xff]
    %v4287 = vld [vmem:[%s5 + $0xa0] sm:$0xff]
    %v4288 = vld [vmem:[%s5 + $0xa8] sm:$0xff]
    %v4289 = vld [vmem:[%s5 + $0xb0] sm:$0xff]
    %v4290 = vld [vmem:[%s5 + $0xb8] sm:$0xff]
    %v4291 = vld [vmem:[%s5 + $0xc0] sm:$0xff]
    %v4292 = vld [vmem:[%s5 + $0xc8] sm:$0xff]
    %v4293 = vld [vmem:[%s5 + $0xd0] sm:$0xff]
    %v4294 = vld [vmem:[%s5 + $0xd8] sm:$0xff]
    %v4295 = vld [vmem:[%s5 + $0xe0] sm:$0xff]
    %v4296 = vld [vmem:[%s5 + $0xe8] sm:$0xff]
    %v4297 = vld [vmem:[%s5 + $0xf0] sm:$0xff]
    %v4298 = vld [vmem:[%s5 + $0xf8] sm:$0xff]
    %v4299 = vld [vmem:[%s5 + $0x100] sm:$0xff]
    %v4300 = vld [vmem:[%s5 + $0x108] sm:$0xff]
    %v4301 = vld [vmem:[%s5 + $0x110] sm:$0xff]
    %v4302 = vld [vmem:[%s5 + $0x118] sm:$0xff]
    %v4303 = vld [vmem:[%s5 + $0x120] sm:$0xff]
    %v4304 = vld [vmem:[%s5 + $0x128] sm:$0xff]
    %v4305 = vld [vmem:[%s5 + $0x130] sm:$0xff]
    %v4306 = vld [vmem:[%s5 + $0x138] sm:$0xff]
    %v4307 = vld [vmem:[%s5 + $0x140] sm:$0xff]
    %v4308 = vld [vmem:[%s5 + $0x148] sm:$0xff]
    %v4309 = vld [vmem:[%s5 + $0x150] sm:$0xff]
    %v4310 = vld [vmem:[%s5 + $0x158] sm:$0xff]
    %v4311 = vld [vmem:[%s5 + $0x160] sm:$0xff]
    %v4312 = vld [vmem:[%s5 + $0x168] sm:$0xff]
    %v4313 = vld [vmem:[%s5 + $0x170] sm:$0xff]
    %v4314 = vld [vmem:[%s5 + $0x178] sm:$0xff]
    %v4315 = vld [vmem:[%s5 + $0x180] sm:$0xff]
    %v4316 = vld [vmem:[%s5 + $0x188] sm:$0xff]
    %v4317 = vld [vmem:[%s5 + $0x190] sm:$0xff]
    %v4318 = vld [vmem:[%s5 + $0x198] sm:$0xff]
    %v4319 = vld [vmem:[%s5 + $0x1a0] sm:$0xff]
    %v4320 = vld [vmem:[%s5 + $0x1a8] sm:$0xff]
    %v4321 = vld [vmem:[%s5 + $0x1b0] sm:$0xff]
    %v4322 = vld [vmem:[%s5 + $0x1b8] sm:$0xff]
    %v4323 = vld [vmem:[#allocation2 + $0x20] sm:$0x11]
    %v4324 = vld [vmem:[#allocation2 + $0x28] sm:$0x11]
    %v4325 = vld [vmem:[#allocation2 + $0x50] sm:$0x11]
    %v4326 = vld [vmem:[#allocation2 + $0x58] sm:$0x11]
    %v4328 = vshrl.u32 %v4203, 16
    %v4330 = vrot.slane %v4328, 4
    %v4331 = vshll.u32 %v4203, 16
    %v4333 = vrot.slane %v4331, 5
    %v4334 = vor.u32 %v4330, %v4333
    %v4335 = vrot.slane %v4334, 4
    %v4337 = vshll.u32 %v4205, 16
    %v4339 = vrot.slane %v4337, 5
    %v4340 = vsel %vm68, %v4335, %v4339
    %v4342 = vshrl.u32 %v4204, 16
    %v4344 = vrot.slane %v4342, 4
    %v4345 = vshll.u32 %v4204, 16
    %v4347 = vrot.slane %v4345, 5
    %v4348 = vor.u32 %v4344, %v4347
    %v4349 = vrot.slane %v4348, 4
    %v4351 = vshll.u32 %v4206, 16
    %v4353 = vrot.slane %v4351, 5
    %v4354 = vsel %vm68, %v4349, %v4353
    %v4355 = vshrl.u32 %v4205, 16
    %v4357 = vrot.slane %v4355, 4
    %v4358 = vor.u32 %v4357, %v4339
    %v4359 = vrot.slane %v4358, 4
    %v4361 = vshll.u32 %v4323, 16
    %v4363 = vrot.slane %v4361, 5
    %v4364 = vsel %vm68, %v4359, %v4363
    %v4365 = vshrl.u32 %v4206, 16
    %v4367 = vrot.slane %v4365, 4
    %v4368 = vor.u32 %v4367, %v4353
    %v4369 = vrot.slane %v4368, 4
    %v4371 = vshll.u32 %v4324, 16
    %v4373 = vrot.slane %v4371, 5
    %v4374 = vsel %vm68, %v4369, %v4373
    %v4376 = vshrl.u32 %v4207, 16
    %v4378 = vrot.slane %v4376, 4
    %v4379 = vshll.u32 %v4207, 16
    %v4381 = vrot.slane %v4379, 5
    %v4382 = vor.u32 %v4378, %v4381
    %v4383 = vrot.slane %v4382, 4
    %v4385 = vshll.u32 %v4209, 16
    %v4387 = vrot.slane %v4385, 5
    %v4388 = vsel %vm68, %v4383, %v4387
    %v4390 = vshrl.u32 %v4208, 16
    %v4392 = vrot.slane %v4390, 4
    %v4393 = vshll.u32 %v4208, 16
    %v4395 = vrot.slane %v4393, 5
    %v4396 = vor.u32 %v4392, %v4395
    %v4397 = vrot.slane %v4396, 4
    %v4399 = vshll.u32 %v4210, 16
    %v4401 = vrot.slane %v4399, 5
    %v4402 = vsel %vm68, %v4397, %v4401
    %v4403 = vshrl.u32 %v4209, 16
    %v4405 = vrot.slane %v4403, 4
    %v4406 = vor.u32 %v4405, %v4387
    %v4407 = vrot.slane %v4406, 4
    %v4409 = vshll.u32 %v4325, 16
    %v4411 = vrot.slane %v4409, 5
    %v4412 = vsel %vm68, %v4407, %v4411
    %v4413 = vshrl.u32 %v4210, 16
    %v4415 = vrot.slane %v4413, 4
    %v4416 = vor.u32 %v4415, %v4401
    %v4417 = vrot.slane %v4416, 4
    %v4419 = vshll.u32 %v4326, 16
    %v4421 = vrot.slane %v4419, 5
    %v4422 = vsel %vm68, %v4417, %v4421
    %s4423 = scalar_lea.vmem %s4, 448
    %v4424 = vld [vmem:[%s4423] sm:$0xff]
    %v4425 = vld [vmem:[%s4423 + $0x8] sm:$0xff]
    %v4426 = vld [vmem:[%s4423 + $0x10] sm:$0xff]
    %v4427 = vld [vmem:[%s4423 + $0x18] sm:$0xff]
    %v4428 = vld [vmem:[%s4423 + $0x20] sm:$0xff]
    %v4429 = vld [vmem:[%s4423 + $0x28] sm:$0xff]
    %v4430 = vld [vmem:[%s4423 + $0x30] sm:$0xff]
    %v4431 = vld [vmem:[%s4423 + $0x38] sm:$0xff]
    %v4432 = vld [vmem:[%s4423 + $0x40] sm:$0xff]
    %v4433 = vld [vmem:[%s4423 + $0x48] sm:$0xff]
    %v4434 = vld [vmem:[%s4423 + $0x50] sm:$0xff]
    %v4435 = vld [vmem:[%s4423 + $0x58] sm:$0xff]
    %v4436 = vld [vmem:[%s4423 + $0x60] sm:$0xff]
    %v4437 = vld [vmem:[%s4423 + $0x68] sm:$0xff]
    %v4438 = vld [vmem:[%s4423 + $0x70] sm:$0xff]
    %v4439 = vld [vmem:[%s4423 + $0x78] sm:$0xff]
    %v4440 = vld [vmem:[%s4423 + $0x80] sm:$0xff]
    %v4441 = vld [vmem:[%s4423 + $0x88] sm:$0xff]
    %v4442 = vld [vmem:[%s4423 + $0x90] sm:$0xff]
    %v4443 = vld [vmem:[%s4423 + $0x98] sm:$0xff]
    %v4444 = vld [vmem:[%s4423 + $0xa0] sm:$0xff]
    %v4445 = vld [vmem:[%s4423 + $0xa8] sm:$0xff]
    %v4446 = vld [vmem:[%s4423 + $0xb0] sm:$0xff]
    %v4447 = vld [vmem:[%s4423 + $0xb8] sm:$0xff]
    %v4448 = vld [vmem:[%s4423 + $0xc0] sm:$0xff]
    %v4449 = vld [vmem:[%s4423 + $0xc8] sm:$0xff]
    %v4450 = vld [vmem:[%s4423 + $0xd0] sm:$0xff]
    %v4451 = vld [vmem:[%s4423 + $0xd8] sm:$0xff]
    %v4452 = vld [vmem:[%s4423 + $0xe0] sm:$0xff]
    %v4453 = vld [vmem:[%s4423 + $0xe8] sm:$0xff]
    %v4454 = vld [vmem:[%s4423 + $0xf0] sm:$0xff]
    %v4455 = vld [vmem:[%s4423 + $0xf8] sm:$0xff]
    %v4456 = vld [vmem:[%s4423 + $0x100] sm:$0xff]
    %v4457 = vld [vmem:[%s4423 + $0x108] sm:$0xff]
    %v4458 = vld [vmem:[%s4423 + $0x110] sm:$0xff]
    %v4459 = vld [vmem:[%s4423 + $0x118] sm:$0xff]
    %v4460 = vld [vmem:[%s4423 + $0x120] sm:$0xff]
    %v4461 = vld [vmem:[%s4423 + $0x128] sm:$0xff]
    %v4462 = vld [vmem:[%s4423 + $0x130] sm:$0xff]
    %v4463 = vld [vmem:[%s4423 + $0x138] sm:$0xff]
    %v4464 = vld [vmem:[%s4423 + $0x140] sm:$0xff]
    %v4465 = vld [vmem:[%s4423 + $0x148] sm:$0xff]
    %v4466 = vld [vmem:[%s4423 + $0x150] sm:$0xff]
    %v4467 = vld [vmem:[%s4423 + $0x158] sm:$0xff]
    %v4468 = vld [vmem:[%s4423 + $0x160] sm:$0xff]
    %v4469 = vld [vmem:[%s4423 + $0x168] sm:$0xff]
    %v4470 = vld [vmem:[%s4423 + $0x170] sm:$0xff]
    %v4471 = vld [vmem:[%s4423 + $0x178] sm:$0xff]
    %v4472 = vld [vmem:[%s4423 + $0x180] sm:$0xff]
    %v4473 = vld [vmem:[%s4423 + $0x188] sm:$0xff]
    %v4474 = vld [vmem:[%s4423 + $0x190] sm:$0xff]
    %v4475 = vld [vmem:[%s4423 + $0x198] sm:$0xff]
    %v4476 = vld [vmem:[%s4423 + $0x1a0] sm:$0xff]
    %v4477 = vld [vmem:[%s4423 + $0x1a8] sm:$0xff]
    %v4478 = vld [vmem:[%s4423 + $0x1b0] sm:$0xff]
    %v4479 = vld [vmem:[%s4423 + $0x1b8] sm:$0xff]
    %v4480 = vunpack.c.l.b16 %v4340
    %v4481 = vunpack.c.h.b16 %v4340
    %v4482 = vunpack.c.l.b16 %v4354
    %v4483 = vunpack.c.h.b16 %v4354
    %v4484 = vunpack.c.l.b16 %v4364
    %v4485 = vunpack.c.h.b16 %v4364
    %v4486 = vunpack.c.l.b16 %v4374
    %v4487 = vunpack.c.h.b16 %v4374
    %v4488 = vunpack.c.l.b16 %v4388
    %v4489 = vunpack.c.h.b16 %v4388
    %v4490 = vunpack.c.l.b16 %v4402
    %v4491 = vunpack.c.h.b16 %v4402
    %v4492 = vunpack.c.l.b16 %v4412
    %v4493 = vunpack.c.h.b16 %v4412
    %v4494 = vunpack.c.l.b16 %v4422
    %v4495 = vunpack.c.h.b16 %v4422
    %v4496 = vpack.c.b16 %v4484, %v4480
    %v4497 = vpack.c.b16 %v4485, %v4481
    %v4498 = vpack.c.b16 %v4486, %v4482
    %v4499 = vpack.c.b16 %v4487, %v4483
    %v4500 = vpack.c.b16 %v4492, %v4488
    %v4501 = vpack.c.b16 %v4493, %v4489
    %v4502 = vpack.c.b16 %v4494, %v4490
    %v4503 = vpack.c.b16 %v4495, %v4491
    %v4566 = vunpack.c.l.b16 %v4424
    %v4567 = vunpack.c.h.b16 %v4424
    %v4568 = vunpack.c.l.b16 %v4425
    %v4569 = vunpack.c.h.b16 %v4425
    %v4570 = vunpack.c.l.b16 %v4426
    %v4571 = vunpack.c.h.b16 %v4426
    %v4572 = vunpack.c.l.b16 %v4427
    %v4573 = vunpack.c.h.b16 %v4427
    %v4574 = vunpack.c.l.b16 %v4428
    %v4575 = vunpack.c.h.b16 %v4428
    %v4576 = vunpack.c.l.b16 %v4429
    %v4577 = vunpack.c.h.b16 %v4429
    %v4578 = vunpack.c.l.b16 %v4430
    %v4579 = vunpack.c.h.b16 %v4430
    %v4580 = vunpack.c.l.b16 %v4431
    %v4581 = vunpack.c.h.b16 %v4431
    %v4582 = vunpack.c.l.b16 %v4432
    %v4583 = vunpack.c.h.b16 %v4432
    %v4584 = vunpack.c.l.b16 %v4433
    %v4585 = vunpack.c.h.b16 %v4433
    %v4586 = vunpack.c.l.b16 %v4434
    %v4587 = vunpack.c.h.b16 %v4434
    %v4588 = vunpack.c.l.b16 %v4435
    %v4589 = vunpack.c.h.b16 %v4435
    %v4590 = vunpack.c.l.b16 %v4436
    %v4591 = vunpack.c.h.b16 %v4436
    %v4592 = vunpack.c.l.b16 %v4437
    %v4593 = vunpack.c.h.b16 %v4437
    %v4594 = vunpack.c.l.b16 %v4438
    %v4595 = vunpack.c.h.b16 %v4438
    %v4596 = vunpack.c.l.b16 %v4439
    %v4597 = vunpack.c.h.b16 %v4439
    %v4598 = vunpack.c.l.b16 %v4440
    %v4599 = vunpack.c.h.b16 %v4440
    %v4600 = vunpack.c.l.b16 %v4441
    %v4601 = vunpack.c.h.b16 %v4441
    %v4602 = vunpack.c.l.b16 %v4442
    %v4603 = vunpack.c.h.b16 %v4442
    %v4604 = vunpack.c.l.b16 %v4443
    %v4605 = vunpack.c.h.b16 %v4443
    %v4606 = vunpack.c.l.b16 %v4444
    %v4607 = vunpack.c.h.b16 %v4444
    %v4608 = vunpack.c.l.b16 %v4445
    %v4609 = vunpack.c.h.b16 %v4445
    %v4610 = vunpack.c.l.b16 %v4446
    %v4611 = vunpack.c.h.b16 %v4446
    %v4612 = vunpack.c.l.b16 %v4447
    %v4613 = vunpack.c.h.b16 %v4447
    %v4614 = vunpack.c.l.b16 %v4448
    %v4615 = vunpack.c.h.b16 %v4448
    %v4616 = vunpack.c.l.b16 %v4449
    %v4617 = vunpack.c.h.b16 %v4449
    %v4618 = vunpack.c.l.b16 %v4450
    %v4619 = vunpack.c.h.b16 %v4450
    %v4620 = vunpack.c.l.b16 %v4451
    %v4621 = vunpack.c.h.b16 %v4451
    %v4622 = vunpack.c.l.b16 %v4452
    %v4623 = vunpack.c.h.b16 %v4452
    %v4624 = vunpack.c.l.b16 %v4453
    %v4625 = vunpack.c.h.b16 %v4453
    %v4626 = vunpack.c.l.b16 %v4454
    %v4627 = vunpack.c.h.b16 %v4454
    %v4628 = vunpack.c.l.b16 %v4455
    %v4629 = vunpack.c.h.b16 %v4455
    %v4630 = vunpack.c.l.b16 %v4456
    %v4631 = vunpack.c.h.b16 %v4456
    %v4632 = vunpack.c.l.b16 %v4457
    %v4633 = vunpack.c.h.b16 %v4457
    %v4634 = vunpack.c.l.b16 %v4458
    %v4635 = vunpack.c.h.b16 %v4458
    %v4636 = vunpack.c.l.b16 %v4459
    %v4637 = vunpack.c.h.b16 %v4459
    %v4638 = vunpack.c.l.b16 %v4460
    %v4639 = vunpack.c.h.b16 %v4460
    %v4640 = vunpack.c.l.b16 %v4461
    %v4641 = vunpack.c.h.b16 %v4461
    %v4642 = vunpack.c.l.b16 %v4462
    %v4643 = vunpack.c.h.b16 %v4462
    %v4644 = vunpack.c.l.b16 %v4463
    %v4645 = vunpack.c.h.b16 %v4463
    %v4646 = vunpack.c.l.b16 %v4464
    %v4647 = vunpack.c.h.b16 %v4464
    %v4648 = vunpack.c.l.b16 %v4465
    %v4649 = vunpack.c.h.b16 %v4465
    %v4650 = vunpack.c.l.b16 %v4466
    %v4651 = vunpack.c.h.b16 %v4466
    %v4652 = vunpack.c.l.b16 %v4467
    %v4653 = vunpack.c.h.b16 %v4467
    %v4654 = vunpack.c.l.b16 %v4468
    %v4655 = vunpack.c.h.b16 %v4468
    %v4656 = vunpack.c.l.b16 %v4469
    %v4657 = vunpack.c.h.b16 %v4469
    %v4658 = vunpack.c.l.b16 %v4470
    %v4659 = vunpack.c.h.b16 %v4470
    %v4660 = vunpack.c.l.b16 %v4471
    %v4661 = vunpack.c.h.b16 %v4471
    %v4662 = vunpack.c.l.b16 %v4472
    %v4663 = vunpack.c.h.b16 %v4472
    %v4664 = vunpack.c.l.b16 %v4473
    %v4665 = vunpack.c.h.b16 %v4473
    %v4666 = vunpack.c.l.b16 %v4474
    %v4667 = vunpack.c.h.b16 %v4474
    %v4668 = vunpack.c.l.b16 %v4475
    %v4669 = vunpack.c.h.b16 %v4475
    %v4670 = vunpack.c.l.b16 %v4476
    %v4671 = vunpack.c.h.b16 %v4476
    %v4672 = vunpack.c.l.b16 %v4477
    %v4673 = vunpack.c.h.b16 %v4477
    %v4674 = vunpack.c.l.b16 %v4478
    %v4675 = vunpack.c.h.b16 %v4478
    %v4676 = vunpack.c.l.b16 %v4479
    %v4677 = vunpack.c.h.b16 %v4479
    %v4678 = vpack.c.b16 %v4568, %v4566
    %v4679 = vpack.c.b16 %v4569, %v4567
    %v4680 = vpack.c.b16 %v4572, %v4570
    %v4681 = vpack.c.b16 %v4573, %v4571
    %v4682 = vpack.c.b16 %v4576, %v4574
    %v4683 = vpack.c.b16 %v4577, %v4575
    %v4684 = vpack.c.b16 %v4580, %v4578
    %v4685 = vpack.c.b16 %v4581, %v4579
    %v4686 = vpack.c.b16 %v4584, %v4582
    %v4687 = vpack.c.b16 %v4585, %v4583
    %v4688 = vpack.c.b16 %v4588, %v4586
    %v4689 = vpack.c.b16 %v4589, %v4587
    %v4690 = vpack.c.b16 %v4592, %v4590
    %v4691 = vpack.c.b16 %v4593, %v4591
    %v4692 = vpack.c.b16 %v4596, %v4594
    %v4693 = vpack.c.b16 %v4597, %v4595
    %v4694 = vpack.c.b16 %v4600, %v4598
    %v4695 = vpack.c.b16 %v4601, %v4599
    %v4696 = vpack.c.b16 %v4604, %v4602
    %v4697 = vpack.c.b16 %v4605, %v4603
    %v4698 = vpack.c.b16 %v4608, %v4606
    %v4699 = vpack.c.b16 %v4609, %v4607
    %v4700 = vpack.c.b16 %v4612, %v4610
    %v4701 = vpack.c.b16 %v4613, %v4611
    %v4702 = vpack.c.b16 %v4616, %v4614
    %v4703 = vpack.c.b16 %v4617, %v4615
    %v4704 = vpack.c.b16 %v4620, %v4618
    %v4705 = vpack.c.b16 %v4621, %v4619
    %v4706 = vpack.c.b16 %v4624, %v4622
    %v4707 = vpack.c.b16 %v4625, %v4623
    %v4708 = vpack.c.b16 %v4628, %v4626
    %v4709 = vpack.c.b16 %v4629, %v4627
    %v4710 = vpack.c.b16 %v4632, %v4630
    %v4711 = vpack.c.b16 %v4633, %v4631
    %v4712 = vpack.c.b16 %v4636, %v4634
    %v4713 = vpack.c.b16 %v4637, %v4635
    %v4714 = vpack.c.b16 %v4640, %v4638
    %v4715 = vpack.c.b16 %v4641, %v4639
    %v4716 = vpack.c.b16 %v4644, %v4642
    %v4717 = vpack.c.b16 %v4645, %v4643
    %v4718 = vpack.c.b16 %v4648, %v4646
    %v4719 = vpack.c.b16 %v4649, %v4647
    %v4720 = vpack.c.b16 %v4652, %v4650
    %v4721 = vpack.c.b16 %v4653, %v4651
    %v4722 = vpack.c.b16 %v4656, %v4654
    %v4723 = vpack.c.b16 %v4657, %v4655
    %v4724 = vpack.c.b16 %v4660, %v4658
    %v4725 = vpack.c.b16 %v4661, %v4659
    %v4726 = vpack.c.b16 %v4664, %v4662
    %v4727 = vpack.c.b16 %v4665, %v4663
    %v4728 = vpack.c.b16 %v4668, %v4666
    %v4729 = vpack.c.b16 %v4669, %v4667
    %v4730 = vpack.c.b16 %v4672, %v4670
    %v4731 = vpack.c.b16 %v4673, %v4671
    %v4732 = vpack.c.b16 %v4676, %v4674
    %v4733 = vpack.c.b16 %v4677, %v4675
    %vm4790 = vcmask 523264
    %v4792 = vsel %vm4790, %v4499, 0
    %v4795 = vsel %vm4790, %v4503, 0
    %4797 = vmatprep.subr.bf16.mxu0 %v4693
    %4798 = vmatpush1.bf16.msra.mxu0 %v4692
    %4799 = vmatprep.subr.bf16.mxu0 %v4691
    %4800 = vmatpush1.bf16.msra.mxu0 %v4690
    %4801 = vmatprep.subr.bf16.mxu0 %v4689
    %4802 = vmatpush1.bf16.msra.mxu0 %v4688
    %4803 = vmatprep.subr.bf16.mxu0 %v4687
    %4804 = vmatpush1.bf16.msra.mxu0 %v4686
    %4805 = vmatprep.subr.bf16.mxu0 %v4685
    %4806 = vmatpush1.bf16.msra.mxu0 %v4684
    %4807 = vmatprep.subr.bf16.mxu0 %v4683
    %4808 = vmatpush1.bf16.msra.mxu0 %v4682
    %4809 = vmatprep.subr.bf16.mxu0 %v4681
    %4810 = vmatpush1.bf16.msra.mxu0 %v4680
    %4811 = vmatprep.subr.bf16.mxu0 %v4679
    %4812 = vmatpush1.bf16.msra.mxu0 %v4678
    %4813 = vmatprep.subr.bf16.mxu0 %v4709
    %4814 = vmatpush2.bf16.msra.mxu0 %v4708
    %4815 = vmatprep.subr.bf16.mxu0 %v4707
    %4816 = vmatpush2.bf16.msra.mxu0 %v4706
    %4817 = vmatprep.subr.bf16.mxu0 %v4705
    %4818 = vmatpush2.bf16.msra.mxu0 %v4704
    %4819 = vmatprep.subr.bf16.mxu0 %v4703
    %4820 = vmatpush2.bf16.msra.mxu0 %v4702
    %4821 = vmatprep.subr.bf16.mxu0 %v4701
    %4822 = vmatpush2.bf16.msra.mxu0 %v4700
    %4823 = vmatprep.subr.bf16.mxu0 %v4699
    %4824 = vmatpush2.bf16.msra.mxu0 %v4698
    %4825 = vmatprep.subr.bf16.mxu0 %v4697
    %4826 = vmatpush2.bf16.msra.mxu0 %v4696
    %4827 = vmatprep.subr.bf16.mxu0 %v4695
    %4828 = vmatpush2.bf16.msra.mxu0 %v4694
    %4829 = vmatprep.mubr.bf16.mxu0 %v4497
    %4830 = vmatmul.mubr.bf16.gmra.mxu0 %v4496
    %v4831 = vpop.f32.mrf.mxu0
    %v4832 = vadd.f32 0.0, %v4831
    %v4833 = vpop.f32.mrf.mxu0
    %v4834 = vadd.f32 0.0, %v4833
    %v4835 = vpop.f32.mrf.mxu0
    %v4836 = vadd.f32 0.0, %v4835
    %v4837 = vpop.f32.mrf.mxu0
    %v4838 = vadd.f32 0.0, %v4837
    %4839 = vmatprep.mubr.bf16.mxu0 %v4501
    %4840 = vmatmul.mubr.bf16.gmra.mxu0 %v4500
    %v4841 = vpop.f32.mrf.mxu0
    %v4842 = vadd.f32 0.0, %v4841
    %v4843 = vpop.f32.mrf.mxu0
    %v4844 = vadd.f32 0.0, %v4843
    %v4845 = vpop.f32.mrf.mxu0
    %v4846 = vadd.f32 0.0, %v4845
    %v4847 = vpop.f32.mrf.mxu0
    %v4848 = vadd.f32 0.0, %v4847
    %4849 = vdwg.mxu0
    %4850 = vmatprep.subr.bf16.mxu0 %v4725
    %4851 = vmatpush1.bf16.msra.mxu0 %v4724
    %4852 = vmatprep.subr.bf16.mxu0 %v4723
    %4853 = vmatpush1.bf16.msra.mxu0 %v4722
    %4854 = vmatprep.subr.bf16.mxu0 %v4721
    %4855 = vmatpush1.bf16.msra.mxu0 %v4720
    %4856 = vmatprep.subr.bf16.mxu0 %v4719
    %4857 = vmatpush1.bf16.msra.mxu0 %v4718
    %4858 = vmatprep.subr.bf16.mxu0 %v4717
    %4859 = vmatpush1.bf16.msra.mxu0 %v4716
    %4860 = vmatprep.subr.bf16.mxu0 %v4715
    %4861 = vmatpush1.bf16.msra.mxu0 %v4714
    %4862 = vmatprep.subr.bf16.mxu0 %v4713
    %4863 = vmatpush1.bf16.msra.mxu0 %v4712
    %4864 = vmatprep.subr.bf16.mxu0 %v4711
    %4865 = vmatpush1.bf16.msra.mxu0 %v4710
    %4866 = vmatprep.subr.bf16.mxu0 0
    %4867 = vmatpush2.bf16.msra.mxu0 0
    %4868 = vmatprep.subr.bf16.mxu0 0
    %4869 = vmatpush2.bf16.msra.mxu0 0
    %4870 = vmatprep.subr.bf16.mxu0 0
    %4871 = vmatpush2.bf16.msra.mxu0 0
    %4872 = vmatprep.subr.bf16.mxu0 0
    %4873 = vmatpush2.bf16.msra.mxu0 0
    %4874 = vmatprep.subr.bf16.mxu0 %v4733
    %4875 = vmatpush2.bf16.msra.mxu0 %v4732
    %4876 = vmatprep.subr.bf16.mxu0 %v4731
    %4877 = vmatpush2.bf16.msra.mxu0 %v4730
    %4878 = vmatprep.subr.bf16.mxu0 %v4729
    %4879 = vmatpush2.bf16.msra.mxu0 %v4728
    %4880 = vmatprep.subr.bf16.mxu0 %v4727
    %4881 = vmatpush2.bf16.msra.mxu0 %v4726
    %4882 = vmatprep.mubr.bf16.mxu0 %v4792
    %4883 = vmatmul.mubr.bf16.gmra.mxu0 %v4498
    %v4884 = vpop.f32.mrf.mxu0
    %v4885 = vadd.f32 %v4832, %v4884
    %v4886 = vpop.f32.mrf.mxu0
    %v4887 = vadd.f32 %v4834, %v4886
    %v4888 = vpop.f32.mrf.mxu0
    %v4889 = vadd.f32 %v4836, %v4888
    %v4890 = vpop.f32.mrf.mxu0
    %v4891 = vadd.f32 %v4838, %v4890
    %4892 = vmatprep.mubr.bf16.mxu0 %v4795
    %4893 = vmatmul.mubr.bf16.gmra.mxu0 %v4502
    %v4894 = vpop.f32.mrf.mxu0
    %v4895 = vadd.f32 %v4842, %v4894
    %v4896 = vpop.f32.mrf.mxu0
    %v4897 = vadd.f32 %v4844, %v4896
    %v4898 = vpop.f32.mrf.mxu0
    %v4899 = vadd.f32 %v4846, %v4898
    %v4900 = vpop.f32.mrf.mxu0
    %v4901 = vadd.f32 %v4848, %v4900
    %4902 = vdwg.mxu0
    %s4903 = scalar_lea.vmem %s5, 448
    %v4904 = vld [vmem:[%s4903] sm:$0xff]
    %v4905 = vld [vmem:[%s4903 + $0x8] sm:$0xff]
    %v4906 = vld [vmem:[%s4903 + $0x10] sm:$0xff]
    %v4907 = vld [vmem:[%s4903 + $0x18] sm:$0xff]
    %v4908 = vld [vmem:[%s4903 + $0x20] sm:$0xff]
    %v4909 = vld [vmem:[%s4903 + $0x28] sm:$0xff]
    %v4910 = vld [vmem:[%s4903 + $0x30] sm:$0xff]
    %v4911 = vld [vmem:[%s4903 + $0x38] sm:$0xff]
    %v4912 = vld [vmem:[%s4903 + $0x40] sm:$0xff]
    %v4913 = vld [vmem:[%s4903 + $0x48] sm:$0xff]
    %v4914 = vld [vmem:[%s4903 + $0x50] sm:$0xff]
    %v4915 = vld [vmem:[%s4903 + $0x58] sm:$0xff]
    %v4916 = vld [vmem:[%s4903 + $0x60] sm:$0xff]
    %v4917 = vld [vmem:[%s4903 + $0x68] sm:$0xff]
    %v4918 = vld [vmem:[%s4903 + $0x70] sm:$0xff]
    %v4919 = vld [vmem:[%s4903 + $0x78] sm:$0xff]
    %v4920 = vld [vmem:[%s4903 + $0x80] sm:$0xff]
    %v4921 = vld [vmem:[%s4903 + $0x88] sm:$0xff]
    %v4922 = vld [vmem:[%s4903 + $0x90] sm:$0xff]
    %v4923 = vld [vmem:[%s4903 + $0x98] sm:$0xff]
    %v4924 = vld [vmem:[%s4903 + $0xa0] sm:$0xff]
    %v4925 = vld [vmem:[%s4903 + $0xa8] sm:$0xff]
    %v4926 = vld [vmem:[%s4903 + $0xb0] sm:$0xff]
    %v4927 = vld [vmem:[%s4903 + $0xb8] sm:$0xff]
    %v4928 = vld [vmem:[%s4903 + $0xc0] sm:$0xff]
    %v4929 = vld [vmem:[%s4903 + $0xc8] sm:$0xff]
    %v4930 = vld [vmem:[%s4903 + $0xd0] sm:$0xff]
    %v4931 = vld [vmem:[%s4903 + $0xd8] sm:$0xff]
    %v4932 = vld [vmem:[%s4903 + $0xe0] sm:$0xff]
    %v4933 = vld [vmem:[%s4903 + $0xe8] sm:$0xff]
    %v4934 = vld [vmem:[%s4903 + $0xf0] sm:$0xff]
    %v4935 = vld [vmem:[%s4903 + $0xf8] sm:$0xff]
    %v4936 = vld [vmem:[%s4903 + $0x100] sm:$0xff]
    %v4937 = vld [vmem:[%s4903 + $0x108] sm:$0xff]
    %v4938 = vld [vmem:[%s4903 + $0x110] sm:$0xff]
    %v4939 = vld [vmem:[%s4903 + $0x118] sm:$0xff]
    %v4940 = vld [vmem:[%s4903 + $0x120] sm:$0xff]
    %v4941 = vld [vmem:[%s4903 + $0x128] sm:$0xff]
    %v4942 = vld [vmem:[%s4903 + $0x130] sm:$0xff]
    %v4943 = vld [vmem:[%s4903 + $0x138] sm:$0xff]
    %v4944 = vld [vmem:[%s4903 + $0x140] sm:$0xff]
    %v4945 = vld [vmem:[%s4903 + $0x148] sm:$0xff]
    %v4946 = vld [vmem:[%s4903 + $0x150] sm:$0xff]
    %v4947 = vld [vmem:[%s4903 + $0x158] sm:$0xff]
    %v4948 = vld [vmem:[%s4903 + $0x160] sm:$0xff]
    %v4949 = vld [vmem:[%s4903 + $0x168] sm:$0xff]
    %v4950 = vld [vmem:[%s4903 + $0x170] sm:$0xff]
    %v4951 = vld [vmem:[%s4903 + $0x178] sm:$0xff]
    %v4952 = vld [vmem:[%s4903 + $0x180] sm:$0xff]
    %v4953 = vld [vmem:[%s4903 + $0x188] sm:$0xff]
    %v4954 = vld [vmem:[%s4903 + $0x190] sm:$0xff]
    %v4955 = vld [vmem:[%s4903 + $0x198] sm:$0xff]
    %v4956 = vld [vmem:[%s4903 + $0x1a0] sm:$0xff]
    %v4957 = vld [vmem:[%s4903 + $0x1a8] sm:$0xff]
    %v4958 = vld [vmem:[%s4903 + $0x1b0] sm:$0xff]
    %v4959 = vld [vmem:[%s4903 + $0x1b8] sm:$0xff]
    %v5016 = vunpack.c.l.b16 %v4904
    %v5017 = vunpack.c.h.b16 %v4904
    %v5018 = vunpack.c.l.b16 %v4905
    %v5019 = vunpack.c.h.b16 %v4905
    %v5020 = vunpack.c.l.b16 %v4906
    %v5021 = vunpack.c.h.b16 %v4906
    %v5022 = vunpack.c.l.b16 %v4907
    %v5023 = vunpack.c.h.b16 %v4907
    %v5024 = vunpack.c.l.b16 %v4908
    %v5025 = vunpack.c.h.b16 %v4908
    %v5026 = vunpack.c.l.b16 %v4909
    %v5027 = vunpack.c.h.b16 %v4909
    %v5028 = vunpack.c.l.b16 %v4910
    %v5029 = vunpack.c.h.b16 %v4910
    %v5030 = vunpack.c.l.b16 %v4911
    %v5031 = vunpack.c.h.b16 %v4911
    %v5032 = vunpack.c.l.b16 %v4912
    %v5033 = vunpack.c.h.b16 %v4912
    %v5034 = vunpack.c.l.b16 %v4913
    %v5035 = vunpack.c.h.b16 %v4913
    %v5036 = vunpack.c.l.b16 %v4914
    %v5037 = vunpack.c.h.b16 %v4914
    %v5038 = vunpack.c.l.b16 %v4915
    %v5039 = vunpack.c.h.b16 %v4915
    %v5040 = vunpack.c.l.b16 %v4916
    %v5041 = vunpack.c.h.b16 %v4916
    %v5042 = vunpack.c.l.b16 %v4917
    %v5043 = vunpack.c.h.b16 %v4917
    %v5044 = vunpack.c.l.b16 %v4918
    %v5045 = vunpack.c.h.b16 %v4918
    %v5046 = vunpack.c.l.b16 %v4919
    %v5047 = vunpack.c.h.b16 %v4919
    %v5048 = vunpack.c.l.b16 %v4920
    %v5049 = vunpack.c.h.b16 %v4920
    %v5050 = vunpack.c.l.b16 %v4921
    %v5051 = vunpack.c.h.b16 %v4921
    %v5052 = vunpack.c.l.b16 %v4922
    %v5053 = vunpack.c.h.b16 %v4922
    %v5054 = vunpack.c.l.b16 %v4923
    %v5055 = vunpack.c.h.b16 %v4923
    %v5056 = vunpack.c.l.b16 %v4924
    %v5057 = vunpack.c.h.b16 %v4924
    %v5058 = vunpack.c.l.b16 %v4925
    %v5059 = vunpack.c.h.b16 %v4925
    %v5060 = vunpack.c.l.b16 %v4926
    %v5061 = vunpack.c.h.b16 %v4926
    %v5062 = vunpack.c.l.b16 %v4927
    %v5063 = vunpack.c.h.b16 %v4927
    %v5064 = vunpack.c.l.b16 %v4928
    %v5065 = vunpack.c.h.b16 %v4928
    %v5066 = vunpack.c.l.b16 %v4929
    %v5067 = vunpack.c.h.b16 %v4929
    %v5068 = vunpack.c.l.b16 %v4930
    %v5069 = vunpack.c.h.b16 %v4930
    %v5070 = vunpack.c.l.b16 %v4931
    %v5071 = vunpack.c.h.b16 %v4931
    %v5072 = vunpack.c.l.b16 %v4932
    %v5073 = vunpack.c.h.b16 %v4932
    %v5074 = vunpack.c.l.b16 %v4933
    %v5075 = vunpack.c.h.b16 %v4933
    %v5076 = vunpack.c.l.b16 %v4934
    %v5077 = vunpack.c.h.b16 %v4934
    %v5078 = vunpack.c.l.b16 %v4935
    %v5079 = vunpack.c.h.b16 %v4935
    %v5080 = vunpack.c.l.b16 %v4936
    %v5081 = vunpack.c.h.b16 %v4936
    %v5082 = vunpack.c.l.b16 %v4937
    %v5083 = vunpack.c.h.b16 %v4937
    %v5084 = vunpack.c.l.b16 %v4938
    %v5085 = vunpack.c.h.b16 %v4938
    %v5086 = vunpack.c.l.b16 %v4939
    %v5087 = vunpack.c.h.b16 %v4939
    %v5088 = vunpack.c.l.b16 %v4940
    %v5089 = vunpack.c.h.b16 %v4940
    %v5090 = vunpack.c.l.b16 %v4941
    %v5091 = vunpack.c.h.b16 %v4941
    %v5092 = vunpack.c.l.b16 %v4942
    %v5093 = vunpack.c.h.b16 %v4942
    %v5094 = vunpack.c.l.b16 %v4943
    %v5095 = vunpack.c.h.b16 %v4943
    %v5096 = vunpack.c.l.b16 %v4944
    %v5097 = vunpack.c.h.b16 %v4944
    %v5098 = vunpack.c.l.b16 %v4945
    %v5099 = vunpack.c.h.b16 %v4945
    %v5100 = vunpack.c.l.b16 %v4946
    %v5101 = vunpack.c.h.b16 %v4946
    %v5102 = vunpack.c.l.b16 %v4947
    %v5103 = vunpack.c.h.b16 %v4947
    %v5104 = vunpack.c.l.b16 %v4948
    %v5105 = vunpack.c.h.b16 %v4948
    %v5106 = vunpack.c.l.b16 %v4949
    %v5107 = vunpack.c.h.b16 %v4949
    %v5108 = vunpack.c.l.b16 %v4950
    %v5109 = vunpack.c.h.b16 %v4950
    %v5110 = vunpack.c.l.b16 %v4951
    %v5111 = vunpack.c.h.b16 %v4951
    %v5112 = vunpack.c.l.b16 %v4952
    %v5113 = vunpack.c.h.b16 %v4952
    %v5114 = vunpack.c.l.b16 %v4953
    %v5115 = vunpack.c.h.b16 %v4953
    %v5116 = vunpack.c.l.b16 %v4954
    %v5117 = vunpack.c.h.b16 %v4954
    %v5118 = vunpack.c.l.b16 %v4955
    %v5119 = vunpack.c.h.b16 %v4955
    %v5120 = vunpack.c.l.b16 %v4956
    %v5121 = vunpack.c.h.b16 %v4956
    %v5122 = vunpack.c.l.b16 %v4957
    %v5123 = vunpack.c.h.b16 %v4957
    %v5124 = vunpack.c.l.b16 %v4958
    %v5125 = vunpack.c.h.b16 %v4958
    %v5126 = vunpack.c.l.b16 %v4959
    %v5127 = vunpack.c.h.b16 %v4959
    %v5128 = vpack.c.b16 %v5018, %v5016
    %v5129 = vpack.c.b16 %v5019, %v5017
    %v5130 = vpack.c.b16 %v5022, %v5020
    %v5131 = vpack.c.b16 %v5023, %v5021
    %v5132 = vpack.c.b16 %v5026, %v5024
    %v5133 = vpack.c.b16 %v5027, %v5025
    %v5134 = vpack.c.b16 %v5030, %v5028
    %v5135 = vpack.c.b16 %v5031, %v5029
    %v5136 = vpack.c.b16 %v5034, %v5032
    %v5137 = vpack.c.b16 %v5035, %v5033
    %v5138 = vpack.c.b16 %v5038, %v5036
    %v5139 = vpack.c.b16 %v5039, %v5037
    %v5140 = vpack.c.b16 %v5042, %v5040
    %v5141 = vpack.c.b16 %v5043, %v5041
    %v5142 = vpack.c.b16 %v5046, %v5044
    %v5143 = vpack.c.b16 %v5047, %v5045
    %v5144 = vpack.c.b16 %v5050, %v5048
    %v5145 = vpack.c.b16 %v5051, %v5049
    %v5146 = vpack.c.b16 %v5054, %v5052
    %v5147 = vpack.c.b16 %v5055, %v5053
    %v5148 = vpack.c.b16 %v5058, %v5056
    %v5149 = vpack.c.b16 %v5059, %v5057
    %v5150 = vpack.c.b16 %v5062, %v5060
    %v5151 = vpack.c.b16 %v5063, %v5061
    %v5152 = vpack.c.b16 %v5066, %v5064
    %v5153 = vpack.c.b16 %v5067, %v5065
    %v5154 = vpack.c.b16 %v5070, %v5068
    %v5155 = vpack.c.b16 %v5071, %v5069
    %v5156 = vpack.c.b16 %v5074, %v5072
    %v5157 = vpack.c.b16 %v5075, %v5073
    %v5158 = vpack.c.b16 %v5078, %v5076
    %v5159 = vpack.c.b16 %v5079, %v5077
    %v5160 = vpack.c.b16 %v5082, %v5080
    %v5161 = vpack.c.b16 %v5083, %v5081
    %v5162 = vpack.c.b16 %v5086, %v5084
    %v5163 = vpack.c.b16 %v5087, %v5085
    %v5164 = vpack.c.b16 %v5090, %v5088
    %v5165 = vpack.c.b16 %v5091, %v5089
    %v5166 = vpack.c.b16 %v5094, %v5092
    %v5167 = vpack.c.b16 %v5095, %v5093
    %v5168 = vpack.c.b16 %v5098, %v5096
    %v5169 = vpack.c.b16 %v5099, %v5097
    %v5170 = vpack.c.b16 %v5102, %v5100
    %v5171 = vpack.c.b16 %v5103, %v5101
    %v5172 = vpack.c.b16 %v5106, %v5104
    %v5173 = vpack.c.b16 %v5107, %v5105
    %v5174 = vpack.c.b16 %v5110, %v5108
    %v5175 = vpack.c.b16 %v5111, %v5109
    %v5176 = vpack.c.b16 %v5114, %v5112
    %v5177 = vpack.c.b16 %v5115, %v5113
    %v5178 = vpack.c.b16 %v5118, %v5116
    %v5179 = vpack.c.b16 %v5119, %v5117
    %v5180 = vpack.c.b16 %v5122, %v5120
    %v5181 = vpack.c.b16 %v5123, %v5121
    %v5182 = vpack.c.b16 %v5126, %v5124
    %v5183 = vpack.c.b16 %v5127, %v5125
    %5240 = vmatprep.subr.bf16.mxu0 %v5143
    %5241 = vmatpush1.bf16.msra.mxu0 %v5142
    %5242 = vmatprep.subr.bf16.mxu0 %v5141
    %5243 = vmatpush1.bf16.msra.mxu0 %v5140
    %5244 = vmatprep.subr.bf16.mxu0 %v5139
    %5245 = vmatpush1.bf16.msra.mxu0 %v5138
    %5246 = vmatprep.subr.bf16.mxu0 %v5137
    %5247 = vmatpush1.bf16.msra.mxu0 %v5136
    %5248 = vmatprep.subr.bf16.mxu0 %v5135
    %5249 = vmatpush1.bf16.msra.mxu0 %v5134
    %5250 = vmatprep.subr.bf16.mxu0 %v5133
    %5251 = vmatpush1.bf16.msra.mxu0 %v5132
    %5252 = vmatprep.subr.bf16.mxu0 %v5131
    %5253 = vmatpush1.bf16.msra.mxu0 %v5130
    %5254 = vmatprep.subr.bf16.mxu0 %v5129
    %5255 = vmatpush1.bf16.msra.mxu0 %v5128
    %5256 = vmatprep.subr.bf16.mxu0 %v5159
    %5257 = vmatpush2.bf16.msra.mxu0 %v5158
    %5258 = vmatprep.subr.bf16.mxu0 %v5157
    %5259 = vmatpush2.bf16.msra.mxu0 %v5156
    %5260 = vmatprep.subr.bf16.mxu0 %v5155
    %5261 = vmatpush2.bf16.msra.mxu0 %v5154
    %5262 = vmatprep.subr.bf16.mxu0 %v5153
    %5263 = vmatpush2.bf16.msra.mxu0 %v5152
    %5264 = vmatprep.subr.bf16.mxu0 %v5151
    %5265 = vmatpush2.bf16.msra.mxu0 %v5150
    %5266 = vmatprep.subr.bf16.mxu0 %v5149
    %5267 = vmatpush2.bf16.msra.mxu0 %v5148
    %5268 = vmatprep.subr.bf16.mxu0 %v5147
    %5269 = vmatpush2.bf16.msra.mxu0 %v5146
    %5270 = vmatprep.subr.bf16.mxu0 %v5145
    %5271 = vmatpush2.bf16.msra.mxu0 %v5144
    %5272 = vmatprep.mubr.bf16.mxu0 %v4497
    %5273 = vmatmul.mubr.bf16.gmra.mxu0 %v4496
    %v5274 = vpop.f32.mrf.mxu0
    %v5275 = vadd.f32 0.0, %v5274
    %v5276 = vpop.f32.mrf.mxu0
    %v5277 = vadd.f32 0.0, %v5276
    %v5278 = vpop.f32.mrf.mxu0
    %v5279 = vadd.f32 0.0, %v5278
    %v5280 = vpop.f32.mrf.mxu0
    %v5281 = vadd.f32 0.0, %v5280
    %5282 = vmatprep.mubr.bf16.mxu0 %v4501
    %5283 = vmatmul.mubr.bf16.gmra.mxu0 %v4500
    %v5284 = vpop.f32.mrf.mxu0
    %v5285 = vadd.f32 0.0, %v5284
    %v5286 = vpop.f32.mrf.mxu0
    %v5287 = vadd.f32 0.0, %v5286
    %v5288 = vpop.f32.mrf.mxu0
    %v5289 = vadd.f32 0.0, %v5288
    %v5290 = vpop.f32.mrf.mxu0
    %v5291 = vadd.f32 0.0, %v5290
    %5292 = vdwg.mxu0
    %5293 = vmatprep.subr.bf16.mxu0 %v5175
    %5294 = vmatpush1.bf16.msra.mxu0 %v5174
    %5295 = vmatprep.subr.bf16.mxu0 %v5173
    %5296 = vmatpush1.bf16.msra.mxu0 %v5172
    %5297 = vmatprep.subr.bf16.mxu0 %v5171
    %5298 = vmatpush1.bf16.msra.mxu0 %v5170
    %5299 = vmatprep.subr.bf16.mxu0 %v5169
    %5300 = vmatpush1.bf16.msra.mxu0 %v5168
    %5301 = vmatprep.subr.bf16.mxu0 %v5167
    %5302 = vmatpush1.bf16.msra.mxu0 %v5166
    %5303 = vmatprep.subr.bf16.mxu0 %v5165
    %5304 = vmatpush1.bf16.msra.mxu0 %v5164
    %5305 = vmatprep.subr.bf16.mxu0 %v5163
    %5306 = vmatpush1.bf16.msra.mxu0 %v5162
    %5307 = vmatprep.subr.bf16.mxu0 %v5161
    %5308 = vmatpush1.bf16.msra.mxu0 %v5160
    %5309 = vmatprep.subr.bf16.mxu0 0
    %5310 = vmatpush2.bf16.msra.mxu0 0
    %5311 = vmatprep.subr.bf16.mxu0 0
    %5312 = vmatpush2.bf16.msra.mxu0 0
    %5313 = vmatprep.subr.bf16.mxu0 0
    %5314 = vmatpush2.bf16.msra.mxu0 0
    %5315 = vmatprep.subr.bf16.mxu0 0
    %5316 = vmatpush2.bf16.msra.mxu0 0
    %5317 = vmatprep.subr.bf16.mxu0 %v5183
    %5318 = vmatpush2.bf16.msra.mxu0 %v5182
    %5319 = vmatprep.subr.bf16.mxu0 %v5181
    %5320 = vmatpush2.bf16.msra.mxu0 %v5180
    %5321 = vmatprep.subr.bf16.mxu0 %v5179
    %5322 = vmatpush2.bf16.msra.mxu0 %v5178
    %5323 = vmatprep.subr.bf16.mxu0 %v5177
    %5324 = vmatpush2.bf16.msra.mxu0 %v5176
    %5325 = vmatprep.mubr.bf16.mxu0 %v4792
    %5326 = vmatmul.mubr.bf16.gmra.mxu0 %v4498
    %v5327 = vpop.f32.mrf.mxu0
    %v5328 = vadd.f32 %v5275, %v5327
    %v5329 = vpop.f32.mrf.mxu0
    %v5330 = vadd.f32 %v5277, %v5329
    %v5331 = vpop.f32.mrf.mxu0
    %v5332 = vadd.f32 %v5279, %v5331
    %v5333 = vpop.f32.mrf.mxu0
    %v5334 = vadd.f32 %v5281, %v5333
    %5335 = vmatprep.mubr.bf16.mxu0 %v4795
    %5336 = vmatmul.mubr.bf16.gmra.mxu0 %v4502
    %v5337 = vpop.f32.mrf.mxu0
    %v5338 = vadd.f32 %v5285, %v5337
    %v5339 = vpop.f32.mrf.mxu0
    %v5340 = vadd.f32 %v5287, %v5339
    %v5341 = vpop.f32.mrf.mxu0
    %v5342 = vadd.f32 %v5289, %v5341
    %v5343 = vpop.f32.mrf.mxu0
    %v5344 = vadd.f32 %v5291, %v5343
    %5345 = vdwg.mxu0
    %v5354 = vunpack.c.l.b16 %v4203
    %v5355 = vunpack.c.h.b16 %v4203
    %v5356 = vunpack.c.l.b16 %v4204
    %v5357 = vunpack.c.h.b16 %v4204
    %v5358 = vunpack.c.l.b16 %v4205
    %v5359 = vunpack.c.h.b16 %v4205
    %v5360 = vunpack.c.l.b16 %v4206
    %v5361 = vunpack.c.h.b16 %v4206
    %v5362 = vunpack.c.l.b16 %v4207
    %v5363 = vunpack.c.h.b16 %v4207
    %v5364 = vunpack.c.l.b16 %v4208
    %v5365 = vunpack.c.h.b16 %v4208
    %v5366 = vunpack.c.l.b16 %v4209
    %v5367 = vunpack.c.h.b16 %v4209
    %v5368 = vunpack.c.l.b16 %v4210
    %v5369 = vunpack.c.h.b16 %v4210
    %v5370 = vpack.c.b16 %v5358, %v5354
    %v5371 = vpack.c.b16 %v5359, %v5355
    %v5372 = vpack.c.b16 %v5360, %v5356
    %v5373 = vpack.c.b16 %v5361, %v5357
    %v5374 = vpack.c.b16 %v5366, %v5362
    %v5375 = vpack.c.b16 %v5367, %v5363
    %v5376 = vpack.c.b16 %v5368, %v5364
    %v5377 = vpack.c.b16 %v5369, %v5365
    %v5440 = vunpack.c.l.b16 %v4211
    %v5441 = vunpack.c.h.b16 %v4211
    %v5442 = vunpack.c.l.b16 %v4212
    %v5443 = vunpack.c.h.b16 %v4212
    %v5444 = vunpack.c.l.b16 %v4213
    %v5445 = vunpack.c.h.b16 %v4213
    %v5446 = vunpack.c.l.b16 %v4214
    %v5447 = vunpack.c.h.b16 %v4214
    %v5448 = vunpack.c.l.b16 %v4215
    %v5449 = vunpack.c.h.b16 %v4215
    %v5450 = vunpack.c.l.b16 %v4216
    %v5451 = vunpack.c.h.b16 %v4216
    %v5452 = vunpack.c.l.b16 %v4217
    %v5453 = vunpack.c.h.b16 %v4217
    %v5454 = vunpack.c.l.b16 %v4218
    %v5455 = vunpack.c.h.b16 %v4218
    %v5456 = vunpack.c.l.b16 %v4219
    %v5457 = vunpack.c.h.b16 %v4219
    %v5458 = vunpack.c.l.b16 %v4220
    %v5459 = vunpack.c.h.b16 %v4220
    %v5460 = vunpack.c.l.b16 %v4221
    %v5461 = vunpack.c.h.b16 %v4221
    %v5462 = vunpack.c.l.b16 %v4222
    %v5463 = vunpack.c.h.b16 %v4222
    %v5464 = vunpack.c.l.b16 %v4223
    %v5465 = vunpack.c.h.b16 %v4223
    %v5466 = vunpack.c.l.b16 %v4224
    %v5467 = vunpack.c.h.b16 %v4224
    %v5468 = vunpack.c.l.b16 %v4225
    %v5469 = vunpack.c.h.b16 %v4225
    %v5470 = vunpack.c.l.b16 %v4226
    %v5471 = vunpack.c.h.b16 %v4226
    %v5472 = vunpack.c.l.b16 %v4227
    %v5473 = vunpack.c.h.b16 %v4227
    %v5474 = vunpack.c.l.b16 %v4228
    %v5475 = vunpack.c.h.b16 %v4228
    %v5476 = vunpack.c.l.b16 %v4229
    %v5477 = vunpack.c.h.b16 %v4229
    %v5478 = vunpack.c.l.b16 %v4230
    %v5479 = vunpack.c.h.b16 %v4230
    %v5480 = vunpack.c.l.b16 %v4231
    %v5481 = vunpack.c.h.b16 %v4231
    %v5482 = vunpack.c.l.b16 %v4232
    %v5483 = vunpack.c.h.b16 %v4232
    %v5484 = vunpack.c.l.b16 %v4233
    %v5485 = vunpack.c.h.b16 %v4233
    %v5486 = vunpack.c.l.b16 %v4234
    %v5487 = vunpack.c.h.b16 %v4234
    %v5488 = vunpack.c.l.b16 %v4235
    %v5489 = vunpack.c.h.b16 %v4235
    %v5490 = vunpack.c.l.b16 %v4236
    %v5491 = vunpack.c.h.b16 %v4236
    %v5492 = vunpack.c.l.b16 %v4237
    %v5493 = vunpack.c.h.b16 %v4237
    %v5494 = vunpack.c.l.b16 %v4238
    %v5495 = vunpack.c.h.b16 %v4238
    %v5496 = vunpack.c.l.b16 %v4239
    %v5497 = vunpack.c.h.b16 %v4239
    %v5498 = vunpack.c.l.b16 %v4240
    %v5499 = vunpack.c.h.b16 %v4240
    %v5500 = vunpack.c.l.b16 %v4241
    %v5501 = vunpack.c.h.b16 %v4241
    %v5502 = vunpack.c.l.b16 %v4242
    %v5503 = vunpack.c.h.b16 %v4242
    %v5504 = vunpack.c.l.b16 %v4243
    %v5505 = vunpack.c.h.b16 %v4243
    %v5506 = vunpack.c.l.b16 %v4244
    %v5507 = vunpack.c.h.b16 %v4244
    %v5508 = vunpack.c.l.b16 %v4245
    %v5509 = vunpack.c.h.b16 %v4245
    %v5510 = vunpack.c.l.b16 %v4246
    %v5511 = vunpack.c.h.b16 %v4246
    %v5512 = vunpack.c.l.b16 %v4247
    %v5513 = vunpack.c.h.b16 %v4247
    %v5514 = vunpack.c.l.b16 %v4248
    %v5515 = vunpack.c.h.b16 %v4248
    %v5516 = vunpack.c.l.b16 %v4249
    %v5517 = vunpack.c.h.b16 %v4249
    %v5518 = vunpack.c.l.b16 %v4250
    %v5519 = vunpack.c.h.b16 %v4250
    %v5520 = vunpack.c.l.b16 %v4251
    %v5521 = vunpack.c.h.b16 %v4251
    %v5522 = vunpack.c.l.b16 %v4252
    %v5523 = vunpack.c.h.b16 %v4252
    %v5524 = vunpack.c.l.b16 %v4253
    %v5525 = vunpack.c.h.b16 %v4253
    %v5526 = vunpack.c.l.b16 %v4254
    %v5527 = vunpack.c.h.b16 %v4254
    %v5528 = vunpack.c.l.b16 %v4255
    %v5529 = vunpack.c.h.b16 %v4255
    %v5530 = vunpack.c.l.b16 %v4256
    %v5531 = vunpack.c.h.b16 %v4256
    %v5532 = vunpack.c.l.b16 %v4257
    %v5533 = vunpack.c.h.b16 %v4257
    %v5534 = vunpack.c.l.b16 %v4258
    %v5535 = vunpack.c.h.b16 %v4258
    %v5536 = vunpack.c.l.b16 %v4259
    %v5537 = vunpack.c.h.b16 %v4259
    %v5538 = vunpack.c.l.b16 %v4260
    %v5539 = vunpack.c.h.b16 %v4260
    %v5540 = vunpack.c.l.b16 %v4261
    %v5541 = vunpack.c.h.b16 %v4261
    %v5542 = vunpack.c.l.b16 %v4262
    %v5543 = vunpack.c.h.b16 %v4262
    %v5544 = vunpack.c.l.b16 %v4263
    %v5545 = vunpack.c.h.b16 %v4263
    %v5546 = vunpack.c.l.b16 %v4264
    %v5547 = vunpack.c.h.b16 %v4264
    %v5548 = vunpack.c.l.b16 %v4265
    %v5549 = vunpack.c.h.b16 %v4265
    %v5550 = vunpack.c.l.b16 %v4266
    %v5551 = vunpack.c.h.b16 %v4266
    %v5552 = vpack.c.b16 %v5442, %v5440
    %v5553 = vpack.c.b16 %v5443, %v5441
    %v5554 = vpack.c.b16 %v5446, %v5444
    %v5555 = vpack.c.b16 %v5447, %v5445
    %v5556 = vpack.c.b16 %v5450, %v5448
    %v5557 = vpack.c.b16 %v5451, %v5449
    %v5558 = vpack.c.b16 %v5454, %v5452
    %v5559 = vpack.c.b16 %v5455, %v5453
    %v5560 = vpack.c.b16 %v5458, %v5456
    %v5561 = vpack.c.b16 %v5459, %v5457
    %v5562 = vpack.c.b16 %v5462, %v5460
    %v5563 = vpack.c.b16 %v5463, %v5461
    %v5564 = vpack.c.b16 %v5466, %v5464
    %v5565 = vpack.c.b16 %v5467, %v5465
    %v5566 = vpack.c.b16 %v5470, %v5468
    %v5567 = vpack.c.b16 %v5471, %v5469
    %v5568 = vpack.c.b16 %v5474, %v5472
    %v5569 = vpack.c.b16 %v5475, %v5473
    %v5570 = vpack.c.b16 %v5478, %v5476
    %v5571 = vpack.c.b16 %v5479, %v5477
    %v5572 = vpack.c.b16 %v5482, %v5480
    %v5573 = vpack.c.b16 %v5483, %v5481
    %v5574 = vpack.c.b16 %v5486, %v5484
    %v5575 = vpack.c.b16 %v5487, %v5485
    %v5576 = vpack.c.b16 %v5490, %v5488
    %v5577 = vpack.c.b16 %v5491, %v5489
    %v5578 = vpack.c.b16 %v5494, %v5492
    %v5579 = vpack.c.b16 %v5495, %v5493
    %v5580 = vpack.c.b16 %v5498, %v5496
    %v5581 = vpack.c.b16 %v5499, %v5497
    %v5582 = vpack.c.b16 %v5502, %v5500
    %v5583 = vpack.c.b16 %v5503, %v5501
    %v5584 = vpack.c.b16 %v5506, %v5504
    %v5585 = vpack.c.b16 %v5507, %v5505
    %v5586 = vpack.c.b16 %v5510, %v5508
    %v5587 = vpack.c.b16 %v5511, %v5509
    %v5588 = vpack.c.b16 %v5514, %v5512
    %v5589 = vpack.c.b16 %v5515, %v5513
    %v5590 = vpack.c.b16 %v5518, %v5516
    %v5591 = vpack.c.b16 %v5519, %v5517
    %v5592 = vpack.c.b16 %v5522, %v5520
    %v5593 = vpack.c.b16 %v5523, %v5521
    %v5594 = vpack.c.b16 %v5526, %v5524
    %v5595 = vpack.c.b16 %v5527, %v5525
    %v5596 = vpack.c.b16 %v5530, %v5528
    %v5597 = vpack.c.b16 %v5531, %v5529
    %v5598 = vpack.c.b16 %v5534, %v5532
    %v5599 = vpack.c.b16 %v5535, %v5533
    %v5600 = vpack.c.b16 %v5538, %v5536
    %v5601 = vpack.c.b16 %v5539, %v5537
    %v5602 = vpack.c.b16 %v5542, %v5540
    %v5603 = vpack.c.b16 %v5543, %v5541
    %v5604 = vpack.c.b16 %v5546, %v5544
    %v5605 = vpack.c.b16 %v5547, %v5545
    %v5606 = vpack.c.b16 %v5550, %v5548
    %v5607 = vpack.c.b16 %v5551, %v5549
    %v5665 = vsel %vm4790, %v5373, 0
    %v5668 = vsel %vm4790, %v5377, 0
    %5670 = vmatprep.subr.bf16.mxu0 %v5567
    %5671 = vmatpush1.bf16.msra.mxu0 %v5566
    %5672 = vmatprep.subr.bf16.mxu0 %v5565
    %5673 = vmatpush1.bf16.msra.mxu0 %v5564
    %5674 = vmatprep.subr.bf16.mxu0 %v5563
    %5675 = vmatpush1.bf16.msra.mxu0 %v5562
    %5676 = vmatprep.subr.bf16.mxu0 %v5561
    %5677 = vmatpush1.bf16.msra.mxu0 %v5560
    %5678 = vmatprep.subr.bf16.mxu0 %v5559
    %5679 = vmatpush1.bf16.msra.mxu0 %v5558
    %5680 = vmatprep.subr.bf16.mxu0 %v5557
    %5681 = vmatpush1.bf16.msra.mxu0 %v5556
    %5682 = vmatprep.subr.bf16.mxu0 %v5555
    %5683 = vmatpush1.bf16.msra.mxu0 %v5554
    %5684 = vmatprep.subr.bf16.mxu0 %v5553
    %5685 = vmatpush1.bf16.msra.mxu0 %v5552
    %5686 = vmatprep.subr.bf16.mxu0 %v5583
    %5687 = vmatpush2.bf16.msra.mxu0 %v5582
    %5688 = vmatprep.subr.bf16.mxu0 %v5581
    %5689 = vmatpush2.bf16.msra.mxu0 %v5580
    %5690 = vmatprep.subr.bf16.mxu0 %v5579
    %5691 = vmatpush2.bf16.msra.mxu0 %v5578
    %5692 = vmatprep.subr.bf16.mxu0 %v5577
    %5693 = vmatpush2.bf16.msra.mxu0 %v5576
    %5694 = vmatprep.subr.bf16.mxu0 %v5575
    %5695 = vmatpush2.bf16.msra.mxu0 %v5574
    %5696 = vmatprep.subr.bf16.mxu0 %v5573
    %5697 = vmatpush2.bf16.msra.mxu0 %v5572
    %5698 = vmatprep.subr.bf16.mxu0 %v5571
    %5699 = vmatpush2.bf16.msra.mxu0 %v5570
    %5700 = vmatprep.subr.bf16.mxu0 %v5569
    %5701 = vmatpush2.bf16.msra.mxu0 %v5568
    %5702 = vmatprep.mubr.bf16.mxu0 %v5371
    %5703 = vmatmul.mubr.bf16.gmra.mxu0 %v5370
    %v5704 = vpop.f32.mrf.mxu0
    %v5705 = vadd.f32 %v4885, %v5704
    %v5706 = vpop.f32.mrf.mxu0
    %v5707 = vadd.f32 %v4887, %v5706
    %v5708 = vpop.f32.mrf.mxu0
    %v5709 = vadd.f32 %v4889, %v5708
    %v5710 = vpop.f32.mrf.mxu0
    %v5711 = vadd.f32 %v4891, %v5710
    %5712 = vmatprep.mubr.bf16.mxu0 %v5375
    %5713 = vmatmul.mubr.bf16.gmra.mxu0 %v5374
    %v5714 = vpop.f32.mrf.mxu0
    %v5715 = vadd.f32 %v4895, %v5714
    %v5716 = vpop.f32.mrf.mxu0
    %v5717 = vadd.f32 %v4897, %v5716
    %v5718 = vpop.f32.mrf.mxu0
    %v5719 = vadd.f32 %v4899, %v5718
    %v5720 = vpop.f32.mrf.mxu0
    %v5721 = vadd.f32 %v4901, %v5720
    %5722 = vdwg.mxu0
    %5723 = vmatprep.subr.bf16.mxu0 %v5599
    %5724 = vmatpush1.bf16.msra.mxu0 %v5598
    %5725 = vmatprep.subr.bf16.mxu0 %v5597
    %5726 = vmatpush1.bf16.msra.mxu0 %v5596
    %5727 = vmatprep.subr.bf16.mxu0 %v5595
    %5728 = vmatpush1.bf16.msra.mxu0 %v5594
    %5729 = vmatprep.subr.bf16.mxu0 %v5593
    %5730 = vmatpush1.bf16.msra.mxu0 %v5592
    %5731 = vmatprep.subr.bf16.mxu0 %v5591
    %5732 = vmatpush1.bf16.msra.mxu0 %v5590
    %5733 = vmatprep.subr.bf16.mxu0 %v5589
    %5734 = vmatpush1.bf16.msra.mxu0 %v5588
    %5735 = vmatprep.subr.bf16.mxu0 %v5587
    %5736 = vmatpush1.bf16.msra.mxu0 %v5586
    %5737 = vmatprep.subr.bf16.mxu0 %v5585
    %5738 = vmatpush1.bf16.msra.mxu0 %v5584
    %5739 = vmatprep.subr.bf16.mxu0 0
    %5740 = vmatpush2.bf16.msra.mxu0 0
    %5741 = vmatprep.subr.bf16.mxu0 0
    %5742 = vmatpush2.bf16.msra.mxu0 0
    %5743 = vmatprep.subr.bf16.mxu0 0
    %5744 = vmatpush2.bf16.msra.mxu0 0
    %5745 = vmatprep.subr.bf16.mxu0 0
    %5746 = vmatpush2.bf16.msra.mxu0 0
    %5747 = vmatprep.subr.bf16.mxu0 %v5607
    %5748 = vmatpush2.bf16.msra.mxu0 %v5606
    %5749 = vmatprep.subr.bf16.mxu0 %v5605
    %5750 = vmatpush2.bf16.msra.mxu0 %v5604
    %5751 = vmatprep.subr.bf16.mxu0 %v5603
    %5752 = vmatpush2.bf16.msra.mxu0 %v5602
    %5753 = vmatprep.subr.bf16.mxu0 %v5601
    %5754 = vmatpush2.bf16.msra.mxu0 %v5600
    %5755 = vmatprep.mubr.bf16.mxu0 %v5665
    %5756 = vmatmul.mubr.bf16.gmra.mxu0 %v5372
    %v5757 = vpop.f32.mrf.mxu0
    %v5758 = vadd.f32 %v5705, %v5757
    %v5759 = vpop.f32.mrf.mxu0
    %v5760 = vadd.f32 %v5707, %v5759
    %v5761 = vpop.f32.mrf.mxu0
    %v5762 = vadd.f32 %v5709, %v5761
    %v5763 = vpop.f32.mrf.mxu0
    %v5764 = vadd.f32 %v5711, %v5763
    %5765 = vmatprep.mubr.bf16.mxu0 %v5668
    %5766 = vmatmul.mubr.bf16.gmra.mxu0 %v5376
    %v5767 = vpop.f32.mrf.mxu0
    %v5768 = vadd.f32 %v5715, %v5767
    %v5769 = vpop.f32.mrf.mxu0
    %v5770 = vadd.f32 %v5717, %v5769
    %v5771 = vpop.f32.mrf.mxu0
    %v5772 = vadd.f32 %v5719, %v5771
    %v5773 = vpop.f32.mrf.mxu0
    %v5774 = vadd.f32 %v5721, %v5773
    %5775 = vdwg.mxu0
    %v5832 = vunpack.c.l.b16 %v4267
    %v5833 = vunpack.c.h.b16 %v4267
    %v5834 = vunpack.c.l.b16 %v4268
    %v5835 = vunpack.c.h.b16 %v4268
    %v5836 = vunpack.c.l.b16 %v4269
    %v5837 = vunpack.c.h.b16 %v4269
    %v5838 = vunpack.c.l.b16 %v4270
    %v5839 = vunpack.c.h.b16 %v4270
    %v5840 = vunpack.c.l.b16 %v4271
    %v5841 = vunpack.c.h.b16 %v4271
    %v5842 = vunpack.c.l.b16 %v4272
    %v5843 = vunpack.c.h.b16 %v4272
    %v5844 = vunpack.c.l.b16 %v4273
    %v5845 = vunpack.c.h.b16 %v4273
    %v5846 = vunpack.c.l.b16 %v4274
    %v5847 = vunpack.c.h.b16 %v4274
    %v5848 = vunpack.c.l.b16 %v4275
    %v5849 = vunpack.c.h.b16 %v4275
    %v5850 = vunpack.c.l.b16 %v4276
    %v5851 = vunpack.c.h.b16 %v4276
    %v5852 = vunpack.c.l.b16 %v4277
    %v5853 = vunpack.c.h.b16 %v4277
    %v5854 = vunpack.c.l.b16 %v4278
    %v5855 = vunpack.c.h.b16 %v4278
    %v5856 = vunpack.c.l.b16 %v4279
    %v5857 = vunpack.c.h.b16 %v4279
    %v5858 = vunpack.c.l.b16 %v4280
    %v5859 = vunpack.c.h.b16 %v4280
    %v5860 = vunpack.c.l.b16 %v4281
    %v5861 = vunpack.c.h.b16 %v4281
    %v5862 = vunpack.c.l.b16 %v4282
    %v5863 = vunpack.c.h.b16 %v4282
    %v5864 = vunpack.c.l.b16 %v4283
    %v5865 = vunpack.c.h.b16 %v4283
    %v5866 = vunpack.c.l.b16 %v4284
    %v5867 = vunpack.c.h.b16 %v4284
    %v5868 = vunpack.c.l.b16 %v4285
    %v5869 = vunpack.c.h.b16 %v4285
    %v5870 = vunpack.c.l.b16 %v4286
    %v5871 = vunpack.c.h.b16 %v4286
    %v5872 = vunpack.c.l.b16 %v4287
    %v5873 = vunpack.c.h.b16 %v4287
    %v5874 = vunpack.c.l.b16 %v4288
    %v5875 = vunpack.c.h.b16 %v4288
    %v5876 = vunpack.c.l.b16 %v4289
    %v5877 = vunpack.c.h.b16 %v4289
    %v5878 = vunpack.c.l.b16 %v4290
    %v5879 = vunpack.c.h.b16 %v4290
    %v5880 = vunpack.c.l.b16 %v4291
    %v5881 = vunpack.c.h.b16 %v4291
    %v5882 = vunpack.c.l.b16 %v4292
    %v5883 = vunpack.c.h.b16 %v4292
    %v5884 = vunpack.c.l.b16 %v4293
    %v5885 = vunpack.c.h.b16 %v4293
    %v5886 = vunpack.c.l.b16 %v4294
    %v5887 = vunpack.c.h.b16 %v4294
    %v5888 = vunpack.c.l.b16 %v4295
    %v5889 = vunpack.c.h.b16 %v4295
    %v5890 = vunpack.c.l.b16 %v4296
    %v5891 = vunpack.c.h.b16 %v4296
    %v5892 = vunpack.c.l.b16 %v4297
    %v5893 = vunpack.c.h.b16 %v4297
    %v5894 = vunpack.c.l.b16 %v4298
    %v5895 = vunpack.c.h.b16 %v4298
    %v5896 = vunpack.c.l.b16 %v4299
    %v5897 = vunpack.c.h.b16 %v4299
    %v5898 = vunpack.c.l.b16 %v4300
    %v5899 = vunpack.c.h.b16 %v4300
    %v5900 = vunpack.c.l.b16 %v4301
    %v5901 = vunpack.c.h.b16 %v4301
    %v5902 = vunpack.c.l.b16 %v4302
    %v5903 = vunpack.c.h.b16 %v4302
    %v5904 = vunpack.c.l.b16 %v4303
    %v5905 = vunpack.c.h.b16 %v4303
    %v5906 = vunpack.c.l.b16 %v4304
    %v5907 = vunpack.c.h.b16 %v4304
    %v5908 = vunpack.c.l.b16 %v4305
    %v5909 = vunpack.c.h.b16 %v4305
    %v5910 = vunpack.c.l.b16 %v4306
    %v5911 = vunpack.c.h.b16 %v4306
    %v5912 = vunpack.c.l.b16 %v4307
    %v5913 = vunpack.c.h.b16 %v4307
    %v5914 = vunpack.c.l.b16 %v4308
    %v5915 = vunpack.c.h.b16 %v4308
    %v5916 = vunpack.c.l.b16 %v4309
    %v5917 = vunpack.c.h.b16 %v4309
    %v5918 = vunpack.c.l.b16 %v4310
    %v5919 = vunpack.c.h.b16 %v4310
    %v5920 = vunpack.c.l.b16 %v4311
    %v5921 = vunpack.c.h.b16 %v4311
    %v5922 = vunpack.c.l.b16 %v4312
    %v5923 = vunpack.c.h.b16 %v4312
    %v5924 = vunpack.c.l.b16 %v4313
    %v5925 = vunpack.c.h.b16 %v4313
    %v5926 = vunpack.c.l.b16 %v4314
    %v5927 = vunpack.c.h.b16 %v4314
    %v5928 = vunpack.c.l.b16 %v4315
    %v5929 = vunpack.c.h.b16 %v4315
    %v5930 = vunpack.c.l.b16 %v4316
    %v5931 = vunpack.c.h.b16 %v4316
    %v5932 = vunpack.c.l.b16 %v4317
    %v5933 = vunpack.c.h.b16 %v4317
    %v5934 = vunpack.c.l.b16 %v4318
    %v5935 = vunpack.c.h.b16 %v4318
    %v5936 = vunpack.c.l.b16 %v4319
    %v5937 = vunpack.c.h.b16 %v4319
    %v5938 = vunpack.c.l.b16 %v4320
    %v5939 = vunpack.c.h.b16 %v4320
    %v5940 = vunpack.c.l.b16 %v4321
    %v5941 = vunpack.c.h.b16 %v4321
    %v5942 = vunpack.c.l.b16 %v4322
    %v5943 = vunpack.c.h.b16 %v4322
    %v5944 = vpack.c.b16 %v5834, %v5832
    %v5945 = vpack.c.b16 %v5835, %v5833
    %v5946 = vpack.c.b16 %v5838, %v5836
    %v5947 = vpack.c.b16 %v5839, %v5837
    %v5948 = vpack.c.b16 %v5842, %v5840
    %v5949 = vpack.c.b16 %v5843, %v5841
    %v5950 = vpack.c.b16 %v5846, %v5844
    %v5951 = vpack.c.b16 %v5847, %v5845
    %v5952 = vpack.c.b16 %v5850, %v5848
    %v5953 = vpack.c.b16 %v5851, %v5849
    %v5954 = vpack.c.b16 %v5854, %v5852
    %v5955 = vpack.c.b16 %v5855, %v5853
    %v5956 = vpack.c.b16 %v5858, %v5856
    %v5957 = vpack.c.b16 %v5859, %v5857
    %v5958 = vpack.c.b16 %v5862, %v5860
    %v5959 = vpack.c.b16 %v5863, %v5861
    %v5960 = vpack.c.b16 %v5866, %v5864
    %v5961 = vpack.c.b16 %v5867, %v5865
    %v5962 = vpack.c.b16 %v5870, %v5868
    %v5963 = vpack.c.b16 %v5871, %v5869
    %v5964 = vpack.c.b16 %v5874, %v5872
    %v5965 = vpack.c.b16 %v5875, %v5873
    %v5966 = vpack.c.b16 %v5878, %v5876
    %v5967 = vpack.c.b16 %v5879, %v5877
    %v5968 = vpack.c.b16 %v5882, %v5880
    %v5969 = vpack.c.b16 %v5883, %v5881
    %v5970 = vpack.c.b16 %v5886, %v5884
    %v5971 = vpack.c.b16 %v5887, %v5885
    %v5972 = vpack.c.b16 %v5890, %v5888
    %v5973 = vpack.c.b16 %v5891, %v5889
    %v5974 = vpack.c.b16 %v5894, %v5892
    %v5975 = vpack.c.b16 %v5895, %v5893
    %v5976 = vpack.c.b16 %v5898, %v5896
    %v5977 = vpack.c.b16 %v5899, %v5897
    %v5978 = vpack.c.b16 %v5902, %v5900
    %v5979 = vpack.c.b16 %v5903, %v5901
    %v5980 = vpack.c.b16 %v5906, %v5904
    %v5981 = vpack.c.b16 %v5907, %v5905
    %v5982 = vpack.c.b16 %v5910, %v5908
    %v5983 = vpack.c.b16 %v5911, %v5909
    %v5984 = vpack.c.b16 %v5914, %v5912
    %v5985 = vpack.c.b16 %v5915, %v5913
    %v5986 = vpack.c.b16 %v5918, %v5916
    %v5987 = vpack.c.b16 %v5919, %v5917
    %v5988 = vpack.c.b16 %v5922, %v5920
    %v5989 = vpack.c.b16 %v5923, %v5921
    %v5990 = vpack.c.b16 %v5926, %v5924
    %v5991 = vpack.c.b16 %v5927, %v5925
    %v5992 = vpack.c.b16 %v5930, %v5928
    %v5993 = vpack.c.b16 %v5931, %v5929
    %v5994 = vpack.c.b16 %v5934, %v5932
    %v5995 = vpack.c.b16 %v5935, %v5933
    %v5996 = vpack.c.b16 %v5938, %v5936
    %v5997 = vpack.c.b16 %v5939, %v5937
    %v5998 = vpack.c.b16 %v5942, %v5940
    %v5999 = vpack.c.b16 %v5943, %v5941
    %6056 = vmatprep.subr.bf16.mxu0 %v5959
    %6057 = vmatpush1.bf16.msra.mxu0 %v5958
    %6058 = vmatprep.subr.bf16.mxu0 %v5957
    %6059 = vmatpush1.bf16.msra.mxu0 %v5956
    %6060 = vmatprep.subr.bf16.mxu0 %v5955
    %6061 = vmatpush1.bf16.msra.mxu0 %v5954
    %6062 = vmatprep.subr.bf16.mxu0 %v5953
    %6063 = vmatpush1.bf16.msra.mxu0 %v5952
    %6064 = vmatprep.subr.bf16.mxu0 %v5951
    %6065 = vmatpush1.bf16.msra.mxu0 %v5950
    %6066 = vmatprep.subr.bf16.mxu0 %v5949
    %6067 = vmatpush1.bf16.msra.mxu0 %v5948
    %6068 = vmatprep.subr.bf16.mxu0 %v5947
    %6069 = vmatpush1.bf16.msra.mxu0 %v5946
    %6070 = vmatprep.subr.bf16.mxu0 %v5945
    %6071 = vmatpush1.bf16.msra.mxu0 %v5944
    %6072 = vmatprep.subr.bf16.mxu0 %v5975
    %6073 = vmatpush2.bf16.msra.mxu0 %v5974
    %6074 = vmatprep.subr.bf16.mxu0 %v5973
    %6075 = vmatpush2.bf16.msra.mxu0 %v5972
    %6076 = vmatprep.subr.bf16.mxu0 %v5971
    %6077 = vmatpush2.bf16.msra.mxu0 %v5970
    %6078 = vmatprep.subr.bf16.mxu0 %v5969
    %6079 = vmatpush2.bf16.msra.mxu0 %v5968
    %6080 = vmatprep.subr.bf16.mxu0 %v5967
    %6081 = vmatpush2.bf16.msra.mxu0 %v5966
    %6082 = vmatprep.subr.bf16.mxu0 %v5965
    %6083 = vmatpush2.bf16.msra.mxu0 %v5964
    %6084 = vmatprep.subr.bf16.mxu0 %v5963
    %6085 = vmatpush2.bf16.msra.mxu0 %v5962
    %6086 = vmatprep.subr.bf16.mxu0 %v5961
    %6087 = vmatpush2.bf16.msra.mxu0 %v5960
    %6088 = vmatprep.mubr.bf16.mxu0 %v5371
    %6089 = vmatmul.mubr.bf16.gmra.mxu0 %v5370
    %v6090 = vpop.f32.mrf.mxu0
    %v6091 = vadd.f32 %v5328, %v6090
    %v6092 = vpop.f32.mrf.mxu0
    %v6093 = vadd.f32 %v5330, %v6092
    %v6094 = vpop.f32.mrf.mxu0
    %v6095 = vadd.f32 %v5332, %v6094
    %v6096 = vpop.f32.mrf.mxu0
    %v6097 = vadd.f32 %v5334, %v6096
    %6098 = vmatprep.mubr.bf16.mxu0 %v5375
    %6099 = vmatmul.mubr.bf16.gmra.mxu0 %v5374
    %v6100 = vpop.f32.mrf.mxu0
    %v6101 = vadd.f32 %v5338, %v6100
    %v6102 = vpop.f32.mrf.mxu0
    %v6103 = vadd.f32 %v5340, %v6102
    %v6104 = vpop.f32.mrf.mxu0
    %v6105 = vadd.f32 %v5342, %v6104
    %v6106 = vpop.f32.mrf.mxu0
    %v6107 = vadd.f32 %v5344, %v6106
    %6108 = vdwg.mxu0
    %6109 = vmatprep.subr.bf16.mxu0 %v5991
    %6110 = vmatpush1.bf16.msra.mxu0 %v5990
    %6111 = vmatprep.subr.bf16.mxu0 %v5989
    %6112 = vmatpush1.bf16.msra.mxu0 %v5988
    %6113 = vmatprep.subr.bf16.mxu0 %v5987
    %6114 = vmatpush1.bf16.msra.mxu0 %v5986
    %6115 = vmatprep.subr.bf16.mxu0 %v5985
    %6116 = vmatpush1.bf16.msra.mxu0 %v5984
    %6117 = vmatprep.subr.bf16.mxu0 %v5983
    %6118 = vmatpush1.bf16.msra.mxu0 %v5982
    %6119 = vmatprep.subr.bf16.mxu0 %v5981
    %6120 = vmatpush1.bf16.msra.mxu0 %v5980
    %6121 = vmatprep.subr.bf16.mxu0 %v5979
    %6122 = vmatpush1.bf16.msra.mxu0 %v5978
    %6123 = vmatprep.subr.bf16.mxu0 %v5977
    %6124 = vmatpush1.bf16.msra.mxu0 %v5976
    %6125 = vmatprep.subr.bf16.mxu0 0
    %6126 = vmatpush2.bf16.msra.mxu0 0
    %6127 = vmatprep.subr.bf16.mxu0 0
    %6128 = vmatpush2.bf16.msra.mxu0 0
    %6129 = vmatprep.subr.bf16.mxu0 0
    %6130 = vmatpush2.bf16.msra.mxu0 0
    %6131 = vmatprep.subr.bf16.mxu0 0
    %6132 = vmatpush2.bf16.msra.mxu0 0
    %6133 = vmatprep.subr.bf16.mxu0 %v5999
    %6134 = vmatpush2.bf16.msra.mxu0 %v5998
    %6135 = vmatprep.subr.bf16.mxu0 %v5997
    %6136 = vmatpush2.bf16.msra.mxu0 %v5996
    %6137 = vmatprep.subr.bf16.mxu0 %v5995
    %6138 = vmatpush2.bf16.msra.mxu0 %v5994
    %6139 = vmatprep.subr.bf16.mxu0 %v5993
    %6140 = vmatpush2.bf16.msra.mxu0 %v5992
    %6141 = vmatprep.mubr.bf16.mxu0 %v5665
    %6142 = vmatmul.mubr.bf16.gmra.mxu0 %v5372
    %v6143 = vpop.f32.mrf.mxu0
    %v6144 = vadd.f32 %v6091, %v6143
    %v6145 = vpop.f32.mrf.mxu0
    %v6146 = vadd.f32 %v6093, %v6145
    %v6147 = vpop.f32.mrf.mxu0
    %v6148 = vadd.f32 %v6095, %v6147
    %v6149 = vpop.f32.mrf.mxu0
    %v6150 = vadd.f32 %v6097, %v6149
    %6151 = vmatprep.mubr.bf16.mxu0 %v5668
    %6152 = vmatmul.mubr.bf16.gmra.mxu0 %v5376
    %v6153 = vpop.f32.mrf.mxu0
    %v6154 = vadd.f32 %v6101, %v6153
    %v6155 = vpop.f32.mrf.mxu0
    %v6156 = vadd.f32 %v6103, %v6155
    %v6157 = vpop.f32.mrf.mxu0
    %v6158 = vadd.f32 %v6105, %v6157
    %v6159 = vpop.f32.mrf.mxu0
    %v6160 = vadd.f32 %v6107, %v6159
    %6161 = vdwg.mxu0
    %v6162 = vld [vmem:[#allocation2] sm:$0xee]
    %v6163 = vld [vmem:[#allocation2 + $0x8] sm:$0xee]
    %v6164 = vld [vmem:[#allocation2 + $0x30] sm:$0xee]
    %v6165 = vld [vmem:[#allocation2 + $0x38] sm:$0xee]
    %v6174 = vrot.slane %v6162, 5
    %v6175 = vrot.slane %v6174, 4
    %v6176 = vrot.slane %v4205, 5
    %v6177 = vsel %vm984, %v6175, %v6176
    %v6178 = vrot.slane %v6163, 5
    %v6179 = vrot.slane %v6178, 4
    %v6180 = vrot.slane %v4206, 5
    %v6181 = vsel %vm984, %v6179, %v6180
    %v6182 = vrot.slane %v6176, 4
    %v6183 = vrot.slane %v4323, 5
    %v6184 = vsel %vm984, %v6182, %v6183
    %v6185 = vrot.slane %v6180, 4
    %v6186 = vrot.slane %v4324, 5
    %v6187 = vsel %vm984, %v6185, %v6186
    %v6188 = vrot.slane %v6164, 5
    %v6189 = vrot.slane %v6188, 4
    %v6190 = vrot.slane %v4209, 5
    %v6191 = vsel %vm984, %v6189, %v6190
    %v6192 = vrot.slane %v6165, 5
    %v6193 = vrot.slane %v6192, 4
    %v6194 = vrot.slane %v4210, 5
    %v6195 = vsel %vm984, %v6193, %v6194
    %v6196 = vrot.slane %v6190, 4
    %v6197 = vrot.slane %v4325, 5
    %v6198 = vsel %vm984, %v6196, %v6197
    %v6199 = vrot.slane %v6194, 4
    %v6200 = vrot.slane %v4326, 5
    %v6201 = vsel %vm984, %v6199, %v6200
    %s6202 = scalar_lea.vmem %s4, 896
    %v6203 = vld [vmem:[%s6202] sm:$0xff]
    %v6204 = vld [vmem:[%s6202 + $0x8] sm:$0xff]
    %v6205 = vld [vmem:[%s6202 + $0x10] sm:$0xff]
    %v6206 = vld [vmem:[%s6202 + $0x18] sm:$0xff]
    %v6207 = vld [vmem:[%s6202 + $0x20] sm:$0xff]
    %v6208 = vld [vmem:[%s6202 + $0x28] sm:$0xff]
    %v6209 = vld [vmem:[%s6202 + $0x30] sm:$0xff]
    %v6210 = vld [vmem:[%s6202 + $0x38] sm:$0xff]
    %v6211 = vld [vmem:[%s6202 + $0x40] sm:$0xff]
    %v6212 = vld [vmem:[%s6202 + $0x48] sm:$0xff]
    %v6213 = vld [vmem:[%s6202 + $0x50] sm:$0xff]
    %v6214 = vld [vmem:[%s6202 + $0x58] sm:$0xff]
    %v6215 = vld [vmem:[%s6202 + $0x60] sm:$0xff]
    %v6216 = vld [vmem:[%s6202 + $0x68] sm:$0xff]
    %v6217 = vld [vmem:[%s6202 + $0x70] sm:$0xff]
    %v6218 = vld [vmem:[%s6202 + $0x78] sm:$0xff]
    %v6219 = vld [vmem:[%s6202 + $0x80] sm:$0xff]
    %v6220 = vld [vmem:[%s6202 + $0x88] sm:$0xff]
    %v6221 = vld [vmem:[%s6202 + $0x90] sm:$0xff]
    %v6222 = vld [vmem:[%s6202 + $0x98] sm:$0xff]
    %v6223 = vld [vmem:[%s6202 + $0xa0] sm:$0xff]
    %v6224 = vld [vmem:[%s6202 + $0xa8] sm:$0xff]
    %v6225 = vld [vmem:[%s6202 + $0xb0] sm:$0xff]
    %v6226 = vld [vmem:[%s6202 + $0xb8] sm:$0xff]
    %v6227 = vld [vmem:[%s6202 + $0xc0] sm:$0xff]
    %v6228 = vld [vmem:[%s6202 + $0xc8] sm:$0xff]
    %v6229 = vld [vmem:[%s6202 + $0xd0] sm:$0xff]
    %v6230 = vld [vmem:[%s6202 + $0xd8] sm:$0xff]
    %v6231 = vld [vmem:[%s6202 + $0xe0] sm:$0xff]
    %v6232 = vld [vmem:[%s6202 + $0xe8] sm:$0xff]
    %v6233 = vld [vmem:[%s6202 + $0xf0] sm:$0xff]
    %v6234 = vld [vmem:[%s6202 + $0xf8] sm:$0xff]
    %v6235 = vld [vmem:[%s6202 + $0x100] sm:$0xff]
    %v6236 = vld [vmem:[%s6202 + $0x108] sm:$0xff]
    %v6237 = vld [vmem:[%s6202 + $0x110] sm:$0xff]
    %v6238 = vld [vmem:[%s6202 + $0x118] sm:$0xff]
    %v6239 = vld [vmem:[%s6202 + $0x120] sm:$0xff]
    %v6240 = vld [vmem:[%s6202 + $0x128] sm:$0xff]
    %v6241 = vld [vmem:[%s6202 + $0x130] sm:$0xff]
    %v6242 = vld [vmem:[%s6202 + $0x138] sm:$0xff]
    %v6243 = vld [vmem:[%s6202 + $0x140] sm:$0xff]
    %v6244 = vld [vmem:[%s6202 + $0x148] sm:$0xff]
    %v6245 = vld [vmem:[%s6202 + $0x150] sm:$0xff]
    %v6246 = vld [vmem:[%s6202 + $0x158] sm:$0xff]
    %v6247 = vld [vmem:[%s6202 + $0x160] sm:$0xff]
    %v6248 = vld [vmem:[%s6202 + $0x168] sm:$0xff]
    %v6249 = vld [vmem:[%s6202 + $0x170] sm:$0xff]
    %v6250 = vld [vmem:[%s6202 + $0x178] sm:$0xff]
    %v6251 = vld [vmem:[%s6202 + $0x180] sm:$0xff]
    %v6252 = vld [vmem:[%s6202 + $0x188] sm:$0xff]
    %v6253 = vld [vmem:[%s6202 + $0x190] sm:$0xff]
    %v6254 = vld [vmem:[%s6202 + $0x198] sm:$0xff]
    %v6255 = vld [vmem:[%s6202 + $0x1a0] sm:$0xff]
    %v6256 = vld [vmem:[%s6202 + $0x1a8] sm:$0xff]
    %v6257 = vld [vmem:[%s6202 + $0x1b0] sm:$0xff]
    %v6258 = vld [vmem:[%s6202 + $0x1b8] sm:$0xff]
    %v6259 = vunpack.c.l.b16 %v6177
    %v6260 = vunpack.c.h.b16 %v6177
    %v6261 = vunpack.c.l.b16 %v6181
    %v6262 = vunpack.c.h.b16 %v6181
    %v6263 = vunpack.c.l.b16 %v6184
    %v6264 = vunpack.c.h.b16 %v6184
    %v6265 = vunpack.c.l.b16 %v6187
    %v6266 = vunpack.c.h.b16 %v6187
    %v6267 = vunpack.c.l.b16 %v6191
    %v6268 = vunpack.c.h.b16 %v6191
    %v6269 = vunpack.c.l.b16 %v6195
    %v6270 = vunpack.c.h.b16 %v6195
    %v6271 = vunpack.c.l.b16 %v6198
    %v6272 = vunpack.c.h.b16 %v6198
    %v6273 = vunpack.c.l.b16 %v6201
    %v6274 = vunpack.c.h.b16 %v6201
    %v6275 = vpack.c.b16 %v6263, %v6259
    %v6276 = vpack.c.b16 %v6264, %v6260
    %v6277 = vpack.c.b16 %v6265, %v6261
    %v6278 = vpack.c.b16 %v6266, %v6262
    %v6279 = vpack.c.b16 %v6271, %v6267
    %v6280 = vpack.c.b16 %v6272, %v6268
    %v6281 = vpack.c.b16 %v6273, %v6269
    %v6282 = vpack.c.b16 %v6274, %v6270
    %v6345 = vunpack.c.l.b16 %v6203
    %v6346 = vunpack.c.h.b16 %v6203
    %v6347 = vunpack.c.l.b16 %v6204
    %v6348 = vunpack.c.h.b16 %v6204
    %v6349 = vunpack.c.l.b16 %v6205
    %v6350 = vunpack.c.h.b16 %v6205
    %v6351 = vunpack.c.l.b16 %v6206
    %v6352 = vunpack.c.h.b16 %v6206
    %v6353 = vunpack.c.l.b16 %v6207
    %v6354 = vunpack.c.h.b16 %v6207
    %v6355 = vunpack.c.l.b16 %v6208
    %v6356 = vunpack.c.h.b16 %v6208
    %v6357 = vunpack.c.l.b16 %v6209
    %v6358 = vunpack.c.h.b16 %v6209
    %v6359 = vunpack.c.l.b16 %v6210
    %v6360 = vunpack.c.h.b16 %v6210
    %v6361 = vunpack.c.l.b16 %v6211
    %v6362 = vunpack.c.h.b16 %v6211
    %v6363 = vunpack.c.l.b16 %v6212
    %v6364 = vunpack.c.h.b16 %v6212
    %v6365 = vunpack.c.l.b16 %v6213
    %v6366 = vunpack.c.h.b16 %v6213
    %v6367 = vunpack.c.l.b16 %v6214
    %v6368 = vunpack.c.h.b16 %v6214
    %v6369 = vunpack.c.l.b16 %v6215
    %v6370 = vunpack.c.h.b16 %v6215
    %v6371 = vunpack.c.l.b16 %v6216
    %v6372 = vunpack.c.h.b16 %v6216
    %v6373 = vunpack.c.l.b16 %v6217
    %v6374 = vunpack.c.h.b16 %v6217
    %v6375 = vunpack.c.l.b16 %v6218
    %v6376 = vunpack.c.h.b16 %v6218
    %v6377 = vunpack.c.l.b16 %v6219
    %v6378 = vunpack.c.h.b16 %v6219
    %v6379 = vunpack.c.l.b16 %v6220
    %v6380 = vunpack.c.h.b16 %v6220
    %v6381 = vunpack.c.l.b16 %v6221
    %v6382 = vunpack.c.h.b16 %v6221
    %v6383 = vunpack.c.l.b16 %v6222
    %v6384 = vunpack.c.h.b16 %v6222
    %v6385 = vunpack.c.l.b16 %v6223
    %v6386 = vunpack.c.h.b16 %v6223
    %v6387 = vunpack.c.l.b16 %v6224
    %v6388 = vunpack.c.h.b16 %v6224
    %v6389 = vunpack.c.l.b16 %v6225
    %v6390 = vunpack.c.h.b16 %v6225
    %v6391 = vunpack.c.l.b16 %v6226
    %v6392 = vunpack.c.h.b16 %v6226
    %v6393 = vunpack.c.l.b16 %v6227
    %v6394 = vunpack.c.h.b16 %v6227
    %v6395 = vunpack.c.l.b16 %v6228
    %v6396 = vunpack.c.h.b16 %v6228
    %v6397 = vunpack.c.l.b16 %v6229
    %v6398 = vunpack.c.h.b16 %v6229
    %v6399 = vunpack.c.l.b16 %v6230
    %v6400 = vunpack.c.h.b16 %v6230
    %v6401 = vunpack.c.l.b16 %v6231
    %v6402 = vunpack.c.h.b16 %v6231
    %v6403 = vunpack.c.l.b16 %v6232
    %v6404 = vunpack.c.h.b16 %v6232
    %v6405 = vunpack.c.l.b16 %v6233
    %v6406 = vunpack.c.h.b16 %v6233
    %v6407 = vunpack.c.l.b16 %v6234
    %v6408 = vunpack.c.h.b16 %v6234
    %v6409 = vunpack.c.l.b16 %v6235
    %v6410 = vunpack.c.h.b16 %v6235
    %v6411 = vunpack.c.l.b16 %v6236
    %v6412 = vunpack.c.h.b16 %v6236
    %v6413 = vunpack.c.l.b16 %v6237
    %v6414 = vunpack.c.h.b16 %v6237
    %v6415 = vunpack.c.l.b16 %v6238
    %v6416 = vunpack.c.h.b16 %v6238
    %v6417 = vunpack.c.l.b16 %v6239
    %v6418 = vunpack.c.h.b16 %v6239
    %v6419 = vunpack.c.l.b16 %v6240
    %v6420 = vunpack.c.h.b16 %v6240
    %v6421 = vunpack.c.l.b16 %v6241
    %v6422 = vunpack.c.h.b16 %v6241
    %v6423 = vunpack.c.l.b16 %v6242
    %v6424 = vunpack.c.h.b16 %v6242
    %v6425 = vunpack.c.l.b16 %v6243
    %v6426 = vunpack.c.h.b16 %v6243
    %v6427 = vunpack.c.l.b16 %v6244
    %v6428 = vunpack.c.h.b16 %v6244
    %v6429 = vunpack.c.l.b16 %v6245
    %v6430 = vunpack.c.h.b16 %v6245
    %v6431 = vunpack.c.l.b16 %v6246
    %v6432 = vunpack.c.h.b16 %v6246
    %v6433 = vunpack.c.l.b16 %v6247
    %v6434 = vunpack.c.h.b16 %v6247
    %v6435 = vunpack.c.l.b16 %v6248
    %v6436 = vunpack.c.h.b16 %v6248
    %v6437 = vunpack.c.l.b16 %v6249
    %v6438 = vunpack.c.h.b16 %v6249
    %v6439 = vunpack.c.l.b16 %v6250
    %v6440 = vunpack.c.h.b16 %v6250
    %v6441 = vunpack.c.l.b16 %v6251
    %v6442 = vunpack.c.h.b16 %v6251
    %v6443 = vunpack.c.l.b16 %v6252
    %v6444 = vunpack.c.h.b16 %v6252
    %v6445 = vunpack.c.l.b16 %v6253
    %v6446 = vunpack.c.h.b16 %v6253
    %v6447 = vunpack.c.l.b16 %v6254
    %v6448 = vunpack.c.h.b16 %v6254
    %v6449 = vunpack.c.l.b16 %v6255
    %v6450 = vunpack.c.h.b16 %v6255
    %v6451 = vunpack.c.l.b16 %v6256
    %v6452 = vunpack.c.h.b16 %v6256
    %v6453 = vunpack.c.l.b16 %v6257
    %v6454 = vunpack.c.h.b16 %v6257
    %v6455 = vunpack.c.l.b16 %v6258
    %v6456 = vunpack.c.h.b16 %v6258
    %v6457 = vpack.c.b16 %v6347, %v6345
    %v6458 = vpack.c.b16 %v6348, %v6346
    %v6459 = vpack.c.b16 %v6351, %v6349
    %v6460 = vpack.c.b16 %v6352, %v6350
    %v6461 = vpack.c.b16 %v6355, %v6353
    %v6462 = vpack.c.b16 %v6356, %v6354
    %v6463 = vpack.c.b16 %v6359, %v6357
    %v6464 = vpack.c.b16 %v6360, %v6358
    %v6465 = vpack.c.b16 %v6363, %v6361
    %v6466 = vpack.c.b16 %v6364, %v6362
    %v6467 = vpack.c.b16 %v6367, %v6365
    %v6468 = vpack.c.b16 %v6368, %v6366
    %v6469 = vpack.c.b16 %v6371, %v6369
    %v6470 = vpack.c.b16 %v6372, %v6370
    %v6471 = vpack.c.b16 %v6375, %v6373
    %v6472 = vpack.c.b16 %v6376, %v6374
    %v6473 = vpack.c.b16 %v6379, %v6377
    %v6474 = vpack.c.b16 %v6380, %v6378
    %v6475 = vpack.c.b16 %v6383, %v6381
    %v6476 = vpack.c.b16 %v6384, %v6382
    %v6477 = vpack.c.b16 %v6387, %v6385
    %v6478 = vpack.c.b16 %v6388, %v6386
    %v6479 = vpack.c.b16 %v6391, %v6389
    %v6480 = vpack.c.b16 %v6392, %v6390
    %v6481 = vpack.c.b16 %v6395, %v6393
    %v6482 = vpack.c.b16 %v6396, %v6394
    %v6483 = vpack.c.b16 %v6399, %v6397
    %v6484 = vpack.c.b16 %v6400, %v6398
    %v6485 = vpack.c.b16 %v6403, %v6401
    %v6486 = vpack.c.b16 %v6404, %v6402
    %v6487 = vpack.c.b16 %v6407, %v6405
    %v6488 = vpack.c.b16 %v6408, %v6406
    %v6489 = vpack.c.b16 %v6411, %v6409
    %v6490 = vpack.c.b16 %v6412, %v6410
    %v6491 = vpack.c.b16 %v6415, %v6413
    %v6492 = vpack.c.b16 %v6416, %v6414
    %v6493 = vpack.c.b16 %v6419, %v6417
    %v6494 = vpack.c.b16 %v6420, %v6418
    %v6495 = vpack.c.b16 %v6423, %v6421
    %v6496 = vpack.c.b16 %v6424, %v6422
    %v6497 = vpack.c.b16 %v6427, %v6425
    %v6498 = vpack.c.b16 %v6428, %v6426
    %v6499 = vpack.c.b16 %v6431, %v6429
    %v6500 = vpack.c.b16 %v6432, %v6430
    %v6501 = vpack.c.b16 %v6435, %v6433
    %v6502 = vpack.c.b16 %v6436, %v6434
    %v6503 = vpack.c.b16 %v6439, %v6437
    %v6504 = vpack.c.b16 %v6440, %v6438
    %v6505 = vpack.c.b16 %v6443, %v6441
    %v6506 = vpack.c.b16 %v6444, %v6442
    %v6507 = vpack.c.b16 %v6447, %v6445
    %v6508 = vpack.c.b16 %v6448, %v6446
    %v6509 = vpack.c.b16 %v6451, %v6449
    %v6510 = vpack.c.b16 %v6452, %v6450
    %v6511 = vpack.c.b16 %v6455, %v6453
    %v6512 = vpack.c.b16 %v6456, %v6454
    %v6570 = vsel %vm4790, %v6278, 0
    %v6573 = vsel %vm4790, %v6282, 0
    %6575 = vmatprep.subr.bf16.mxu0 %v6472
    %6576 = vmatpush1.bf16.msra.mxu0 %v6471
    %6577 = vmatprep.subr.bf16.mxu0 %v6470
    %6578 = vmatpush1.bf16.msra.mxu0 %v6469
    %6579 = vmatprep.subr.bf16.mxu0 %v6468
    %6580 = vmatpush1.bf16.msra.mxu0 %v6467
    %6581 = vmatprep.subr.bf16.mxu0 %v6466
    %6582 = vmatpush1.bf16.msra.mxu0 %v6465
    %6583 = vmatprep.subr.bf16.mxu0 %v6464
    %6584 = vmatpush1.bf16.msra.mxu0 %v6463
    %6585 = vmatprep.subr.bf16.mxu0 %v6462
    %6586 = vmatpush1.bf16.msra.mxu0 %v6461
    %6587 = vmatprep.subr.bf16.mxu0 %v6460
    %6588 = vmatpush1.bf16.msra.mxu0 %v6459
    %6589 = vmatprep.subr.bf16.mxu0 %v6458
    %6590 = vmatpush1.bf16.msra.mxu0 %v6457
    %6591 = vmatprep.subr.bf16.mxu0 %v6488
    %6592 = vmatpush2.bf16.msra.mxu0 %v6487
    %6593 = vmatprep.subr.bf16.mxu0 %v6486
    %6594 = vmatpush2.bf16.msra.mxu0 %v6485
    %6595 = vmatprep.subr.bf16.mxu0 %v6484
    %6596 = vmatpush2.bf16.msra.mxu0 %v6483
    %6597 = vmatprep.subr.bf16.mxu0 %v6482
    %6598 = vmatpush2.bf16.msra.mxu0 %v6481
    %6599 = vmatprep.subr.bf16.mxu0 %v6480
    %6600 = vmatpush2.bf16.msra.mxu0 %v6479
    %6601 = vmatprep.subr.bf16.mxu0 %v6478
    %6602 = vmatpush2.bf16.msra.mxu0 %v6477
    %6603 = vmatprep.subr.bf16.mxu0 %v6476
    %6604 = vmatpush2.bf16.msra.mxu0 %v6475
    %6605 = vmatprep.subr.bf16.mxu0 %v6474
    %6606 = vmatpush2.bf16.msra.mxu0 %v6473
    %6607 = vmatprep.mubr.bf16.mxu0 %v6276
    %6608 = vmatmul.mubr.bf16.gmra.mxu0 %v6275
    %v6609 = vpop.f32.mrf.mxu0
    %v6610 = vadd.f32 0.0, %v6609
    %v6611 = vpop.f32.mrf.mxu0
    %v6612 = vadd.f32 0.0, %v6611
    %v6613 = vpop.f32.mrf.mxu0
    %v6614 = vadd.f32 0.0, %v6613
    %v6615 = vpop.f32.mrf.mxu0
    %v6616 = vadd.f32 0.0, %v6615
    %6617 = vmatprep.mubr.bf16.mxu0 %v6280
    %6618 = vmatmul.mubr.bf16.gmra.mxu0 %v6279
    %v6619 = vpop.f32.mrf.mxu0
    %v6620 = vadd.f32 0.0, %v6619
    %v6621 = vpop.f32.mrf.mxu0
    %v6622 = vadd.f32 0.0, %v6621
    %v6623 = vpop.f32.mrf.mxu0
    %v6624 = vadd.f32 0.0, %v6623
    %v6625 = vpop.f32.mrf.mxu0
    %v6626 = vadd.f32 0.0, %v6625
    %6627 = vdwg.mxu0
    %6628 = vmatprep.subr.bf16.mxu0 %v6504
    %6629 = vmatpush1.bf16.msra.mxu0 %v6503
    %6630 = vmatprep.subr.bf16.mxu0 %v6502
    %6631 = vmatpush1.bf16.msra.mxu0 %v6501
    %6632 = vmatprep.subr.bf16.mxu0 %v6500
    %6633 = vmatpush1.bf16.msra.mxu0 %v6499
    %6634 = vmatprep.subr.bf16.mxu0 %v6498
    %6635 = vmatpush1.bf16.msra.mxu0 %v6497
    %6636 = vmatprep.subr.bf16.mxu0 %v6496
    %6637 = vmatpush1.bf16.msra.mxu0 %v6495
    %6638 = vmatprep.subr.bf16.mxu0 %v6494
    %6639 = vmatpush1.bf16.msra.mxu0 %v6493
    %6640 = vmatprep.subr.bf16.mxu0 %v6492
    %6641 = vmatpush1.bf16.msra.mxu0 %v6491
    %6642 = vmatprep.subr.bf16.mxu0 %v6490
    %6643 = vmatpush1.bf16.msra.mxu0 %v6489
    %6644 = vmatprep.subr.bf16.mxu0 0
    %6645 = vmatpush2.bf16.msra.mxu0 0
    %6646 = vmatprep.subr.bf16.mxu0 0
    %6647 = vmatpush2.bf16.msra.mxu0 0
    %6648 = vmatprep.subr.bf16.mxu0 0
    %6649 = vmatpush2.bf16.msra.mxu0 0
    %6650 = vmatprep.subr.bf16.mxu0 0
    %6651 = vmatpush2.bf16.msra.mxu0 0
    %6652 = vmatprep.subr.bf16.mxu0 %v6512
    %6653 = vmatpush2.bf16.msra.mxu0 %v6511
    %6654 = vmatprep.subr.bf16.mxu0 %v6510
    %6655 = vmatpush2.bf16.msra.mxu0 %v6509
    %6656 = vmatprep.subr.bf16.mxu0 %v6508
    %6657 = vmatpush2.bf16.msra.mxu0 %v6507
    %6658 = vmatprep.subr.bf16.mxu0 %v6506
    %6659 = vmatpush2.bf16.msra.mxu0 %v6505
    %6660 = vmatprep.mubr.bf16.mxu0 %v6570
    %6661 = vmatmul.mubr.bf16.gmra.mxu0 %v6277
    %v6662 = vpop.f32.mrf.mxu0
    %v6663 = vadd.f32 %v6610, %v6662
    %v6664 = vpop.f32.mrf.mxu0
    %v6665 = vadd.f32 %v6612, %v6664
    %v6666 = vpop.f32.mrf.mxu0
    %v6667 = vadd.f32 %v6614, %v6666
    %v6668 = vpop.f32.mrf.mxu0
    %v6669 = vadd.f32 %v6616, %v6668
    %6670 = vmatprep.mubr.bf16.mxu0 %v6573
    %6671 = vmatmul.mubr.bf16.gmra.mxu0 %v6281
    %v6672 = vpop.f32.mrf.mxu0
    %v6673 = vadd.f32 %v6620, %v6672
    %v6674 = vpop.f32.mrf.mxu0
    %v6675 = vadd.f32 %v6622, %v6674
    %v6676 = vpop.f32.mrf.mxu0
    %v6677 = vadd.f32 %v6624, %v6676
    %v6678 = vpop.f32.mrf.mxu0
    %v6679 = vadd.f32 %v6626, %v6678
    %6680 = vdwg.mxu0
    %s6681 = scalar_lea.vmem %s5, 896
    %v6682 = vld [vmem:[%s6681] sm:$0xff]
    %v6683 = vld [vmem:[%s6681 + $0x8] sm:$0xff]
    %v6684 = vld [vmem:[%s6681 + $0x10] sm:$0xff]
    %v6685 = vld [vmem:[%s6681 + $0x18] sm:$0xff]
    %v6686 = vld [vmem:[%s6681 + $0x20] sm:$0xff]
    %v6687 = vld [vmem:[%s6681 + $0x28] sm:$0xff]
    %v6688 = vld [vmem:[%s6681 + $0x30] sm:$0xff]
    %v6689 = vld [vmem:[%s6681 + $0x38] sm:$0xff]
    %v6690 = vld [vmem:[%s6681 + $0x40] sm:$0xff]
    %v6691 = vld [vmem:[%s6681 + $0x48] sm:$0xff]
    %v6692 = vld [vmem:[%s6681 + $0x50] sm:$0xff]
    %v6693 = vld [vmem:[%s6681 + $0x58] sm:$0xff]
    %v6694 = vld [vmem:[%s6681 + $0x60] sm:$0xff]
    %v6695 = vld [vmem:[%s6681 + $0x68] sm:$0xff]
    %v6696 = vld [vmem:[%s6681 + $0x70] sm:$0xff]
    %v6697 = vld [vmem:[%s6681 + $0x78] sm:$0xff]
    %v6698 = vld [vmem:[%s6681 + $0x80] sm:$0xff]
    %v6699 = vld [vmem:[%s6681 + $0x88] sm:$0xff]
    %v6700 = vld [vmem:[%s6681 + $0x90] sm:$0xff]
    %v6701 = vld [vmem:[%s6681 + $0x98] sm:$0xff]
    %v6702 = vld [vmem:[%s6681 + $0xa0] sm:$0xff]
    %v6703 = vld [vmem:[%s6681 + $0xa8] sm:$0xff]
    %v6704 = vld [vmem:[%s6681 + $0xb0] sm:$0xff]
    %v6705 = vld [vmem:[%s6681 + $0xb8] sm:$0xff]
    %v6706 = vld [vmem:[%s6681 + $0xc0] sm:$0xff]
    %v6707 = vld [vmem:[%s6681 + $0xc8] sm:$0xff]
    %v6708 = vld [vmem:[%s6681 + $0xd0] sm:$0xff]
    %v6709 = vld [vmem:[%s6681 + $0xd8] sm:$0xff]
    %v6710 = vld [vmem:[%s6681 + $0xe0] sm:$0xff]
    %v6711 = vld [vmem:[%s6681 + $0xe8] sm:$0xff]
    %v6712 = vld [vmem:[%s6681 + $0xf0] sm:$0xff]
    %v6713 = vld [vmem:[%s6681 + $0xf8] sm:$0xff]
    %v6714 = vld [vmem:[%s6681 + $0x100] sm:$0xff]
    %v6715 = vld [vmem:[%s6681 + $0x108] sm:$0xff]
    %v6716 = vld [vmem:[%s6681 + $0x110] sm:$0xff]
    %v6717 = vld [vmem:[%s6681 + $0x118] sm:$0xff]
    %v6718 = vld [vmem:[%s6681 + $0x120] sm:$0xff]
    %v6719 = vld [vmem:[%s6681 + $0x128] sm:$0xff]
    %v6720 = vld [vmem:[%s6681 + $0x130] sm:$0xff]
    %v6721 = vld [vmem:[%s6681 + $0x138] sm:$0xff]
    %v6722 = vld [vmem:[%s6681 + $0x140] sm:$0xff]
    %v6723 = vld [vmem:[%s6681 + $0x148] sm:$0xff]
    %v6724 = vld [vmem:[%s6681 + $0x150] sm:$0xff]
    %v6725 = vld [vmem:[%s6681 + $0x158] sm:$0xff]
    %v6726 = vld [vmem:[%s6681 + $0x160] sm:$0xff]
    %v6727 = vld [vmem:[%s6681 + $0x168] sm:$0xff]
    %v6728 = vld [vmem:[%s6681 + $0x170] sm:$0xff]
    %v6729 = vld [vmem:[%s6681 + $0x178] sm:$0xff]
    %v6730 = vld [vmem:[%s6681 + $0x180] sm:$0xff]
    %v6731 = vld [vmem:[%s6681 + $0x188] sm:$0xff]
    %v6732 = vld [vmem:[%s6681 + $0x190] sm:$0xff]
    %v6733 = vld [vmem:[%s6681 + $0x198] sm:$0xff]
    %v6734 = vld [vmem:[%s6681 + $0x1a0] sm:$0xff]
    %v6735 = vld [vmem:[%s6681 + $0x1a8] sm:$0xff]
    %v6736 = vld [vmem:[%s6681 + $0x1b0] sm:$0xff]
    %v6737 = vld [vmem:[%s6681 + $0x1b8] sm:$0xff]
    %v6794 = vunpack.c.l.b16 %v6682
    %v6795 = vunpack.c.h.b16 %v6682
    %v6796 = vunpack.c.l.b16 %v6683
    %v6797 = vunpack.c.h.b16 %v6683
    %v6798 = vunpack.c.l.b16 %v6684
    %v6799 = vunpack.c.h.b16 %v6684
    %v6800 = vunpack.c.l.b16 %v6685
    %v6801 = vunpack.c.h.b16 %v6685
    %v6802 = vunpack.c.l.b16 %v6686
    %v6803 = vunpack.c.h.b16 %v6686
    %v6804 = vunpack.c.l.b16 %v6687
    %v6805 = vunpack.c.h.b16 %v6687
    %v6806 = vunpack.c.l.b16 %v6688
    %v6807 = vunpack.c.h.b16 %v6688
    %v6808 = vunpack.c.l.b16 %v6689
    %v6809 = vunpack.c.h.b16 %v6689
    %v6810 = vunpack.c.l.b16 %v6690
    %v6811 = vunpack.c.h.b16 %v6690
    %v6812 = vunpack.c.l.b16 %v6691
    %v6813 = vunpack.c.h.b16 %v6691
    %v6814 = vunpack.c.l.b16 %v6692
    %v6815 = vunpack.c.h.b16 %v6692
    %v6816 = vunpack.c.l.b16 %v6693
    %v6817 = vunpack.c.h.b16 %v6693
    %v6818 = vunpack.c.l.b16 %v6694
    %v6819 = vunpack.c.h.b16 %v6694
    %v6820 = vunpack.c.l.b16 %v6695
    %v6821 = vunpack.c.h.b16 %v6695
    %v6822 = vunpack.c.l.b16 %v6696
    %v6823 = vunpack.c.h.b16 %v6696
    %v6824 = vunpack.c.l.b16 %v6697
    %v6825 = vunpack.c.h.b16 %v6697
    %v6826 = vunpack.c.l.b16 %v6698
    %v6827 = vunpack.c.h.b16 %v6698
    %v6828 = vunpack.c.l.b16 %v6699
    %v6829 = vunpack.c.h.b16 %v6699
    %v6830 = vunpack.c.l.b16 %v6700
    %v6831 = vunpack.c.h.b16 %v6700
    %v6832 = vunpack.c.l.b16 %v6701
    %v6833 = vunpack.c.h.b16 %v6701
    %v6834 = vunpack.c.l.b16 %v6702
    %v6835 = vunpack.c.h.b16 %v6702
    %v6836 = vunpack.c.l.b16 %v6703
    %v6837 = vunpack.c.h.b16 %v6703
    %v6838 = vunpack.c.l.b16 %v6704
    %v6839 = vunpack.c.h.b16 %v6704
    %v6840 = vunpack.c.l.b16 %v6705
    %v6841 = vunpack.c.h.b16 %v6705
    %v6842 = vunpack.c.l.b16 %v6706
    %v6843 = vunpack.c.h.b16 %v6706
    %v6844 = vunpack.c.l.b16 %v6707
    %v6845 = vunpack.c.h.b16 %v6707
    %v6846 = vunpack.c.l.b16 %v6708
    %v6847 = vunpack.c.h.b16 %v6708
    %v6848 = vunpack.c.l.b16 %v6709
    %v6849 = vunpack.c.h.b16 %v6709
    %v6850 = vunpack.c.l.b16 %v6710
    %v6851 = vunpack.c.h.b16 %v6710
    %v6852 = vunpack.c.l.b16 %v6711
    %v6853 = vunpack.c.h.b16 %v6711
    %v6854 = vunpack.c.l.b16 %v6712
    %v6855 = vunpack.c.h.b16 %v6712
    %v6856 = vunpack.c.l.b16 %v6713
    %v6857 = vunpack.c.h.b16 %v6713
    %v6858 = vunpack.c.l.b16 %v6714
    %v6859 = vunpack.c.h.b16 %v6714
    %v6860 = vunpack.c.l.b16 %v6715
    %v6861 = vunpack.c.h.b16 %v6715
    %v6862 = vunpack.c.l.b16 %v6716
    %v6863 = vunpack.c.h.b16 %v6716
    %v6864 = vunpack.c.l.b16 %v6717
    %v6865 = vunpack.c.h.b16 %v6717
    %v6866 = vunpack.c.l.b16 %v6718
    %v6867 = vunpack.c.h.b16 %v6718
    %v6868 = vunpack.c.l.b16 %v6719
    %v6869 = vunpack.c.h.b16 %v6719
    %v6870 = vunpack.c.l.b16 %v6720
    %v6871 = vunpack.c.h.b16 %v6720
    %v6872 = vunpack.c.l.b16 %v6721
    %v6873 = vunpack.c.h.b16 %v6721
    %v6874 = vunpack.c.l.b16 %v6722
    %v6875 = vunpack.c.h.b16 %v6722
    %v6876 = vunpack.c.l.b16 %v6723
    %v6877 = vunpack.c.h.b16 %v6723
    %v6878 = vunpack.c.l.b16 %v6724
    %v6879 = vunpack.c.h.b16 %v6724
    %v6880 = vunpack.c.l.b16 %v6725
    %v6881 = vunpack.c.h.b16 %v6725
    %v6882 = vunpack.c.l.b16 %v6726
    %v6883 = vunpack.c.h.b16 %v6726
    %v6884 = vunpack.c.l.b16 %v6727
    %v6885 = vunpack.c.h.b16 %v6727
    %v6886 = vunpack.c.l.b16 %v6728
    %v6887 = vunpack.c.h.b16 %v6728
    %v6888 = vunpack.c.l.b16 %v6729
    %v6889 = vunpack.c.h.b16 %v6729
    %v6890 = vunpack.c.l.b16 %v6730
    %v6891 = vunpack.c.h.b16 %v6730
    %v6892 = vunpack.c.l.b16 %v6731
    %v6893 = vunpack.c.h.b16 %v6731
    %v6894 = vunpack.c.l.b16 %v6732
    %v6895 = vunpack.c.h.b16 %v6732
    %v6896 = vunpack.c.l.b16 %v6733
    %v6897 = vunpack.c.h.b16 %v6733
    %v6898 = vunpack.c.l.b16 %v6734
    %v6899 = vunpack.c.h.b16 %v6734
    %v6900 = vunpack.c.l.b16 %v6735
    %v6901 = vunpack.c.h.b16 %v6735
    %v6902 = vunpack.c.l.b16 %v6736
    %v6903 = vunpack.c.h.b16 %v6736
    %v6904 = vunpack.c.l.b16 %v6737
    %v6905 = vunpack.c.h.b16 %v6737
    %v6906 = vpack.c.b16 %v6796, %v6794
    %v6907 = vpack.c.b16 %v6797, %v6795
    %v6908 = vpack.c.b16 %v6800, %v6798
    %v6909 = vpack.c.b16 %v6801, %v6799
    %v6910 = vpack.c.b16 %v6804, %v6802
    %v6911 = vpack.c.b16 %v6805, %v6803
    %v6912 = vpack.c.b16 %v6808, %v6806
    %v6913 = vpack.c.b16 %v6809, %v6807
    %v6914 = vpack.c.b16 %v6812, %v6810
    %v6915 = vpack.c.b16 %v6813, %v6811
    %v6916 = vpack.c.b16 %v6816, %v6814
    %v6917 = vpack.c.b16 %v6817, %v6815
    %v6918 = vpack.c.b16 %v6820, %v6818
    %v6919 = vpack.c.b16 %v6821, %v6819
    %v6920 = vpack.c.b16 %v6824, %v6822
    %v6921 = vpack.c.b16 %v6825, %v6823
    %v6922 = vpack.c.b16 %v6828, %v6826
    %v6923 = vpack.c.b16 %v6829, %v6827
    %v6924 = vpack.c.b16 %v6832, %v6830
    %v6925 = vpack.c.b16 %v6833, %v6831
    %v6926 = vpack.c.b16 %v6836, %v6834
    %v6927 = vpack.c.b16 %v6837, %v6835
    %v6928 = vpack.c.b16 %v6840, %v6838
    %v6929 = vpack.c.b16 %v6841, %v6839
    %v6930 = vpack.c.b16 %v6844, %v6842
    %v6931 = vpack.c.b16 %v6845, %v6843
    %v6932 = vpack.c.b16 %v6848, %v6846
    %v6933 = vpack.c.b16 %v6849, %v6847
    %v6934 = vpack.c.b16 %v6852, %v6850
    %v6935 = vpack.c.b16 %v6853, %v6851
    %v6936 = vpack.c.b16 %v6856, %v6854
    %v6937 = vpack.c.b16 %v6857, %v6855
    %v6938 = vpack.c.b16 %v6860, %v6858
    %v6939 = vpack.c.b16 %v6861, %v6859
    %v6940 = vpack.c.b16 %v6864, %v6862
    %v6941 = vpack.c.b16 %v6865, %v6863
    %v6942 = vpack.c.b16 %v6868, %v6866
    %v6943 = vpack.c.b16 %v6869, %v6867
    %v6944 = vpack.c.b16 %v6872, %v6870
    %v6945 = vpack.c.b16 %v6873, %v6871
    %v6946 = vpack.c.b16 %v6876, %v6874
    %v6947 = vpack.c.b16 %v6877, %v6875
    %v6948 = vpack.c.b16 %v6880, %v6878
    %v6949 = vpack.c.b16 %v6881, %v6879
    %v6950 = vpack.c.b16 %v6884, %v6882
    %v6951 = vpack.c.b16 %v6885, %v6883
    %v6952 = vpack.c.b16 %v6888, %v6886
    %v6953 = vpack.c.b16 %v6889, %v6887
    %v6954 = vpack.c.b16 %v6892, %v6890
    %v6955 = vpack.c.b16 %v6893, %v6891
    %v6956 = vpack.c.b16 %v6896, %v6894
    %v6957 = vpack.c.b16 %v6897, %v6895
    %v6958 = vpack.c.b16 %v6900, %v6898
    %v6959 = vpack.c.b16 %v6901, %v6899
    %v6960 = vpack.c.b16 %v6904, %v6902
    %v6961 = vpack.c.b16 %v6905, %v6903
    %7018 = vmatprep.subr.bf16.mxu0 %v6921
    %7019 = vmatpush1.bf16.msra.mxu0 %v6920
    %7020 = vmatprep.subr.bf16.mxu0 %v6919
    %7021 = vmatpush1.bf16.msra.mxu0 %v6918
    %7022 = vmatprep.subr.bf16.mxu0 %v6917
    %7023 = vmatpush1.bf16.msra.mxu0 %v6916
    %7024 = vmatprep.subr.bf16.mxu0 %v6915
    %7025 = vmatpush1.bf16.msra.mxu0 %v6914
    %7026 = vmatprep.subr.bf16.mxu0 %v6913
    %7027 = vmatpush1.bf16.msra.mxu0 %v6912
    %7028 = vmatprep.subr.bf16.mxu0 %v6911
    %7029 = vmatpush1.bf16.msra.mxu0 %v6910
    %7030 = vmatprep.subr.bf16.mxu0 %v6909
    %7031 = vmatpush1.bf16.msra.mxu0 %v6908
    %7032 = vmatprep.subr.bf16.mxu0 %v6907
    %7033 = vmatpush1.bf16.msra.mxu0 %v6906
    %7034 = vmatprep.subr.bf16.mxu0 %v6937
    %7035 = vmatpush2.bf16.msra.mxu0 %v6936
    %7036 = vmatprep.subr.bf16.mxu0 %v6935
    %7037 = vmatpush2.bf16.msra.mxu0 %v6934
    %7038 = vmatprep.subr.bf16.mxu0 %v6933
    %7039 = vmatpush2.bf16.msra.mxu0 %v6932
    %7040 = vmatprep.subr.bf16.mxu0 %v6931
    %7041 = vmatpush2.bf16.msra.mxu0 %v6930
    %7042 = vmatprep.subr.bf16.mxu0 %v6929
    %7043 = vmatpush2.bf16.msra.mxu0 %v6928
    %7044 = vmatprep.subr.bf16.mxu0 %v6927
    %7045 = vmatpush2.bf16.msra.mxu0 %v6926
    %7046 = vmatprep.subr.bf16.mxu0 %v6925
    %7047 = vmatpush2.bf16.msra.mxu0 %v6924
    %7048 = vmatprep.subr.bf16.mxu0 %v6923
    %7049 = vmatpush2.bf16.msra.mxu0 %v6922
    %7050 = vmatprep.mubr.bf16.mxu0 %v6276
    %7051 = vmatmul.mubr.bf16.gmra.mxu0 %v6275
    %v7052 = vpop.f32.mrf.mxu0
    %v7053 = vadd.f32 0.0, %v7052
    %v7054 = vpop.f32.mrf.mxu0
    %v7055 = vadd.f32 0.0, %v7054
    %v7056 = vpop.f32.mrf.mxu0
    %v7057 = vadd.f32 0.0, %v7056
    %v7058 = vpop.f32.mrf.mxu0
    %v7059 = vadd.f32 0.0, %v7058
    %7060 = vmatprep.mubr.bf16.mxu0 %v6280
    %7061 = vmatmul.mubr.bf16.gmra.mxu0 %v6279
    %v7062 = vpop.f32.mrf.mxu0
    %v7063 = vadd.f32 0.0, %v7062
    %v7064 = vpop.f32.mrf.mxu0
    %v7065 = vadd.f32 0.0, %v7064
    %v7066 = vpop.f32.mrf.mxu0
    %v7067 = vadd.f32 0.0, %v7066
    %v7068 = vpop.f32.mrf.mxu0
    %v7069 = vadd.f32 0.0, %v7068
    %7070 = vdwg.mxu0
    %7071 = vmatprep.subr.bf16.mxu0 %v6953
    %7072 = vmatpush1.bf16.msra.mxu0 %v6952
    %7073 = vmatprep.subr.bf16.mxu0 %v6951
    %7074 = vmatpush1.bf16.msra.mxu0 %v6950
    %7075 = vmatprep.subr.bf16.mxu0 %v6949
    %7076 = vmatpush1.bf16.msra.mxu0 %v6948
    %7077 = vmatprep.subr.bf16.mxu0 %v6947
    %7078 = vmatpush1.bf16.msra.mxu0 %v6946
    %7079 = vmatprep.subr.bf16.mxu0 %v6945
    %7080 = vmatpush1.bf16.msra.mxu0 %v6944
    %7081 = vmatprep.subr.bf16.mxu0 %v6943
    %7082 = vmatpush1.bf16.msra.mxu0 %v6942
    %7083 = vmatprep.subr.bf16.mxu0 %v6941
    %7084 = vmatpush1.bf16.msra.mxu0 %v6940
    %7085 = vmatprep.subr.bf16.mxu0 %v6939
    %7086 = vmatpush1.bf16.msra.mxu0 %v6938
    %7087 = vmatprep.subr.bf16.mxu0 0
    %7088 = vmatpush2.bf16.msra.mxu0 0
    %7089 = vmatprep.subr.bf16.mxu0 0
    %7090 = vmatpush2.bf16.msra.mxu0 0
    %7091 = vmatprep.subr.bf16.mxu0 0
    %7092 = vmatpush2.bf16.msra.mxu0 0
    %7093 = vmatprep.subr.bf16.mxu0 0
    %7094 = vmatpush2.bf16.msra.mxu0 0
    %7095 = vmatprep.subr.bf16.mxu0 %v6961
    %7096 = vmatpush2.bf16.msra.mxu0 %v6960
    %7097 = vmatprep.subr.bf16.mxu0 %v6959
    %7098 = vmatpush2.bf16.msra.mxu0 %v6958
    %7099 = vmatprep.subr.bf16.mxu0 %v6957
    %7100 = vmatpush2.bf16.msra.mxu0 %v6956
    %7101 = vmatprep.subr.bf16.mxu0 %v6955
    %7102 = vmatpush2.bf16.msra.mxu0 %v6954
    %7103 = vmatprep.mubr.bf16.mxu0 %v6570
    %7104 = vmatmul.mubr.bf16.gmra.mxu0 %v6277
    %v7105 = vpop.f32.mrf.mxu0
    %v7106 = vadd.f32 %v7053, %v7105
    %v7107 = vpop.f32.mrf.mxu0
    %v7108 = vadd.f32 %v7055, %v7107
    %v7109 = vpop.f32.mrf.mxu0
    %v7110 = vadd.f32 %v7057, %v7109
    %v7111 = vpop.f32.mrf.mxu0
    %v7112 = vadd.f32 %v7059, %v7111
    %7113 = vmatprep.mubr.bf16.mxu0 %v6573
    %7114 = vmatmul.mubr.bf16.gmra.mxu0 %v6281
    %v7115 = vpop.f32.mrf.mxu0
    %v7116 = vadd.f32 %v7063, %v7115
    %v7117 = vpop.f32.mrf.mxu0
    %v7118 = vadd.f32 %v7065, %v7117
    %v7119 = vpop.f32.mrf.mxu0
    %v7120 = vadd.f32 %v7067, %v7119
    %v7121 = vpop.f32.mrf.mxu0
    %v7122 = vadd.f32 %v7069, %v7121
    %7123 = vdwg.mxu0
    %v7124 = vadd.f32 %v5758, %v6663
    %v7125 = vadd.f32 %v5760, %v6665
    %v7126 = vadd.f32 %v5762, %v6667
    %v7127 = vadd.f32 %v5764, %v6669
    %v7128 = vadd.f32 %v5768, %v6673
    %v7129 = vadd.f32 %v5770, %v6675
    %v7130 = vadd.f32 %v5772, %v6677
    %v7131 = vadd.f32 %v5774, %v6679
    %v7132 = vadd.f32 %v6144, %v7106
    %v7133 = vadd.f32 %v6146, %v7108
    %v7134 = vadd.f32 %v6148, %v7110
    %v7135 = vadd.f32 %v6150, %v7112
    %v7136 = vadd.f32 %v6154, %v7116
    %v7137 = vadd.f32 %v6156, %v7118
    %v7138 = vadd.f32 %v6158, %v7120
    %v7139 = vadd.f32 %v6160, %v7122
    %v7140 = vld [vmem:[#allocation2 + $0x20] sm:$0x33]
    %v7141 = vld [vmem:[#allocation2 + $0x28] sm:$0x33]
    %v7142 = vld [vmem:[#allocation2 + $0x50] sm:$0x33]
    %v7143 = vld [vmem:[#allocation2 + $0x58] sm:$0x33]
    %v7145 = vshrl.u32 %v6162, 16
    %v7147 = vrot.slane %v7145, 5
    %v7148 = vshll.u32 %v6162, 16
    %v7150 = vrot.slane %v7148, 6
    %v7151 = vor.u32 %v7147, %v7150
    %v7152 = vrot.slane %v7151, 4
    %v7153 = vrot.slane %v4355, 5
    %v7154 = vrot.slane %v4337, 6
    %v7155 = vor.u32 %v7153, %v7154
    %v7156 = vsel %vm1493, %v7152, %v7155
    %v7158 = vshrl.u32 %v6163, 16
    %v7160 = vrot.slane %v7158, 5
    %v7161 = vshll.u32 %v6163, 16
    %v7163 = vrot.slane %v7161, 6
    %v7164 = vor.u32 %v7160, %v7163
    %v7165 = vrot.slane %v7164, 4
    %v7166 = vrot.slane %v4365, 5
    %v7167 = vrot.slane %v4351, 6
    %v7168 = vor.u32 %v7166, %v7167
    %v7169 = vsel %vm1493, %v7165, %v7168
    %v7170 = vrot.slane %v7155, 4
    %v7172 = vshrl.u32 %v7140, 16
    %v7174 = vrot.slane %v7172, 5
    %v7175 = vshll.u32 %v7140, 16
    %v7177 = vrot.slane %v7175, 6
    %v7178 = vor.u32 %v7174, %v7177
    %v7179 = vsel %vm1493, %v7170, %v7178
    %v7180 = vrot.slane %v7168, 4
    %v7182 = vshrl.u32 %v7141, 16
    %v7184 = vrot.slane %v7182, 5
    %v7185 = vshll.u32 %v7141, 16
    %v7187 = vrot.slane %v7185, 6
    %v7188 = vor.u32 %v7184, %v7187
    %v7189 = vsel %vm1493, %v7180, %v7188
    %v7191 = vshrl.u32 %v6164, 16
    %v7193 = vrot.slane %v7191, 5
    %v7194 = vshll.u32 %v6164, 16
    %v7196 = vrot.slane %v7194, 6
    %v7197 = vor.u32 %v7193, %v7196
    %v7198 = vrot.slane %v7197, 4
    %v7199 = vrot.slane %v4403, 5
    %v7200 = vrot.slane %v4385, 6
    %v7201 = vor.u32 %v7199, %v7200
    %v7202 = vsel %vm1493, %v7198, %v7201
    %v7204 = vshrl.u32 %v6165, 16
    %v7206 = vrot.slane %v7204, 5
    %v7207 = vshll.u32 %v6165, 16
    %v7209 = vrot.slane %v7207, 6
    %v7210 = vor.u32 %v7206, %v7209
    %v7211 = vrot.slane %v7210, 4
    %v7212 = vrot.slane %v4413, 5
    %v7213 = vrot.slane %v4399, 6
    %v7214 = vor.u32 %v7212, %v7213
    %v7215 = vsel %vm1493, %v7211, %v7214
    %v7216 = vrot.slane %v7201, 4
    %v7218 = vshrl.u32 %v7142, 16
    %v7220 = vrot.slane %v7218, 5
    %v7221 = vshll.u32 %v7142, 16
    %v7223 = vrot.slane %v7221, 6
    %v7224 = vor.u32 %v7220, %v7223
    %v7225 = vsel %vm1493, %v7216, %v7224
    %v7226 = vrot.slane %v7214, 4
    %v7228 = vshrl.u32 %v7143, 16
    %v7230 = vrot.slane %v7228, 5
    %v7231 = vshll.u32 %v7143, 16
    %v7233 = vrot.slane %v7231, 6
    %v7234 = vor.u32 %v7230, %v7233
    %v7235 = vsel %vm1493, %v7226, %v7234
    %s7236 = scalar_lea.vmem %s4, 1344
    %v7237 = vld [vmem:[%s7236] sm:$0xff]
    %v7238 = vld [vmem:[%s7236 + $0x8] sm:$0xff]
    %v7239 = vld [vmem:[%s7236 + $0x10] sm:$0xff]
    %v7240 = vld [vmem:[%s7236 + $0x18] sm:$0xff]
    %v7241 = vld [vmem:[%s7236 + $0x20] sm:$0xff]
    %v7242 = vld [vmem:[%s7236 + $0x28] sm:$0xff]
    %v7243 = vld [vmem:[%s7236 + $0x30] sm:$0xff]
    %v7244 = vld [vmem:[%s7236 + $0x38] sm:$0xff]
    %v7245 = vld [vmem:[%s7236 + $0x40] sm:$0xff]
    %v7246 = vld [vmem:[%s7236 + $0x48] sm:$0xff]
    %v7247 = vld [vmem:[%s7236 + $0x50] sm:$0xff]
    %v7248 = vld [vmem:[%s7236 + $0x58] sm:$0xff]
    %v7249 = vld [vmem:[%s7236 + $0x60] sm:$0xff]
    %v7250 = vld [vmem:[%s7236 + $0x68] sm:$0xff]
    %v7251 = vld [vmem:[%s7236 + $0x70] sm:$0xff]
    %v7252 = vld [vmem:[%s7236 + $0x78] sm:$0xff]
    %v7253 = vld [vmem:[%s7236 + $0x80] sm:$0xff]
    %v7254 = vld [vmem:[%s7236 + $0x88] sm:$0xff]
    %v7255 = vld [vmem:[%s7236 + $0x90] sm:$0xff]
    %v7256 = vld [vmem:[%s7236 + $0x98] sm:$0xff]
    %v7257 = vld [vmem:[%s7236 + $0xa0] sm:$0xff]
    %v7258 = vld [vmem:[%s7236 + $0xa8] sm:$0xff]
    %v7259 = vld [vmem:[%s7236 + $0xb0] sm:$0xff]
    %v7260 = vld [vmem:[%s7236 + $0xb8] sm:$0xff]
    %v7261 = vld [vmem:[%s7236 + $0xc0] sm:$0xff]
    %v7262 = vld [vmem:[%s7236 + $0xc8] sm:$0xff]
    %v7263 = vld [vmem:[%s7236 + $0xd0] sm:$0xff]
    %v7264 = vld [vmem:[%s7236 + $0xd8] sm:$0xff]
    %v7265 = vld [vmem:[%s7236 + $0xe0] sm:$0xff]
    %v7266 = vld [vmem:[%s7236 + $0xe8] sm:$0xff]
    %v7267 = vld [vmem:[%s7236 + $0xf0] sm:$0xff]
    %v7268 = vld [vmem:[%s7236 + $0xf8] sm:$0xff]
    %v7269 = vld [vmem:[%s7236 + $0x100] sm:$0xff]
    %v7270 = vld [vmem:[%s7236 + $0x108] sm:$0xff]
    %v7271 = vld [vmem:[%s7236 + $0x110] sm:$0xff]
    %v7272 = vld [vmem:[%s7236 + $0x118] sm:$0xff]
    %v7273 = vld [vmem:[%s7236 + $0x120] sm:$0xff]
    %v7274 = vld [vmem:[%s7236 + $0x128] sm:$0xff]
    %v7275 = vld [vmem:[%s7236 + $0x130] sm:$0xff]
    %v7276 = vld [vmem:[%s7236 + $0x138] sm:$0xff]
    %v7277 = vld [vmem:[%s7236 + $0x140] sm:$0xff]
    %v7278 = vld [vmem:[%s7236 + $0x148] sm:$0xff]
    %v7279 = vld [vmem:[%s7236 + $0x150] sm:$0xff]
    %v7280 = vld [vmem:[%s7236 + $0x158] sm:$0xff]
    %v7281 = vld [vmem:[%s7236 + $0x160] sm:$0xff]
    %v7282 = vld [vmem:[%s7236 + $0x168] sm:$0xff]
    %v7283 = vld [vmem:[%s7236 + $0x170] sm:$0xff]
    %v7284 = vld [vmem:[%s7236 + $0x178] sm:$0xff]
    %v7285 = vld [vmem:[%s7236 + $0x180] sm:$0xff]
    %v7286 = vld [vmem:[%s7236 + $0x188] sm:$0xff]
    %v7287 = vld [vmem:[%s7236 + $0x190] sm:$0xff]
    %v7288 = vld [vmem:[%s7236 + $0x198] sm:$0xff]
    %v7289 = vld [vmem:[%s7236 + $0x1a0] sm:$0xff]
    %v7290 = vld [vmem:[%s7236 + $0x1a8] sm:$0xff]
    %v7291 = vld [vmem:[%s7236 + $0x1b0] sm:$0xff]
    %v7292 = vld [vmem:[%s7236 + $0x1b8] sm:$0xff]
    %v7293 = vunpack.c.l.b16 %v7156
    %v7294 = vunpack.c.h.b16 %v7156
    %v7295 = vunpack.c.l.b16 %v7169
    %v7296 = vunpack.c.h.b16 %v7169
    %v7297 = vunpack.c.l.b16 %v7179
    %v7298 = vunpack.c.h.b16 %v7179
    %v7299 = vunpack.c.l.b16 %v7189
    %v7300 = vunpack.c.h.b16 %v7189
    %v7301 = vunpack.c.l.b16 %v7202
    %v7302 = vunpack.c.h.b16 %v7202
    %v7303 = vunpack.c.l.b16 %v7215
    %v7304 = vunpack.c.h.b16 %v7215
    %v7305 = vunpack.c.l.b16 %v7225
    %v7306 = vunpack.c.h.b16 %v7225
    %v7307 = vunpack.c.l.b16 %v7235
    %v7308 = vunpack.c.h.b16 %v7235
    %v7309 = vpack.c.b16 %v7297, %v7293
    %v7310 = vpack.c.b16 %v7298, %v7294
    %v7311 = vpack.c.b16 %v7299, %v7295
    %v7312 = vpack.c.b16 %v7300, %v7296
    %v7313 = vpack.c.b16 %v7305, %v7301
    %v7314 = vpack.c.b16 %v7306, %v7302
    %v7315 = vpack.c.b16 %v7307, %v7303
    %v7316 = vpack.c.b16 %v7308, %v7304
    %v7379 = vunpack.c.l.b16 %v7237
    %v7380 = vunpack.c.h.b16 %v7237
    %v7381 = vunpack.c.l.b16 %v7238
    %v7382 = vunpack.c.h.b16 %v7238
    %v7383 = vunpack.c.l.b16 %v7239
    %v7384 = vunpack.c.h.b16 %v7239
    %v7385 = vunpack.c.l.b16 %v7240
    %v7386 = vunpack.c.h.b16 %v7240
    %v7387 = vunpack.c.l.b16 %v7241
    %v7388 = vunpack.c.h.b16 %v7241
    %v7389 = vunpack.c.l.b16 %v7242
    %v7390 = vunpack.c.h.b16 %v7242
    %v7391 = vunpack.c.l.b16 %v7243
    %v7392 = vunpack.c.h.b16 %v7243
    %v7393 = vunpack.c.l.b16 %v7244
    %v7394 = vunpack.c.h.b16 %v7244
    %v7395 = vunpack.c.l.b16 %v7245
    %v7396 = vunpack.c.h.b16 %v7245
    %v7397 = vunpack.c.l.b16 %v7246
    %v7398 = vunpack.c.h.b16 %v7246
    %v7399 = vunpack.c.l.b16 %v7247
    %v7400 = vunpack.c.h.b16 %v7247
    %v7401 = vunpack.c.l.b16 %v7248
    %v7402 = vunpack.c.h.b16 %v7248
    %v7403 = vunpack.c.l.b16 %v7249
    %v7404 = vunpack.c.h.b16 %v7249
    %v7405 = vunpack.c.l.b16 %v7250
    %v7406 = vunpack.c.h.b16 %v7250
    %v7407 = vunpack.c.l.b16 %v7251
    %v7408 = vunpack.c.h.b16 %v7251
    %v7409 = vunpack.c.l.b16 %v7252
    %v7410 = vunpack.c.h.b16 %v7252
    %v7411 = vunpack.c.l.b16 %v7253
    %v7412 = vunpack.c.h.b16 %v7253
    %v7413 = vunpack.c.l.b16 %v7254
    %v7414 = vunpack.c.h.b16 %v7254
    %v7415 = vunpack.c.l.b16 %v7255
    %v7416 = vunpack.c.h.b16 %v7255
    %v7417 = vunpack.c.l.b16 %v7256
    %v7418 = vunpack.c.h.b16 %v7256
    %v7419 = vunpack.c.l.b16 %v7257
    %v7420 = vunpack.c.h.b16 %v7257
    %v7421 = vunpack.c.l.b16 %v7258
    %v7422 = vunpack.c.h.b16 %v7258
    %v7423 = vunpack.c.l.b16 %v7259
    %v7424 = vunpack.c.h.b16 %v7259
    %v7425 = vunpack.c.l.b16 %v7260
    %v7426 = vunpack.c.h.b16 %v7260
    %v7427 = vunpack.c.l.b16 %v7261
    %v7428 = vunpack.c.h.b16 %v7261
    %v7429 = vunpack.c.l.b16 %v7262
    %v7430 = vunpack.c.h.b16 %v7262
    %v7431 = vunpack.c.l.b16 %v7263
    %v7432 = vunpack.c.h.b16 %v7263
    %v7433 = vunpack.c.l.b16 %v7264
    %v7434 = vunpack.c.h.b16 %v7264
    %v7435 = vunpack.c.l.b16 %v7265
    %v7436 = vunpack.c.h.b16 %v7265
    %v7437 = vunpack.c.l.b16 %v7266
    %v7438 = vunpack.c.h.b16 %v7266
    %v7439 = vunpack.c.l.b16 %v7267
    %v7440 = vunpack.c.h.b16 %v7267
    %v7441 = vunpack.c.l.b16 %v7268
    %v7442 = vunpack.c.h.b16 %v7268
    %v7443 = vunpack.c.l.b16 %v7269
    %v7444 = vunpack.c.h.b16 %v7269
    %v7445 = vunpack.c.l.b16 %v7270
    %v7446 = vunpack.c.h.b16 %v7270
    %v7447 = vunpack.c.l.b16 %v7271
    %v7448 = vunpack.c.h.b16 %v7271
    %v7449 = vunpack.c.l.b16 %v7272
    %v7450 = vunpack.c.h.b16 %v7272
    %v7451 = vunpack.c.l.b16 %v7273
    %v7452 = vunpack.c.h.b16 %v7273
    %v7453 = vunpack.c.l.b16 %v7274
    %v7454 = vunpack.c.h.b16 %v7274
    %v7455 = vunpack.c.l.b16 %v7275
    %v7456 = vunpack.c.h.b16 %v7275
    %v7457 = vunpack.c.l.b16 %v7276
    %v7458 = vunpack.c.h.b16 %v7276
    %v7459 = vunpack.c.l.b16 %v7277
    %v7460 = vunpack.c.h.b16 %v7277
    %v7461 = vunpack.c.l.b16 %v7278
    %v7462 = vunpack.c.h.b16 %v7278
    %v7463 = vunpack.c.l.b16 %v7279
    %v7464 = vunpack.c.h.b16 %v7279
    %v7465 = vunpack.c.l.b16 %v7280
    %v7466 = vunpack.c.h.b16 %v7280
    %v7467 = vunpack.c.l.b16 %v7281
    %v7468 = vunpack.c.h.b16 %v7281
    %v7469 = vunpack.c.l.b16 %v7282
    %v7470 = vunpack.c.h.b16 %v7282
    %v7471 = vunpack.c.l.b16 %v7283
    %v7472 = vunpack.c.h.b16 %v7283
    %v7473 = vunpack.c.l.b16 %v7284
    %v7474 = vunpack.c.h.b16 %v7284
    %v7475 = vunpack.c.l.b16 %v7285
    %v7476 = vunpack.c.h.b16 %v7285
    %v7477 = vunpack.c.l.b16 %v7286
    %v7478 = vunpack.c.h.b16 %v7286
    %v7479 = vunpack.c.l.b16 %v7287
    %v7480 = vunpack.c.h.b16 %v7287
    %v7481 = vunpack.c.l.b16 %v7288
    %v7482 = vunpack.c.h.b16 %v7288
    %v7483 = vunpack.c.l.b16 %v7289
    %v7484 = vunpack.c.h.b16 %v7289
    %v7485 = vunpack.c.l.b16 %v7290
    %v7486 = vunpack.c.h.b16 %v7290
    %v7487 = vunpack.c.l.b16 %v7291
    %v7488 = vunpack.c.h.b16 %v7291
    %v7489 = vunpack.c.l.b16 %v7292
    %v7490 = vunpack.c.h.b16 %v7292
    %v7491 = vpack.c.b16 %v7381, %v7379
    %v7492 = vpack.c.b16 %v7382, %v7380
    %v7493 = vpack.c.b16 %v7385, %v7383
    %v7494 = vpack.c.b16 %v7386, %v7384
    %v7495 = vpack.c.b16 %v7389, %v7387
    %v7496 = vpack.c.b16 %v7390, %v7388
    %v7497 = vpack.c.b16 %v7393, %v7391
    %v7498 = vpack.c.b16 %v7394, %v7392
    %v7499 = vpack.c.b16 %v7397, %v7395
    %v7500 = vpack.c.b16 %v7398, %v7396
    %v7501 = vpack.c.b16 %v7401, %v7399
    %v7502 = vpack.c.b16 %v7402, %v7400
    %v7503 = vpack.c.b16 %v7405, %v7403
    %v7504 = vpack.c.b16 %v7406, %v7404
    %v7505 = vpack.c.b16 %v7409, %v7407
    %v7506 = vpack.c.b16 %v7410, %v7408
    %v7507 = vpack.c.b16 %v7413, %v7411
    %v7508 = vpack.c.b16 %v7414, %v7412
    %v7509 = vpack.c.b16 %v7417, %v7415
    %v7510 = vpack.c.b16 %v7418, %v7416
    %v7511 = vpack.c.b16 %v7421, %v7419
    %v7512 = vpack.c.b16 %v7422, %v7420
    %v7513 = vpack.c.b16 %v7425, %v7423
    %v7514 = vpack.c.b16 %v7426, %v7424
    %v7515 = vpack.c.b16 %v7429, %v7427
    %v7516 = vpack.c.b16 %v7430, %v7428
    %v7517 = vpack.c.b16 %v7433, %v7431
    %v7518 = vpack.c.b16 %v7434, %v7432
    %v7519 = vpack.c.b16 %v7437, %v7435
    %v7520 = vpack.c.b16 %v7438, %v7436
    %v7521 = vpack.c.b16 %v7441, %v7439
    %v7522 = vpack.c.b16 %v7442, %v7440
    %v7523 = vpack.c.b16 %v7445, %v7443
    %v7524 = vpack.c.b16 %v7446, %v7444
    %v7525 = vpack.c.b16 %v7449, %v7447
    %v7526 = vpack.c.b16 %v7450, %v7448
    %v7527 = vpack.c.b16 %v7453, %v7451
    %v7528 = vpack.c.b16 %v7454, %v7452
    %v7529 = vpack.c.b16 %v7457, %v7455
    %v7530 = vpack.c.b16 %v7458, %v7456
    %v7531 = vpack.c.b16 %v7461, %v7459
    %v7532 = vpack.c.b16 %v7462, %v7460
    %v7533 = vpack.c.b16 %v7465, %v7463
    %v7534 = vpack.c.b16 %v7466, %v7464
    %v7535 = vpack.c.b16 %v7469, %v7467
    %v7536 = vpack.c.b16 %v7470, %v7468
    %v7537 = vpack.c.b16 %v7473, %v7471
    %v7538 = vpack.c.b16 %v7474, %v7472
    %v7539 = vpack.c.b16 %v7477, %v7475
    %v7540 = vpack.c.b16 %v7478, %v7476
    %v7541 = vpack.c.b16 %v7481, %v7479
    %v7542 = vpack.c.b16 %v7482, %v7480
    %v7543 = vpack.c.b16 %v7485, %v7483
    %v7544 = vpack.c.b16 %v7486, %v7484
    %v7545 = vpack.c.b16 %v7489, %v7487
    %v7546 = vpack.c.b16 %v7490, %v7488
    %v7604 = vsel %vm4790, %v7312, 0
    %v7607 = vsel %vm4790, %v7316, 0
    %7609 = vmatprep.subr.bf16.mxu0 %v7506
    %7610 = vmatpush1.bf16.msra.mxu0 %v7505
    %7611 = vmatprep.subr.bf16.mxu0 %v7504
    %7612 = vmatpush1.bf16.msra.mxu0 %v7503
    %7613 = vmatprep.subr.bf16.mxu0 %v7502
    %7614 = vmatpush1.bf16.msra.mxu0 %v7501
    %7615 = vmatprep.subr.bf16.mxu0 %v7500
    %7616 = vmatpush1.bf16.msra.mxu0 %v7499
    %7617 = vmatprep.subr.bf16.mxu0 %v7498
    %7618 = vmatpush1.bf16.msra.mxu0 %v7497
    %7619 = vmatprep.subr.bf16.mxu0 %v7496
    %7620 = vmatpush1.bf16.msra.mxu0 %v7495
    %7621 = vmatprep.subr.bf16.mxu0 %v7494
    %7622 = vmatpush1.bf16.msra.mxu0 %v7493
    %7623 = vmatprep.subr.bf16.mxu0 %v7492
    %7624 = vmatpush1.bf16.msra.mxu0 %v7491
    %7625 = vmatprep.subr.bf16.mxu0 %v7522
    %7626 = vmatpush2.bf16.msra.mxu0 %v7521
    %7627 = vmatprep.subr.bf16.mxu0 %v7520
    %7628 = vmatpush2.bf16.msra.mxu0 %v7519
    %7629 = vmatprep.subr.bf16.mxu0 %v7518
    %7630 = vmatpush2.bf16.msra.mxu0 %v7517
    %7631 = vmatprep.subr.bf16.mxu0 %v7516
    %7632 = vmatpush2.bf16.msra.mxu0 %v7515
    %7633 = vmatprep.subr.bf16.mxu0 %v7514
    %7634 = vmatpush2.bf16.msra.mxu0 %v7513
    %7635 = vmatprep.subr.bf16.mxu0 %v7512
    %7636 = vmatpush2.bf16.msra.mxu0 %v7511
    %7637 = vmatprep.subr.bf16.mxu0 %v7510
    %7638 = vmatpush2.bf16.msra.mxu0 %v7509
    %7639 = vmatprep.subr.bf16.mxu0 %v7508
    %7640 = vmatpush2.bf16.msra.mxu0 %v7507
    %7641 = vmatprep.mubr.bf16.mxu0 %v7310
    %7642 = vmatmul.mubr.bf16.gmra.mxu0 %v7309
    %v7643 = vpop.f32.mrf.mxu0
    %v7644 = vadd.f32 0.0, %v7643
    %v7645 = vpop.f32.mrf.mxu0
    %v7646 = vadd.f32 0.0, %v7645
    %v7647 = vpop.f32.mrf.mxu0
    %v7648 = vadd.f32 0.0, %v7647
    %v7649 = vpop.f32.mrf.mxu0
    %v7650 = vadd.f32 0.0, %v7649
    %7651 = vmatprep.mubr.bf16.mxu0 %v7314
    %7652 = vmatmul.mubr.bf16.gmra.mxu0 %v7313
    %v7653 = vpop.f32.mrf.mxu0
    %v7654 = vadd.f32 0.0, %v7653
    %v7655 = vpop.f32.mrf.mxu0
    %v7656 = vadd.f32 0.0, %v7655
    %v7657 = vpop.f32.mrf.mxu0
    %v7658 = vadd.f32 0.0, %v7657
    %v7659 = vpop.f32.mrf.mxu0
    %v7660 = vadd.f32 0.0, %v7659
    %7661 = vdwg.mxu0
    %7662 = vmatprep.subr.bf16.mxu0 %v7538
    %7663 = vmatpush1.bf16.msra.mxu0 %v7537
    %7664 = vmatprep.subr.bf16.mxu0 %v7536
    %7665 = vmatpush1.bf16.msra.mxu0 %v7535
    %7666 = vmatprep.subr.bf16.mxu0 %v7534
    %7667 = vmatpush1.bf16.msra.mxu0 %v7533
    %7668 = vmatprep.subr.bf16.mxu0 %v7532
    %7669 = vmatpush1.bf16.msra.mxu0 %v7531
    %7670 = vmatprep.subr.bf16.mxu0 %v7530
    %7671 = vmatpush1.bf16.msra.mxu0 %v7529
    %7672 = vmatprep.subr.bf16.mxu0 %v7528
    %7673 = vmatpush1.bf16.msra.mxu0 %v7527
    %7674 = vmatprep.subr.bf16.mxu0 %v7526
    %7675 = vmatpush1.bf16.msra.mxu0 %v7525
    %7676 = vmatprep.subr.bf16.mxu0 %v7524
    %7677 = vmatpush1.bf16.msra.mxu0 %v7523
    %7678 = vmatprep.subr.bf16.mxu0 0
    %7679 = vmatpush2.bf16.msra.mxu0 0
    %7680 = vmatprep.subr.bf16.mxu0 0
    %7681 = vmatpush2.bf16.msra.mxu0 0
    %7682 = vmatprep.subr.bf16.mxu0 0
    %7683 = vmatpush2.bf16.msra.mxu0 0
    %7684 = vmatprep.subr.bf16.mxu0 0
    %7685 = vmatpush2.bf16.msra.mxu0 0
    %7686 = vmatprep.subr.bf16.mxu0 %v7546
    %7687 = vmatpush2.bf16.msra.mxu0 %v7545
    %7688 = vmatprep.subr.bf16.mxu0 %v7544
    %7689 = vmatpush2.bf16.msra.mxu0 %v7543
    %7690 = vmatprep.subr.bf16.mxu0 %v7542
    %7691 = vmatpush2.bf16.msra.mxu0 %v7541
    %7692 = vmatprep.subr.bf16.mxu0 %v7540
    %7693 = vmatpush2.bf16.msra.mxu0 %v7539
    %7694 = vmatprep.mubr.bf16.mxu0 %v7604
    %7695 = vmatmul.mubr.bf16.gmra.mxu0 %v7311
    %v7696 = vpop.f32.mrf.mxu0
    %v7697 = vadd.f32 %v7644, %v7696
    %v7698 = vpop.f32.mrf.mxu0
    %v7699 = vadd.f32 %v7646, %v7698
    %v7700 = vpop.f32.mrf.mxu0
    %v7701 = vadd.f32 %v7648, %v7700
    %v7702 = vpop.f32.mrf.mxu0
    %v7703 = vadd.f32 %v7650, %v7702
    %7704 = vmatprep.mubr.bf16.mxu0 %v7607
    %7705 = vmatmul.mubr.bf16.gmra.mxu0 %v7315
    %v7706 = vpop.f32.mrf.mxu0
    %v7707 = vadd.f32 %v7654, %v7706
    %v7708 = vpop.f32.mrf.mxu0
    %v7709 = vadd.f32 %v7656, %v7708
    %v7710 = vpop.f32.mrf.mxu0
    %v7711 = vadd.f32 %v7658, %v7710
    %v7712 = vpop.f32.mrf.mxu0
    %v7713 = vadd.f32 %v7660, %v7712
    %7714 = vdwg.mxu0
    %s7715 = scalar_lea.vmem %s5, 1344
    %v7716 = vld [vmem:[%s7715] sm:$0xff]
    %v7717 = vld [vmem:[%s7715 + $0x8] sm:$0xff]
    %v7718 = vld [vmem:[%s7715 + $0x10] sm:$0xff]
    %v7719 = vld [vmem:[%s7715 + $0x18] sm:$0xff]
    %v7720 = vld [vmem:[%s7715 + $0x20] sm:$0xff]
    %v7721 = vld [vmem:[%s7715 + $0x28] sm:$0xff]
    %v7722 = vld [vmem:[%s7715 + $0x30] sm:$0xff]
    %v7723 = vld [vmem:[%s7715 + $0x38] sm:$0xff]
    %v7724 = vld [vmem:[%s7715 + $0x40] sm:$0xff]
    %v7725 = vld [vmem:[%s7715 + $0x48] sm:$0xff]
    %v7726 = vld [vmem:[%s7715 + $0x50] sm:$0xff]
    %v7727 = vld [vmem:[%s7715 + $0x58] sm:$0xff]
    %v7728 = vld [vmem:[%s7715 + $0x60] sm:$0xff]
    %v7729 = vld [vmem:[%s7715 + $0x68] sm:$0xff]
    %v7730 = vld [vmem:[%s7715 + $0x70] sm:$0xff]
    %v7731 = vld [vmem:[%s7715 + $0x78] sm:$0xff]
    %v7732 = vld [vmem:[%s7715 + $0x80] sm:$0xff]
    %v7733 = vld [vmem:[%s7715 + $0x88] sm:$0xff]
    %v7734 = vld [vmem:[%s7715 + $0x90] sm:$0xff]
    %v7735 = vld [vmem:[%s7715 + $0x98] sm:$0xff]
    %v7736 = vld [vmem:[%s7715 + $0xa0] sm:$0xff]
    %v7737 = vld [vmem:[%s7715 + $0xa8] sm:$0xff]
    %v7738 = vld [vmem:[%s7715 + $0xb0] sm:$0xff]
    %v7739 = vld [vmem:[%s7715 + $0xb8] sm:$0xff]
    %v7740 = vld [vmem:[%s7715 + $0xc0] sm:$0xff]
    %v7741 = vld [vmem:[%s7715 + $0xc8] sm:$0xff]
    %v7742 = vld [vmem:[%s7715 + $0xd0] sm:$0xff]
    %v7743 = vld [vmem:[%s7715 + $0xd8] sm:$0xff]
    %v7744 = vld [vmem:[%s7715 + $0xe0] sm:$0xff]
    %v7745 = vld [vmem:[%s7715 + $0xe8] sm:$0xff]
    %v7746 = vld [vmem:[%s7715 + $0xf0] sm:$0xff]
    %v7747 = vld [vmem:[%s7715 + $0xf8] sm:$0xff]
    %v7748 = vld [vmem:[%s7715 + $0x100] sm:$0xff]
    %v7749 = vld [vmem:[%s7715 + $0x108] sm:$0xff]
    %v7750 = vld [vmem:[%s7715 + $0x110] sm:$0xff]
    %v7751 = vld [vmem:[%s7715 + $0x118] sm:$0xff]
    %v7752 = vld [vmem:[%s7715 + $0x120] sm:$0xff]
    %v7753 = vld [vmem:[%s7715 + $0x128] sm:$0xff]
    %v7754 = vld [vmem:[%s7715 + $0x130] sm:$0xff]
    %v7755 = vld [vmem:[%s7715 + $0x138] sm:$0xff]
    %v7756 = vld [vmem:[%s7715 + $0x140] sm:$0xff]
    %v7757 = vld [vmem:[%s7715 + $0x148] sm:$0xff]
    %v7758 = vld [vmem:[%s7715 + $0x150] sm:$0xff]
    %v7759 = vld [vmem:[%s7715 + $0x158] sm:$0xff]
    %v7760 = vld [vmem:[%s7715 + $0x160] sm:$0xff]
    %v7761 = vld [vmem:[%s7715 + $0x168] sm:$0xff]
    %v7762 = vld [vmem:[%s7715 + $0x170] sm:$0xff]
    %v7763 = vld [vmem:[%s7715 + $0x178] sm:$0xff]
    %v7764 = vld [vmem:[%s7715 + $0x180] sm:$0xff]
    %v7765 = vld [vmem:[%s7715 + $0x188] sm:$0xff]
    %v7766 = vld [vmem:[%s7715 + $0x190] sm:$0xff]
    %v7767 = vld [vmem:[%s7715 + $0x198] sm:$0xff]
    %v7768 = vld [vmem:[%s7715 + $0x1a0] sm:$0xff]
    %v7769 = vld [vmem:[%s7715 + $0x1a8] sm:$0xff]
    %v7770 = vld [vmem:[%s7715 + $0x1b0] sm:$0xff]
    %v7771 = vld [vmem:[%s7715 + $0x1b8] sm:$0xff]
    %v7828 = vunpack.c.l.b16 %v7716
    %v7829 = vunpack.c.h.b16 %v7716
    %v7830 = vunpack.c.l.b16 %v7717
    %v7831 = vunpack.c.h.b16 %v7717
    %v7832 = vunpack.c.l.b16 %v7718
    %v7833 = vunpack.c.h.b16 %v7718
    %v7834 = vunpack.c.l.b16 %v7719
    %v7835 = vunpack.c.h.b16 %v7719
    %v7836 = vunpack.c.l.b16 %v7720
    %v7837 = vunpack.c.h.b16 %v7720
    %v7838 = vunpack.c.l.b16 %v7721
    %v7839 = vunpack.c.h.b16 %v7721
    %v7840 = vunpack.c.l.b16 %v7722
    %v7841 = vunpack.c.h.b16 %v7722
    %v7842 = vunpack.c.l.b16 %v7723
    %v7843 = vunpack.c.h.b16 %v7723
    %v7844 = vunpack.c.l.b16 %v7724
    %v7845 = vunpack.c.h.b16 %v7724
    %v7846 = vunpack.c.l.b16 %v7725
    %v7847 = vunpack.c.h.b16 %v7725
    %v7848 = vunpack.c.l.b16 %v7726
    %v7849 = vunpack.c.h.b16 %v7726
    %v7850 = vunpack.c.l.b16 %v7727
    %v7851 = vunpack.c.h.b16 %v7727
    %v7852 = vunpack.c.l.b16 %v7728
    %v7853 = vunpack.c.h.b16 %v7728
    %v7854 = vunpack.c.l.b16 %v7729
    %v7855 = vunpack.c.h.b16 %v7729
    %v7856 = vunpack.c.l.b16 %v7730
    %v7857 = vunpack.c.h.b16 %v7730
    %v7858 = vunpack.c.l.b16 %v7731
    %v7859 = vunpack.c.h.b16 %v7731
    %v7860 = vunpack.c.l.b16 %v7732
    %v7861 = vunpack.c.h.b16 %v7732
    %v7862 = vunpack.c.l.b16 %v7733
    %v7863 = vunpack.c.h.b16 %v7733
    %v7864 = vunpack.c.l.b16 %v7734
    %v7865 = vunpack.c.h.b16 %v7734
    %v7866 = vunpack.c.l.b16 %v7735
    %v7867 = vunpack.c.h.b16 %v7735
    %v7868 = vunpack.c.l.b16 %v7736
    %v7869 = vunpack.c.h.b16 %v7736
    %v7870 = vunpack.c.l.b16 %v7737
    %v7871 = vunpack.c.h.b16 %v7737
    %v7872 = vunpack.c.l.b16 %v7738
    %v7873 = vunpack.c.h.b16 %v7738
    %v7874 = vunpack.c.l.b16 %v7739
    %v7875 = vunpack.c.h.b16 %v7739
    %v7876 = vunpack.c.l.b16 %v7740
    %v7877 = vunpack.c.h.b16 %v7740
    %v7878 = vunpack.c.l.b16 %v7741
    %v7879 = vunpack.c.h.b16 %v7741
    %v7880 = vunpack.c.l.b16 %v7742
    %v7881 = vunpack.c.h.b16 %v7742
    %v7882 = vunpack.c.l.b16 %v7743
    %v7883 = vunpack.c.h.b16 %v7743
    %v7884 = vunpack.c.l.b16 %v7744
    %v7885 = vunpack.c.h.b16 %v7744
    %v7886 = vunpack.c.l.b16 %v7745
    %v7887 = vunpack.c.h.b16 %v7745
    %v7888 = vunpack.c.l.b16 %v7746
    %v7889 = vunpack.c.h.b16 %v7746
    %v7890 = vunpack.c.l.b16 %v7747
    %v7891 = vunpack.c.h.b16 %v7747
    %v7892 = vunpack.c.l.b16 %v7748
    %v7893 = vunpack.c.h.b16 %v7748
    %v7894 = vunpack.c.l.b16 %v7749
    %v7895 = vunpack.c.h.b16 %v7749
    %v7896 = vunpack.c.l.b16 %v7750
    %v7897 = vunpack.c.h.b16 %v7750
    %v7898 = vunpack.c.l.b16 %v7751
    %v7899 = vunpack.c.h.b16 %v7751
    %v7900 = vunpack.c.l.b16 %v7752
    %v7901 = vunpack.c.h.b16 %v7752
    %v7902 = vunpack.c.l.b16 %v7753
    %v7903 = vunpack.c.h.b16 %v7753
    %v7904 = vunpack.c.l.b16 %v7754
    %v7905 = vunpack.c.h.b16 %v7754
    %v7906 = vunpack.c.l.b16 %v7755
    %v7907 = vunpack.c.h.b16 %v7755
    %v7908 = vunpack.c.l.b16 %v7756
    %v7909 = vunpack.c.h.b16 %v7756
    %v7910 = vunpack.c.l.b16 %v7757
    %v7911 = vunpack.c.h.b16 %v7757
    %v7912 = vunpack.c.l.b16 %v7758
    %v7913 = vunpack.c.h.b16 %v7758
    %v7914 = vunpack.c.l.b16 %v7759
    %v7915 = vunpack.c.h.b16 %v7759
    %v7916 = vunpack.c.l.b16 %v7760
    %v7917 = vunpack.c.h.b16 %v7760
    %v7918 = vunpack.c.l.b16 %v7761
    %v7919 = vunpack.c.h.b16 %v7761
    %v7920 = vunpack.c.l.b16 %v7762
    %v7921 = vunpack.c.h.b16 %v7762
    %v7922 = vunpack.c.l.b16 %v7763
    %v7923 = vunpack.c.h.b16 %v7763
    %v7924 = vunpack.c.l.b16 %v7764
    %v7925 = vunpack.c.h.b16 %v7764
    %v7926 = vunpack.c.l.b16 %v7765
    %v7927 = vunpack.c.h.b16 %v7765
    %v7928 = vunpack.c.l.b16 %v7766
    %v7929 = vunpack.c.h.b16 %v7766
    %v7930 = vunpack.c.l.b16 %v7767
    %v7931 = vunpack.c.h.b16 %v7767
    %v7932 = vunpack.c.l.b16 %v7768
    %v7933 = vunpack.c.h.b16 %v7768
    %v7934 = vunpack.c.l.b16 %v7769
    %v7935 = vunpack.c.h.b16 %v7769
    %v7936 = vunpack.c.l.b16 %v7770
    %v7937 = vunpack.c.h.b16 %v7770
    %v7938 = vunpack.c.l.b16 %v7771
    %v7939 = vunpack.c.h.b16 %v7771
    %v7940 = vpack.c.b16 %v7830, %v7828
    %v7941 = vpack.c.b16 %v7831, %v7829
    %v7942 = vpack.c.b16 %v7834, %v7832
    %v7943 = vpack.c.b16 %v7835, %v7833
    %v7944 = vpack.c.b16 %v7838, %v7836
    %v7945 = vpack.c.b16 %v7839, %v7837
    %v7946 = vpack.c.b16 %v7842, %v7840
    %v7947 = vpack.c.b16 %v7843, %v7841
    %v7948 = vpack.c.b16 %v7846, %v7844
    %v7949 = vpack.c.b16 %v7847, %v7845
    %v7950 = vpack.c.b16 %v7850, %v7848
    %v7951 = vpack.c.b16 %v7851, %v7849
    %v7952 = vpack.c.b16 %v7854, %v7852
    %v7953 = vpack.c.b16 %v7855, %v7853
    %v7954 = vpack.c.b16 %v7858, %v7856
    %v7955 = vpack.c.b16 %v7859, %v7857
    %v7956 = vpack.c.b16 %v7862, %v7860
    %v7957 = vpack.c.b16 %v7863, %v7861
    %v7958 = vpack.c.b16 %v7866, %v7864
    %v7959 = vpack.c.b16 %v7867, %v7865
    %v7960 = vpack.c.b16 %v7870, %v7868
    %v7961 = vpack.c.b16 %v7871, %v7869
    %v7962 = vpack.c.b16 %v7874, %v7872
    %v7963 = vpack.c.b16 %v7875, %v7873
    %v7964 = vpack.c.b16 %v7878, %v7876
    %v7965 = vpack.c.b16 %v7879, %v7877
    %v7966 = vpack.c.b16 %v7882, %v7880
    %v7967 = vpack.c.b16 %v7883, %v7881
    %v7968 = vpack.c.b16 %v7886, %v7884
    %v7969 = vpack.c.b16 %v7887, %v7885
    %v7970 = vpack.c.b16 %v7890, %v7888
    %v7971 = vpack.c.b16 %v7891, %v7889
    %v7972 = vpack.c.b16 %v7894, %v7892
    %v7973 = vpack.c.b16 %v7895, %v7893
    %v7974 = vpack.c.b16 %v7898, %v7896
    %v7975 = vpack.c.b16 %v7899, %v7897
    %v7976 = vpack.c.b16 %v7902, %v7900
    %v7977 = vpack.c.b16 %v7903, %v7901
    %v7978 = vpack.c.b16 %v7906, %v7904
    %v7979 = vpack.c.b16 %v7907, %v7905
    %v7980 = vpack.c.b16 %v7910, %v7908
    %v7981 = vpack.c.b16 %v7911, %v7909
    %v7982 = vpack.c.b16 %v7914, %v7912
    %v7983 = vpack.c.b16 %v7915, %v7913
    %v7984 = vpack.c.b16 %v7918, %v7916
    %v7985 = vpack.c.b16 %v7919, %v7917
    %v7986 = vpack.c.b16 %v7922, %v7920
    %v7987 = vpack.c.b16 %v7923, %v7921
    %v7988 = vpack.c.b16 %v7926, %v7924
    %v7989 = vpack.c.b16 %v7927, %v7925
    %v7990 = vpack.c.b16 %v7930, %v7928
    %v7991 = vpack.c.b16 %v7931, %v7929
    %v7992 = vpack.c.b16 %v7934, %v7932
    %v7993 = vpack.c.b16 %v7935, %v7933
    %v7994 = vpack.c.b16 %v7938, %v7936
    %v7995 = vpack.c.b16 %v7939, %v7937
    %8052 = vmatprep.subr.bf16.mxu0 %v7955
    %8053 = vmatpush1.bf16.msra.mxu0 %v7954
    %8054 = vmatprep.subr.bf16.mxu0 %v7953
    %8055 = vmatpush1.bf16.msra.mxu0 %v7952
    %8056 = vmatprep.subr.bf16.mxu0 %v7951
    %8057 = vmatpush1.bf16.msra.mxu0 %v7950
    %8058 = vmatprep.subr.bf16.mxu0 %v7949
    %8059 = vmatpush1.bf16.msra.mxu0 %v7948
    %8060 = vmatprep.subr.bf16.mxu0 %v7947
    %8061 = vmatpush1.bf16.msra.mxu0 %v7946
    %8062 = vmatprep.subr.bf16.mxu0 %v7945
    %8063 = vmatpush1.bf16.msra.mxu0 %v7944
    %8064 = vmatprep.subr.bf16.mxu0 %v7943
    %8065 = vmatpush1.bf16.msra.mxu0 %v7942
    %8066 = vmatprep.subr.bf16.mxu0 %v7941
    %8067 = vmatpush1.bf16.msra.mxu0 %v7940
    %8068 = vmatprep.subr.bf16.mxu0 %v7971
    %8069 = vmatpush2.bf16.msra.mxu0 %v7970
    %8070 = vmatprep.subr.bf16.mxu0 %v7969
    %8071 = vmatpush2.bf16.msra.mxu0 %v7968
    %8072 = vmatprep.subr.bf16.mxu0 %v7967
    %8073 = vmatpush2.bf16.msra.mxu0 %v7966
    %8074 = vmatprep.subr.bf16.mxu0 %v7965
    %8075 = vmatpush2.bf16.msra.mxu0 %v7964
    %8076 = vmatprep.subr.bf16.mxu0 %v7963
    %8077 = vmatpush2.bf16.msra.mxu0 %v7962
    %8078 = vmatprep.subr.bf16.mxu0 %v7961
    %8079 = vmatpush2.bf16.msra.mxu0 %v7960
    %8080 = vmatprep.subr.bf16.mxu0 %v7959
    %8081 = vmatpush2.bf16.msra.mxu0 %v7958
    %8082 = vmatprep.subr.bf16.mxu0 %v7957
    %8083 = vmatpush2.bf16.msra.mxu0 %v7956
    %8084 = vmatprep.mubr.bf16.mxu0 %v7310
    %8085 = vmatmul.mubr.bf16.gmra.mxu0 %v7309
    %v8086 = vpop.f32.mrf.mxu0
    %v8087 = vadd.f32 0.0, %v8086
    %v8088 = vpop.f32.mrf.mxu0
    %v8089 = vadd.f32 0.0, %v8088
    %v8090 = vpop.f32.mrf.mxu0
    %v8091 = vadd.f32 0.0, %v8090
    %v8092 = vpop.f32.mrf.mxu0
    %v8093 = vadd.f32 0.0, %v8092
    %8094 = vmatprep.mubr.bf16.mxu0 %v7314
    %8095 = vmatmul.mubr.bf16.gmra.mxu0 %v7313
    %v8096 = vpop.f32.mrf.mxu0
    %v8097 = vadd.f32 0.0, %v8096
    %v8098 = vpop.f32.mrf.mxu0
    %v8099 = vadd.f32 0.0, %v8098
    %v8100 = vpop.f32.mrf.mxu0
    %v8101 = vadd.f32 0.0, %v8100
    %v8102 = vpop.f32.mrf.mxu0
    %v8103 = vadd.f32 0.0, %v8102
    %8104 = vdwg.mxu0
    %8105 = vmatprep.subr.bf16.mxu0 %v7987
    %8106 = vmatpush1.bf16.msra.mxu0 %v7986
    %8107 = vmatprep.subr.bf16.mxu0 %v7985
    %8108 = vmatpush1.bf16.msra.mxu0 %v7984
    %8109 = vmatprep.subr.bf16.mxu0 %v7983
    %8110 = vmatpush1.bf16.msra.mxu0 %v7982
    %8111 = vmatprep.subr.bf16.mxu0 %v7981
    %8112 = vmatpush1.bf16.msra.mxu0 %v7980
    %8113 = vmatprep.subr.bf16.mxu0 %v7979
    %8114 = vmatpush1.bf16.msra.mxu0 %v7978
    %8115 = vmatprep.subr.bf16.mxu0 %v7977
    %8116 = vmatpush1.bf16.msra.mxu0 %v7976
    %8117 = vmatprep.subr.bf16.mxu0 %v7975
    %8118 = vmatpush1.bf16.msra.mxu0 %v7974
    %8119 = vmatprep.subr.bf16.mxu0 %v7973
    %8120 = vmatpush1.bf16.msra.mxu0 %v7972
    %8121 = vmatprep.subr.bf16.mxu0 0
    %8122 = vmatpush2.bf16.msra.mxu0 0
    %8123 = vmatprep.subr.bf16.mxu0 0
    %8124 = vmatpush2.bf16.msra.mxu0 0
    %8125 = vmatprep.subr.bf16.mxu0 0
    %8126 = vmatpush2.bf16.msra.mxu0 0
    %8127 = vmatprep.subr.bf16.mxu0 0
    %8128 = vmatpush2.bf16.msra.mxu0 0
    %8129 = vmatprep.subr.bf16.mxu0 %v7995
    %8130 = vmatpush2.bf16.msra.mxu0 %v7994
    %8131 = vmatprep.subr.bf16.mxu0 %v7993
    %8132 = vmatpush2.bf16.msra.mxu0 %v7992
    %8133 = vmatprep.subr.bf16.mxu0 %v7991
    %8134 = vmatpush2.bf16.msra.mxu0 %v7990
    %8135 = vmatprep.subr.bf16.mxu0 %v7989
    %8136 = vmatpush2.bf16.msra.mxu0 %v7988
    %8137 = vmatprep.mubr.bf16.mxu0 %v7604
    %8138 = vmatmul.mubr.bf16.gmra.mxu0 %v7311
    %v8139 = vpop.f32.mrf.mxu0
    %v8140 = vadd.f32 %v8087, %v8139
    %v8141 = vpop.f32.mrf.mxu0
    %v8142 = vadd.f32 %v8089, %v8141
    %v8143 = vpop.f32.mrf.mxu0
    %v8144 = vadd.f32 %v8091, %v8143
    %v8145 = vpop.f32.mrf.mxu0
    %v8146 = vadd.f32 %v8093, %v8145
    %8147 = vmatprep.mubr.bf16.mxu0 %v7607
    %8148 = vmatmul.mubr.bf16.gmra.mxu0 %v7315
    %v8149 = vpop.f32.mrf.mxu0
    %v8150 = vadd.f32 %v8097, %v8149
    %v8151 = vpop.f32.mrf.mxu0
    %v8152 = vadd.f32 %v8099, %v8151
    %v8153 = vpop.f32.mrf.mxu0
    %v8154 = vadd.f32 %v8101, %v8153
    %v8155 = vpop.f32.mrf.mxu0
    %v8156 = vadd.f32 %v8103, %v8155
    %8157 = vdwg.mxu0
    %v8158 = vadd.f32 %v7124, %v7697
    %v8159 = vadd.f32 %v7125, %v7699
    %v8160 = vadd.f32 %v7126, %v7701
    %v8161 = vadd.f32 %v7127, %v7703
    %v8162 = vadd.f32 %v7128, %v7707
    %v8163 = vadd.f32 %v7129, %v7709
    %v8164 = vadd.f32 %v7130, %v7711
    %v8165 = vadd.f32 %v7131, %v7713
    %v8166 = vadd.f32 %v7132, %v8140
    %v8167 = vadd.f32 %v7133, %v8142
    %v8168 = vadd.f32 %v7134, %v8144
    %v8169 = vadd.f32 %v7135, %v8146
    %v8170 = vadd.f32 %v7136, %v8150
    %v8171 = vadd.f32 %v7137, %v8152
    %v8172 = vadd.f32 %v7138, %v8154
    %v8173 = vadd.f32 %v7139, %v8156
    %v8174 = vld [vmem:[#allocation2] sm:$0xcc]
    %v8175 = vld [vmem:[#allocation2 + $0x8] sm:$0xcc]
    %v8176 = vld [vmem:[#allocation2 + $0x30] sm:$0xcc]
    %v8177 = vld [vmem:[#allocation2 + $0x38] sm:$0xcc]
    %v8186 = vrot.slane %v8174, 6
    %v8187 = vrot.slane %v8186, 4
    %v8188 = vrot.slane %v4205, 6
    %v8189 = vsel %vm2046, %v8187, %v8188
    %v8190 = vrot.slane %v8175, 6
    %v8191 = vrot.slane %v8190, 4
    %v8192 = vrot.slane %v4206, 6
    %v8193 = vsel %vm2046, %v8191, %v8192
    %v8194 = vrot.slane %v8188, 4
    %v8195 = vrot.slane %v7140, 6
    %v8196 = vsel %vm2046, %v8194, %v8195
    %v8197 = vrot.slane %v8192, 4
    %v8198 = vrot.slane %v7141, 6
    %v8199 = vsel %vm2046, %v8197, %v8198
    %v8200 = vrot.slane %v8176, 6
    %v8201 = vrot.slane %v8200, 4
    %v8202 = vrot.slane %v4209, 6
    %v8203 = vsel %vm2046, %v8201, %v8202
    %v8204 = vrot.slane %v8177, 6
    %v8205 = vrot.slane %v8204, 4
    %v8206 = vrot.slane %v4210, 6
    %v8207 = vsel %vm2046, %v8205, %v8206
    %v8208 = vrot.slane %v8202, 4
    %v8209 = vrot.slane %v7142, 6
    %v8210 = vsel %vm2046, %v8208, %v8209
    %v8211 = vrot.slane %v8206, 4
    %v8212 = vrot.slane %v7143, 6
    %v8213 = vsel %vm2046, %v8211, %v8212
    %s8214 = scalar_lea.vmem %s4, 1792
    %v8215 = vld [vmem:[%s8214] sm:$0xff]
    %v8216 = vld [vmem:[%s8214 + $0x8] sm:$0xff]
    %v8217 = vld [vmem:[%s8214 + $0x10] sm:$0xff]
    %v8218 = vld [vmem:[%s8214 + $0x18] sm:$0xff]
    %v8219 = vld [vmem:[%s8214 + $0x20] sm:$0xff]
    %v8220 = vld [vmem:[%s8214 + $0x28] sm:$0xff]
    %v8221 = vld [vmem:[%s8214 + $0x30] sm:$0xff]
    %v8222 = vld [vmem:[%s8214 + $0x38] sm:$0xff]
    %v8223 = vld [vmem:[%s8214 + $0x40] sm:$0xff]
    %v8224 = vld [vmem:[%s8214 + $0x48] sm:$0xff]
    %v8225 = vld [vmem:[%s8214 + $0x50] sm:$0xff]
    %v8226 = vld [vmem:[%s8214 + $0x58] sm:$0xff]
    %v8227 = vld [vmem:[%s8214 + $0x60] sm:$0xff]
    %v8228 = vld [vmem:[%s8214 + $0x68] sm:$0xff]
    %v8229 = vld [vmem:[%s8214 + $0x70] sm:$0xff]
    %v8230 = vld [vmem:[%s8214 + $0x78] sm:$0xff]
    %v8231 = vld [vmem:[%s8214 + $0x80] sm:$0xff]
    %v8232 = vld [vmem:[%s8214 + $0x88] sm:$0xff]
    %v8233 = vld [vmem:[%s8214 + $0x90] sm:$0xff]
    %v8234 = vld [vmem:[%s8214 + $0x98] sm:$0xff]
    %v8235 = vld [vmem:[%s8214 + $0xa0] sm:$0xff]
    %v8236 = vld [vmem:[%s8214 + $0xa8] sm:$0xff]
    %v8237 = vld [vmem:[%s8214 + $0xb0] sm:$0xff]
    %v8238 = vld [vmem:[%s8214 + $0xb8] sm:$0xff]
    %v8239 = vld [vmem:[%s8214 + $0xc0] sm:$0xff]
    %v8240 = vld [vmem:[%s8214 + $0xc8] sm:$0xff]
    %v8241 = vld [vmem:[%s8214 + $0xd0] sm:$0xff]
    %v8242 = vld [vmem:[%s8214 + $0xd8] sm:$0xff]
    %v8243 = vld [vmem:[%s8214 + $0xe0] sm:$0xff]
    %v8244 = vld [vmem:[%s8214 + $0xe8] sm:$0xff]
    %v8245 = vld [vmem:[%s8214 + $0xf0] sm:$0xff]
    %v8246 = vld [vmem:[%s8214 + $0xf8] sm:$0xff]
    %v8247 = vld [vmem:[%s8214 + $0x100] sm:$0xff]
    %v8248 = vld [vmem:[%s8214 + $0x108] sm:$0xff]
    %v8249 = vld [vmem:[%s8214 + $0x110] sm:$0xff]
    %v8250 = vld [vmem:[%s8214 + $0x118] sm:$0xff]
    %v8251 = vld [vmem:[%s8214 + $0x120] sm:$0xff]
    %v8252 = vld [vmem:[%s8214 + $0x128] sm:$0xff]
    %v8253 = vld [vmem:[%s8214 + $0x130] sm:$0xff]
    %v8254 = vld [vmem:[%s8214 + $0x138] sm:$0xff]
    %v8255 = vld [vmem:[%s8214 + $0x140] sm:$0xff]
    %v8256 = vld [vmem:[%s8214 + $0x148] sm:$0xff]
    %v8257 = vld [vmem:[%s8214 + $0x150] sm:$0xff]
    %v8258 = vld [vmem:[%s8214 + $0x158] sm:$0xff]
    %v8259 = vld [vmem:[%s8214 + $0x160] sm:$0xff]
    %v8260 = vld [vmem:[%s8214 + $0x168] sm:$0xff]
    %v8261 = vld [vmem:[%s8214 + $0x170] sm:$0xff]
    %v8262 = vld [vmem:[%s8214 + $0x178] sm:$0xff]
    %v8263 = vld [vmem:[%s8214 + $0x180] sm:$0xff]
    %v8264 = vld [vmem:[%s8214 + $0x188] sm:$0xff]
    %v8265 = vld [vmem:[%s8214 + $0x190] sm:$0xff]
    %v8266 = vld [vmem:[%s8214 + $0x198] sm:$0xff]
    %v8267 = vld [vmem:[%s8214 + $0x1a0] sm:$0xff]
    %v8268 = vld [vmem:[%s8214 + $0x1a8] sm:$0xff]
    %v8269 = vld [vmem:[%s8214 + $0x1b0] sm:$0xff]
    %v8270 = vld [vmem:[%s8214 + $0x1b8] sm:$0xff]
    %v8271 = vunpack.c.l.b16 %v8189
    %v8272 = vunpack.c.h.b16 %v8189
    %v8273 = vunpack.c.l.b16 %v8193
    %v8274 = vunpack.c.h.b16 %v8193
    %v8275 = vunpack.c.l.b16 %v8196
    %v8276 = vunpack.c.h.b16 %v8196
    %v8277 = vunpack.c.l.b16 %v8199
    %v8278 = vunpack.c.h.b16 %v8199
    %v8279 = vunpack.c.l.b16 %v8203
    %v8280 = vunpack.c.h.b16 %v8203
    %v8281 = vunpack.c.l.b16 %v8207
    %v8282 = vunpack.c.h.b16 %v8207
    %v8283 = vunpack.c.l.b16 %v8210
    %v8284 = vunpack.c.h.b16 %v8210
    %v8285 = vunpack.c.l.b16 %v8213
    %v8286 = vunpack.c.h.b16 %v8213
    %v8287 = vpack.c.b16 %v8275, %v8271
    %v8288 = vpack.c.b16 %v8276, %v8272
    %v8289 = vpack.c.b16 %v8277, %v8273
    %v8290 = vpack.c.b16 %v8278, %v8274
    %v8291 = vpack.c.b16 %v8283, %v8279
    %v8292 = vpack.c.b16 %v8284, %v8280
    %v8293 = vpack.c.b16 %v8285, %v8281
    %v8294 = vpack.c.b16 %v8286, %v8282
    %v8357 = vunpack.c.l.b16 %v8215
    %v8358 = vunpack.c.h.b16 %v8215
    %v8359 = vunpack.c.l.b16 %v8216
    %v8360 = vunpack.c.h.b16 %v8216
    %v8361 = vunpack.c.l.b16 %v8217
    %v8362 = vunpack.c.h.b16 %v8217
    %v8363 = vunpack.c.l.b16 %v8218
    %v8364 = vunpack.c.h.b16 %v8218
    %v8365 = vunpack.c.l.b16 %v8219
    %v8366 = vunpack.c.h.b16 %v8219
    %v8367 = vunpack.c.l.b16 %v8220
    %v8368 = vunpack.c.h.b16 %v8220
    %v8369 = vunpack.c.l.b16 %v8221
    %v8370 = vunpack.c.h.b16 %v8221
    %v8371 = vunpack.c.l.b16 %v8222
    %v8372 = vunpack.c.h.b16 %v8222
    %v8373 = vunpack.c.l.b16 %v8223
    %v8374 = vunpack.c.h.b16 %v8223
    %v8375 = vunpack.c.l.b16 %v8224
    %v8376 = vunpack.c.h.b16 %v8224
    %v8377 = vunpack.c.l.b16 %v8225
    %v8378 = vunpack.c.h.b16 %v8225
    %v8379 = vunpack.c.l.b16 %v8226
    %v8380 = vunpack.c.h.b16 %v8226
    %v8381 = vunpack.c.l.b16 %v8227
    %v8382 = vunpack.c.h.b16 %v8227
    %v8383 = vunpack.c.l.b16 %v8228
    %v8384 = vunpack.c.h.b16 %v8228
    %v8385 = vunpack.c.l.b16 %v8229
    %v8386 = vunpack.c.h.b16 %v8229
    %v8387 = vunpack.c.l.b16 %v8230
    %v8388 = vunpack.c.h.b16 %v8230
    %v8389 = vunpack.c.l.b16 %v8231
    %v8390 = vunpack.c.h.b16 %v8231
    %v8391 = vunpack.c.l.b16 %v8232
    %v8392 = vunpack.c.h.b16 %v8232
    %v8393 = vunpack.c.l.b16 %v8233
    %v8394 = vunpack.c.h.b16 %v8233
    %v8395 = vunpack.c.l.b16 %v8234
    %v8396 = vunpack.c.h.b16 %v8234
    %v8397 = vunpack.c.l.b16 %v8235
    %v8398 = vunpack.c.h.b16 %v8235
    %v8399 = vunpack.c.l.b16 %v8236
    %v8400 = vunpack.c.h.b16 %v8236
    %v8401 = vunpack.c.l.b16 %v8237
    %v8402 = vunpack.c.h.b16 %v8237
    %v8403 = vunpack.c.l.b16 %v8238
    %v8404 = vunpack.c.h.b16 %v8238
    %v8405 = vunpack.c.l.b16 %v8239
    %v8406 = vunpack.c.h.b16 %v8239
    %v8407 = vunpack.c.l.b16 %v8240
    %v8408 = vunpack.c.h.b16 %v8240
    %v8409 = vunpack.c.l.b16 %v8241
    %v8410 = vunpack.c.h.b16 %v8241
    %v8411 = vunpack.c.l.b16 %v8242
    %v8412 = vunpack.c.h.b16 %v8242
    %v8413 = vunpack.c.l.b16 %v8243
    %v8414 = vunpack.c.h.b16 %v8243
    %v8415 = vunpack.c.l.b16 %v8244
    %v8416 = vunpack.c.h.b16 %v8244
    %v8417 = vunpack.c.l.b16 %v8245
    %v8418 = vunpack.c.h.b16 %v8245
    %v8419 = vunpack.c.l.b16 %v8246
    %v8420 = vunpack.c.h.b16 %v8246
    %v8421 = vunpack.c.l.b16 %v8247
    %v8422 = vunpack.c.h.b16 %v8247
    %v8423 = vunpack.c.l.b16 %v8248
    %v8424 = vunpack.c.h.b16 %v8248
    %v8425 = vunpack.c.l.b16 %v8249
    %v8426 = vunpack.c.h.b16 %v8249
    %v8427 = vunpack.c.l.b16 %v8250
    %v8428 = vunpack.c.h.b16 %v8250
    %v8429 = vunpack.c.l.b16 %v8251
    %v8430 = vunpack.c.h.b16 %v8251
    %v8431 = vunpack.c.l.b16 %v8252
    %v8432 = vunpack.c.h.b16 %v8252
    %v8433 = vunpack.c.l.b16 %v8253
    %v8434 = vunpack.c.h.b16 %v8253
    %v8435 = vunpack.c.l.b16 %v8254
    %v8436 = vunpack.c.h.b16 %v8254
    %v8437 = vunpack.c.l.b16 %v8255
    %v8438 = vunpack.c.h.b16 %v8255
    %v8439 = vunpack.c.l.b16 %v8256
    %v8440 = vunpack.c.h.b16 %v8256
    %v8441 = vunpack.c.l.b16 %v8257
    %v8442 = vunpack.c.h.b16 %v8257
    %v8443 = vunpack.c.l.b16 %v8258
    %v8444 = vunpack.c.h.b16 %v8258
    %v8445 = vunpack.c.l.b16 %v8259
    %v8446 = vunpack.c.h.b16 %v8259
    %v8447 = vunpack.c.l.b16 %v8260
    %v8448 = vunpack.c.h.b16 %v8260
    %v8449 = vunpack.c.l.b16 %v8261
    %v8450 = vunpack.c.h.b16 %v8261
    %v8451 = vunpack.c.l.b16 %v8262
    %v8452 = vunpack.c.h.b16 %v8262
    %v8453 = vunpack.c.l.b16 %v8263
    %v8454 = vunpack.c.h.b16 %v8263
    %v8455 = vunpack.c.l.b16 %v8264
    %v8456 = vunpack.c.h.b16 %v8264
    %v8457 = vunpack.c.l.b16 %v8265
    %v8458 = vunpack.c.h.b16 %v8265
    %v8459 = vunpack.c.l.b16 %v8266
    %v8460 = vunpack.c.h.b16 %v8266
    %v8461 = vunpack.c.l.b16 %v8267
    %v8462 = vunpack.c.h.b16 %v8267
    %v8463 = vunpack.c.l.b16 %v8268
    %v8464 = vunpack.c.h.b16 %v8268
    %v8465 = vunpack.c.l.b16 %v8269
    %v8466 = vunpack.c.h.b16 %v8269
    %v8467 = vunpack.c.l.b16 %v8270
    %v8468 = vunpack.c.h.b16 %v8270
    %v8469 = vpack.c.b16 %v8359, %v8357
    %v8470 = vpack.c.b16 %v8360, %v8358
    %v8471 = vpack.c.b16 %v8363, %v8361
    %v8472 = vpack.c.b16 %v8364, %v8362
    %v8473 = vpack.c.b16 %v8367, %v8365
    %v8474 = vpack.c.b16 %v8368, %v8366
    %v8475 = vpack.c.b16 %v8371, %v8369
    %v8476 = vpack.c.b16 %v8372, %v8370
    %v8477 = vpack.c.b16 %v8375, %v8373
    %v8478 = vpack.c.b16 %v8376, %v8374
    %v8479 = vpack.c.b16 %v8379, %v8377
    %v8480 = vpack.c.b16 %v8380, %v8378
    %v8481 = vpack.c.b16 %v8383, %v8381
    %v8482 = vpack.c.b16 %v8384, %v8382
    %v8483 = vpack.c.b16 %v8387, %v8385
    %v8484 = vpack.c.b16 %v8388, %v8386
    %v8485 = vpack.c.b16 %v8391, %v8389
    %v8486 = vpack.c.b16 %v8392, %v8390
    %v8487 = vpack.c.b16 %v8395, %v8393
    %v8488 = vpack.c.b16 %v8396, %v8394
    %v8489 = vpack.c.b16 %v8399, %v8397
    %v8490 = vpack.c.b16 %v8400, %v8398
    %v8491 = vpack.c.b16 %v8403, %v8401
    %v8492 = vpack.c.b16 %v8404, %v8402
    %v8493 = vpack.c.b16 %v8407, %v8405
    %v8494 = vpack.c.b16 %v8408, %v8406
    %v8495 = vpack.c.b16 %v8411, %v8409
    %v8496 = vpack.c.b16 %v8412, %v8410
    %v8497 = vpack.c.b16 %v8415, %v8413
    %v8498 = vpack.c.b16 %v8416, %v8414
    %v8499 = vpack.c.b16 %v8419, %v8417
    %v8500 = vpack.c.b16 %v8420, %v8418
    %v8501 = vpack.c.b16 %v8423, %v8421
    %v8502 = vpack.c.b16 %v8424, %v8422
    %v8503 = vpack.c.b16 %v8427, %v8425
    %v8504 = vpack.c.b16 %v8428, %v8426
    %v8505 = vpack.c.b16 %v8431, %v8429
    %v8506 = vpack.c.b16 %v8432, %v8430
    %v8507 = vpack.c.b16 %v8435, %v8433
    %v8508 = vpack.c.b16 %v8436, %v8434
    %v8509 = vpack.c.b16 %v8439, %v8437
    %v8510 = vpack.c.b16 %v8440, %v8438
    %v8511 = vpack.c.b16 %v8443, %v8441
    %v8512 = vpack.c.b16 %v8444, %v8442
    %v8513 = vpack.c.b16 %v8447, %v8445
    %v8514 = vpack.c.b16 %v8448, %v8446
    %v8515 = vpack.c.b16 %v8451, %v8449
    %v8516 = vpack.c.b16 %v8452, %v8450
    %v8517 = vpack.c.b16 %v8455, %v8453
    %v8518 = vpack.c.b16 %v8456, %v8454
    %v8519 = vpack.c.b16 %v8459, %v8457
    %v8520 = vpack.c.b16 %v8460, %v8458
    %v8521 = vpack.c.b16 %v8463, %v8461
    %v8522 = vpack.c.b16 %v8464, %v8462
    %v8523 = vpack.c.b16 %v8467, %v8465
    %v8524 = vpack.c.b16 %v8468, %v8466
    %v8582 = vsel %vm4790, %v8290, 0
    %v8585 = vsel %vm4790, %v8294, 0
    %8587 = vmatprep.subr.bf16.mxu0 %v8484
    %8588 = vmatpush1.bf16.msra.mxu0 %v8483
    %8589 = vmatprep.subr.bf16.mxu0 %v8482
    %8590 = vmatpush1.bf16.msra.mxu0 %v8481
    %8591 = vmatprep.subr.bf16.mxu0 %v8480
    %8592 = vmatpush1.bf16.msra.mxu0 %v8479
    %8593 = vmatprep.subr.bf16.mxu0 %v8478
    %8594 = vmatpush1.bf16.msra.mxu0 %v8477
    %8595 = vmatprep.subr.bf16.mxu0 %v8476
    %8596 = vmatpush1.bf16.msra.mxu0 %v8475
    %8597 = vmatprep.subr.bf16.mxu0 %v8474
    %8598 = vmatpush1.bf16.msra.mxu0 %v8473
    %8599 = vmatprep.subr.bf16.mxu0 %v8472
    %8600 = vmatpush1.bf16.msra.mxu0 %v8471
    %8601 = vmatprep.subr.bf16.mxu0 %v8470
    %8602 = vmatpush1.bf16.msra.mxu0 %v8469
    %8603 = vmatprep.subr.bf16.mxu0 %v8500
    %8604 = vmatpush2.bf16.msra.mxu0 %v8499
    %8605 = vmatprep.subr.bf16.mxu0 %v8498
    %8606 = vmatpush2.bf16.msra.mxu0 %v8497
    %8607 = vmatprep.subr.bf16.mxu0 %v8496
    %8608 = vmatpush2.bf16.msra.mxu0 %v8495
    %8609 = vmatprep.subr.bf16.mxu0 %v8494
    %8610 = vmatpush2.bf16.msra.mxu0 %v8493
    %8611 = vmatprep.subr.bf16.mxu0 %v8492
    %8612 = vmatpush2.bf16.msra.mxu0 %v8491
    %8613 = vmatprep.subr.bf16.mxu0 %v8490
    %8614 = vmatpush2.bf16.msra.mxu0 %v8489
    %8615 = vmatprep.subr.bf16.mxu0 %v8488
    %8616 = vmatpush2.bf16.msra.mxu0 %v8487
    %8617 = vmatprep.subr.bf16.mxu0 %v8486
    %8618 = vmatpush2.bf16.msra.mxu0 %v8485
    %8619 = vmatprep.mubr.bf16.mxu0 %v8288
    %8620 = vmatmul.mubr.bf16.gmra.mxu0 %v8287
    %v8621 = vpop.f32.mrf.mxu0
    %v8622 = vadd.f32 0.0, %v8621
    %v8623 = vpop.f32.mrf.mxu0
    %v8624 = vadd.f32 0.0, %v8623
    %v8625 = vpop.f32.mrf.mxu0
    %v8626 = vadd.f32 0.0, %v8625
    %v8627 = vpop.f32.mrf.mxu0
    %v8628 = vadd.f32 0.0, %v8627
    %8629 = vmatprep.mubr.bf16.mxu0 %v8292
    %8630 = vmatmul.mubr.bf16.gmra.mxu0 %v8291
    %v8631 = vpop.f32.mrf.mxu0
    %v8632 = vadd.f32 0.0, %v8631
    %v8633 = vpop.f32.mrf.mxu0
    %v8634 = vadd.f32 0.0, %v8633
    %v8635 = vpop.f32.mrf.mxu0
    %v8636 = vadd.f32 0.0, %v8635
    %v8637 = vpop.f32.mrf.mxu0
    %v8638 = vadd.f32 0.0, %v8637
    %8639 = vdwg.mxu0
    %8640 = vmatprep.subr.bf16.mxu0 %v8516
    %8641 = vmatpush1.bf16.msra.mxu0 %v8515
    %8642 = vmatprep.subr.bf16.mxu0 %v8514
    %8643 = vmatpush1.bf16.msra.mxu0 %v8513
    %8644 = vmatprep.subr.bf16.mxu0 %v8512
    %8645 = vmatpush1.bf16.msra.mxu0 %v8511
    %8646 = vmatprep.subr.bf16.mxu0 %v8510
    %8647 = vmatpush1.bf16.msra.mxu0 %v8509
    %8648 = vmatprep.subr.bf16.mxu0 %v8508
    %8649 = vmatpush1.bf16.msra.mxu0 %v8507
    %8650 = vmatprep.subr.bf16.mxu0 %v8506
    %8651 = vmatpush1.bf16.msra.mxu0 %v8505
    %8652 = vmatprep.subr.bf16.mxu0 %v8504
    %8653 = vmatpush1.bf16.msra.mxu0 %v8503
    %8654 = vmatprep.subr.bf16.mxu0 %v8502
    %8655 = vmatpush1.bf16.msra.mxu0 %v8501
    %8656 = vmatprep.subr.bf16.mxu0 0
    %8657 = vmatpush2.bf16.msra.mxu0 0
    %8658 = vmatprep.subr.bf16.mxu0 0
    %8659 = vmatpush2.bf16.msra.mxu0 0
    %8660 = vmatprep.subr.bf16.mxu0 0
    %8661 = vmatpush2.bf16.msra.mxu0 0
    %8662 = vmatprep.subr.bf16.mxu0 0
    %8663 = vmatpush2.bf16.msra.mxu0 0
    %8664 = vmatprep.subr.bf16.mxu0 %v8524
    %8665 = vmatpush2.bf16.msra.mxu0 %v8523
    %8666 = vmatprep.subr.bf16.mxu0 %v8522
    %8667 = vmatpush2.bf16.msra.mxu0 %v8521
    %8668 = vmatprep.subr.bf16.mxu0 %v8520
    %8669 = vmatpush2.bf16.msra.mxu0 %v8519
    %8670 = vmatprep.subr.bf16.mxu0 %v8518
    %8671 = vmatpush2.bf16.msra.mxu0 %v8517
    %8672 = vmatprep.mubr.bf16.mxu0 %v8582
    %8673 = vmatmul.mubr.bf16.gmra.mxu0 %v8289
    %v8674 = vpop.f32.mrf.mxu0
    %v8675 = vadd.f32 %v8622, %v8674
    %v8676 = vpop.f32.mrf.mxu0
    %v8677 = vadd.f32 %v8624, %v8676
    %v8678 = vpop.f32.mrf.mxu0
    %v8679 = vadd.f32 %v8626, %v8678
    %v8680 = vpop.f32.mrf.mxu0
    %v8681 = vadd.f32 %v8628, %v8680
    %8682 = vmatprep.mubr.bf16.mxu0 %v8585
    %8683 = vmatmul.mubr.bf16.gmra.mxu0 %v8293
    %v8684 = vpop.f32.mrf.mxu0
    %v8685 = vadd.f32 %v8632, %v8684
    %v8686 = vpop.f32.mrf.mxu0
    %v8687 = vadd.f32 %v8634, %v8686
    %v8688 = vpop.f32.mrf.mxu0
    %v8689 = vadd.f32 %v8636, %v8688
    %v8690 = vpop.f32.mrf.mxu0
    %v8691 = vadd.f32 %v8638, %v8690
    %8692 = vdwg.mxu0
    %s8693 = scalar_lea.vmem %s5, 1792
    %v8694 = vld [vmem:[%s8693] sm:$0xff]
    %v8695 = vld [vmem:[%s8693 + $0x8] sm:$0xff]
    %v8696 = vld [vmem:[%s8693 + $0x10] sm:$0xff]
    %v8697 = vld [vmem:[%s8693 + $0x18] sm:$0xff]
    %v8698 = vld [vmem:[%s8693 + $0x20] sm:$0xff]
    %v8699 = vld [vmem:[%s8693 + $0x28] sm:$0xff]
    %v8700 = vld [vmem:[%s8693 + $0x30] sm:$0xff]
    %v8701 = vld [vmem:[%s8693 + $0x38] sm:$0xff]
    %v8702 = vld [vmem:[%s8693 + $0x40] sm:$0xff]
    %v8703 = vld [vmem:[%s8693 + $0x48] sm:$0xff]
    %v8704 = vld [vmem:[%s8693 + $0x50] sm:$0xff]
    %v8705 = vld [vmem:[%s8693 + $0x58] sm:$0xff]
    %v8706 = vld [vmem:[%s8693 + $0x60] sm:$0xff]
    %v8707 = vld [vmem:[%s8693 + $0x68] sm:$0xff]
    %v8708 = vld [vmem:[%s8693 + $0x70] sm:$0xff]
    %v8709 = vld [vmem:[%s8693 + $0x78] sm:$0xff]
    %v8710 = vld [vmem:[%s8693 + $0x80] sm:$0xff]
    %v8711 = vld [vmem:[%s8693 + $0x88] sm:$0xff]
    %v8712 = vld [vmem:[%s8693 + $0x90] sm:$0xff]
    %v8713 = vld [vmem:[%s8693 + $0x98] sm:$0xff]
    %v8714 = vld [vmem:[%s8693 + $0xa0] sm:$0xff]
    %v8715 = vld [vmem:[%s8693 + $0xa8] sm:$0xff]
    %v8716 = vld [vmem:[%s8693 + $0xb0] sm:$0xff]
    %v8717 = vld [vmem:[%s8693 + $0xb8] sm:$0xff]
    %v8718 = vld [vmem:[%s8693 + $0xc0] sm:$0xff]
    %v8719 = vld [vmem:[%s8693 + $0xc8] sm:$0xff]
    %v8720 = vld [vmem:[%s8693 + $0xd0] sm:$0xff]
    %v8721 = vld [vmem:[%s8693 + $0xd8] sm:$0xff]
    %v8722 = vld [vmem:[%s8693 + $0xe0] sm:$0xff]
    %v8723 = vld [vmem:[%s8693 + $0xe8] sm:$0xff]
    %v8724 = vld [vmem:[%s8693 + $0xf0] sm:$0xff]
    %v8725 = vld [vmem:[%s8693 + $0xf8] sm:$0xff]
    %v8726 = vld [vmem:[%s8693 + $0x100] sm:$0xff]
    %v8727 = vld [vmem:[%s8693 + $0x108] sm:$0xff]
    %v8728 = vld [vmem:[%s8693 + $0x110] sm:$0xff]
    %v8729 = vld [vmem:[%s8693 + $0x118] sm:$0xff]
    %v8730 = vld [vmem:[%s8693 + $0x120] sm:$0xff]
    %v8731 = vld [vmem:[%s8693 + $0x128] sm:$0xff]
    %v8732 = vld [vmem:[%s8693 + $0x130] sm:$0xff]
    %v8733 = vld [vmem:[%s8693 + $0x138] sm:$0xff]
    %v8734 = vld [vmem:[%s8693 + $0x140] sm:$0xff]
    %v8735 = vld [vmem:[%s8693 + $0x148] sm:$0xff]
    %v8736 = vld [vmem:[%s8693 + $0x150] sm:$0xff]
    %v8737 = vld [vmem:[%s8693 + $0x158] sm:$0xff]
    %v8738 = vld [vmem:[%s8693 + $0x160] sm:$0xff]
    %v8739 = vld [vmem:[%s8693 + $0x168] sm:$0xff]
    %v8740 = vld [vmem:[%s8693 + $0x170] sm:$0xff]
    %v8741 = vld [vmem:[%s8693 + $0x178] sm:$0xff]
    %v8742 = vld [vmem:[%s8693 + $0x180] sm:$0xff]
    %v8743 = vld [vmem:[%s8693 + $0x188] sm:$0xff]
    %v8744 = vld [vmem:[%s8693 + $0x190] sm:$0xff]
    %v8745 = vld [vmem:[%s8693 + $0x198] sm:$0xff]
    %v8746 = vld [vmem:[%s8693 + $0x1a0] sm:$0xff]
    %v8747 = vld [vmem:[%s8693 + $0x1a8] sm:$0xff]
    %v8748 = vld [vmem:[%s8693 + $0x1b0] sm:$0xff]
    %v8749 = vld [vmem:[%s8693 + $0x1b8] sm:$0xff]
    %v8806 = vunpack.c.l.b16 %v8694
    %v8807 = vunpack.c.h.b16 %v8694
    %v8808 = vunpack.c.l.b16 %v8695
    %v8809 = vunpack.c.h.b16 %v8695
    %v8810 = vunpack.c.l.b16 %v8696
    %v8811 = vunpack.c.h.b16 %v8696
    %v8812 = vunpack.c.l.b16 %v8697
    %v8813 = vunpack.c.h.b16 %v8697
    %v8814 = vunpack.c.l.b16 %v8698
    %v8815 = vunpack.c.h.b16 %v8698
    %v8816 = vunpack.c.l.b16 %v8699
    %v8817 = vunpack.c.h.b16 %v8699
    %v8818 = vunpack.c.l.b16 %v8700
    %v8819 = vunpack.c.h.b16 %v8700
    %v8820 = vunpack.c.l.b16 %v8701
    %v8821 = vunpack.c.h.b16 %v8701
    %v8822 = vunpack.c.l.b16 %v8702
    %v8823 = vunpack.c.h.b16 %v8702
    %v8824 = vunpack.c.l.b16 %v8703
    %v8825 = vunpack.c.h.b16 %v8703
    %v8826 = vunpack.c.l.b16 %v8704
    %v8827 = vunpack.c.h.b16 %v8704
    %v8828 = vunpack.c.l.b16 %v8705
    %v8829 = vunpack.c.h.b16 %v8705
    %v8830 = vunpack.c.l.b16 %v8706
    %v8831 = vunpack.c.h.b16 %v8706
    %v8832 = vunpack.c.l.b16 %v8707
    %v8833 = vunpack.c.h.b16 %v8707
    %v8834 = vunpack.c.l.b16 %v8708
    %v8835 = vunpack.c.h.b16 %v8708
    %v8836 = vunpack.c.l.b16 %v8709
    %v8837 = vunpack.c.h.b16 %v8709
    %v8838 = vunpack.c.l.b16 %v8710
    %v8839 = vunpack.c.h.b16 %v8710
    %v8840 = vunpack.c.l.b16 %v8711
    %v8841 = vunpack.c.h.b16 %v8711
    %v8842 = vunpack.c.l.b16 %v8712
    %v8843 = vunpack.c.h.b16 %v8712
    %v8844 = vunpack.c.l.b16 %v8713
    %v8845 = vunpack.c.h.b16 %v8713
    %v8846 = vunpack.c.l.b16 %v8714
    %v8847 = vunpack.c.h.b16 %v8714
    %v8848 = vunpack.c.l.b16 %v8715
    %v8849 = vunpack.c.h.b16 %v8715
    %v8850 = vunpack.c.l.b16 %v8716
    %v8851 = vunpack.c.h.b16 %v8716
    %v8852 = vunpack.c.l.b16 %v8717
    %v8853 = vunpack.c.h.b16 %v8717
    %v8854 = vunpack.c.l.b16 %v8718
    %v8855 = vunpack.c.h.b16 %v8718
    %v8856 = vunpack.c.l.b16 %v8719
    %v8857 = vunpack.c.h.b16 %v8719
    %v8858 = vunpack.c.l.b16 %v8720
    %v8859 = vunpack.c.h.b16 %v8720
    %v8860 = vunpack.c.l.b16 %v8721
    %v8861 = vunpack.c.h.b16 %v8721
    %v8862 = vunpack.c.l.b16 %v8722
    %v8863 = vunpack.c.h.b16 %v8722
    %v8864 = vunpack.c.l.b16 %v8723
    %v8865 = vunpack.c.h.b16 %v8723
    %v8866 = vunpack.c.l.b16 %v8724
    %v8867 = vunpack.c.h.b16 %v8724
    %v8868 = vunpack.c.l.b16 %v8725
    %v8869 = vunpack.c.h.b16 %v8725
    %v8870 = vunpack.c.l.b16 %v8726
    %v8871 = vunpack.c.h.b16 %v8726
    %v8872 = vunpack.c.l.b16 %v8727
    %v8873 = vunpack.c.h.b16 %v8727
    %v8874 = vunpack.c.l.b16 %v8728
    %v8875 = vunpack.c.h.b16 %v8728
    %v8876 = vunpack.c.l.b16 %v8729
    %v8877 = vunpack.c.h.b16 %v8729
    %v8878 = vunpack.c.l.b16 %v8730
    %v8879 = vunpack.c.h.b16 %v8730
    %v8880 = vunpack.c.l.b16 %v8731
    %v8881 = vunpack.c.h.b16 %v8731
    %v8882 = vunpack.c.l.b16 %v8732
    %v8883 = vunpack.c.h.b16 %v8732
    %v8884 = vunpack.c.l.b16 %v8733
    %v8885 = vunpack.c.h.b16 %v8733
    %v8886 = vunpack.c.l.b16 %v8734
    %v8887 = vunpack.c.h.b16 %v8734
    %v8888 = vunpack.c.l.b16 %v8735
    %v8889 = vunpack.c.h.b16 %v8735
    %v8890 = vunpack.c.l.b16 %v8736
    %v8891 = vunpack.c.h.b16 %v8736
    %v8892 = vunpack.c.l.b16 %v8737
    %v8893 = vunpack.c.h.b16 %v8737
    %v8894 = vunpack.c.l.b16 %v8738
    %v8895 = vunpack.c.h.b16 %v8738
    %v8896 = vunpack.c.l.b16 %v8739
    %v8897 = vunpack.c.h.b16 %v8739
    %v8898 = vunpack.c.l.b16 %v8740
    %v8899 = vunpack.c.h.b16 %v8740
    %v8900 = vunpack.c.l.b16 %v8741
    %v8901 = vunpack.c.h.b16 %v8741
    %v8902 = vunpack.c.l.b16 %v8742
    %v8903 = vunpack.c.h.b16 %v8742
    %v8904 = vunpack.c.l.b16 %v8743
    %v8905 = vunpack.c.h.b16 %v8743
    %v8906 = vunpack.c.l.b16 %v8744
    %v8907 = vunpack.c.h.b16 %v8744
    %v8908 = vunpack.c.l.b16 %v8745
    %v8909 = vunpack.c.h.b16 %v8745
    %v8910 = vunpack.c.l.b16 %v8746
    %v8911 = vunpack.c.h.b16 %v8746
    %v8912 = vunpack.c.l.b16 %v8747
    %v8913 = vunpack.c.h.b16 %v8747
    %v8914 = vunpack.c.l.b16 %v8748
    %v8915 = vunpack.c.h.b16 %v8748
    %v8916 = vunpack.c.l.b16 %v8749
    %v8917 = vunpack.c.h.b16 %v8749
    %v8918 = vpack.c.b16 %v8808, %v8806
    %v8919 = vpack.c.b16 %v8809, %v8807
    %v8920 = vpack.c.b16 %v8812, %v8810
    %v8921 = vpack.c.b16 %v8813, %v8811
    %v8922 = vpack.c.b16 %v8816, %v8814
    %v8923 = vpack.c.b16 %v8817, %v8815
    %v8924 = vpack.c.b16 %v8820, %v8818
    %v8925 = vpack.c.b16 %v8821, %v8819
    %v8926 = vpack.c.b16 %v8824, %v8822
    %v8927 = vpack.c.b16 %v8825, %v8823
    %v8928 = vpack.c.b16 %v8828, %v8826
    %v8929 = vpack.c.b16 %v8829, %v8827
    %v8930 = vpack.c.b16 %v8832, %v8830
    %v8931 = vpack.c.b16 %v8833, %v8831
    %v8932 = vpack.c.b16 %v8836, %v8834
    %v8933 = vpack.c.b16 %v8837, %v8835
    %v8934 = vpack.c.b16 %v8840, %v8838
    %v8935 = vpack.c.b16 %v8841, %v8839
    %v8936 = vpack.c.b16 %v8844, %v8842
    %v8937 = vpack.c.b16 %v8845, %v8843
    %v8938 = vpack.c.b16 %v8848, %v8846
    %v8939 = vpack.c.b16 %v8849, %v8847
    %v8940 = vpack.c.b16 %v8852, %v8850
    %v8941 = vpack.c.b16 %v8853, %v8851
    %v8942 = vpack.c.b16 %v8856, %v8854
    %v8943 = vpack.c.b16 %v8857, %v8855
    %v8944 = vpack.c.b16 %v8860, %v8858
    %v8945 = vpack.c.b16 %v8861, %v8859
    %v8946 = vpack.c.b16 %v8864, %v8862
    %v8947 = vpack.c.b16 %v8865, %v8863
    %v8948 = vpack.c.b16 %v8868, %v8866
    %v8949 = vpack.c.b16 %v8869, %v8867
    %v8950 = vpack.c.b16 %v8872, %v8870
    %v8951 = vpack.c.b16 %v8873, %v8871
    %v8952 = vpack.c.b16 %v8876, %v8874
    %v8953 = vpack.c.b16 %v8877, %v8875
    %v8954 = vpack.c.b16 %v8880, %v8878
    %v8955 = vpack.c.b16 %v8881, %v8879
    %v8956 = vpack.c.b16 %v8884, %v8882
    %v8957 = vpack.c.b16 %v8885, %v8883
    %v8958 = vpack.c.b16 %v8888, %v8886
    %v8959 = vpack.c.b16 %v8889, %v8887
    %v8960 = vpack.c.b16 %v8892, %v8890
    %v8961 = vpack.c.b16 %v8893, %v8891
    %v8962 = vpack.c.b16 %v8896, %v8894
    %v8963 = vpack.c.b16 %v8897, %v8895
    %v8964 = vpack.c.b16 %v8900, %v8898
    %v8965 = vpack.c.b16 %v8901, %v8899
    %v8966 = vpack.c.b16 %v8904, %v8902
    %v8967 = vpack.c.b16 %v8905, %v8903
    %v8968 = vpack.c.b16 %v8908, %v8906
    %v8969 = vpack.c.b16 %v8909, %v8907
    %v8970 = vpack.c.b16 %v8912, %v8910
    %v8971 = vpack.c.b16 %v8913, %v8911
    %v8972 = vpack.c.b16 %v8916, %v8914
    %v8973 = vpack.c.b16 %v8917, %v8915
    %9030 = vmatprep.subr.bf16.mxu0 %v8933
    %9031 = vmatpush1.bf16.msra.mxu0 %v8932
    %9032 = vmatprep.subr.bf16.mxu0 %v8931
    %9033 = vmatpush1.bf16.msra.mxu0 %v8930
    %9034 = vmatprep.subr.bf16.mxu0 %v8929
    %9035 = vmatpush1.bf16.msra.mxu0 %v8928
    %9036 = vmatprep.subr.bf16.mxu0 %v8927
    %9037 = vmatpush1.bf16.msra.mxu0 %v8926
    %9038 = vmatprep.subr.bf16.mxu0 %v8925
    %9039 = vmatpush1.bf16.msra.mxu0 %v8924
    %9040 = vmatprep.subr.bf16.mxu0 %v8923
    %9041 = vmatpush1.bf16.msra.mxu0 %v8922
    %9042 = vmatprep.subr.bf16.mxu0 %v8921
    %9043 = vmatpush1.bf16.msra.mxu0 %v8920
    %9044 = vmatprep.subr.bf16.mxu0 %v8919
    %9045 = vmatpush1.bf16.msra.mxu0 %v8918
    %9046 = vmatprep.subr.bf16.mxu0 %v8949
    %9047 = vmatpush2.bf16.msra.mxu0 %v8948
    %9048 = vmatprep.subr.bf16.mxu0 %v8947
    %9049 = vmatpush2.bf16.msra.mxu0 %v8946
    %9050 = vmatprep.subr.bf16.mxu0 %v8945
    %9051 = vmatpush2.bf16.msra.mxu0 %v8944
    %9052 = vmatprep.subr.bf16.mxu0 %v8943
    %9053 = vmatpush2.bf16.msra.mxu0 %v8942
    %9054 = vmatprep.subr.bf16.mxu0 %v8941
    %9055 = vmatpush2.bf16.msra.mxu0 %v8940
    %9056 = vmatprep.subr.bf16.mxu0 %v8939
    %9057 = vmatpush2.bf16.msra.mxu0 %v8938
    %9058 = vmatprep.subr.bf16.mxu0 %v8937
    %9059 = vmatpush2.bf16.msra.mxu0 %v8936
    %9060 = vmatprep.subr.bf16.mxu0 %v8935
    %9061 = vmatpush2.bf16.msra.mxu0 %v8934
    %9062 = vmatprep.mubr.bf16.mxu0 %v8288
    %9063 = vmatmul.mubr.bf16.gmra.mxu0 %v8287
    %v9064 = vpop.f32.mrf.mxu0
    %v9065 = vadd.f32 0.0, %v9064
    %v9066 = vpop.f32.mrf.mxu0
    %v9067 = vadd.f32 0.0, %v9066
    %v9068 = vpop.f32.mrf.mxu0
    %v9069 = vadd.f32 0.0, %v9068
    %v9070 = vpop.f32.mrf.mxu0
    %v9071 = vadd.f32 0.0, %v9070
    %9072 = vmatprep.mubr.bf16.mxu0 %v8292
    %9073 = vmatmul.mubr.bf16.gmra.mxu0 %v8291
    %v9074 = vpop.f32.mrf.mxu0
    %v9075 = vadd.f32 0.0, %v9074
    %v9076 = vpop.f32.mrf.mxu0
    %v9077 = vadd.f32 0.0, %v9076
    %v9078 = vpop.f32.mrf.mxu0
    %v9079 = vadd.f32 0.0, %v9078
    %v9080 = vpop.f32.mrf.mxu0
    %v9081 = vadd.f32 0.0, %v9080
    %9082 = vdwg.mxu0
    %9083 = vmatprep.subr.bf16.mxu0 %v8965
    %9084 = vmatpush1.bf16.msra.mxu0 %v8964
    %9085 = vmatprep.subr.bf16.mxu0 %v8963
    %9086 = vmatpush1.bf16.msra.mxu0 %v8962
    %9087 = vmatprep.subr.bf16.mxu0 %v8961
    %9088 = vmatpush1.bf16.msra.mxu0 %v8960
    %9089 = vmatprep.subr.bf16.mxu0 %v8959
    %9090 = vmatpush1.bf16.msra.mxu0 %v8958
    %9091 = vmatprep.subr.bf16.mxu0 %v8957
    %9092 = vmatpush1.bf16.msra.mxu0 %v8956
    %9093 = vmatprep.subr.bf16.mxu0 %v8955
    %9094 = vmatpush1.bf16.msra.mxu0 %v8954
    %9095 = vmatprep.subr.bf16.mxu0 %v8953
    %9096 = vmatpush1.bf16.msra.mxu0 %v8952
    %9097 = vmatprep.subr.bf16.mxu0 %v8951
    %9098 = vmatpush1.bf16.msra.mxu0 %v8950
    %9099 = vmatprep.subr.bf16.mxu0 0
    %9100 = vmatpush2.bf16.msra.mxu0 0
    %9101 = vmatprep.subr.bf16.mxu0 0
    %9102 = vmatpush2.bf16.msra.mxu0 0
    %9103 = vmatprep.subr.bf16.mxu0 0
    %9104 = vmatpush2.bf16.msra.mxu0 0
    %9105 = vmatprep.subr.bf16.mxu0 0
    %9106 = vmatpush2.bf16.msra.mxu0 0
    %9107 = vmatprep.subr.bf16.mxu0 %v8973
    %9108 = vmatpush2.bf16.msra.mxu0 %v8972
    %9109 = vmatprep.subr.bf16.mxu0 %v8971
    %9110 = vmatpush2.bf16.msra.mxu0 %v8970
    %9111 = vmatprep.subr.bf16.mxu0 %v8969
    %9112 = vmatpush2.bf16.msra.mxu0 %v8968
    %9113 = vmatprep.subr.bf16.mxu0 %v8967
    %9114 = vmatpush2.bf16.msra.mxu0 %v8966
    %9115 = vmatprep.mubr.bf16.mxu0 %v8582
    %9116 = vmatmul.mubr.bf16.gmra.mxu0 %v8289
    %v9117 = vpop.f32.mrf.mxu0
    %v9118 = vadd.f32 %v9065, %v9117
    %v9119 = vpop.f32.mrf.mxu0
    %v9120 = vadd.f32 %v9067, %v9119
    %v9121 = vpop.f32.mrf.mxu0
    %v9122 = vadd.f32 %v9069, %v9121
    %v9123 = vpop.f32.mrf.mxu0
    %v9124 = vadd.f32 %v9071, %v9123
    %9125 = vmatprep.mubr.bf16.mxu0 %v8585
    %9126 = vmatmul.mubr.bf16.gmra.mxu0 %v8293
    %v9127 = vpop.f32.mrf.mxu0
    %v9128 = vadd.f32 %v9075, %v9127
    %v9129 = vpop.f32.mrf.mxu0
    %v9130 = vadd.f32 %v9077, %v9129
    %v9131 = vpop.f32.mrf.mxu0
    %v9132 = vadd.f32 %v9079, %v9131
    %v9133 = vpop.f32.mrf.mxu0
    %v9134 = vadd.f32 %v9081, %v9133
    %9135 = vdwg.mxu0
    %v9136 = vadd.f32 %v8158, %v8675
    %v9137 = vadd.f32 %v8159, %v8677
    %v9138 = vadd.f32 %v8160, %v8679
    %v9139 = vadd.f32 %v8161, %v8681
    %v9140 = vadd.f32 %v8162, %v8685
    %v9141 = vadd.f32 %v8163, %v8687
    %v9142 = vadd.f32 %v8164, %v8689
    %v9143 = vadd.f32 %v8165, %v8691
    %v9144 = vadd.f32 %v8166, %v9118
    %v9145 = vadd.f32 %v8167, %v9120
    %v9146 = vadd.f32 %v8168, %v9122
    %v9147 = vadd.f32 %v8169, %v9124
    %v9148 = vadd.f32 %v8170, %v9128
    %v9149 = vadd.f32 %v8171, %v9130
    %v9150 = vadd.f32 %v8172, %v9132
    %v9151 = vadd.f32 %v8173, %v9134
    %v9152 = vmax.f32 %v9136, %v9144
    %v9153 = vmax.f32 %v9137, %v9145
    %v9154 = vmax.f32 %v9138, %v9146
    %v9155 = vmax.f32 %v9139, %v9147
    %v9156 = vmax.f32 %v9140, %v9148
    %v9157 = vmax.f32 %v9141, %v9149
    %v9158 = vmax.f32 %v9142, %v9150
    %v9159 = vmax.f32 %v9143, %v9151
    %v9164 = vrot.slane %v9152, 1
    %v9165 = vrot.slane %v9153, 1
    %v9166 = vrot.slane %v9156, 1
    %v9167 = vrot.slane %v9157, 1
    %v9172 = vmax.f32 %v9152, %v9164
    %v9173 = vmax.f32 %v9153, %v9165
    %v9174 = vmax.f32 %v9156, %v9166
    %v9175 = vmax.f32 %v9157, %v9167
    %v9176 = vld [vmem:[%s6] sm:$0x3]
    %v9178 = vlaneseq
    %v9179 = vshrl.u32 %v9178, 7
    %v9180 = vsub.s32 0, %v9179
    %v9181 = vrot.slane %v9176, %v9180
    %v9182 = vlaneseq
    %v9183 = vshrl.u32 %v9182, 7
    %v9184 = vsub.s32 1, %v9183
    %v9185 = vrot.slane %v9176, %v9184
    %v9188 = vadd.f32 %v9172, %v9181
    %v9189 = vadd.f32 %v9173, %v9185
    %v9190 = vadd.f32 %v9174, %v9181
    %v9191 = vadd.f32 %v9175, %v9185
    %v9192 = vmul.f32 %v9188, 0.1
    %v9193 = vmul.f32 %v9189, 0.1
    %v9194 = vmul.f32 %v9190, 0.1
    %v9195 = vmul.f32 %v9191, 0.1
    %v9196 = vmax.f32 %v9188, %v9192
    %v9197 = vmax.f32 %v9189, %v9193
    %v9198 = vmax.f32 %v9190, %v9194
    %v9199 = vmax.f32 %v9191, %v9195
    %v9200 = vpack.c.bf16 %v9196, %v9196
    %v9201 = vpack.c.bf16 %v9197, %v9197
    %v9202 = vpack.c.bf16 %v9198, %v9198
    %v9203 = vpack.c.bf16 %v9199, %v9199
    %v9204 = vld [vmem:[%s7] sm:$0xf]
    %v9205 = vld [vmem:[%s7 + $0x4] sm:$0xf]
    %v9206 = vld [vmem:[%s7 + $0x8] sm:$0xf]
    %v9207 = vld [vmem:[%s7 + $0xc] sm:$0xf]
    %v9208 = vld [vmem:[%s7 + $0x10] sm:$0xf]
    %v9209 = vld [vmem:[%s7 + $0x14] sm:$0xf]
    %v9210 = vld [vmem:[%s7 + $0x18] sm:$0xf]
    %v9211 = vld [vmem:[%s7 + $0x1c] sm:$0xf]
    %v9212 = vld [vmem:[%s7 + $0x20] sm:$0xf]
    %v9213 = vld [vmem:[%s7 + $0x24] sm:$0xf]
    %v9214 = vld [vmem:[%s7 + $0x28] sm:$0xf]
    %v9215 = vld [vmem:[%s7 + $0x2c] sm:$0xf]
    %v9216 = vld [vmem:[%s7 + $0x30] sm:$0xf]
    %v9217 = vld [vmem:[%s7 + $0x34] sm:$0xf]
    %v9218 = vld [vmem:[%s7 + $0x38] sm:$0xf]
    %v9219 = vld [vmem:[%s7 + $0x3c] sm:$0xf]
    %v9220 = vld [vmem:[%s7 + $0x40] sm:$0xf]
    %v9221 = vld [vmem:[%s7 + $0x44] sm:$0xf]
    %v9222 = vld [vmem:[%s7 + $0x48] sm:$0xf]
    %v9223 = vld [vmem:[%s7 + $0x4c] sm:$0xf]
    %s9224 = scalar_lea.vmem %s7, 80
    %v9225 = vld [vmem:[%s9224] sm:$0xf]
    %v9226 = vld [vmem:[%s9224 + $0x4] sm:$0xf]
    %v9227 = vld [vmem:[%s9224 + $0x8] sm:$0xf]
    %v9228 = vld [vmem:[%s9224 + $0xc] sm:$0xf]
    %v9229 = vld [vmem:[%s9224 + $0x10] sm:$0xf]
    %v9230 = vld [vmem:[%s9224 + $0x14] sm:$0xf]
    %v9231 = vld [vmem:[%s9224 + $0x18] sm:$0xf]
    %v9232 = vld [vmem:[%s9224 + $0x1c] sm:$0xf]
    %v9233 = vld [vmem:[%s9224 + $0x20] sm:$0xf]
    %v9234 = vld [vmem:[%s9224 + $0x24] sm:$0xf]
    %v9235 = vld [vmem:[%s9224 + $0x28] sm:$0xf]
    %v9236 = vld [vmem:[%s9224 + $0x2c] sm:$0xf]
    %v9237 = vld [vmem:[%s9224 + $0x30] sm:$0xf]
    %v9238 = vld [vmem:[%s9224 + $0x34] sm:$0xf]
    %v9239 = vld [vmem:[%s9224 + $0x38] sm:$0xf]
    %v9240 = vld [vmem:[%s9224 + $0x3c] sm:$0xf]
    %v9241 = vld [vmem:[%s9224 + $0x40] sm:$0xf]
    %v9242 = vld [vmem:[%s9224 + $0x44] sm:$0xf]
    %v9243 = vld [vmem:[%s9224 + $0x48] sm:$0xf]
    %v9244 = vld [vmem:[%s9224 + $0x4c] sm:$0xf]
    %v9249 = vunpack.c.l.b16 %v9200
    %v9250 = vunpack.c.l.b16 %v9201
    %v9251 = vunpack.c.l.b16 %v9202
    %v9252 = vunpack.c.l.b16 %v9203
    %v9253 = vrot.slane %v9249, 2
    %v9254 = vrot.slane %v9251, 1
    %vm9255 = vcmask 1041409
    %v9256 = vsel %vm9255, %v9254, %v9253
    %v9257 = vrot.slane %v9250, 2
    %v9258 = vrot.slane %v9252, 1
    %v9259 = vsel %vm9255, %v9258, %v9257
    %v9260 = vpack.c.b16 %v9256, %v9256
    %v9261 = vpack.c.b16 %v9259, %v9259
    %v9283 = vunpack.c.l.b16 %v9225
    %v9284 = vunpack.c.l.b16 %v9226
    %v9285 = vunpack.c.l.b16 %v9227
    %v9286 = vunpack.c.l.b16 %v9228
    %v9287 = vunpack.c.l.b16 %v9229
    %v9288 = vunpack.c.l.b16 %v9230
    %v9289 = vunpack.c.l.b16 %v9231
    %v9290 = vunpack.c.l.b16 %v9232
    %v9291 = vunpack.c.l.b16 %v9233
    %v9292 = vunpack.c.l.b16 %v9234
    %v9293 = vunpack.c.l.b16 %v9235
    %v9294 = vunpack.c.l.b16 %v9236
    %v9295 = vunpack.c.l.b16 %v9237
    %v9296 = vunpack.c.l.b16 %v9238
    %v9297 = vunpack.c.l.b16 %v9239
    %v9298 = vunpack.c.l.b16 %v9240
    %v9299 = vunpack.c.l.b16 %v9241
    %v9300 = vunpack.c.l.b16 %v9242
    %v9301 = vunpack.c.l.b16 %v9243
    %v9302 = vunpack.c.l.b16 %v9244
    %v9303 = vpack.c.b16 %v9284, %v9283
    %v9304 = vpack.c.b16 %v9286, %v9285
    %v9305 = vpack.c.b16 %v9288, %v9287
    %v9306 = vpack.c.b16 %v9290, %v9289
    %v9307 = vpack.c.b16 %v9292, %v9291
    %v9308 = vpack.c.b16 %v9294, %v9293
    %v9309 = vpack.c.b16 %v9296, %v9295
    %v9310 = vpack.c.b16 %v9298, %v9297
    %v9311 = vpack.c.b16 %v9300, %v9299
    %v9312 = vpack.c.b16 %v9302, %v9301
    %v9324 = vsel %vm218, %v9261, 0
    %9326 = vmatprep.subr.bf16.mxu0 0
    %9327 = vmatpush1.bf16.msra.mxu0 %v9310
    %9328 = vmatprep.subr.bf16.mxu0 0
    %9329 = vmatpush1.bf16.msra.mxu0 %v9309
    %9330 = vmatprep.subr.bf16.mxu0 0
    %9331 = vmatpush1.bf16.msra.mxu0 %v9308
    %9332 = vmatprep.subr.bf16.mxu0 0
    %9333 = vmatpush1.bf16.msra.mxu0 %v9307
    %9334 = vmatprep.subr.bf16.mxu0 0
    %9335 = vmatpush1.bf16.msra.mxu0 %v9306
    %9336 = vmatprep.subr.bf16.mxu0 0
    %9337 = vmatpush1.bf16.msra.mxu0 %v9305
    %9338 = vmatprep.subr.bf16.mxu0 0
    %9339 = vmatpush1.bf16.msra.mxu0 %v9304
    %9340 = vmatprep.subr.bf16.mxu0 0
    %9341 = vmatpush1.bf16.msra.mxu0 %v9303
    %9342 = vmatprep.subr.bf16.mxu0 0
    %9343 = vmatpush2.bf16.msra.mxu0 0
    %9344 = vmatprep.subr.bf16.mxu0 0
    %9345 = vmatpush2.bf16.msra.mxu0 0
    %9346 = vmatprep.subr.bf16.mxu0 0
    %9347 = vmatpush2.bf16.msra.mxu0 0
    %9348 = vmatprep.subr.bf16.mxu0 0
    %9349 = vmatpush2.bf16.msra.mxu0 0
    %9350 = vmatprep.subr.bf16.mxu0 0
    %9351 = vmatpush2.bf16.msra.mxu0 0
    %9352 = vmatprep.subr.bf16.mxu0 0
    %9353 = vmatpush2.bf16.msra.mxu0 0
    %9354 = vmatprep.subr.bf16.mxu0 0
    %9355 = vmatpush2.bf16.msra.mxu0 %v9312
    %9356 = vmatprep.subr.bf16.mxu0 0
    %9357 = vmatpush2.bf16.msra.mxu0 %v9311
    %9358 = vmatprep.mubr.bf16.mxu0 %v9324
    %9359 = vmatmul.mubr.bf16.gmra.mxu0 %v9260
    %v9360 = vpop.f32.mrf.mxu0
    %v9361 = vadd.f32 0.0, %v9360
    %v9362 = vpop.f32.mrf.mxu0
    %v9363 = vpop.f32.mrf.mxu0
    %v9364 = vpop.f32.mrf.mxu0
    %9365 = vdwg.mxu0
    %v9366 = vrot.slane %v9251, 7
    %v9367 = vsel %vm9255, %v9366, %v9249
    %v9368 = vrot.slane %v9252, 7
    %v9369 = vsel %vm9255, %v9368, %v9250
    %v9370 = vpack.c.b16 %v9367, %v9367
    %v9371 = vpack.c.b16 %v9369, %v9369
    %v9393 = vunpack.c.l.b16 %v9204
    %v9394 = vunpack.c.l.b16 %v9205
    %v9395 = vunpack.c.l.b16 %v9206
    %v9396 = vunpack.c.l.b16 %v9207
    %v9397 = vunpack.c.l.b16 %v9208
    %v9398 = vunpack.c.l.b16 %v9209
    %v9399 = vunpack.c.l.b16 %v9210
    %v9400 = vunpack.c.l.b16 %v9211
    %v9401 = vunpack.c.l.b16 %v9212
    %v9402 = vunpack.c.l.b16 %v9213
    %v9403 = vunpack.c.l.b16 %v9214
    %v9404 = vunpack.c.l.b16 %v9215
    %v9405 = vunpack.c.l.b16 %v9216
    %v9406 = vunpack.c.l.b16 %v9217
    %v9407 = vunpack.c.l.b16 %v9218
    %v9408 = vunpack.c.l.b16 %v9219
    %v9409 = vunpack.c.l.b16 %v9220
    %v9410 = vunpack.c.l.b16 %v9221
    %v9411 = vunpack.c.l.b16 %v9222
    %v9412 = vunpack.c.l.b16 %v9223
    %v9413 = vpack.c.b16 %v9394, %v9393
    %v9414 = vpack.c.b16 %v9396, %v9395
    %v9415 = vpack.c.b16 %v9398, %v9397
    %v9416 = vpack.c.b16 %v9400, %v9399
    %v9417 = vpack.c.b16 %v9402, %v9401
    %v9418 = vpack.c.b16 %v9404, %v9403
    %v9419 = vpack.c.b16 %v9406, %v9405
    %v9420 = vpack.c.b16 %v9408, %v9407
    %v9421 = vpack.c.b16 %v9410, %v9409
    %v9422 = vpack.c.b16 %v9412, %v9411
    %v9434 = vsel %vm218, %v9371, 0
    %9436 = vmatprep.subr.bf16.mxu0 0
    %9437 = vmatpush1.bf16.msra.mxu0 %v9420
    %9438 = vmatprep.subr.bf16.mxu0 0
    %9439 = vmatpush1.bf16.msra.mxu0 %v9419
    %9440 = vmatprep.subr.bf16.mxu0 0
    %9441 = vmatpush1.bf16.msra.mxu0 %v9418
    %9442 = vmatprep.subr.bf16.mxu0 0
    %9443 = vmatpush1.bf16.msra.mxu0 %v9417
    %9444 = vmatprep.subr.bf16.mxu0 0
    %9445 = vmatpush1.bf16.msra.mxu0 %v9416
    %9446 = vmatprep.subr.bf16.mxu0 0
    %9447 = vmatpush1.bf16.msra.mxu0 %v9415
    %9448 = vmatprep.subr.bf16.mxu0 0
    %9449 = vmatpush1.bf16.msra.mxu0 %v9414
    %9450 = vmatprep.subr.bf16.mxu0 0
    %9451 = vmatpush1.bf16.msra.mxu0 %v9413
    %9452 = vmatprep.subr.bf16.mxu0 0
    %9453 = vmatpush2.bf16.msra.mxu0 0
    %9454 = vmatprep.subr.bf16.mxu0 0
    %9455 = vmatpush2.bf16.msra.mxu0 0
    %9456 = vmatprep.subr.bf16.mxu0 0
    %9457 = vmatpush2.bf16.msra.mxu0 0
    %9458 = vmatprep.subr.bf16.mxu0 0
    %9459 = vmatpush2.bf16.msra.mxu0 0
    %9460 = vmatprep.subr.bf16.mxu0 0
    %9461 = vmatpush2.bf16.msra.mxu0 0
    %9462 = vmatprep.subr.bf16.mxu0 0
    %9463 = vmatpush2.bf16.msra.mxu0 0
    %9464 = vmatprep.subr.bf16.mxu0 0
    %9465 = vmatpush2.bf16.msra.mxu0 %v9422
    %9466 = vmatprep.subr.bf16.mxu0 0
    %9467 = vmatpush2.bf16.msra.mxu0 %v9421
    %9468 = vmatprep.mubr.bf16.mxu0 %v9434
    %9469 = vmatmul.mubr.bf16.gmra.mxu0 %v9370
    %v9470 = vpop.f32.mrf.mxu0
    %v9471 = vadd.f32 %v9361, %v9470
    %v9472 = vpop.f32.mrf.mxu0
    %v9473 = vpop.f32.mrf.mxu0
    %v9474 = vpop.f32.mrf.mxu0
    %9475 = vdwg.mxu0
    %s9476 = scalar_lea.vmem %s7, 160
    %v9477 = vld [vmem:[%s9476] sm:$0xf]
    %v9478 = vld [vmem:[%s9476 + $0x4] sm:$0xf]
    %v9479 = vld [vmem:[%s9476 + $0x8] sm:$0xf]
    %v9480 = vld [vmem:[%s9476 + $0xc] sm:$0xf]
    %v9481 = vld [vmem:[%s9476 + $0x10] sm:$0xf]
    %v9482 = vld [vmem:[%s9476 + $0x14] sm:$0xf]
    %v9483 = vld [vmem:[%s9476 + $0x18] sm:$0xf]
    %v9484 = vld [vmem:[%s9476 + $0x1c] sm:$0xf]
    %v9485 = vld [vmem:[%s9476 + $0x20] sm:$0xf]
    %v9486 = vld [vmem:[%s9476 + $0x24] sm:$0xf]
    %v9487 = vld [vmem:[%s9476 + $0x28] sm:$0xf]
    %v9488 = vld [vmem:[%s9476 + $0x2c] sm:$0xf]
    %v9489 = vld [vmem:[%s9476 + $0x30] sm:$0xf]
    %v9490 = vld [vmem:[%s9476 + $0x34] sm:$0xf]
    %v9491 = vld [vmem:[%s9476 + $0x38] sm:$0xf]
    %v9492 = vld [vmem:[%s9476 + $0x3c] sm:$0xf]
    %v9493 = vld [vmem:[%s9476 + $0x40] sm:$0xf]
    %v9494 = vld [vmem:[%s9476 + $0x44] sm:$0xf]
    %v9495 = vld [vmem:[%s9476 + $0x48] sm:$0xf]
    %v9496 = vld [vmem:[%s9476 + $0x4c] sm:$0xf]
    %v9497 = vrot.slane %v9249, 4
    %v9498 = vrot.slane %v9251, 3
    %v9499 = vsel %vm9255, %v9498, %v9497
    %v9500 = vrot.slane %v9250, 4
    %v9501 = vrot.slane %v9252, 3
    %v9502 = vsel %vm9255, %v9501, %v9500
    %v9503 = vpack.c.b16 %v9499, %v9499
    %v9504 = vpack.c.b16 %v9502, %v9502
    %v9526 = vunpack.c.l.b16 %v9477
    %v9527 = vunpack.c.l.b16 %v9478
    %v9528 = vunpack.c.l.b16 %v9479
    %v9529 = vunpack.c.l.b16 %v9480
    %v9530 = vunpack.c.l.b16 %v9481
    %v9531 = vunpack.c.l.b16 %v9482
    %v9532 = vunpack.c.l.b16 %v9483
    %v9533 = vunpack.c.l.b16 %v9484
    %v9534 = vunpack.c.l.b16 %v9485
    %v9535 = vunpack.c.l.b16 %v9486
    %v9536 = vunpack.c.l.b16 %v9487
    %v9537 = vunpack.c.l.b16 %v9488
    %v9538 = vunpack.c.l.b16 %v9489
    %v9539 = vunpack.c.l.b16 %v9490
    %v9540 = vunpack.c.l.b16 %v9491
    %v9541 = vunpack.c.l.b16 %v9492
    %v9542 = vunpack.c.l.b16 %v9493
    %v9543 = vunpack.c.l.b16 %v9494
    %v9544 = vunpack.c.l.b16 %v9495
    %v9545 = vunpack.c.l.b16 %v9496
    %v9546 = vpack.c.b16 %v9527, %v9526
    %v9547 = vpack.c.b16 %v9529, %v9528
    %v9548 = vpack.c.b16 %v9531, %v9530
    %v9549 = vpack.c.b16 %v9533, %v9532
    %v9550 = vpack.c.b16 %v9535, %v9534
    %v9551 = vpack.c.b16 %v9537, %v9536
    %v9552 = vpack.c.b16 %v9539, %v9538
    %v9553 = vpack.c.b16 %v9541, %v9540
    %v9554 = vpack.c.b16 %v9543, %v9542
    %v9555 = vpack.c.b16 %v9545, %v9544
    %v9567 = vsel %vm218, %v9504, 0
    %9569 = vmatprep.subr.bf16.mxu0 0
    %9570 = vmatpush1.bf16.msra.mxu0 %v9553
    %9571 = vmatprep.subr.bf16.mxu0 0
    %9572 = vmatpush1.bf16.msra.mxu0 %v9552
    %9573 = vmatprep.subr.bf16.mxu0 0
    %9574 = vmatpush1.bf16.msra.mxu0 %v9551
    %9575 = vmatprep.subr.bf16.mxu0 0
    %9576 = vmatpush1.bf16.msra.mxu0 %v9550
    %9577 = vmatprep.subr.bf16.mxu0 0
    %9578 = vmatpush1.bf16.msra.mxu0 %v9549
    %9579 = vmatprep.subr.bf16.mxu0 0
    %9580 = vmatpush1.bf16.msra.mxu0 %v9548
    %9581 = vmatprep.subr.bf16.mxu0 0
    %9582 = vmatpush1.bf16.msra.mxu0 %v9547
    %9583 = vmatprep.subr.bf16.mxu0 0
    %9584 = vmatpush1.bf16.msra.mxu0 %v9546
    %9585 = vmatprep.subr.bf16.mxu0 0
    %9586 = vmatpush2.bf16.msra.mxu0 0
    %9587 = vmatprep.subr.bf16.mxu0 0
    %9588 = vmatpush2.bf16.msra.mxu0 0
    %9589 = vmatprep.subr.bf16.mxu0 0
    %9590 = vmatpush2.bf16.msra.mxu0 0
    %9591 = vmatprep.subr.bf16.mxu0 0
    %9592 = vmatpush2.bf16.msra.mxu0 0
    %9593 = vmatprep.subr.bf16.mxu0 0
    %9594 = vmatpush2.bf16.msra.mxu0 0
    %9595 = vmatprep.subr.bf16.mxu0 0
    %9596 = vmatpush2.bf16.msra.mxu0 0
    %9597 = vmatprep.subr.bf16.mxu0 0
    %9598 = vmatpush2.bf16.msra.mxu0 %v9555
    %9599 = vmatprep.subr.bf16.mxu0 0
    %9600 = vmatpush2.bf16.msra.mxu0 %v9554
    %9601 = vmatprep.mubr.bf16.mxu0 %v9567
    %9602 = vmatmul.mubr.bf16.gmra.mxu0 %v9503
    %v9603 = vpop.f32.mrf.mxu0
    %v9604 = vadd.f32 0.0, %v9603
    %v9605 = vpop.f32.mrf.mxu0
    %v9606 = vpop.f32.mrf.mxu0
    %v9607 = vpop.f32.mrf.mxu0
    %9608 = vdwg.mxu0
    %v9609 = vadd.f32 %v9471, %v9604
    %s9610 = scalar_lea.vmem %s7, 240
    %v9611 = vld [vmem:[%s9610] sm:$0xf]
    %v9612 = vld [vmem:[%s9610 + $0x4] sm:$0xf]
    %v9613 = vld [vmem:[%s9610 + $0x8] sm:$0xf]
    %v9614 = vld [vmem:[%s9610 + $0xc] sm:$0xf]
    %v9615 = vld [vmem:[%s9610 + $0x10] sm:$0xf]
    %v9616 = vld [vmem:[%s9610 + $0x14] sm:$0xf]
    %v9617 = vld [vmem:[%s9610 + $0x18] sm:$0xf]
    %v9618 = vld [vmem:[%s9610 + $0x1c] sm:$0xf]
    %v9619 = vld [vmem:[%s9610 + $0x20] sm:$0xf]
    %v9620 = vld [vmem:[%s9610 + $0x24] sm:$0xf]
    %v9621 = vld [vmem:[%s9610 + $0x28] sm:$0xf]
    %v9622 = vld [vmem:[%s9610 + $0x2c] sm:$0xf]
    %v9623 = vld [vmem:[%s9610 + $0x30] sm:$0xf]
    %v9624 = vld [vmem:[%s9610 + $0x34] sm:$0xf]
    %v9625 = vld [vmem:[%s9610 + $0x38] sm:$0xf]
    %v9626 = vld [vmem:[%s9610 + $0x3c] sm:$0xf]
    %v9627 = vld [vmem:[%s9610 + $0x40] sm:$0xf]
    %v9628 = vld [vmem:[%s9610 + $0x44] sm:$0xf]
    %v9629 = vld [vmem:[%s9610 + $0x48] sm:$0xf]
    %v9630 = vld [vmem:[%s9610 + $0x4c] sm:$0xf]
    %v9631 = vrot.slane %v9249, 6
    %v9632 = vrot.slane %v9251, 5
    %v9633 = vsel %vm9255, %v9632, %v9631
    %v9634 = vrot.slane %v9250, 6
    %v9635 = vrot.slane %v9252, 5
    %v9636 = vsel %vm9255, %v9635, %v9634
    %v9637 = vpack.c.b16 %v9633, %v9633
    %v9638 = vpack.c.b16 %v9636, %v9636
    %v9660 = vunpack.c.l.b16 %v9611
    %v9661 = vunpack.c.l.b16 %v9612
    %v9662 = vunpack.c.l.b16 %v9613
    %v9663 = vunpack.c.l.b16 %v9614
    %v9664 = vunpack.c.l.b16 %v9615
    %v9665 = vunpack.c.l.b16 %v9616
    %v9666 = vunpack.c.l.b16 %v9617
    %v9667 = vunpack.c.l.b16 %v9618
    %v9668 = vunpack.c.l.b16 %v9619
    %v9669 = vunpack.c.l.b16 %v9620
    %v9670 = vunpack.c.l.b16 %v9621
    %v9671 = vunpack.c.l.b16 %v9622
    %v9672 = vunpack.c.l.b16 %v9623
    %v9673 = vunpack.c.l.b16 %v9624
    %v9674 = vunpack.c.l.b16 %v9625
    %v9675 = vunpack.c.l.b16 %v9626
    %v9676 = vunpack.c.l.b16 %v9627
    %v9677 = vunpack.c.l.b16 %v9628
    %v9678 = vunpack.c.l.b16 %v9629
    %v9679 = vunpack.c.l.b16 %v9630
    %v9680 = vpack.c.b16 %v9661, %v9660
    %v9681 = vpack.c.b16 %v9663, %v9662
    %v9682 = vpack.c.b16 %v9665, %v9664
    %v9683 = vpack.c.b16 %v9667, %v9666
    %v9684 = vpack.c.b16 %v9669, %v9668
    %v9685 = vpack.c.b16 %v9671, %v9670
    %v9686 = vpack.c.b16 %v9673, %v9672
    %v9687 = vpack.c.b16 %v9675, %v9674
    %v9688 = vpack.c.b16 %v9677, %v9676
    %v9689 = vpack.c.b16 %v9679, %v9678
    %v9701 = vsel %vm218, %v9638, 0
    %9703 = vmatprep.subr.bf16.mxu0 0
    %9704 = vmatpush1.bf16.msra.mxu0 %v9687
    %9705 = vmatprep.subr.bf16.mxu0 0
    %9706 = vmatpush1.bf16.msra.mxu0 %v9686
    %9707 = vmatprep.subr.bf16.mxu0 0
    %9708 = vmatpush1.bf16.msra.mxu0 %v9685
    %9709 = vmatprep.subr.bf16.mxu0 0
    %9710 = vmatpush1.bf16.msra.mxu0 %v9684
    %9711 = vmatprep.subr.bf16.mxu0 0
    %9712 = vmatpush1.bf16.msra.mxu0 %v9683
    %9713 = vmatprep.subr.bf16.mxu0 0
    %9714 = vmatpush1.bf16.msra.mxu0 %v9682
    %9715 = vmatprep.subr.bf16.mxu0 0
    %9716 = vmatpush1.bf16.msra.mxu0 %v9681
    %9717 = vmatprep.subr.bf16.mxu0 0
    %9718 = vmatpush1.bf16.msra.mxu0 %v9680
    %9719 = vmatprep.subr.bf16.mxu0 0
    %9720 = vmatpush2.bf16.msra.mxu0 0
    %9721 = vmatprep.subr.bf16.mxu0 0
    %9722 = vmatpush2.bf16.msra.mxu0 0
    %9723 = vmatprep.subr.bf16.mxu0 0
    %9724 = vmatpush2.bf16.msra.mxu0 0
    %9725 = vmatprep.subr.bf16.mxu0 0
    %9726 = vmatpush2.bf16.msra.mxu0 0
    %9727 = vmatprep.subr.bf16.mxu0 0
    %9728 = vmatpush2.bf16.msra.mxu0 0
    %9729 = vmatprep.subr.bf16.mxu0 0
    %9730 = vmatpush2.bf16.msra.mxu0 0
    %9731 = vmatprep.subr.bf16.mxu0 0
    %9732 = vmatpush2.bf16.msra.mxu0 %v9689
    %9733 = vmatprep.subr.bf16.mxu0 0
    %9734 = vmatpush2.bf16.msra.mxu0 %v9688
    %9735 = vmatprep.mubr.bf16.mxu0 %v9701
    %9736 = vmatmul.mubr.bf16.gmra.mxu0 %v9637
    %v9737 = vpop.f32.mrf.mxu0
    %v9738 = vadd.f32 0.0, %v9737
    %v9739 = vpop.f32.mrf.mxu0
    %v9740 = vpop.f32.mrf.mxu0
    %v9741 = vpop.f32.mrf.mxu0
    %9742 = vdwg.mxu0
    %v9743 = vadd.f32 %v9609, %v9738
    %v9748 = vrot.slane %v9154, 1
    %v9749 = vrot.slane %v9155, 1
    %v9750 = vrot.slane %v9158, 1
    %v9751 = vrot.slane %v9159, 1
    %v9756 = vmax.f32 %v9154, %v9748
    %v9757 = vmax.f32 %v9155, %v9749
    %v9758 = vmax.f32 %v9158, %v9750
    %v9759 = vmax.f32 %v9159, %v9751
    %v9760 = vadd.f32 %v9756, %v9181
    %v9761 = vadd.f32 %v9757, %v9185
    %v9762 = vadd.f32 %v9758, %v9181
    %v9763 = vadd.f32 %v9759, %v9185
    %v9764 = vmul.f32 %v9760, 0.1
    %v9765 = vmul.f32 %v9761, 0.1
    %v9766 = vmul.f32 %v9762, 0.1
    %v9767 = vmul.f32 %v9763, 0.1
    %v9768 = vmax.f32 %v9760, %v9764
    %v9769 = vmax.f32 %v9761, %v9765
    %v9770 = vmax.f32 %v9762, %v9766
    %v9771 = vmax.f32 %v9763, %v9767
    %v9772 = vpack.c.bf16 %v9768, %v9768
    %v9773 = vpack.c.bf16 %v9769, %v9769
    %v9774 = vpack.c.bf16 %v9770, %v9770
    %v9775 = vpack.c.bf16 %v9771, %v9771
    %s9776 = scalar_lea.vmem %s7, 320
    %v9777 = vld [vmem:[%s9776] sm:$0xf]
    %v9778 = vld [vmem:[%s9776 + $0x4] sm:$0xf]
    %v9779 = vld [vmem:[%s9776 + $0x8] sm:$0xf]
    %v9780 = vld [vmem:[%s9776 + $0xc] sm:$0xf]
    %v9781 = vld [vmem:[%s9776 + $0x10] sm:$0xf]
    %v9782 = vld [vmem:[%s9776 + $0x14] sm:$0xf]
    %v9783 = vld [vmem:[%s9776 + $0x18] sm:$0xf]
    %v9784 = vld [vmem:[%s9776 + $0x1c] sm:$0xf]
    %v9785 = vld [vmem:[%s9776 + $0x20] sm:$0xf]
    %v9786 = vld [vmem:[%s9776 + $0x24] sm:$0xf]
    %v9787 = vld [vmem:[%s9776 + $0x28] sm:$0xf]
    %v9788 = vld [vmem:[%s9776 + $0x2c] sm:$0xf]
    %v9789 = vld [vmem:[%s9776 + $0x30] sm:$0xf]
    %v9790 = vld [vmem:[%s9776 + $0x34] sm:$0xf]
    %v9791 = vld [vmem:[%s9776 + $0x38] sm:$0xf]
    %v9792 = vld [vmem:[%s9776 + $0x3c] sm:$0xf]
    %v9793 = vld [vmem:[%s9776 + $0x40] sm:$0xf]
    %v9794 = vld [vmem:[%s9776 + $0x44] sm:$0xf]
    %v9795 = vld [vmem:[%s9776 + $0x48] sm:$0xf]
    %v9796 = vld [vmem:[%s9776 + $0x4c] sm:$0xf]
    %v9801 = vunpack.c.l.b16 %v9772
    %v9802 = vunpack.c.l.b16 %v9773
    %v9803 = vunpack.c.l.b16 %v9774
    %v9804 = vunpack.c.l.b16 %v9775
    %v9805 = vrot.slane %v9803, 7
    %v9806 = vsel %vm9255, %v9805, %v9801
    %v9807 = vrot.slane %v9804, 7
    %v9808 = vsel %vm9255, %v9807, %v9802
    %v9809 = vpack.c.b16 %v9806, %v9806
    %v9810 = vpack.c.b16 %v9808, %v9808
    %v9832 = vunpack.c.l.b16 %v9777
    %v9833 = vunpack.c.l.b16 %v9778
    %v9834 = vunpack.c.l.b16 %v9779
    %v9835 = vunpack.c.l.b16 %v9780
    %v9836 = vunpack.c.l.b16 %v9781
    %v9837 = vunpack.c.l.b16 %v9782
    %v9838 = vunpack.c.l.b16 %v9783
    %v9839 = vunpack.c.l.b16 %v9784
    %v9840 = vunpack.c.l.b16 %v9785
    %v9841 = vunpack.c.l.b16 %v9786
    %v9842 = vunpack.c.l.b16 %v9787
    %v9843 = vunpack.c.l.b16 %v9788
    %v9844 = vunpack.c.l.b16 %v9789
    %v9845 = vunpack.c.l.b16 %v9790
    %v9846 = vunpack.c.l.b16 %v9791
    %v9847 = vunpack.c.l.b16 %v9792
    %v9848 = vunpack.c.l.b16 %v9793
    %v9849 = vunpack.c.l.b16 %v9794
    %v9850 = vunpack.c.l.b16 %v9795
    %v9851 = vunpack.c.l.b16 %v9796
    %v9852 = vpack.c.b16 %v9833, %v9832
    %v9853 = vpack.c.b16 %v9835, %v9834
    %v9854 = vpack.c.b16 %v9837, %v9836
    %v9855 = vpack.c.b16 %v9839, %v9838
    %v9856 = vpack.c.b16 %v9841, %v9840
    %v9857 = vpack.c.b16 %v9843, %v9842
    %v9858 = vpack.c.b16 %v9845, %v9844
    %v9859 = vpack.c.b16 %v9847, %v9846
    %v9860 = vpack.c.b16 %v9849, %v9848
    %v9861 = vpack.c.b16 %v9851, %v9850
    %v9873 = vsel %vm218, %v9810, 0
    %9875 = vmatprep.subr.bf16.mxu0 0
    %9876 = vmatpush1.bf16.msra.mxu0 %v9859
    %9877 = vmatprep.subr.bf16.mxu0 0
    %9878 = vmatpush1.bf16.msra.mxu0 %v9858
    %9879 = vmatprep.subr.bf16.mxu0 0
    %9880 = vmatpush1.bf16.msra.mxu0 %v9857
    %9881 = vmatprep.subr.bf16.mxu0 0
    %9882 = vmatpush1.bf16.msra.mxu0 %v9856
    %9883 = vmatprep.subr.bf16.mxu0 0
    %9884 = vmatpush1.bf16.msra.mxu0 %v9855
    %9885 = vmatprep.subr.bf16.mxu0 0
    %9886 = vmatpush1.bf16.msra.mxu0 %v9854
    %9887 = vmatprep.subr.bf16.mxu0 0
    %9888 = vmatpush1.bf16.msra.mxu0 %v9853
    %9889 = vmatprep.subr.bf16.mxu0 0
    %9890 = vmatpush1.bf16.msra.mxu0 %v9852
    %9891 = vmatprep.subr.bf16.mxu0 0
    %9892 = vmatpush2.bf16.msra.mxu0 0
    %9893 = vmatprep.subr.bf16.mxu0 0
    %9894 = vmatpush2.bf16.msra.mxu0 0
    %9895 = vmatprep.subr.bf16.mxu0 0
    %9896 = vmatpush2.bf16.msra.mxu0 0
    %9897 = vmatprep.subr.bf16.mxu0 0
    %9898 = vmatpush2.bf16.msra.mxu0 0
    %9899 = vmatprep.subr.bf16.mxu0 0
    %9900 = vmatpush2.bf16.msra.mxu0 0
    %9901 = vmatprep.subr.bf16.mxu0 0
    %9902 = vmatpush2.bf16.msra.mxu0 0
    %9903 = vmatprep.subr.bf16.mxu0 0
    %9904 = vmatpush2.bf16.msra.mxu0 %v9861
    %9905 = vmatprep.subr.bf16.mxu0 0
    %9906 = vmatpush2.bf16.msra.mxu0 %v9860
    %9907 = vmatprep.mubr.bf16.mxu0 %v9873
    %9908 = vmatmul.mubr.bf16.gmra.mxu0 %v9809
    %v9909 = vpop.f32.mrf.mxu0
    %v9910 = vadd.f32 0.0, %v9909
    %v9911 = vpop.f32.mrf.mxu0
    %v9912 = vpop.f32.mrf.mxu0
    %v9913 = vpop.f32.mrf.mxu0
    %9914 = vdwg.mxu0
    %v9915 = vadd.f32 %v9743, %v9910
    %v9916 = vld [vmem:[%s8] sm:$0x1]
    %v9918 = vlaneseq
    %v9919 = vshrl.u32 %v9918, 7
    %v9920 = vsub.s32 0, %v9919
    %v9921 = vrot.slane %v9916, %v9920
    %v9923 = vadd.f32 %v9915, %v9921
    %v9924 = vmul.f32 %v9923, 0.1
    %v9925 = vmax.f32 %v9923, %v9924
    %v9926 = vpack.c.bf16 %v9925, %v9925
    %v9927 = vld [vmem:[%s9] sm:$0xf]
    %v9928 = vld [vmem:[%s9 + $0x4] sm:$0xf]
    %v9929 = vld [vmem:[%s9 + $0x8] sm:$0xf]
    %v9930 = vld [vmem:[%s9 + $0xc] sm:$0xf]
    %v9931 = vld [vmem:[%s9 + $0x10] sm:$0xf]
    %v9932 = vld [vmem:[%s9 + $0x14] sm:$0xf]
    %v9933 = vld [vmem:[%s9 + $0x18] sm:$0xf]
    %v9934 = vld [vmem:[%s9 + $0x1c] sm:$0xf]
    %v9935 = vld [vmem:[%s9 + $0x20] sm:$0xf]
    %v9936 = vld [vmem:[%s9 + $0x24] sm:$0xf]
    %v9937 = vld [vmem:[%s9 + $0x28] sm:$0x3]
    %v9938 = vld [vmem:[%s10] sm:$0x1]
    %v9940 = vlaneseq
    %v9941 = vshrl.u32 %v9940, 7
    %v9942 = vsub.s32 0, %v9941
    %v9943 = vrot.slane %v9938, %v9942
    %v9956 = vunpack.c.l.b16 %v9927
    %v9957 = vunpack.c.l.b16 %v9928
    %v9958 = vunpack.c.l.b16 %v9929
    %v9959 = vunpack.c.l.b16 %v9930
    %v9960 = vunpack.c.l.b16 %v9931
    %v9961 = vunpack.c.l.b16 %v9932
    %v9962 = vunpack.c.l.b16 %v9933
    %v9963 = vunpack.c.l.b16 %v9934
    %v9964 = vunpack.c.l.b16 %v9935
    %v9965 = vunpack.c.l.b16 %v9936
    %v9966 = vunpack.c.l.b16 %v9937
    %v9967 = vpack.c.b16 %v9957, %v9956
    %v9968 = vpack.c.b16 %v9959, %v9958
    %v9969 = vpack.c.b16 %v9961, %v9960
    %v9970 = vpack.c.b16 %v9963, %v9962
    %v9971 = vpack.c.b16 %v9965, %v9964
    %v9972 = vpack.c.b16 %v9966, %v9966
    %vm9978 = vcmask 687104
    %v9980 = vsel %vm9978, %v9926, 0
    %v9983 = vsel %vm4195, %v9972, 0
    %9985 = vmatprep.subr.bf16.mxu0 0
    %9986 = vmatpush1.bf16.msra.mxu0 0
    %9987 = vmatprep.subr.bf16.mxu0 0
    %9988 = vmatpush1.bf16.msra.mxu0 0
    %9989 = vmatprep.subr.bf16.mxu0 0
    %9990 = vmatpush1.bf16.msra.mxu0 %v9983
    %9991 = vmatprep.subr.bf16.mxu0 0
    %9992 = vmatpush1.bf16.msra.mxu0 %v9971
    %9993 = vmatprep.subr.bf16.mxu0 0
    %9994 = vmatpush1.bf16.msra.mxu0 %v9970
    %9995 = vmatprep.subr.bf16.mxu0 0
    %9996 = vmatpush1.bf16.msra.mxu0 %v9969
    %9997 = vmatprep.subr.bf16.mxu0 0
    %9998 = vmatpush1.bf16.msra.mxu0 %v9968
    %9999 = vmatprep.subr.bf16.mxu0 0
    %10000 = vmatpush1.bf16.msra.mxu0 %v9967
    %10001 = vmatprep.subr.bf16.mxu0 0
    %10002 = vmatpush2.bf16.msra.mxu0 0
    %10003 = vmatprep.subr.bf16.mxu0 0
    %10004 = vmatpush2.bf16.msra.mxu0 0
    %10005 = vmatprep.subr.bf16.mxu0 0
    %10006 = vmatpush2.bf16.msra.mxu0 0
    %10007 = vmatprep.subr.bf16.mxu0 0
    %10008 = vmatpush2.bf16.msra.mxu0 0
    %10009 = vmatprep.subr.bf16.mxu0 0
    %10010 = vmatpush2.bf16.msra.mxu0 0
    %10011 = vmatprep.subr.bf16.mxu0 0
    %10012 = vmatpush2.bf16.msra.mxu0 0
    %10013 = vmatprep.subr.bf16.mxu0 0
    %10014 = vmatpush2.bf16.msra.mxu0 0
    %10015 = vmatprep.subr.bf16.mxu0 0
    %10016 = vmatpush2.bf16.msra.mxu0 0
    %10017 = vmatprep.mubr.bf16.mxu0 0
    %10018 = vmatmul.mubr.bf16.gmra.mxu0 %v9980
    %v10019 = vpop.f32.mrf.mxu0
    %v10020 = vadd.f32 %v9943, %v10019
    %v10021 = vpop.f32.mrf.mxu0
    %v10022 = vpop.f32.mrf.mxu0
    %v10023 = vpop.f32.mrf.mxu0
    %10024 = vdwg.mxu0
    %10025 = vst [vmem:[#allocation3] sm:$0x3] %v10020
    // Predicated region
    $region46: #{glenet5_forward.1} parent=1 // pred_check
      _
    $region47: #{glenet5_forward.1} parent=1 // pred_check_branch
      %10027 = sbr.rel (0) target = $region49
    $region48: #{glenet5_forward.1} parent=1 // pred_region
      %s10029 = ssub.s32 32, 32
      %10030 = vsyncadd [#allocation4], %s10029
      %s10032 = sshll.u32 [#allocation3], 4
      %s10033 = int_to_ptr.vmem [resolvable:$true] %s10032
      %10035 = dma.vmem_to_hbm [thread:$0]  %s10033, 32, %s11, [#allocation4]
    $region49: #{glenet5_forward.1} parent=1 // pred_fallthru
      _
    // Predicated region
    $region50: #{glenet5_forward.1} parent=1 // pred_check
      _
    $region51: #{glenet5_forward.1} parent=1 // pred_check_branch
      %10037 = sbr.rel (0) target = $region53
    $region52: #{glenet5_forward.1} parent=1 // pred_region
      %10038 = dma.done [#allocation4], 32
    $region53: #{glenet5_forward.1} parent=1 // pred_fallthru
      _
    %10039 = vsyncpa [#allocation4], 1

</llo_original>
